<compile_context>
chip_gen: v6e
topology: v6e:2x2x1
jax: 0.10.0
libtpu: 0.0.40
codegen_flags: <defaults>
</compile_context>

<pallas_src>
import functools

import jax
import jax.numpy as jnp
from jax import lax
from jax.experimental import pallas as pl
from jax.experimental.pallas import tpu as pltpu


def _law_attention_kernel(pre_ref, value_ref, query_ref, taps_ref, len_ref,
                          w_dec_ref, w_loc_ref, w_gvec_ref, b_gvec_ref,
                          ctx_ref, attw_ref,
                          m_sc, l_sc, acc_sc, *, sharpening):
    ti = pl.program_id(1)                     # T-tile index (reduction axis)
    nt = pl.num_programs(1)
    BB, Tt, Dp = value_ref.shape              # batch block, T tile, padded D

    @pl.when(ti == 0)
    def _init():
        m_sc[...] = jnp.full_like(m_sc, -1e30)
        l_sc[...] = jnp.zeros_like(l_sc)
        acc_sc[...] = jnp.zeros_like(acc_sc)
        attw_ref[...] = jnp.zeros_like(attw_ref)

    # dec_z_tiled = mlp_dec(dec_z)  (Linear, no bias) -- tiny MXU matmul
    dec = jnp.dot(query_ref[...].reshape(BB, Dp), w_dec_ref[...],
                  preferred_element_type=jnp.float32)                 # (BB, Dp)

    # fused loc_conv + mlp_att: one lane-dense MXU contraction over the taps
    att_conv = jnp.einsum('btk,kd->btd', taps_ref[...], w_loc_ref[...],
                          preferred_element_type=jnp.float32)         # (BB,Tt,Dp)

    # pre_compute_enc_h streamed in compute dtype (bf16) -> upcast just in time
    act = jnp.tanh(att_conv + pre_ref[...].astype(jnp.float32)
                   + dec[:, None, :])                                  # (BB,Tt,Dp)

    # e = gvec(act).squeeze(-1): MXU GEMV instead of VPU-mul + XLU lane reduce.
    # w_gvec is zero-padded to 8 output rows; summing them is exact.
    e3 = jnp.einsum('btd,od->bto', act, w_gvec_ref[...],
                    preferred_element_type=jnp.float32)                # (BB,Tt,8)
    e = jnp.sum(e3, axis=-1) + b_gvec_ref[...]                         # (BB, Tt)

    # pad-masked, sharpened logits for this T tile (finite mask constant)
    lens = len_ref[...].reshape(BB, 1)                                 # (BB, 1)
    tpos = ti * Tt + lax.broadcasted_iota(jnp.int32, (BB, Tt), 1)
    valid = tpos < lens
    scaled = jnp.where(valid, sharpening * e, jnp.float32(-1e30))

    # ---- online softmax update across T tiles --------------------------------
    m_prev = m_sc[...]
    m_new = jnp.maximum(m_prev, jnp.max(scaled, axis=1, keepdims=True))
    alpha = jnp.exp(m_prev - m_new)                                    # (BB, 1)
    p = jnp.where(valid, jnp.exp(scaled - m_new), 0.0)                 # (BB, Tt)

    attw_ref[...] = attw_ref[...] * alpha[None, :, :]    # rescale earlier tiles
    attw_ref[ti] = p                                      # unnormalised tile
    l_sc[...] = alpha * l_sc[...] + jnp.sum(p, axis=1, keepdims=True)
    # context accumulation on the MXU (p cast to value dtype; keep f32 if the
    # downstream consumer is precision-sensitive)
    acc_sc[...] = alpha * acc_sc[...] + jnp.einsum(
        'bqt,btd->bqd',
        p.reshape(BB, 1, Tt).astype(value_ref.dtype), value_ref[...],
        preferred_element_type=jnp.float32).reshape(BB, Dp)
    m_sc[...] = m_new

    @pl.when(ti == nt - 1)
    def _finalize():
        # one EUP reciprocal per row; the clamp guards zero-length rows -> the
        # outputs are exactly 0 instead of NaN.
        inv_l = pl.reciprocal(jnp.maximum(l_sc[...], jnp.float32(1e-30)),
                              approx=False)                             # (BB, 1)
        ctx_ref[...] = (acc_sc[...] * inv_l).astype(ctx_ref.dtype)
        attw_ref[...] = attw_ref[...] * inv_l[None, :, :]


def _round_up(x, m):
    return ((int(x) + m - 1) // m) * m


def _pad_to(x, shape):
    pads = [(0, int(s) - int(d)) for s, d in zip(shape, x.shape)]
    return jnp.pad(x, pads)


def _vmem_bytes_estimate(b_blk, t_blk, t_pad, d_pad, kp, cd_bytes):
    # double-buffered streamed tiles: pre_enc + value (d_pad lanes) + taps (kp)
    streamed = 2 * b_blk * t_blk * cd_bytes * (2 * d_pad + kp)
    weights = 2 * cd_bytes * (d_pad * d_pad + kp * d_pad) + 4 * (9 * d_pad + 1)
    small_in = 2 * b_blk * (d_pad * cd_bytes + 4)          # query + lengths
    outputs = 2 * b_blk * 4 * (t_pad + d_pad)              # attw tiles + ctx
    scratch = 4 * b_blk * (d_pad + 2)                      # m / l / acc
    return streamed + weights + small_in + outputs + scratch


def location_aware_attention(value, query, lengths, params, *,
                             sharpening_factor, aconv_filts,
                             att_prev=None, pre_enc=None,
                             b_block=8, t_block=None,
                             compute_dtype=jnp.bfloat16,
                             vmem_budget_bytes=32 << 20,
                             vmem_limit_bytes=None):
    """Location-aware attention forward (att_prev=None / no window constraint).

    value: (B, T, D) encoder states; query: (B, D) decoder state;
    lengths: (B,) valid frame counts.
    pre_enc: optional cached mlp_enc(value) (B, T, D) -- pass it inside a
             decoder loop to avoid recomputing the O(B*T*D^2) projection.
    compute_dtype: dtype of the streamed tensors / MXU operands (bf16 default);
             tanh, softmax and accumulation stay f32.
    b_block / t_block: batch / time tile sizes. t_block is auto-sized from
             vmem_budget_bytes when None (raise the budget on v5e/v6e's
             128 MiB VMEM, keep <= ~48 MiB on v7x).  On v7x (2 TensorCores)
             prefer b_block <= B/2 so the "parallel" batch axis has >=2 steps.
    """
    B, T, D = value.shape
    F_ = int(aconv_filts)
    K = params['w_conv'].shape[0]
    assert K == 2 * F_ + 1
    lengths = lengths.astype(jnp.int32)

    cd = jnp.dtype(compute_dtype)
    cd_bytes = cd.itemsize

    # ---- lane / sublane padding & tile sizing --------------------------------
    D_pad = _round_up(D, 128)
    Kp = _round_up(K, 8)
    b_block = min(_round_up(max(1, int(b_block)), 8), _round_up(B, 8))
    B_pad = _round_up(B, b_block)

    if t_block is None:
        t_block = min(_round_up(T, 128), 512)
        while (t_block > 128 and
               _vmem_bytes_estimate(b_block, t_block, _round_up(T, t_block),
                                    D_pad, Kp, cd_bytes) > vmem_budget_bytes):
            t_block -= 128
    else:
        t_block = max(128, _round_up(int(t_block), 128))
    T_pad = _round_up(T, t_block)
    nb, nt = B_pad // b_block, T_pad // t_block

    est = _vmem_bytes_estimate(b_block, t_block, T_pad, D_pad, Kp, cd_bytes)
    if vmem_limit_bytes is None:
        vmem_limit_bytes = int(min(max(3 * est // 2 + (4 << 20), 32 << 20),
                                   96 << 20))

    # ---- plain-JAX glue (mirrors the PyTorch host-side setup) ----------------
    lens_p = _pad_to(lengths, (B_pad,))
    lens3 = lens_p.reshape(B_pad, 1, 1)

    # pre_compute_enc_h = mlp_enc(enc_h): computed once, cacheable across steps
    if pre_enc is None:
        pre_enc = (value.reshape(B * T, D) @ params['w_enc']).reshape(B, T, D)
        pre_enc = pre_enc + params['b_enc'][None, :, :]
    pre_p = _pad_to(pre_enc, (B_pad, T_pad, D_pad)).astype(cd)
    value_p = _pad_to(value, (B_pad, T_pad, D_pad)).astype(cd)
    query_p = _pad_to(query, (B_pad, D_pad)).astype(cd).reshape(B_pad, 1, D_pad)

    # att_prev = None path: uniform attention over the valid frames
    if att_prev is None:
        tpos = jnp.arange(T_pad)
        valid = tpos[None, :] < lens_p[:, None]
        att_prev_p = (valid.astype(jnp.float32)
                      / jnp.maximum(lens_p, 1)[:, None].astype(jnp.float32))
    else:
        att_prev_p = _pad_to(att_prev.astype(jnp.float32), (B_pad, T_pad))

    # conv taps: taps[b, t, k] = zero-padded att_prev[b, t + k - F]
    a_pad = jnp.pad(att_prev_p, ((0, 0), (F_, F_)))
    taps = jnp.stack([a_pad[:, k:k + T_pad] for k in range(K)], axis=-1)
    taps_p = _pad_to(taps, (B_pad, T_pad, Kp)).astype(cd)

    # fused loc_conv + mlp_att weight: w_loc = w_conv @ w_att  (K, D)
    w_loc_p = _pad_to(params['w_conv'] @ params['w_att'], (Kp, D_pad)).astype(cd)
    w_dec_p = _pad_to(params['w_dec'], (D_pad, D_pad)).astype(cd)
    w_gvec_p = _pad_to(params['w_gvec'], (8, D_pad)).astype(jnp.float32)
    b_gvec = params['b_gvec'].reshape(1, 1).astype(jnp.float32)

    kernel = functools.partial(_law_attention_kernel,
                               sharpening=float(sharpening_factor))

    bt_map = lambda b, t: (b, t, 0)     # batch+time streamed tensors
    b_map = lambda b, t: (b, 0, 0)      # per-batch resident tensors
    w_map = lambda b, t: (0, 0)         # resident weights

    grid_spec = pltpu.PrefetchScalarGridSpec(
        num_scalar_prefetch=0,
        grid=(nb, nt),
        in_specs=[
            pl.BlockSpec((b_block, t_block, D_pad), bt_map),   # pre_compute_enc_h
            pl.BlockSpec((b_block, t_block, D_pad), bt_map),   # value (enc_h)
            pl.BlockSpec((b_block, 1, D_pad), b_map),          # query (dec_z)
            pl.BlockSpec((b_block, t_block, Kp), bt_map),      # conv taps
            pl.BlockSpec((b_block, 1, 1), b_map),              # lengths
            pl.BlockSpec((D_pad, D_pad), w_map),               # w_dec
            pl.BlockSpec((Kp, D_pad), w_map),                  # w_loc = w_conv @ w_att
            pl.BlockSpec((8, D_pad), w_map),                   # w_gvec (zero-padded rows)
            pl.BlockSpec((1, 1), w_map),                       # b_gvec
        ],
        out_specs=(
            pl.BlockSpec((b_block, D_pad), lambda b, t: (b, 0)),           # ctx
            pl.BlockSpec((nt, b_block, t_block), lambda b, t: (0, b, 0)),  # attw tiles
        ),
        scratch_shapes=[
            pltpu.VMEM((b_block, 1), jnp.float32),       # running max
            pltpu.VMEM((b_block, 1), jnp.float32),       # running denom
            pltpu.VMEM((b_block, D_pad), jnp.float32),   # ctx accumulator
        ],
    )

    ctx_p, attw_tiles = pl.pallas_call(
        kernel,
        out_shape=(jax.ShapeDtypeStruct((B_pad, D_pad), jnp.float32),
                   jax.ShapeDtypeStruct((nt, B_pad, t_block), jnp.float32)),
        grid_spec=grid_spec,
        compiler_params=pltpu.CompilerParams(
            dimension_semantics=("parallel", "arbitrary"),
            vmem_limit_bytes=int(vmem_limit_bytes)),
    )(pre_p, value_p, query_p, taps_p, lens3,
      w_dec_p, w_loc_p, w_gvec_p, b_gvec)

    ctx = ctx_p[:B, :D]
    attw = jnp.transpose(attw_tiles, (1, 0, 2)).reshape(B_pad, T_pad)[:B, :T]
    return ctx, attw


def _reference(value, query, lengths, params, *, sharpening_factor, aconv_filts):
    """Pure-JAX reference replicating the PyTorch forward (att_prev=None path)."""
    B, T, D = value.shape
    F_ = aconv_filts
    K = params['w_conv'].shape[0]
    lengths = lengths.astype(jnp.int32)

    pre = value @ params['w_enc'] + params['b_enc']             # (B, T, D)
    dec = query @ params['w_dec']                               # (B, D)

    t = jnp.arange(T)
    pad_mask = t[None, :] >= lengths[:, None]
    att_prev = jnp.where(pad_mask, 0.0, 1.0) / lengths[:, None].astype(jnp.float32)
    a_pad = jnp.pad(att_prev, ((0, 0), (F_, F_)))
    taps = jnp.stack([a_pad[:, k:k + T] for k in range(K)], axis=-1)  # (B, T, K)
    conv = taps @ params['w_conv']                              # (B, T, C)
    att_conv = conv @ params['w_att']                           # (B, T, D)

    act = jnp.tanh(att_conv + pre + dec[:, None, :])
    e = jnp.sum(act * params['w_gvec'][None, :, :], axis=-1) + params['b_gvec'][0, 0]
    e = jnp.where(pad_mask, -jnp.inf, e)
    w = jax.nn.softmax(sharpening_factor * e, axis=1)
    ctx = jnp.sum(value * w[:, :, None], axis=1)
    return ctx, w


if __name__ == "__main__":
    # Small shapes consistent with the module (T > 128 exercises the T-tiled
    # online-softmax path with t_block=128).
    B, T, D = 2, 200, 32         # batch, encoder length, d_model
    ACONV_CHANS = 8              # aconv_chans
    ACONV_FILTS = 3              # aconv_filts -> conv kernel K = 7
    K = 2 * ACONV_FILTS + 1
    SHARPENING = 2.0

    key = jax.random.PRNGKey(0)
    ks = jax.random.split(key, 9)

    value = jax.random.normal(ks[0], (B, T, D), jnp.float32)
    query = jax.random.normal(ks[1], (B, D), jnp.float32)
    lengths = jnp.array([T, 137], jnp.int32)

    params = {
        'w_enc': 0.1 * jax.random.normal(ks[2], (D, D), jnp.float32),
        'b_enc': 0.1 * jax.random.normal(ks[3], (1, D), jnp.float32),
        'w_dec': 0.1 * jax.random.normal(ks[4], (D, D), jnp.float32),
        'w_conv': 0.5 * jax.random.normal(ks[5], (K, ACONV_CHANS), jnp.float32),
        'w_att': 0.1 * jax.random.normal(ks[6], (ACONV_CHANS, D), jnp.float32),
        'w_gvec': 0.1 * jax.random.normal(ks[7], (1, D), jnp.float32),
        'b_gvec': 0.1 * jax.random.normal(ks[8], (1, 1), jnp.float32),
    }

    ctx_ref, attw_ref = _reference(
        value, query, lengths, params,
        sharpening_factor=SHARPENING, aconv_filts=ACONV_FILTS)

    # --- f32 path, t_block=128 -> 2 T tiles (multi-step online softmax) -------
    ctx, attw = location_aware_attention(
        value, query, lengths, params,
        sharpening_factor=SHARPENING, aconv_filts=ACONV_FILTS,
        t_block=128, compute_dtype=jnp.float32)
    jax.block_until_ready((ctx, attw))

    assert ctx.shape == (B, D) and attw.shape == (B, T)
    assert jnp.allclose(ctx, ctx_ref, rtol=5e-5, atol=5e-5), "context mismatch"
    assert jnp.allclose(attw, attw_ref, rtol=5e-5, atol=5e-5), "att_weights mismatch"
    # attention weights over padded frames must be exactly zero
    assert float(attw[1, 137:].sum()) == 0.0

    # --- bf16 streamed path (auto t_block, single T tile), looser tolerance ---
    ctx_bf, attw_bf = location_aware_attention(
        value, query, lengths, params,
        sharpening_factor=SHARPENING, aconv_filts=ACONV_FILTS,
        compute_dtype=jnp.bfloat16)
    jax.block_until_ready((ctx_bf, attw_bf))
    assert jnp.allclose(ctx_bf, ctx_ref, rtol=5e-2, atol=5e-2), "bf16 context mismatch"
    assert jnp.allclose(attw_bf, attw_ref, rtol=5e-2, atol=5e-2), "bf16 att_weights mismatch"
    assert float(attw_bf[1, 137:].sum()) == 0.0

    print("KERNEL_OK")
</pallas_src>

<mosaic_0001>
module attributes {stable_mosaic.version = 11 : i64} {
  func.func @_law_attention_kernel(%arg0: i32, %arg1: i32, %arg2: memref<8x128x128xf32, #tpu.memory_space<vmem>>, %arg3: memref<8x128x128xf32, #tpu.memory_space<vmem>>, %arg4: memref<8x1x128xf32, #tpu.memory_space<vmem>>, %arg5: memref<8x128x8xf32, #tpu.memory_space<vmem>>, %arg6: memref<8x1x1xi32, #tpu.memory_space<vmem>>, %arg7: memref<128x128xf32, #tpu.memory_space<vmem>>, %arg8: memref<8x128xf32, #tpu.memory_space<vmem>>, %arg9: memref<8x128xf32, #tpu.memory_space<vmem>>, %arg10: memref<1x1xf32, #tpu.memory_space<vmem>>, %arg11: memref<8x128xf32, #tpu.memory_space<vmem>>, %arg12: memref<2x8x128xf32, #tpu.memory_space<vmem>>, %arg13: memref<8x1xf32, #tpu.memory_space<vmem>>, %arg14: memref<8x1xf32, #tpu.memory_space<vmem>>, %arg15: memref<8x128xf32, #tpu.memory_space<vmem>>) attributes {dimension_semantics = [#tpu.dimension_semantics<parallel>, #tpu.dimension_semantics<arbitrary>], iteration_bounds = array<i64: 1, 2>, scalar_prefetch = 0 : i64, scratch_operands = 3 : i64, tpu.core_type = #tpu.core_type<tc>, window_params = [{transform_indices = @transform_0, window_bounds = array<i64: 8, 128, 128>}, {transform_indices = @transform_1, window_bounds = array<i64: 8, 128, 128>}, {transform_indices = @transform_2, window_bounds = array<i64: 8, 1, 128>}, {transform_indices = @transform_3, window_bounds = array<i64: 8, 128, 8>}, {transform_indices = @transform_4, window_bounds = array<i64: 8, 1, 1>}, {pipeline_mode = #tpu.pipeline_mode<synchronous>, transform_indices = @transform_5, window_bounds = array<i64: 128, 128>}, {pipeline_mode = #tpu.pipeline_mode<synchronous>, transform_indices = @transform_6, window_bounds = array<i64: 8, 128>}, {pipeline_mode = #tpu.pipeline_mode<synchronous>, transform_indices = @transform_7, window_bounds = array<i64: 8, 128>}, {pipeline_mode = #tpu.pipeline_mode<synchronous>, transform_indices = @transform_8, window_bounds = array<i64: 1, 1>}, {transform_indices = @transform_9, window_bounds = array<i64: 8, 128>}, {transform_indices = @transform_10, window_bounds = array<i64: 2, 8, 128>}]} {
    %c0_i32 = arith.constant 0 : i32
    %0 = arith.cmpi eq, %arg1, %c0_i32 : i32
    %1 = arith.extui %0 : i1 to i32
    %c0_i32_0 = arith.constant 0 : i32
    %2 = arith.cmpi ne, %1, %c0_i32_0 : i32
    scf.if %2 {
      %cst_53 = arith.constant -1.000000e+30 : f32
      %73 = vector.broadcast %cst_53 : f32 to vector<8x1xf32>
      %c0_54 = arith.constant 0 : index
      %c0_55 = arith.constant 0 : index
      %74 = vector.load %arg13[%c0_54, %c0_55] : memref<8x1xf32, #tpu.memory_space<vmem>>, vector<8x1xf32>
      tpu.vector_store %arg13[%c0_54, %c0_55], %73 {strides = array<i32>} : memref<8x1xf32, #tpu.memory_space<vmem>>, vector<8x1xf32>,
      %cst_56 = arith.constant 0.000000e+00 : f32
      %75 = vector.broadcast %cst_56 : f32 to vector<8x1xf32>
      %c0_57 = arith.constant 0 : index
      %c0_58 = arith.constant 0 : index
      %76 = vector.load %arg14[%c0_57, %c0_58] : memref<8x1xf32, #tpu.memory_space<vmem>>, vector<8x1xf32>
      tpu.vector_store %arg14[%c0_57, %c0_58], %75 {strides = array<i32>} : memref<8x1xf32, #tpu.memory_space<vmem>>, vector<8x1xf32>,
      %cst_59 = arith.constant 0.000000e+00 : f32
      %77 = vector.broadcast %cst_59 : f32 to vector<8x128xf32>
      %c0_60 = arith.constant 0 : index
      %c0_61 = arith.constant 0 : index
      %78 = vector.load %arg15[%c0_60, %c0_61] : memref<8x128xf32, #tpu.memory_space<vmem>>, vector<8x128xf32>
      tpu.vector_store %arg15[%c0_60, %c0_61], %77 {strides = array<i32>} : memref<8x128xf32, #tpu.memory_space<vmem>>, vector<8x128xf32>,
      %cst_62 = arith.constant 0.000000e+00 : f32
      %79 = vector.broadcast %cst_62 : f32 to vector<2x8x128xf32>
      %c0_63 = arith.constant 0 : index
      %c0_64 = arith.constant 0 : index
      %c0_65 = arith.constant 0 : index
      %80 = vector.load %arg12[%c0_63, %c0_64, %c0_65] : memref<2x8x128xf32, #tpu.memory_space<vmem>>, vector<2x8x128xf32>
      tpu.vector_store %arg12[%c0_63, %c0_64, %c0_65], %79 {strides = array<i32>} : memref<2x8x128xf32, #tpu.memory_space<vmem>>, vector<2x8x128xf32>,
    } else {
    }
    %c0 = arith.constant 0 : index
    %c0_1 = arith.constant 0 : index
    %c0_2 = arith.constant 0 : index
    %3 = vector.load %arg4[%c0, %c0_1, %c0_2] : memref<8x1x128xf32, #tpu.memory_space<vmem>>, vector<8x1x128xf32>
    %4 = vector.shape_cast %3 : vector<8x1x128xf32> to vector<8x128xf32>
    %c0_3 = arith.constant 0 : index
    %c0_4 = arith.constant 0 : index
    %5 = vector.load %arg7[%c0_3, %c0_4] : memref<128x128xf32, #tpu.memory_space<vmem>>, vector<128x128xf32>
    %cst = arith.constant dense<0.000000e+00> : vector<8x128xf32>
    %6 = tpu.matmul %4, %5, %cst {dimension_numbers = #tpu.dot_dimension_numbers<[1], [0], [0], [1], [0, 0, 1, 1], [], []>} : vector<8x128xf32>, vector<128x128xf32>, vector<8x128xf32> -> vector<8x128xf32>
    %c0_5 = arith.constant 0 : index
    %c0_6 = arith.constant 0 : index
    %c0_7 = arith.constant 0 : index
    %7 = vector.load %arg5[%c0_5, %c0_6, %c0_7] : memref<8x128x8xf32, #tpu.memory_space<vmem>>, vector<8x128x8xf32>
    %c0_8 = arith.constant 0 : index
    %c0_9 = arith.constant 0 : index
    %8 = vector.load %arg8[%c0_8, %c0_9] : memref<8x128xf32, #tpu.memory_space<vmem>>, vector<8x128xf32>
    "tpu.trace_start"() <{level = 10 : i32, message = "btk,kd->btd"}> : () -> ()
    %cst_10 = arith.constant dense<0.000000e+00> : vector<8x128x128xf32>
    %9 = tpu.matmul %7, %8, %cst_10 {dimension_numbers = #tpu.dot_dimension_numbers<[2], [0], [0, 1], [1], [0, 0, 0, 1, 1, 1], [], []>} : vector<8x128x8xf32>, vector<8x128xf32>, vector<8x128x128xf32> -> vector<8x128x128xf32>
    "tpu.trace_stop"() : () -> ()
    %c0_11 = arith.constant 0 : index
    %c0_12 = arith.constant 0 : index
    %c0_13 = arith.constant 0 : index
    %10 = vector.load %arg2[%c0_11, %c0_12, %c0_13] : memref<8x128x128xf32, #tpu.memory_space<vmem>>, vector<8x128x128xf32>
    %11 = arith.addf %9, %10 : vector<8x128x128xf32>
    %12 = vector.shape_cast %6 : vector<8x128xf32> to vector<8x1x128xf32>
    %13 = vector.broadcast %12 : vector<8x1x128xf32> to vector<8x128x128xf32>
    %14 = arith.addf %11, %13 : vector<8x128x128xf32>
    %15 = math.tanh %14 : vector<8x128x128xf32>
    %c0_14 = arith.constant 0 : index
    %c0_15 = arith.constant 0 : index
    %16 = vector.load %arg9[%c0_14, %c0_15] : memref<8x128xf32, #tpu.memory_space<vmem>>, vector<8x128xf32>
    "tpu.trace_start"() <{level = 10 : i32, message = "btd,od->bto"}> : () -> ()
    %cst_16 = arith.constant dense<0.000000e+00> : vector<8x128x8xf32>
    %17 = tpu.matmul %15, %16, %cst_16 {dimension_numbers = #tpu.dot_dimension_numbers<[2], [1], [0, 1], [0], [0, 0, 0, 1, 1, 0], [], []>} : vector<8x128x128xf32>, vector<8x128xf32>, vector<8x128x8xf32> -> vector<8x128x8xf32>
    "tpu.trace_stop"() : () -> ()
    %cst_17 = arith.constant dense<0.000000e+00> : vector<8x128xf32>
    %18 = vector.multi_reduction <add>, %17, %cst_17 [2] : vector<8x128x8xf32> to vector<8x128xf32>
    %c0_18 = arith.constant 0 : index
    %c0_19 = arith.constant 0 : index
    %19 = vector.load %arg10[%c0_18, %c0_19] : memref<1x1xf32, #tpu.memory_space<vmem>>, vector<1x1xf32>
    %20 = vector.broadcast %19 : vector<1x1xf32> to vector<8x128xf32>
    %21 = arith.addf %18, %20 : vector<8x128xf32>
    %c0_20 = arith.constant 0 : index
    %c0_21 = arith.constant 0 : index
    %c0_22 = arith.constant 0 : index
    %22 = vector.load %arg6[%c0_20, %c0_21, %c0_22] : memref<8x1x1xi32, #tpu.memory_space<vmem>>, vector<8x1x1xi32>
    %23 = vector.shape_cast %22 : vector<8x1x1xi32> to vector<8x1xi32>
    %c128_i32 = arith.constant 128 : i32
    %24 = arith.muli %arg1, %c128_i32 : i32
    %25 = tpu.iota {dimensions = array<i32: 1>} : vector<8x128xi32>
    %26 = vector.broadcast %24 : i32 to vector<8x128xi32>
    %27 = arith.addi %26, %25 : vector<8x128xi32>
    %28 = vector.broadcast %23 : vector<8x1xi32> to vector<8x128xi32>
    %29 = arith.cmpi slt, %27, %28 : vector<8x128xi32>
    %cst_23 = arith.constant 2.000000e+00 : f32
    %30 = vector.broadcast %cst_23 : f32 to vector<8x128xf32>
    %31 = arith.mulf %30, %21 : vector<8x128xf32>
    %cst_24 = arith.constant -1.000000e+30 : f32
    %32 = vector.broadcast %cst_24 : f32 to vector<8x128xf32>
    %33 = arith.select %29, %31, %32 : vector<8x128xi1>, vector<8x128xf32>
    %c0_25 = arith.constant 0 : index
    %c0_26 = arith.constant 0 : index
    %34 = vector.load %arg13[%c0_25, %c0_26] : memref<8x1xf32, #tpu.memory_space<vmem>>, vector<8x1xf32>
    %cst_27 = arith.constant dense<0xFF800000> : vector<8xf32>
    %35 = vector.multi_reduction <maximumf>, %33, %cst_27 [1] : vector<8x128xf32> to vector<8xf32>
    %36 = vector.shape_cast %35 : vector<8xf32> to vector<8x1xf32>
    %37 = arith.maximumf %34, %36 : vector<8x1xf32>
    %38 = arith.subf %34, %37 : vector<8x1xf32>
    %39 = math.exp %38 : vector<8x1xf32>
    %40 = vector.broadcast %37 : vector<8x1xf32> to vector<8x128xf32>
    %41 = arith.subf %33, %40 : vector<8x128xf32>
    %42 = math.exp %41 : vector<8x128xf32>
    %cst_28 = arith.constant 0.000000e+00 : f32
    %43 = vector.broadcast %cst_28 : f32 to vector<8x128xf32>
    %44 = arith.select %29, %42, %43 : vector<8x128xi1>, vector<8x128xf32>
    %c0_29 = arith.constant 0 : index
    %c0_30 = arith.constant 0 : index
    %c0_31 = arith.constant 0 : index
    %45 = vector.load %arg12[%c0_29, %c0_30, %c0_31] : memref<2x8x128xf32, #tpu.memory_space<vmem>>, vector<2x8x128xf32>
    %46 = vector.shape_cast %39 : vector<8x1xf32> to vector<1x8x1xf32>
    %47 = vector.broadcast %46 : vector<1x8x1xf32> to vector<2x8x128xf32>
    %48 = arith.mulf %45, %47 : vector<2x8x128xf32>
    %c0_32 = arith.constant 0 : index
    %c0_33 = arith.constant 0 : index
    %c0_34 = arith.constant 0 : index
    %49 = vector.load %arg12[%c0_32, %c0_33, %c0_34] : memref<2x8x128xf32, #tpu.memory_space<vmem>>, vector<2x8x128xf32>
    tpu.vector_store %arg12[%c0_32, %c0_33, %c0_34], %48 {strides = array<i32>} : memref<2x8x128xf32, #tpu.memory_space<vmem>>, vector<2x8x128xf32>,
    %50 = arith.index_cast %arg1 : i32 to index
    %c0_35 = arith.constant 0 : index
    %c0_36 = arith.constant 0 : index
    %51 = vector.load %arg12[%50, %c0_35, %c0_36] : memref<2x8x128xf32, #tpu.memory_space<vmem>>, vector<1x8x128xf32>
    %52 = vector.shape_cast %51 : vector<1x8x128xf32> to vector<8x128xf32>
    %53 = vector.shape_cast %44 : vector<8x128xf32> to vector<1x8x128xf32>
    tpu.vector_store %arg12[%50, %c0_35, %c0_36], %53 {strides = array<i32>} : memref<2x8x128xf32, #tpu.memory_space<vmem>>, vector<1x8x128xf32>,
    %c0_37 = arith.constant 0 : index
    %c0_38 = arith.constant 0 : index
    %54 = vector.load %arg14[%c0_37, %c0_38] : memref<8x1xf32, #tpu.memory_space<vmem>>, vector<8x1xf32>
    %55 = arith.mulf %39, %54 : vector<8x1xf32>
    %cst_39 = arith.constant dense<0.000000e+00> : vector<8xf32>
    %56 = vector.multi_reduction <add>, %44, %cst_39 [1] : vector<8x128xf32> to vector<8xf32>
    %57 = vector.shape_cast %56 : vector<8xf32> to vector<8x1xf32>
    %58 = arith.addf %55, %57 : vector<8x1xf32>
    %c0_40 = arith.constant 0 : index
    %c0_41 = arith.constant 0 : index
    %59 = vector.load %arg14[%c0_40, %c0_41] : memref<8x1xf32, #tpu.memory_space<vmem>>, vector<8x1xf32>
    tpu.vector_store %arg14[%c0_40, %c0_41], %58 {strides = array<i32>} : memref<8x1xf32, #tpu.memory_space<vmem>>, vector<8x1xf32>,
    %c0_42 = arith.constant 0 : index
    %c0_43 = arith.constant 0 : index
    %60 = vector.load %arg15[%c0_42, %c0_43] : memref<8x128xf32, #tpu.memory_space<vmem>>, vector<8x128xf32>
    %61 = vector.broadcast %39 : vector<8x1xf32> to vector<8x128xf32>
    %62 = arith.mulf %61, %60 : vector<8x128xf32>
    %63 = vector.shape_cast %44 : vector<8x128xf32> to vector<8x1x128xf32>
    %c0_44 = arith.constant 0 : index
    %c0_45 = arith.constant 0 : index
    %c0_46 = arith.constant 0 : index
    %64 = vector.load %arg3[%c0_44, %c0_45, %c0_46] : memref<8x128x128xf32, #tpu.memory_space<vmem>>, vector<8x128x128xf32>
    "tpu.trace_start"() <{level = 10 : i32, message = "bqt,btd->bqd"}> : () -> ()
    %cst_47 = arith.constant dense<0.000000e+00> : vector<8x1x128xf32>
    %65 = tpu.matmul %63, %64, %cst_47 {dimension_numbers = #tpu.dot_dimension_numbers<[2], [1], [1], [2], [0, 0, 0, 1, 1, 2], [0], [0]>} : vector<8x1x128xf32>, vector<8x128x128xf32>, vector<8x1x128xf32> -> vector<8x1x128xf32>
    "tpu.trace_stop"() : () -> ()
    %66 = vector.shape_cast %65 : vector<8x1x128xf32> to vector<8x128xf32>
    %67 = arith.addf %62, %66 : vector<8x128xf32>
    %c0_48 = arith.constant 0 : index
    %c0_49 = arith.constant 0 : index
    %68 = vector.load %arg15[%c0_48, %c0_49] : memref<8x128xf32, #tpu.memory_space<vmem>>, vector<8x128xf32>
    tpu.vector_store %arg15[%c0_48, %c0_49], %67 {strides = array<i32>} : memref<8x128xf32, #tpu.memory_space<vmem>>, vector<8x128xf32>,
    %c0_50 = arith.constant 0 : index
    %c0_51 = arith.constant 0 : index
    %69 = vector.load %arg13[%c0_50, %c0_51] : memref<8x1xf32, #tpu.memory_space<vmem>>, vector<8x1xf32>
    tpu.vector_store %arg13[%c0_50, %c0_51], %37 {strides = array<i32>} : memref<8x1xf32, #tpu.memory_space<vmem>>, vector<8x1xf32>,
    %c1_i32 = arith.constant 1 : i32
    %70 = arith.cmpi eq, %arg1, %c1_i32 : i32
    %71 = arith.extui %70 : i1 to i32
    %c0_i32_52 = arith.constant 0 : i32
    %72 = arith.cmpi ne, %71, %c0_i32_52 : i32
    scf.if %72 {
      %c0_53 = arith.constant 0 : index
      %c0_54 = arith.constant 0 : index
      %73 = vector.load %arg14[%c0_53, %c0_54] : memref<8x1xf32, #tpu.memory_space<vmem>>, vector<8x1xf32>
      %cst_55 = arith.constant 1.000000e-30 : f32
      %74 = vector.broadcast %cst_55 : f32 to vector<8x1xf32>
      %75 = arith.maximumf %73, %74 : vector<8x1xf32>
      %76 = tpu.reciprocal %75 : vector<8x1xf32> -> vector<8x1xf32>
      %c0_56 = arith.constant 0 : index
      %c0_57 = arith.constant 0 : index
      %77 = vector.load %arg15[%c0_56, %c0_57] : memref<8x128xf32, #tpu.memory_space<vmem>>, vector<8x128xf32>
      %78 = vector.broadcast %76 : vector<8x1xf32> to vector<8x128xf32>
      %79 = arith.mulf %77, %78 : vector<8x128xf32>
      %c0_58 = arith.constant 0 : index
      %c0_59 = arith.constant 0 : index
      %80 = vector.load %arg11[%c0_58, %c0_59] : memref<8x128xf32, #tpu.memory_space<vmem>>, vector<8x128xf32>
      tpu.vector_store %arg11[%c0_58, %c0_59], %79 {strides = array<i32>} : memref<8x128xf32, #tpu.memory_space<vmem>>, vector<8x128xf32>,
      %c0_60 = arith.constant 0 : index
      %c0_61 = arith.constant 0 : index
      %c0_62 = arith.constant 0 : index
      %81 = vector.load %arg12[%c0_60, %c0_61, %c0_62] : memref<2x8x128xf32, #tpu.memory_space<vmem>>, vector<2x8x128xf32>
      %82 = vector.shape_cast %76 : vector<8x1xf32> to vector<1x8x1xf32>
      %83 = vector.broadcast %82 : vector<1x8x1xf32> to vector<2x8x128xf32>
      %84 = arith.mulf %81, %83 : vector<2x8x128xf32>
      %c0_63 = arith.constant 0 : index
      %c0_64 = arith.constant 0 : index
      %c0_65 = arith.constant 0 : index
      %85 = vector.load %arg12[%c0_63, %c0_64, %c0_65] : memref<2x8x128xf32, #tpu.memory_space<vmem>>, vector<2x8x128xf32>
      tpu.vector_store %arg12[%c0_63, %c0_64, %c0_65], %84 {strides = array<i32>} : memref<2x8x128xf32, #tpu.memory_space<vmem>>, vector<2x8x128xf32>,
    } else {
    }
    return
  }
  func.func @transform_0(%arg0: i32, %arg1: i32) -> (i32, i32, i32) {
    %c0_i32 = arith.constant 0 : i32
    %c0_i32_0 = arith.constant 0 : i32
    return %arg0, %arg1, %c0_i32 : i32, i32, i32
  }
  func.func @transform_1(%arg0: i32, %arg1: i32) -> (i32, i32, i32) {
    %c0_i32 = arith.constant 0 : i32
    %c0_i32_0 = arith.constant 0 : i32
    return %arg0, %arg1, %c0_i32 : i32, i32, i32
  }
  func.func @transform_2(%arg0: i32, %arg1: i32) -> (i32, i32, i32) {
    %c0_i32 = arith.constant 0 : i32
    %c0_i32_0 = arith.constant 0 : i32
    %c0_i32_1 = arith.constant 0 : i32
    return %arg0, %c0_i32, %c0_i32_0 : i32, i32, i32
  }
  func.func @transform_3(%arg0: i32, %arg1: i32) -> (i32, i32, i32) {
    %c0_i32 = arith.constant 0 : i32
    %c0_i32_0 = arith.constant 0 : i32
    return %arg0, %arg1, %c0_i32 : i32, i32, i32
  }
  func.func @transform_4(%arg0: i32, %arg1: i32) -> (i32, i32, i32) {
    %c0_i32 = arith.constant 0 : i32
    %c0_i32_0 = arith.constant 0 : i32
    %c0_i32_1 = arith.constant 0 : i32
    return %arg0, %c0_i32, %c0_i32_0 : i32, i32, i32
  }
  func.func @transform_5(%arg0: i32, %arg1: i32) -> (i32, i32) {
    %c0_i32 = arith.constant 0 : i32
    %c0_i32_0 = arith.constant 0 : i32
    %c0_i32_1 = arith.constant 0 : i32
    return %c0_i32, %c0_i32_0 : i32, i32
  }
  func.func @transform_6(%arg0: i32, %arg1: i32) -> (i32, i32) {
    %c0_i32 = arith.constant 0 : i32
    %c0_i32_0 = arith.constant 0 : i32
    %c0_i32_1 = arith.constant 0 : i32
    return %c0_i32, %c0_i32_0 : i32, i32
  }
  func.func @transform_7(%arg0: i32, %arg1: i32) -> (i32, i32) {
    %c0_i32 = arith.constant 0 : i32
    %c0_i32_0 = arith.constant 0 : i32
    %c0_i32_1 = arith.constant 0 : i32
    return %c0_i32, %c0_i32_0 : i32, i32
  }
  func.func @transform_8(%arg0: i32, %arg1: i32) -> (i32, i32) {
    %c0_i32 = arith.constant 0 : i32
    %c0_i32_0 = arith.constant 0 : i32
    %c0_i32_1 = arith.constant 0 : i32
    return %c0_i32, %c0_i32_0 : i32, i32
  }
  func.func @transform_9(%arg0: i32, %arg1: i32) -> (i32, i32) {
    %c0_i32 = arith.constant 0 : i32
    %c0_i32_0 = arith.constant 0 : i32
    return %arg0, %c0_i32 : i32, i32
  }
  func.func @transform_10(%arg0: i32, %arg1: i32) -> (i32, i32, i32) {
    %c0_i32 = arith.constant 0 : i32
    %c0_i32_0 = arith.constant 0 : i32
    %c0_i32_1 = arith.constant 0 : i32
    return %c0_i32, %arg0, %c0_i32_0 : i32, i32, i32
  }
}

</mosaic_0001>

<llo_original>
// kernel: tpu_custom_call.1
$region0: #{tpu_custom_call.1}
  #allocation0 [shape = 'u32[]', space=smem, size = 0x4, offset = 0x4, fixed_abs, tag = 'smem constant byte address 0x4 - core index']
  #allocation1 [shape = 'u32[144,128]{1,0:T(1,128)}', space=vmem, size = 0x12000, scoped, tag = 'internal scratch']
  #allocation2 [shape = 'f32[8,1]{1,0:T(8,128)}', space=vmem, size = 0x1000, scoped, tag = 'scratch operand']
  #allocation3 [shape = 'f32[8,1]{1,0:T(8,128)}', space=vmem, size = 0x1000, scoped, tag = 'scratch operand']
  #allocation4 [shape = 'f32[8,128]{1,0:T(8,128)}', space=vmem, size = 0x1000, scoped, tag = 'scratch operand']
  #allocation5 [shape = 'f32[1,1]{1,0:T(1,128)S(1)}', space=vmem, size = 0x200, scoped, tag = 'scoped memory for tpu_custom_call.1']
  #allocation16 [shape = 's32[]', space=sflag, size = 0x4, offset = 0, fixed_abs, tag = 'sflag constant byte address 0x0 - dummy sync flag']
  %s0 = inlined_call_operand.vmem [shape: f32[8,256,128], index: 0, kind: input, shape index: {}]
  %s1 = inlined_call_operand.hbm [shape: f32[8,256,128], index: 1, kind: input, shape index: {}]
  %s2 = inlined_call_operand.vmem [shape: f32[8,1,128], index: 2, kind: input, shape index: {}]
  %s3 = inlined_call_operand.vmem [shape: f32[8,256,8], index: 3, kind: input, shape index: {}]
  %s4 = inlined_call_operand.vmem [shape: s32[8,1,1], index: 4, kind: input, shape index: {}]
  %s5 = inlined_call_operand.vmem [shape: f32[128,128], index: 5, kind: input, shape index: {}]
  %s6 = inlined_call_operand.hbm [shape: f32[8,128], index: 6, kind: input, shape index: {}]
  %s7 = inlined_call_operand.vmem [shape: f32[8,128], index: 7, kind: input, shape index: {}]
  %s8 = inlined_call_operand.<no memory space> [shape: f32[1,1], index: 8, kind: input, shape index: {}]
  %s9 = inlined_call_operand.hbm [shape: f32[8,128], index: 9, kind: output, shape index: {0}]
  %s10 = inlined_call_operand.hbm [shape: f32[2,8,128], index: 10, kind: output, shape index: {1}]
  %11 = xla_tuple %s9, %s10
  %s12 = sld [smem:[#allocation0]]
  $region169: #{tpu_custom_call.1} parent=0
    _
  %s14 = ssub.s32 1, %s12
  %s15 = scalar_select 0, %s14, %s12
  %v16 = vstv %s8
  %17 = vst [vmem:[#allocation5] sm:$0x1] %v16
  $region1: #{tpu_custom_call.1} parent=0
    #allocation6 [shape = 'u8[1048576]{0}', space=vmem, size = 0x100000, scoped, tag = 'input window, operand 0']
    #allocation7 [shape = 'u8[1048576]{0}', space=vmem, size = 0x100000, scoped, tag = 'input window, operand 1']
    #allocation8 [shape = 's32[2]{0}', space=sflag, size = 0x8, scoped, tag = 'scoped memory for tpu_custom_call.1']
    #allocation9 [shape = 's32[2]{0}', space=sflag, size = 0x8, scoped, tag = 'scoped memory for tpu_custom_call.1']
    #allocation10 [shape = 'u8[1048576]{0}', space=vmem, size = 0x100000, scoped, tag = 'input window, operand 3']
    #allocation11 [shape = 'u8[4096]{0}', space=vmem, size = 0x1000, scoped, tag = 'input window, operand 6, single buffered']
    #allocation12 [shape = 's32[1]{0}', space=sflag, size = 0x4, scoped, tag = 'scoped memory for tpu_custom_call.1']
    #allocation13 [shape = 'u8[4096]{0}', space=vmem, size = 0x1000, scoped, tag = 'output window, operand 0, single buffered']
    #allocation14 [shape = 'u8[8192]{0}', space=vmem, size = 0x2000, scoped, tag = 'output window, operand 1, single buffered']
    #allocation15 [shape = 's32[1]{0}', space=sflag, size = 0x4, scoped, tag = 'scoped memory for tpu_custom_call.1']
    %18 = vsyncpa [#allocation8], 0
    %s19 = scalar_lea.sflag [#allocation8], 1
    %20 = vsyncpa %s19, 0
    %21 = vsyncpa [#allocation12], 0
    %22 = vsyncpa [#allocation9], 0
    %23 = vsyncpa [#allocation15], 0
    loop: start=0, step=1, limit=4
    $region2: #{tpu_custom_call.1} parent=1 // loop_pre_header
      _
    $region3: #{tpu_custom_call.1} parent=1 // loop_header
      %s25 = sphi 0, %s29
      %p26 = scmp.ge.s32.totalorder %s25, 4
      %s32 = sphi 0, %s44
      %s33 = sphi 0, %s40
      %s34 = sphi 0, %s32
      %s35 = sphi 0, %s33
      %s36 = sphi 0, %s34
      %s37 = sphi 0, %s35
      %s49 = sphi 0, %s51
      %s52 = sphi 0, %s49
      %s53 = sphi 0, %s52
      %s69 = sphi 0, %s53
      %s77 = sphi 0, %s79
      %s80 = sphi 0, %s77
      %s81 = sphi 0, %s80
      %s97 = sphi 0, %s81
      %s103 = sphi 0, %s105
      %s106 = sphi 0, %s103
      %s107 = sphi 0, %s106
      %s123 = sphi 0, %s107
      %s131 = sphi 0, %s133
      %s134 = sphi 0, %s131
      %s135 = sphi 0, %s134
      %s151 = sphi 0, %s135
      %s157 = sphi 0, %s159
      %s160 = sphi 0, %s157
      %s161 = sphi 0, %s160
      %s177 = sphi 0, %s161
      %s181 = sphi 0, %s181
      %s183 = sphi 0, %s181
      %s184 = sphi 0, %s183
      %s198 = sphi 0, %s184
      %s202 = sphi 0, %s202
      %s204 = sphi 0, %s202
      %s205 = sphi 0, %s204
      %s219 = sphi 0, %s205
      %s223 = sphi 0, %s223
      %s225 = sphi 0, %s223
      %s226 = sphi 0, %s225
      %s240 = sphi 0, %s226
      %s244 = sphi 0, %s244
      %s246 = sphi 0, %s244
      %s247 = sphi 0, %s246
      %s261 = sphi 0, %s247
      %s267 = sphi 0, %s269
      %s270 = sphi 0, %s267
      %s271 = sphi 0, %s270
      %s287 = sphi 0, %s271
      %s293 = sphi 0, %s295
      %s296 = sphi 0, %s293
      %s297 = sphi 0, %s296
      %s313 = sphi 0, %s297
    $region4: #{tpu_custom_call.1} parent=1 // loop_header_branch
      %28 = sbr.rel (%p26) target = $region8
    $region5: #{tpu_custom_call.1} parent=1 // loop_body
      %s30 = ssub.s32 %s25, 1
      %s31 = ssub.s32 %s25, 2
      %s38 = sadd.s32 1, %s33
      %p39 = scmp.ge.s32.totalorder %s38, 2
      %s40 = scalar_select %p39, 0, %s38
      %s41 = sadd.s32 1, %s32
      %s42 = scalar_select %p39, %s41, %s32
      %p43 = scmp.ge.s32.totalorder %s42, 1
      %s44 = scalar_select %p43, 0, %s42
      %s45 = ssub.s32 %s32, %s44
      %s46 = ssub.s32 %s33, %s40
      %s47 = sor.u32 %s45, %s46
      %p48 = scmp.eq.s32.totalorder %s47, 0
      %s50 = sadd.s32 %s49, 1
      %s51 = scalar_select %p48, %s49, %s50
      %p54 = pneg %p48
      %p55 = scmp.eq.s32.totalorder %s25, 1
      %p56 = por %p54, %p55
      %p57 = scmp.ne.s32.totalorder %s49, %s52
      %p58 = scmp.eq.s32.totalorder %s25, 0
      %p59 = por %p57, %p58
      %p60 = scmp.ne.s32.totalorder %s49, %s52
      %p61 = scmp.eq.s32.totalorder %s30, 1
      %p62 = por %p60, %p61
      %p63 = scmp.ne.s32.totalorder %s52, %s53
      %p64 = scmp.eq.s32.totalorder %s30, 0
      %p65 = por %p63, %p64
      %p66 = scmp.ne.s32.totalorder %s52, %s53
      %p67 = scmp.eq.s32.totalorder %s31, 1
      %p68 = por %p66, %p67
      %p70 = scmp.ne.s32.totalorder %s53, %s69
      %p71 = scmp.eq.s32.totalorder %s31, 0
      %p72 = por %p70, %p71
      %s73 = ssub.s32 %s32, %s44
      %s74 = ssub.s32 %s33, %s40
      %s75 = sor.u32 %s73, %s74
      %p76 = scmp.eq.s32.totalorder %s75, 0
      %s78 = sadd.s32 %s77, 1
      %s79 = scalar_select %p76, %s77, %s78
      %p82 = pneg %p76
      %p83 = scmp.eq.s32.totalorder %s25, 1
      %p84 = por %p82, %p83
      %p85 = scmp.ne.s32.totalorder %s77, %s80
      %p86 = scmp.eq.s32.totalorder %s25, 0
      %p87 = por %p85, %p86
      %p88 = scmp.ne.s32.totalorder %s77, %s80
      %p89 = scmp.eq.s32.totalorder %s30, 1
      %p90 = por %p88, %p89
      %p91 = scmp.ne.s32.totalorder %s80, %s81
      %p92 = scmp.eq.s32.totalorder %s30, 0
      %p93 = por %p91, %p92
      %p94 = scmp.ne.s32.totalorder %s80, %s81
      %p95 = scmp.eq.s32.totalorder %s31, 1
      %p96 = por %p94, %p95
      %p98 = scmp.ne.s32.totalorder %s81, %s97
      %p99 = scmp.eq.s32.totalorder %s31, 0
      %p100 = por %p98, %p99
      %s101 = ssub.s32 %s32, %s44
      %p102 = scmp.eq.s32.totalorder %s101, 0
      %s104 = sadd.s32 %s103, 1
      %s105 = scalar_select %p102, %s103, %s104
      %p108 = pneg %p102
      %p109 = scmp.eq.s32.totalorder %s25, 1
      %p110 = por %p108, %p109
      %p111 = scmp.ne.s32.totalorder %s103, %s106
      %p112 = scmp.eq.s32.totalorder %s25, 0
      %p113 = por %p111, %p112
      %p114 = scmp.ne.s32.totalorder %s103, %s106
      %p115 = scmp.eq.s32.totalorder %s30, 1
      %p116 = por %p114, %p115
      %p117 = scmp.ne.s32.totalorder %s106, %s107
      %p118 = scmp.eq.s32.totalorder %s30, 0
      %p119 = por %p117, %p118
      %p120 = scmp.ne.s32.totalorder %s106, %s107
      %p121 = scmp.eq.s32.totalorder %s31, 1
      %p122 = por %p120, %p121
      %p124 = scmp.ne.s32.totalorder %s107, %s123
      %p125 = scmp.eq.s32.totalorder %s31, 0
      %p126 = por %p124, %p125
      %s127 = ssub.s32 %s32, %s44
      %s128 = ssub.s32 %s33, %s40
      %s129 = sor.u32 %s127, %s128
      %p130 = scmp.eq.s32.totalorder %s129, 0
      %s132 = sadd.s32 %s131, 1
      %s133 = scalar_select %p130, %s131, %s132
      %p136 = pneg %p130
      %p137 = scmp.eq.s32.totalorder %s25, 1
      %p138 = por %p136, %p137
      %p139 = scmp.ne.s32.totalorder %s131, %s134
      %p140 = scmp.eq.s32.totalorder %s25, 0
      %p141 = por %p139, %p140
      %p142 = scmp.ne.s32.totalorder %s131, %s134
      %p143 = scmp.eq.s32.totalorder %s30, 1
      %p144 = por %p142, %p143
      %p145 = scmp.ne.s32.totalorder %s134, %s135
      %p146 = scmp.eq.s32.totalorder %s30, 0
      %p147 = por %p145, %p146
      %p148 = scmp.ne.s32.totalorder %s134, %s135
      %p149 = scmp.eq.s32.totalorder %s31, 1
      %p150 = por %p148, %p149
      %p152 = scmp.ne.s32.totalorder %s135, %s151
      %p153 = scmp.eq.s32.totalorder %s31, 0
      %p154 = por %p152, %p153
      %s155 = ssub.s32 %s32, %s44
      %p156 = scmp.eq.s32.totalorder %s155, 0
      %s158 = sadd.s32 %s157, 1
      %s159 = scalar_select %p156, %s157, %s158
      %p162 = pneg %p156
      %p163 = scmp.eq.s32.totalorder %s25, 1
      %p164 = por %p162, %p163
      %p165 = scmp.ne.s32.totalorder %s157, %s160
      %p166 = scmp.eq.s32.totalorder %s25, 0
      %p167 = por %p165, %p166
      %p168 = scmp.ne.s32.totalorder %s157, %s160
      %p169 = scmp.eq.s32.totalorder %s30, 1
      %p170 = por %p168, %p169
      %p171 = scmp.ne.s32.totalorder %s160, %s161
      %p172 = scmp.eq.s32.totalorder %s30, 0
      %p173 = por %p171, %p172
      %p174 = scmp.ne.s32.totalorder %s160, %s161
      %p175 = scmp.eq.s32.totalorder %s31, 1
      %p176 = por %p174, %p175
      %p178 = scmp.ne.s32.totalorder %s161, %s177
      %p179 = scmp.eq.s32.totalorder %s31, 0
      %p180 = por %p178, %p179
      %s182 = sadd.s32 %s181, 1
      %p185 = scmp.eq.s32.totalorder %s25, 1
      %p186 = scmp.ne.s32.totalorder %s181, %s183
      %p187 = scmp.eq.s32.totalorder %s25, 0
      %p188 = por %p186, %p187
      %p189 = scmp.ne.s32.totalorder %s181, %s183
      %p190 = scmp.eq.s32.totalorder %s30, 1
      %p191 = por %p189, %p190
      %p192 = scmp.ne.s32.totalorder %s183, %s184
      %p193 = scmp.eq.s32.totalorder %s30, 0
      %p194 = por %p192, %p193
      %p195 = scmp.ne.s32.totalorder %s183, %s184
      %p196 = scmp.eq.s32.totalorder %s31, 1
      %p197 = por %p195, %p196
      %p199 = scmp.ne.s32.totalorder %s184, %s198
      %p200 = scmp.eq.s32.totalorder %s31, 0
      %p201 = por %p199, %p200
      %s203 = sadd.s32 %s202, 1
      %p206 = scmp.eq.s32.totalorder %s25, 1
      %p207 = scmp.ne.s32.totalorder %s202, %s204
      %p208 = scmp.eq.s32.totalorder %s25, 0
      %p209 = por %p207, %p208
      %p210 = scmp.ne.s32.totalorder %s202, %s204
      %p211 = scmp.eq.s32.totalorder %s30, 1
      %p212 = por %p210, %p211
      %p213 = scmp.ne.s32.totalorder %s204, %s205
      %p214 = scmp.eq.s32.totalorder %s30, 0
      %p215 = por %p213, %p214
      %p216 = scmp.ne.s32.totalorder %s204, %s205
      %p217 = scmp.eq.s32.totalorder %s31, 1
      %p218 = por %p216, %p217
      %p220 = scmp.ne.s32.totalorder %s205, %s219
      %p221 = scmp.eq.s32.totalorder %s31, 0
      %p222 = por %p220, %p221
      %s224 = sadd.s32 %s223, 1
      %p227 = scmp.eq.s32.totalorder %s25, 1
      %p228 = scmp.ne.s32.totalorder %s223, %s225
      %p229 = scmp.eq.s32.totalorder %s25, 0
      %p230 = por %p228, %p229
      %p231 = scmp.ne.s32.totalorder %s223, %s225
      %p232 = scmp.eq.s32.totalorder %s30, 1
      %p233 = por %p231, %p232
      %p234 = scmp.ne.s32.totalorder %s225, %s226
      %p235 = scmp.eq.s32.totalorder %s30, 0
      %p236 = por %p234, %p235
      %p237 = scmp.ne.s32.totalorder %s225, %s226
      %p238 = scmp.eq.s32.totalorder %s31, 1
      %p239 = por %p237, %p238
      %p241 = scmp.ne.s32.totalorder %s226, %s240
      %p242 = scmp.eq.s32.totalorder %s31, 0
      %p243 = por %p241, %p242
      %s245 = sadd.s32 %s244, 1
      %p248 = scmp.eq.s32.totalorder %s25, 1
      %p249 = scmp.ne.s32.totalorder %s244, %s246
      %p250 = scmp.eq.s32.totalorder %s25, 0
      %p251 = por %p249, %p250
      %p252 = scmp.ne.s32.totalorder %s244, %s246
      %p253 = scmp.eq.s32.totalorder %s30, 1
      %p254 = por %p252, %p253
      %p255 = scmp.ne.s32.totalorder %s246, %s247
      %p256 = scmp.eq.s32.totalorder %s30, 0
      %p257 = por %p255, %p256
      %p258 = scmp.ne.s32.totalorder %s246, %s247
      %p259 = scmp.eq.s32.totalorder %s31, 1
      %p260 = por %p258, %p259
      %p262 = scmp.ne.s32.totalorder %s247, %s261
      %p263 = scmp.eq.s32.totalorder %s31, 0
      %p264 = por %p262, %p263
      %s265 = ssub.s32 %s32, %s44
      %p266 = scmp.eq.s32.totalorder %s265, 0
      %s268 = sadd.s32 %s267, 1
      %s269 = scalar_select %p266, %s267, %s268
      %p272 = pneg %p266
      %p273 = scmp.eq.s32.totalorder %s25, 1
      %p274 = por %p272, %p273
      %p275 = scmp.ne.s32.totalorder %s267, %s270
      %p276 = scmp.eq.s32.totalorder %s25, 0
      %p277 = por %p275, %p276
      %p278 = scmp.ne.s32.totalorder %s267, %s270
      %p279 = scmp.eq.s32.totalorder %s30, 1
      %p280 = por %p278, %p279
      %p281 = scmp.ne.s32.totalorder %s270, %s271
      %p282 = scmp.eq.s32.totalorder %s30, 0
      %p283 = por %p281, %p282
      %p284 = scmp.ne.s32.totalorder %s270, %s271
      %p285 = scmp.eq.s32.totalorder %s31, 1
      %p286 = por %p284, %p285
      %p288 = scmp.ne.s32.totalorder %s271, %s287
      %p289 = scmp.eq.s32.totalorder %s31, 0
      %p290 = por %p288, %p289
      %s291 = ssub.s32 %s32, %s44
      %p292 = scmp.eq.s32.totalorder %s291, 0
      %s294 = sadd.s32 %s293, 1
      %s295 = scalar_select %p292, %s293, %s294
      %p298 = pneg %p292
      %p299 = scmp.eq.s32.totalorder %s25, 1
      %p300 = por %p298, %p299
      %p301 = scmp.ne.s32.totalorder %s293, %s296
      %p302 = scmp.eq.s32.totalorder %s25, 0
      %p303 = por %p301, %p302
      %p304 = scmp.ne.s32.totalorder %s293, %s296
      %p305 = scmp.eq.s32.totalorder %s30, 1
      %p306 = por %p304, %p305
      %p307 = scmp.ne.s32.totalorder %s296, %s297
      %p308 = scmp.eq.s32.totalorder %s30, 0
      %p309 = por %p307, %p308
      %p310 = scmp.ne.s32.totalorder %s296, %s297
      %p311 = scmp.eq.s32.totalorder %s31, 1
      %p312 = por %p310, %p311
      %p314 = scmp.ne.s32.totalorder %s297, %s313
      %p315 = scmp.eq.s32.totalorder %s31, 0
      %p316 = por %p314, %p315
      %p317 = scmp.le.s32.totalorder 1, %s25
      %p318 = scmp.lt.s32.totalorder %s25, 3
      %p319 = pnand %p317, %p318
      %p320 = pneg %p319
      // Predicated region
      $region9: #{tpu_custom_call.1} parent=5 // pred_check
        _
      $region10: #{tpu_custom_call.1} parent=5 // pred_check_branch
        %322 = sbr.rel (%p319) target = $region12
      $region11: #{tpu_custom_call.1} parent=5 // pred_region
        %s323 = ssub.s32 %s25, 1
        // Predicated region
        $region13: #{tpu_custom_call.1} parent=11 // pred_check
          %p324 = pneg %p119
        $region14: #{tpu_custom_call.1} parent=11 // pred_check_branch
          %326 = sbr.rel (%p324) target = $region16
        $region15: #{tpu_custom_call.1} parent=11 // pred_region
          %s327 = smul.u32 8, %s34
          %p328 = scmp.lt.s32.totalorder %s327, 7
          %s329 = scalar_select %p328, %s327, 7
          %s330 = scalar_lea.vmem %s2, %s329
          %s331 = smul.u32 8, %s34
        $region16: #{tpu_custom_call.1} parent=11 // pred_fallthru
          _
        // Predicated region
        $region17: #{tpu_custom_call.1} parent=11 // pred_check
          %p332 = pneg %p173
        $region18: #{tpu_custom_call.1} parent=11 // pred_check_branch
          %334 = sbr.rel (%p332) target = $region20
        $region19: #{tpu_custom_call.1} parent=11 // pred_region
          %s335 = smul.u32 8, %s34
          %p336 = scmp.lt.s32.totalorder %s335, 7
          %s337 = scalar_select %p336, %s335, 7
          %s338 = scalar_lea.vmem %s4, %s337
          %s339 = smul.u32 8, %s34
        $region20: #{tpu_custom_call.1} parent=11 // pred_fallthru
          _
        // Predicated region
        $region21: #{tpu_custom_call.1} parent=11 // pred_check
          %p340 = pneg %p194
        $region22: #{tpu_custom_call.1} parent=11 // pred_check_branch
          %342 = sbr.rel (%p340) target = $region24
        $region23: #{tpu_custom_call.1} parent=11 // pred_region
          _
        $region24: #{tpu_custom_call.1} parent=11 // pred_fallthru
          _
        // Predicated region
        $region25: #{tpu_custom_call.1} parent=11 // pred_check
          %p343 = pneg %p215
        $region26: #{tpu_custom_call.1} parent=11 // pred_check_branch
          %345 = sbr.rel (%p343) target = $region28
        $region27: #{tpu_custom_call.1} parent=11 // pred_region
          %s347 = ssub.s32 128, 128
          %348 = vsyncadd [#allocation12], %s347
          %s350 = sshll.u32 [#allocation11], 4
          %s351 = int_to_ptr.vmem [resolvable:$true] %s350
          %353 = dma.hbm_to_vmem [thread:$0]  %s6, 128, %s351, [#allocation12]
        $region28: #{tpu_custom_call.1} parent=11 // pred_fallthru
          _
        // Predicated region
        $region29: #{tpu_custom_call.1} parent=11 // pred_check
          %p354 = pneg %p236
        $region30: #{tpu_custom_call.1} parent=11 // pred_check_branch
          %356 = sbr.rel (%p354) target = $region32
        $region31: #{tpu_custom_call.1} parent=11 // pred_region
          _
        $region32: #{tpu_custom_call.1} parent=11 // pred_fallthru
          _
        // Predicated region
        $region33: #{tpu_custom_call.1} parent=11 // pred_check
          %p357 = pneg %p257
        $region34: #{tpu_custom_call.1} parent=11 // pred_check_branch
          %359 = sbr.rel (%p357) target = $region36
        $region35: #{tpu_custom_call.1} parent=11 // pred_region
          _
        $region36: #{tpu_custom_call.1} parent=11 // pred_fallthru
          _
      $region12: #{tpu_custom_call.1} parent=5 // pred_fallthru
        _
      %p360 = scmp.lt.s32.totalorder %s25, 2
      // Predicated region
      $region37: #{tpu_custom_call.1} parent=5 // pred_check
        %p361 = pneg %p360
      $region38: #{tpu_custom_call.1} parent=5 // pred_check_branch
        %363 = sbr.rel (%p361) target = $region40
      $region39: #{tpu_custom_call.1} parent=5 // pred_region
        // Predicated region
        $region41: #{tpu_custom_call.1} parent=39 // pred_check
          %p364 = pneg %p59
        $region42: #{tpu_custom_call.1} parent=39 // pred_check_branch
          %366 = sbr.rel (%p364) target = $region44
        $region43: #{tpu_custom_call.1} parent=39 // pred_region
          %s367 = sand.u32 %s49, 1
          %s368 = sand.u32 %s49, 1
          %s369 = smul.addr %s368, 1024
          %s370 = scalar_lea.vmem [#allocation6], %s369
          %s371 = smul.u32 8, %s32
          %s372 = smul.u32 16, %s33
          %s373 = smul.addr %s371, 32
          %s374 = sadd.s32 %s372, %s373
          %s375 = smul.addr %s374, 8
          %s376 = scalar_lea.vmem %s0, %s375
          // Predicated region
          $region45: #{tpu_custom_call.1} parent=43 // pred_check
            _
          $region46: #{tpu_custom_call.1} parent=43 // pred_check_branch
            %378 = sbr.rel (0) target = $region48
          $region47: #{tpu_custom_call.1} parent=43 // pred_region
            // Predicated region
            $region49: #{tpu_custom_call.1} parent=47 // pred_check
              _
            $region50: #{tpu_custom_call.1} parent=47 // pred_check_branch
              %380 = sbr.rel (0) target = $region52
            $region51: #{tpu_custom_call.1} parent=47 // pred_region
              // Predicated region
              $region64: #{tpu_custom_call.1} parent=51 // pred_check
                _
              $region65: #{tpu_custom_call.1} parent=51 // pred_check_branch
                %650 = sbr.rel (0) target = $region67
              $region66: #{tpu_custom_call.1} parent=51 // pred_region
                loop: start=0, step=1, limit=1
                $region68: #{tpu_custom_call.1} parent=66 // loop_pre_header
                  _
                $region69: #{tpu_custom_call.1} parent=66 // loop_header
                  %s652 = sphi 0, %s656
                  %p653 = scmp.ge.s32.totalorder %s652, 1
                  %s657 = sphi %s376, %s376
                  %s658 = sphi %s370, %s370
                $region70: #{tpu_custom_call.1} parent=66 // loop_header_branch
                  %655 = sbr.rel (%p653) target = $region74
                $region71: #{tpu_custom_call.1} parent=66 // loop_body
                  %v659 = vld [vmem:[%s657] sm:$0xff]
                  %660 = vst [vmem:[%s658] sm:$0xff] %v659
                  %v661 = vld [vmem:[%s657 + $0x8] sm:$0xff]
                  %662 = vst [vmem:[%s658 + $0x8] sm:$0xff] %v661
                  %v663 = vld [vmem:[%s657 + $0x10] sm:$0xff]
                  %664 = vst [vmem:[%s658 + $0x10] sm:$0xff] %v663
                  %v665 = vld [vmem:[%s657 + $0x18] sm:$0xff]
                  %666 = vst [vmem:[%s658 + $0x18] sm:$0xff] %v665
                  %v667 = vld [vmem:[%s657 + $0x20] sm:$0xff]
                  %668 = vst [vmem:[%s658 + $0x20] sm:$0xff] %v667
                  %v669 = vld [vmem:[%s657 + $0x28] sm:$0xff]
                  %670 = vst [vmem:[%s658 + $0x28] sm:$0xff] %v669
                  %v671 = vld [vmem:[%s657 + $0x30] sm:$0xff]
                  %672 = vst [vmem:[%s658 + $0x30] sm:$0xff] %v671
                  %v673 = vld [vmem:[%s657 + $0x38] sm:$0xff]
                  %674 = vst [vmem:[%s658 + $0x38] sm:$0xff] %v673
                  %v675 = vld [vmem:[%s657 + $0x40] sm:$0xff]
                  %676 = vst [vmem:[%s658 + $0x40] sm:$0xff] %v675
                  %v677 = vld [vmem:[%s657 + $0x48] sm:$0xff]
                  %678 = vst [vmem:[%s658 + $0x48] sm:$0xff] %v677
                  %v679 = vld [vmem:[%s657 + $0x50] sm:$0xff]
                  %680 = vst [vmem:[%s658 + $0x50] sm:$0xff] %v679
                  %v681 = vld [vmem:[%s657 + $0x58] sm:$0xff]
                  %682 = vst [vmem:[%s658 + $0x58] sm:$0xff] %v681
                  %v683 = vld [vmem:[%s657 + $0x60] sm:$0xff]
                  %684 = vst [vmem:[%s658 + $0x60] sm:$0xff] %v683
                  %v685 = vld [vmem:[%s657 + $0x68] sm:$0xff]
                  %686 = vst [vmem:[%s658 + $0x68] sm:$0xff] %v685
                  %v687 = vld [vmem:[%s657 + $0x70] sm:$0xff]
                  %688 = vst [vmem:[%s658 + $0x70] sm:$0xff] %v687
                  %v689 = vld [vmem:[%s657 + $0x78] sm:$0xff]
                  %690 = vst [vmem:[%s658 + $0x78] sm:$0xff] %v689
                  %v691 = vld [vmem:[%s657 + $0x100] sm:$0xff]
                  %692 = vst [vmem:[%s658 + $0x80] sm:$0xff] %v691
                  %v693 = vld [vmem:[%s657 + $0x108] sm:$0xff]
                  %694 = vst [vmem:[%s658 + $0x88] sm:$0xff] %v693
                  %v695 = vld [vmem:[%s657 + $0x110] sm:$0xff]
                  %696 = vst [vmem:[%s658 + $0x90] sm:$0xff] %v695
                  %v697 = vld [vmem:[%s657 + $0x118] sm:$0xff]
                  %698 = vst [vmem:[%s658 + $0x98] sm:$0xff] %v697
                  %v699 = vld [vmem:[%s657 + $0x120] sm:$0xff]
                  %700 = vst [vmem:[%s658 + $0xa0] sm:$0xff] %v699
                  %v701 = vld [vmem:[%s657 + $0x128] sm:$0xff]
                  %702 = vst [vmem:[%s658 + $0xa8] sm:$0xff] %v701
                  %v703 = vld [vmem:[%s657 + $0x130] sm:$0xff]
                  %704 = vst [vmem:[%s658 + $0xb0] sm:$0xff] %v703
                  %v705 = vld [vmem:[%s657 + $0x138] sm:$0xff]
                  %706 = vst [vmem:[%s658 + $0xb8] sm:$0xff] %v705
                  %v707 = vld [vmem:[%s657 + $0x140] sm:$0xff]
                  %708 = vst [vmem:[%s658 + $0xc0] sm:$0xff] %v707
                  %v709 = vld [vmem:[%s657 + $0x148] sm:$0xff]
                  %710 = vst [vmem:[%s658 + $0xc8] sm:$0xff] %v709
                  %v711 = vld [vmem:[%s657 + $0x150] sm:$0xff]
                  %712 = vst [vmem:[%s658 + $0xd0] sm:$0xff] %v711
                  %v713 = vld [vmem:[%s657 + $0x158] sm:$0xff]
                  %714 = vst [vmem:[%s658 + $0xd8] sm:$0xff] %v713
                  %v715 = vld [vmem:[%s657 + $0x160] sm:$0xff]
                  %716 = vst [vmem:[%s658 + $0xe0] sm:$0xff] %v715
                  %v717 = vld [vmem:[%s657 + $0x168] sm:$0xff]
                  %718 = vst [vmem:[%s658 + $0xe8] sm:$0xff] %v717
                  %v719 = vld [vmem:[%s657 + $0x170] sm:$0xff]
                  %720 = vst [vmem:[%s658 + $0xf0] sm:$0xff] %v719
                  %v721 = vld [vmem:[%s657 + $0x178] sm:$0xff]
                  %722 = vst [vmem:[%s658 + $0xf8] sm:$0xff] %v721
                  %v723 = vld [vmem:[%s657 + $0x200] sm:$0xff]
                  %724 = vst [vmem:[%s658 + $0x100] sm:$0xff] %v723
                  %v725 = vld [vmem:[%s657 + $0x208] sm:$0xff]
                  %726 = vst [vmem:[%s658 + $0x108] sm:$0xff] %v725
                  %v727 = vld [vmem:[%s657 + $0x210] sm:$0xff]
                  %728 = vst [vmem:[%s658 + $0x110] sm:$0xff] %v727
                  %v729 = vld [vmem:[%s657 + $0x218] sm:$0xff]
                  %730 = vst [vmem:[%s658 + $0x118] sm:$0xff] %v729
                  %v731 = vld [vmem:[%s657 + $0x220] sm:$0xff]
                  %732 = vst [vmem:[%s658 + $0x120] sm:$0xff] %v731
                  %v733 = vld [vmem:[%s657 + $0x228] sm:$0xff]
                  %734 = vst [vmem:[%s658 + $0x128] sm:$0xff] %v733
                  %v735 = vld [vmem:[%s657 + $0x230] sm:$0xff]
                  %736 = vst [vmem:[%s658 + $0x130] sm:$0xff] %v735
                  %v737 = vld [vmem:[%s657 + $0x238] sm:$0xff]
                  %738 = vst [vmem:[%s658 + $0x138] sm:$0xff] %v737
                  %v739 = vld [vmem:[%s657 + $0x240] sm:$0xff]
                  %740 = vst [vmem:[%s658 + $0x140] sm:$0xff] %v739
                  %v741 = vld [vmem:[%s657 + $0x248] sm:$0xff]
                  %742 = vst [vmem:[%s658 + $0x148] sm:$0xff] %v741
                  %v743 = vld [vmem:[%s657 + $0x250] sm:$0xff]
                  %744 = vst [vmem:[%s658 + $0x150] sm:$0xff] %v743
                  %v745 = vld [vmem:[%s657 + $0x258] sm:$0xff]
                  %746 = vst [vmem:[%s658 + $0x158] sm:$0xff] %v745
                  %v747 = vld [vmem:[%s657 + $0x260] sm:$0xff]
                  %748 = vst [vmem:[%s658 + $0x160] sm:$0xff] %v747
                  %v749 = vld [vmem:[%s657 + $0x268] sm:$0xff]
                  %750 = vst [vmem:[%s658 + $0x168] sm:$0xff] %v749
                  %v751 = vld [vmem:[%s657 + $0x270] sm:$0xff]
                  %752 = vst [vmem:[%s658 + $0x170] sm:$0xff] %v751
                  %v753 = vld [vmem:[%s657 + $0x278] sm:$0xff]
                  %754 = vst [vmem:[%s658 + $0x178] sm:$0xff] %v753
                  %v755 = vld [vmem:[%s657 + $0x300] sm:$0xff]
                  %756 = vst [vmem:[%s658 + $0x180] sm:$0xff] %v755
                  %v757 = vld [vmem:[%s657 + $0x308] sm:$0xff]
                  %758 = vst [vmem:[%s658 + $0x188] sm:$0xff] %v757
                  %v759 = vld [vmem:[%s657 + $0x310] sm:$0xff]
                  %760 = vst [vmem:[%s658 + $0x190] sm:$0xff] %v759
                  %v761 = vld [vmem:[%s657 + $0x318] sm:$0xff]
                  %762 = vst [vmem:[%s658 + $0x198] sm:$0xff] %v761
                  %v763 = vld [vmem:[%s657 + $0x320] sm:$0xff]
                  %764 = vst [vmem:[%s658 + $0x1a0] sm:$0xff] %v763
                  %v765 = vld [vmem:[%s657 + $0x328] sm:$0xff]
                  %766 = vst [vmem:[%s658 + $0x1a8] sm:$0xff] %v765
                  %v767 = vld [vmem:[%s657 + $0x330] sm:$0xff]
                  %768 = vst [vmem:[%s658 + $0x1b0] sm:$0xff] %v767
                  %v769 = vld [vmem:[%s657 + $0x338] sm:$0xff]
                  %770 = vst [vmem:[%s658 + $0x1b8] sm:$0xff] %v769
                  %v771 = vld [vmem:[%s657 + $0x340] sm:$0xff]
                  %772 = vst [vmem:[%s658 + $0x1c0] sm:$0xff] %v771
                  %v773 = vld [vmem:[%s657 + $0x348] sm:$0xff]
                  %774 = vst [vmem:[%s658 + $0x1c8] sm:$0xff] %v773
                  %v775 = vld [vmem:[%s657 + $0x350] sm:$0xff]
                  %776 = vst [vmem:[%s658 + $0x1d0] sm:$0xff] %v775
                  %v777 = vld [vmem:[%s657 + $0x358] sm:$0xff]
                  %778 = vst [vmem:[%s658 + $0x1d8] sm:$0xff] %v777
                  %v779 = vld [vmem:[%s657 + $0x360] sm:$0xff]
                  %780 = vst [vmem:[%s658 + $0x1e0] sm:$0xff] %v779
                  %v781 = vld [vmem:[%s657 + $0x368] sm:$0xff]
                  %782 = vst [vmem:[%s658 + $0x1e8] sm:$0xff] %v781
                  %v783 = vld [vmem:[%s657 + $0x370] sm:$0xff]
                  %784 = vst [vmem:[%s658 + $0x1f0] sm:$0xff] %v783
                  %v785 = vld [vmem:[%s657 + $0x378] sm:$0xff]
                  %786 = vst [vmem:[%s658 + $0x1f8] sm:$0xff] %v785
                  %v787 = vld [vmem:[%s657 + $0x400] sm:$0xff]
                  %788 = vst [vmem:[%s658 + $0x200] sm:$0xff] %v787
                  %v789 = vld [vmem:[%s657 + $0x408] sm:$0xff]
                  %790 = vst [vmem:[%s658 + $0x208] sm:$0xff] %v789
                  %v791 = vld [vmem:[%s657 + $0x410] sm:$0xff]
                  %792 = vst [vmem:[%s658 + $0x210] sm:$0xff] %v791
                  %v793 = vld [vmem:[%s657 + $0x418] sm:$0xff]
                  %794 = vst [vmem:[%s658 + $0x218] sm:$0xff] %v793
                  %v795 = vld [vmem:[%s657 + $0x420] sm:$0xff]
                  %796 = vst [vmem:[%s658 + $0x220] sm:$0xff] %v795
                  %v797 = vld [vmem:[%s657 + $0x428] sm:$0xff]
                  %798 = vst [vmem:[%s658 + $0x228] sm:$0xff] %v797
                  %v799 = vld [vmem:[%s657 + $0x430] sm:$0xff]
                  %800 = vst [vmem:[%s658 + $0x230] sm:$0xff] %v799
                  %v801 = vld [vmem:[%s657 + $0x438] sm:$0xff]
                  %802 = vst [vmem:[%s658 + $0x238] sm:$0xff] %v801
                  %v803 = vld [vmem:[%s657 + $0x440] sm:$0xff]
                  %804 = vst [vmem:[%s658 + $0x240] sm:$0xff] %v803
                  %v805 = vld [vmem:[%s657 + $0x448] sm:$0xff]
                  %806 = vst [vmem:[%s658 + $0x248] sm:$0xff] %v805
                  %v807 = vld [vmem:[%s657 + $0x450] sm:$0xff]
                  %808 = vst [vmem:[%s658 + $0x250] sm:$0xff] %v807
                  %v809 = vld [vmem:[%s657 + $0x458] sm:$0xff]
                  %810 = vst [vmem:[%s658 + $0x258] sm:$0xff] %v809
                  %v811 = vld [vmem:[%s657 + $0x460] sm:$0xff]
                  %812 = vst [vmem:[%s658 + $0x260] sm:$0xff] %v811
                  %v813 = vld [vmem:[%s657 + $0x468] sm:$0xff]
                  %814 = vst [vmem:[%s658 + $0x268] sm:$0xff] %v813
                  %v815 = vld [vmem:[%s657 + $0x470] sm:$0xff]
                  %816 = vst [vmem:[%s658 + $0x270] sm:$0xff] %v815
                  %v817 = vld [vmem:[%s657 + $0x478] sm:$0xff]
                  %818 = vst [vmem:[%s658 + $0x278] sm:$0xff] %v817
                  %v819 = vld [vmem:[%s657 + $0x500] sm:$0xff]
                  %820 = vst [vmem:[%s658 + $0x280] sm:$0xff] %v819
                  %v821 = vld [vmem:[%s657 + $0x508] sm:$0xff]
                  %822 = vst [vmem:[%s658 + $0x288] sm:$0xff] %v821
                  %v823 = vld [vmem:[%s657 + $0x510] sm:$0xff]
                  %824 = vst [vmem:[%s658 + $0x290] sm:$0xff] %v823
                  %v825 = vld [vmem:[%s657 + $0x518] sm:$0xff]
                  %826 = vst [vmem:[%s658 + $0x298] sm:$0xff] %v825
                  %v827 = vld [vmem:[%s657 + $0x520] sm:$0xff]
                  %828 = vst [vmem:[%s658 + $0x2a0] sm:$0xff] %v827
                  %v829 = vld [vmem:[%s657 + $0x528] sm:$0xff]
                  %830 = vst [vmem:[%s658 + $0x2a8] sm:$0xff] %v829
                  %v831 = vld [vmem:[%s657 + $0x530] sm:$0xff]
                  %832 = vst [vmem:[%s658 + $0x2b0] sm:$0xff] %v831
                  %v833 = vld [vmem:[%s657 + $0x538] sm:$0xff]
                  %834 = vst [vmem:[%s658 + $0x2b8] sm:$0xff] %v833
                  %v835 = vld [vmem:[%s657 + $0x540] sm:$0xff]
                  %836 = vst [vmem:[%s658 + $0x2c0] sm:$0xff] %v835
                  %v837 = vld [vmem:[%s657 + $0x548] sm:$0xff]
                  %838 = vst [vmem:[%s658 + $0x2c8] sm:$0xff] %v837
                  %v839 = vld [vmem:[%s657 + $0x550] sm:$0xff]
                  %840 = vst [vmem:[%s658 + $0x2d0] sm:$0xff] %v839
                  %v841 = vld [vmem:[%s657 + $0x558] sm:$0xff]
                  %842 = vst [vmem:[%s658 + $0x2d8] sm:$0xff] %v841
                  %v843 = vld [vmem:[%s657 + $0x560] sm:$0xff]
                  %844 = vst [vmem:[%s658 + $0x2e0] sm:$0xff] %v843
                  %v845 = vld [vmem:[%s657 + $0x568] sm:$0xff]
                  %846 = vst [vmem:[%s658 + $0x2e8] sm:$0xff] %v845
                  %v847 = vld [vmem:[%s657 + $0x570] sm:$0xff]
                  %848 = vst [vmem:[%s658 + $0x2f0] sm:$0xff] %v847
                  %v849 = vld [vmem:[%s657 + $0x578] sm:$0xff]
                  %850 = vst [vmem:[%s658 + $0x2f8] sm:$0xff] %v849
                  %v851 = vld [vmem:[%s657 + $0x600] sm:$0xff]
                  %852 = vst [vmem:[%s658 + $0x300] sm:$0xff] %v851
                  %v853 = vld [vmem:[%s657 + $0x608] sm:$0xff]
                  %854 = vst [vmem:[%s658 + $0x308] sm:$0xff] %v853
                  %v855 = vld [vmem:[%s657 + $0x610] sm:$0xff]
                  %856 = vst [vmem:[%s658 + $0x310] sm:$0xff] %v855
                  %v857 = vld [vmem:[%s657 + $0x618] sm:$0xff]
                  %858 = vst [vmem:[%s658 + $0x318] sm:$0xff] %v857
                  %v859 = vld [vmem:[%s657 + $0x620] sm:$0xff]
                  %860 = vst [vmem:[%s658 + $0x320] sm:$0xff] %v859
                  %v861 = vld [vmem:[%s657 + $0x628] sm:$0xff]
                  %862 = vst [vmem:[%s658 + $0x328] sm:$0xff] %v861
                  %v863 = vld [vmem:[%s657 + $0x630] sm:$0xff]
                  %864 = vst [vmem:[%s658 + $0x330] sm:$0xff] %v863
                  %v865 = vld [vmem:[%s657 + $0x638] sm:$0xff]
                  %866 = vst [vmem:[%s658 + $0x338] sm:$0xff] %v865
                  %v867 = vld [vmem:[%s657 + $0x640] sm:$0xff]
                  %868 = vst [vmem:[%s658 + $0x340] sm:$0xff] %v867
                  %v869 = vld [vmem:[%s657 + $0x648] sm:$0xff]
                  %870 = vst [vmem:[%s658 + $0x348] sm:$0xff] %v869
                  %v871 = vld [vmem:[%s657 + $0x650] sm:$0xff]
                  %872 = vst [vmem:[%s658 + $0x350] sm:$0xff] %v871
                  %v873 = vld [vmem:[%s657 + $0x658] sm:$0xff]
                  %874 = vst [vmem:[%s658 + $0x358] sm:$0xff] %v873
                  %v875 = vld [vmem:[%s657 + $0x660] sm:$0xff]
                  %876 = vst [vmem:[%s658 + $0x360] sm:$0xff] %v875
                  %v877 = vld [vmem:[%s657 + $0x668] sm:$0xff]
                  %878 = vst [vmem:[%s658 + $0x368] sm:$0xff] %v877
                  %v879 = vld [vmem:[%s657 + $0x670] sm:$0xff]
                  %880 = vst [vmem:[%s658 + $0x370] sm:$0xff] %v879
                  %v881 = vld [vmem:[%s657 + $0x678] sm:$0xff]
                  %882 = vst [vmem:[%s658 + $0x378] sm:$0xff] %v881
                  %v883 = vld [vmem:[%s657 + $0x700] sm:$0xff]
                  %884 = vst [vmem:[%s658 + $0x380] sm:$0xff] %v883
                  %v885 = vld [vmem:[%s657 + $0x708] sm:$0xff]
                  %886 = vst [vmem:[%s658 + $0x388] sm:$0xff] %v885
                  %v887 = vld [vmem:[%s657 + $0x710] sm:$0xff]
                  %888 = vst [vmem:[%s658 + $0x390] sm:$0xff] %v887
                  %v889 = vld [vmem:[%s657 + $0x718] sm:$0xff]
                  %890 = vst [vmem:[%s658 + $0x398] sm:$0xff] %v889
                  %v891 = vld [vmem:[%s657 + $0x720] sm:$0xff]
                  %892 = vst [vmem:[%s658 + $0x3a0] sm:$0xff] %v891
                  %v893 = vld [vmem:[%s657 + $0x728] sm:$0xff]
                  %894 = vst [vmem:[%s658 + $0x3a8] sm:$0xff] %v893
                  %v895 = vld [vmem:[%s657 + $0x730] sm:$0xff]
                  %896 = vst [vmem:[%s658 + $0x3b0] sm:$0xff] %v895
                  %v897 = vld [vmem:[%s657 + $0x738] sm:$0xff]
                  %898 = vst [vmem:[%s658 + $0x3b8] sm:$0xff] %v897
                  %v899 = vld [vmem:[%s657 + $0x740] sm:$0xff]
                  %900 = vst [vmem:[%s658 + $0x3c0] sm:$0xff] %v899
                  %v901 = vld [vmem:[%s657 + $0x748] sm:$0xff]
                  %902 = vst [vmem:[%s658 + $0x3c8] sm:$0xff] %v901
                  %v903 = vld [vmem:[%s657 + $0x750] sm:$0xff]
                  %904 = vst [vmem:[%s658 + $0x3d0] sm:$0xff] %v903
                  %v905 = vld [vmem:[%s657 + $0x758] sm:$0xff]
                  %906 = vst [vmem:[%s658 + $0x3d8] sm:$0xff] %v905
                  %v907 = vld [vmem:[%s657 + $0x760] sm:$0xff]
                  %908 = vst [vmem:[%s658 + $0x3e0] sm:$0xff] %v907
                  %v909 = vld [vmem:[%s657 + $0x768] sm:$0xff]
                  %910 = vst [vmem:[%s658 + $0x3e8] sm:$0xff] %v909
                  %v911 = vld [vmem:[%s657 + $0x770] sm:$0xff]
                  %912 = vst [vmem:[%s658 + $0x3f0] sm:$0xff] %v911
                  %v913 = vld [vmem:[%s657 + $0x778] sm:$0xff]
                  %914 = vst [vmem:[%s658 + $0x3f8] sm:$0xff] %v913
                $region72: #{tpu_custom_call.1} parent=66 // loop_footer
                  %s656 = sadd.s32 1, %s652
                $region73: #{tpu_custom_call.1} parent=66 // loop_footer_branch
                  %651 = sbr.rel target = $region69
                $region74: #{tpu_custom_call.1} parent=66 // loop_exit
                  _
              $region67: #{tpu_custom_call.1} parent=51 // pred_fallthru
                _
              // Predicated region
              $region75: #{tpu_custom_call.1} parent=51 // pred_check
                _
              $region76: #{tpu_custom_call.1} parent=51 // pred_check_branch
                %916 = sbr.rel target = $region78
              $region77: #{tpu_custom_call.1} parent=51 // pred_region
                _
              $region78: #{tpu_custom_call.1} parent=51 // pred_fallthru
                _
            $region52: #{tpu_custom_call.1} parent=47 // pred_fallthru
              _
            // Predicated region
            $region53: #{tpu_custom_call.1} parent=47 // pred_check
              _
            $region54: #{tpu_custom_call.1} parent=47 // pred_check_branch
              %382 = sbr.rel target = $region56
            $region55: #{tpu_custom_call.1} parent=47 // pred_region
              %s384 = ssub.s32 256, 1
              loop: start=0, step=1, limit=1
              $region57: #{tpu_custom_call.1} parent=55 // loop_pre_header
                _
              $region58: #{tpu_custom_call.1} parent=55 // loop_header
                %s386 = sphi 0, %s390
                %p387 = scmp.ge.s32.totalorder %s386, 1
                %s391 = sphi %s376, %s376
                %s392 = sphi %s370, %s370
              $region59: #{tpu_custom_call.1} parent=55 // loop_header_branch
                %389 = sbr.rel (%p387) target = $region63
              $region60: #{tpu_custom_call.1} parent=55 // loop_body
                %v393 = vld [vmem:[%s391] sm:%s384]
                %394 = vst [vmem:[%s392] sm:%s384] %v393
                %v395 = vld [vmem:[%s391 + $0x8] sm:%s384]
                %396 = vst [vmem:[%s392 + $0x8] sm:%s384] %v395
                %v397 = vld [vmem:[%s391 + $0x10] sm:%s384]
                %398 = vst [vmem:[%s392 + $0x10] sm:%s384] %v397
                %v399 = vld [vmem:[%s391 + $0x18] sm:%s384]
                %400 = vst [vmem:[%s392 + $0x18] sm:%s384] %v399
                %v401 = vld [vmem:[%s391 + $0x20] sm:%s384]
                %402 = vst [vmem:[%s392 + $0x20] sm:%s384] %v401
                %v403 = vld [vmem:[%s391 + $0x28] sm:%s384]
                %404 = vst [vmem:[%s392 + $0x28] sm:%s384] %v403
                %v405 = vld [vmem:[%s391 + $0x30] sm:%s384]
                %406 = vst [vmem:[%s392 + $0x30] sm:%s384] %v405
                %v407 = vld [vmem:[%s391 + $0x38] sm:%s384]
                %408 = vst [vmem:[%s392 + $0x38] sm:%s384] %v407
                %v409 = vld [vmem:[%s391 + $0x40] sm:%s384]
                %410 = vst [vmem:[%s392 + $0x40] sm:%s384] %v409
                %v411 = vld [vmem:[%s391 + $0x48] sm:%s384]
                %412 = vst [vmem:[%s392 + $0x48] sm:%s384] %v411
                %v413 = vld [vmem:[%s391 + $0x50] sm:%s384]
                %414 = vst [vmem:[%s392 + $0x50] sm:%s384] %v413
                %v415 = vld [vmem:[%s391 + $0x58] sm:%s384]
                %416 = vst [vmem:[%s392 + $0x58] sm:%s384] %v415
                %v417 = vld [vmem:[%s391 + $0x60] sm:%s384]
                %418 = vst [vmem:[%s392 + $0x60] sm:%s384] %v417
                %v419 = vld [vmem:[%s391 + $0x68] sm:%s384]
                %420 = vst [vmem:[%s392 + $0x68] sm:%s384] %v419
                %v421 = vld [vmem:[%s391 + $0x70] sm:%s384]
                %422 = vst [vmem:[%s392 + $0x70] sm:%s384] %v421
                %v423 = vld [vmem:[%s391 + $0x78] sm:%s384]
                %424 = vst [vmem:[%s392 + $0x78] sm:%s384] %v423
                %v425 = vld [vmem:[%s391 + $0x100] sm:%s384]
                %426 = vst [vmem:[%s392 + $0x80] sm:%s384] %v425
                %v427 = vld [vmem:[%s391 + $0x108] sm:%s384]
                %428 = vst [vmem:[%s392 + $0x88] sm:%s384] %v427
                %v429 = vld [vmem:[%s391 + $0x110] sm:%s384]
                %430 = vst [vmem:[%s392 + $0x90] sm:%s384] %v429
                %v431 = vld [vmem:[%s391 + $0x118] sm:%s384]
                %432 = vst [vmem:[%s392 + $0x98] sm:%s384] %v431
                %v433 = vld [vmem:[%s391 + $0x120] sm:%s384]
                %434 = vst [vmem:[%s392 + $0xa0] sm:%s384] %v433
                %v435 = vld [vmem:[%s391 + $0x128] sm:%s384]
                %436 = vst [vmem:[%s392 + $0xa8] sm:%s384] %v435
                %v437 = vld [vmem:[%s391 + $0x130] sm:%s384]
                %438 = vst [vmem:[%s392 + $0xb0] sm:%s384] %v437
                %v439 = vld [vmem:[%s391 + $0x138] sm:%s384]
                %440 = vst [vmem:[%s392 + $0xb8] sm:%s384] %v439
                %v441 = vld [vmem:[%s391 + $0x140] sm:%s384]
                %442 = vst [vmem:[%s392 + $0xc0] sm:%s384] %v441
                %v443 = vld [vmem:[%s391 + $0x148] sm:%s384]
                %444 = vst [vmem:[%s392 + $0xc8] sm:%s384] %v443
                %v445 = vld [vmem:[%s391 + $0x150] sm:%s384]
                %446 = vst [vmem:[%s392 + $0xd0] sm:%s384] %v445
                %v447 = vld [vmem:[%s391 + $0x158] sm:%s384]
                %448 = vst [vmem:[%s392 + $0xd8] sm:%s384] %v447
                %v449 = vld [vmem:[%s391 + $0x160] sm:%s384]
                %450 = vst [vmem:[%s392 + $0xe0] sm:%s384] %v449
                %v451 = vld [vmem:[%s391 + $0x168] sm:%s384]
                %452 = vst [vmem:[%s392 + $0xe8] sm:%s384] %v451
                %v453 = vld [vmem:[%s391 + $0x170] sm:%s384]
                %454 = vst [vmem:[%s392 + $0xf0] sm:%s384] %v453
                %v455 = vld [vmem:[%s391 + $0x178] sm:%s384]
                %456 = vst [vmem:[%s392 + $0xf8] sm:%s384] %v455
                %v457 = vld [vmem:[%s391 + $0x200] sm:%s384]
                %458 = vst [vmem:[%s392 + $0x100] sm:%s384] %v457
                %v459 = vld [vmem:[%s391 + $0x208] sm:%s384]
                %460 = vst [vmem:[%s392 + $0x108] sm:%s384] %v459
                %v461 = vld [vmem:[%s391 + $0x210] sm:%s384]
                %462 = vst [vmem:[%s392 + $0x110] sm:%s384] %v461
                %v463 = vld [vmem:[%s391 + $0x218] sm:%s384]
                %464 = vst [vmem:[%s392 + $0x118] sm:%s384] %v463
                %v465 = vld [vmem:[%s391 + $0x220] sm:%s384]
                %466 = vst [vmem:[%s392 + $0x120] sm:%s384] %v465
                %v467 = vld [vmem:[%s391 + $0x228] sm:%s384]
                %468 = vst [vmem:[%s392 + $0x128] sm:%s384] %v467
                %v469 = vld [vmem:[%s391 + $0x230] sm:%s384]
                %470 = vst [vmem:[%s392 + $0x130] sm:%s384] %v469
                %v471 = vld [vmem:[%s391 + $0x238] sm:%s384]
                %472 = vst [vmem:[%s392 + $0x138] sm:%s384] %v471
                %v473 = vld [vmem:[%s391 + $0x240] sm:%s384]
                %474 = vst [vmem:[%s392 + $0x140] sm:%s384] %v473
                %v475 = vld [vmem:[%s391 + $0x248] sm:%s384]
                %476 = vst [vmem:[%s392 + $0x148] sm:%s384] %v475
                %v477 = vld [vmem:[%s391 + $0x250] sm:%s384]
                %478 = vst [vmem:[%s392 + $0x150] sm:%s384] %v477
                %v479 = vld [vmem:[%s391 + $0x258] sm:%s384]
                %480 = vst [vmem:[%s392 + $0x158] sm:%s384] %v479
                %v481 = vld [vmem:[%s391 + $0x260] sm:%s384]
                %482 = vst [vmem:[%s392 + $0x160] sm:%s384] %v481
                %v483 = vld [vmem:[%s391 + $0x268] sm:%s384]
                %484 = vst [vmem:[%s392 + $0x168] sm:%s384] %v483
                %v485 = vld [vmem:[%s391 + $0x270] sm:%s384]
                %486 = vst [vmem:[%s392 + $0x170] sm:%s384] %v485
                %v487 = vld [vmem:[%s391 + $0x278] sm:%s384]
                %488 = vst [vmem:[%s392 + $0x178] sm:%s384] %v487
                %v489 = vld [vmem:[%s391 + $0x300] sm:%s384]
                %490 = vst [vmem:[%s392 + $0x180] sm:%s384] %v489
                %v491 = vld [vmem:[%s391 + $0x308] sm:%s384]
                %492 = vst [vmem:[%s392 + $0x188] sm:%s384] %v491
                %v493 = vld [vmem:[%s391 + $0x310] sm:%s384]
                %494 = vst [vmem:[%s392 + $0x190] sm:%s384] %v493
                %v495 = vld [vmem:[%s391 + $0x318] sm:%s384]
                %496 = vst [vmem:[%s392 + $0x198] sm:%s384] %v495
                %v497 = vld [vmem:[%s391 + $0x320] sm:%s384]
                %498 = vst [vmem:[%s392 + $0x1a0] sm:%s384] %v497
                %v499 = vld [vmem:[%s391 + $0x328] sm:%s384]
                %500 = vst [vmem:[%s392 + $0x1a8] sm:%s384] %v499
                %v501 = vld [vmem:[%s391 + $0x330] sm:%s384]
                %502 = vst [vmem:[%s392 + $0x1b0] sm:%s384] %v501
                %v503 = vld [vmem:[%s391 + $0x338] sm:%s384]
                %504 = vst [vmem:[%s392 + $0x1b8] sm:%s384] %v503
                %v505 = vld [vmem:[%s391 + $0x340] sm:%s384]
                %506 = vst [vmem:[%s392 + $0x1c0] sm:%s384] %v505
                %v507 = vld [vmem:[%s391 + $0x348] sm:%s384]
                %508 = vst [vmem:[%s392 + $0x1c8] sm:%s384] %v507
                %v509 = vld [vmem:[%s391 + $0x350] sm:%s384]
                %510 = vst [vmem:[%s392 + $0x1d0] sm:%s384] %v509
                %v511 = vld [vmem:[%s391 + $0x358] sm:%s384]
                %512 = vst [vmem:[%s392 + $0x1d8] sm:%s384] %v511
                %v513 = vld [vmem:[%s391 + $0x360] sm:%s384]
                %514 = vst [vmem:[%s392 + $0x1e0] sm:%s384] %v513
                %v515 = vld [vmem:[%s391 + $0x368] sm:%s384]
                %516 = vst [vmem:[%s392 + $0x1e8] sm:%s384] %v515
                %v517 = vld [vmem:[%s391 + $0x370] sm:%s384]
                %518 = vst [vmem:[%s392 + $0x1f0] sm:%s384] %v517
                %v519 = vld [vmem:[%s391 + $0x378] sm:%s384]
                %520 = vst [vmem:[%s392 + $0x1f8] sm:%s384] %v519
                %v521 = vld [vmem:[%s391 + $0x400] sm:%s384]
                %522 = vst [vmem:[%s392 + $0x200] sm:%s384] %v521
                %v523 = vld [vmem:[%s391 + $0x408] sm:%s384]
                %524 = vst [vmem:[%s392 + $0x208] sm:%s384] %v523
                %v525 = vld [vmem:[%s391 + $0x410] sm:%s384]
                %526 = vst [vmem:[%s392 + $0x210] sm:%s384] %v525
                %v527 = vld [vmem:[%s391 + $0x418] sm:%s384]
                %528 = vst [vmem:[%s392 + $0x218] sm:%s384] %v527
                %v529 = vld [vmem:[%s391 + $0x420] sm:%s384]
                %530 = vst [vmem:[%s392 + $0x220] sm:%s384] %v529
                %v531 = vld [vmem:[%s391 + $0x428] sm:%s384]
                %532 = vst [vmem:[%s392 + $0x228] sm:%s384] %v531
                %v533 = vld [vmem:[%s391 + $0x430] sm:%s384]
                %534 = vst [vmem:[%s392 + $0x230] sm:%s384] %v533
                %v535 = vld [vmem:[%s391 + $0x438] sm:%s384]
                %536 = vst [vmem:[%s392 + $0x238] sm:%s384] %v535
                %v537 = vld [vmem:[%s391 + $0x440] sm:%s384]
                %538 = vst [vmem:[%s392 + $0x240] sm:%s384] %v537
                %v539 = vld [vmem:[%s391 + $0x448] sm:%s384]
                %540 = vst [vmem:[%s392 + $0x248] sm:%s384] %v539
                %v541 = vld [vmem:[%s391 + $0x450] sm:%s384]
                %542 = vst [vmem:[%s392 + $0x250] sm:%s384] %v541
                %v543 = vld [vmem:[%s391 + $0x458] sm:%s384]
                %544 = vst [vmem:[%s392 + $0x258] sm:%s384] %v543
                %v545 = vld [vmem:[%s391 + $0x460] sm:%s384]
                %546 = vst [vmem:[%s392 + $0x260] sm:%s384] %v545
                %v547 = vld [vmem:[%s391 + $0x468] sm:%s384]
                %548 = vst [vmem:[%s392 + $0x268] sm:%s384] %v547
                %v549 = vld [vmem:[%s391 + $0x470] sm:%s384]
                %550 = vst [vmem:[%s392 + $0x270] sm:%s384] %v549
                %v551 = vld [vmem:[%s391 + $0x478] sm:%s384]
                %552 = vst [vmem:[%s392 + $0x278] sm:%s384] %v551
                %v553 = vld [vmem:[%s391 + $0x500] sm:%s384]
                %554 = vst [vmem:[%s392 + $0x280] sm:%s384] %v553
                %v555 = vld [vmem:[%s391 + $0x508] sm:%s384]
                %556 = vst [vmem:[%s392 + $0x288] sm:%s384] %v555
                %v557 = vld [vmem:[%s391 + $0x510] sm:%s384]
                %558 = vst [vmem:[%s392 + $0x290] sm:%s384] %v557
                %v559 = vld [vmem:[%s391 + $0x518] sm:%s384]
                %560 = vst [vmem:[%s392 + $0x298] sm:%s384] %v559
                %v561 = vld [vmem:[%s391 + $0x520] sm:%s384]
                %562 = vst [vmem:[%s392 + $0x2a0] sm:%s384] %v561
                %v563 = vld [vmem:[%s391 + $0x528] sm:%s384]
                %564 = vst [vmem:[%s392 + $0x2a8] sm:%s384] %v563
                %v565 = vld [vmem:[%s391 + $0x530] sm:%s384]
                %566 = vst [vmem:[%s392 + $0x2b0] sm:%s384] %v565
                %v567 = vld [vmem:[%s391 + $0x538] sm:%s384]
                %568 = vst [vmem:[%s392 + $0x2b8] sm:%s384] %v567
                %v569 = vld [vmem:[%s391 + $0x540] sm:%s384]
                %570 = vst [vmem:[%s392 + $0x2c0] sm:%s384] %v569
                %v571 = vld [vmem:[%s391 + $0x548] sm:%s384]
                %572 = vst [vmem:[%s392 + $0x2c8] sm:%s384] %v571
                %v573 = vld [vmem:[%s391 + $0x550] sm:%s384]
                %574 = vst [vmem:[%s392 + $0x2d0] sm:%s384] %v573
                %v575 = vld [vmem:[%s391 + $0x558] sm:%s384]
                %576 = vst [vmem:[%s392 + $0x2d8] sm:%s384] %v575
                %v577 = vld [vmem:[%s391 + $0x560] sm:%s384]
                %578 = vst [vmem:[%s392 + $0x2e0] sm:%s384] %v577
                %v579 = vld [vmem:[%s391 + $0x568] sm:%s384]
                %580 = vst [vmem:[%s392 + $0x2e8] sm:%s384] %v579
                %v581 = vld [vmem:[%s391 + $0x570] sm:%s384]
                %582 = vst [vmem:[%s392 + $0x2f0] sm:%s384] %v581
                %v583 = vld [vmem:[%s391 + $0x578] sm:%s384]
                %584 = vst [vmem:[%s392 + $0x2f8] sm:%s384] %v583
                %v585 = vld [vmem:[%s391 + $0x600] sm:%s384]
                %586 = vst [vmem:[%s392 + $0x300] sm:%s384] %v585
                %v587 = vld [vmem:[%s391 + $0x608] sm:%s384]
                %588 = vst [vmem:[%s392 + $0x308] sm:%s384] %v587
                %v589 = vld [vmem:[%s391 + $0x610] sm:%s384]
                %590 = vst [vmem:[%s392 + $0x310] sm:%s384] %v589
                %v591 = vld [vmem:[%s391 + $0x618] sm:%s384]
                %592 = vst [vmem:[%s392 + $0x318] sm:%s384] %v591
                %v593 = vld [vmem:[%s391 + $0x620] sm:%s384]
                %594 = vst [vmem:[%s392 + $0x320] sm:%s384] %v593
                %v595 = vld [vmem:[%s391 + $0x628] sm:%s384]
                %596 = vst [vmem:[%s392 + $0x328] sm:%s384] %v595
                %v597 = vld [vmem:[%s391 + $0x630] sm:%s384]
                %598 = vst [vmem:[%s392 + $0x330] sm:%s384] %v597
                %v599 = vld [vmem:[%s391 + $0x638] sm:%s384]
                %600 = vst [vmem:[%s392 + $0x338] sm:%s384] %v599
                %v601 = vld [vmem:[%s391 + $0x640] sm:%s384]
                %602 = vst [vmem:[%s392 + $0x340] sm:%s384] %v601
                %v603 = vld [vmem:[%s391 + $0x648] sm:%s384]
                %604 = vst [vmem:[%s392 + $0x348] sm:%s384] %v603
                %v605 = vld [vmem:[%s391 + $0x650] sm:%s384]
                %606 = vst [vmem:[%s392 + $0x350] sm:%s384] %v605
                %v607 = vld [vmem:[%s391 + $0x658] sm:%s384]
                %608 = vst [vmem:[%s392 + $0x358] sm:%s384] %v607
                %v609 = vld [vmem:[%s391 + $0x660] sm:%s384]
                %610 = vst [vmem:[%s392 + $0x360] sm:%s384] %v609
                %v611 = vld [vmem:[%s391 + $0x668] sm:%s384]
                %612 = vst [vmem:[%s392 + $0x368] sm:%s384] %v611
                %v613 = vld [vmem:[%s391 + $0x670] sm:%s384]
                %614 = vst [vmem:[%s392 + $0x370] sm:%s384] %v613
                %v615 = vld [vmem:[%s391 + $0x678] sm:%s384]
                %616 = vst [vmem:[%s392 + $0x378] sm:%s384] %v615
                %v617 = vld [vmem:[%s391 + $0x700] sm:%s384]
                %618 = vst [vmem:[%s392 + $0x380] sm:%s384] %v617
                %v619 = vld [vmem:[%s391 + $0x708] sm:%s384]
                %620 = vst [vmem:[%s392 + $0x388] sm:%s384] %v619
                %v621 = vld [vmem:[%s391 + $0x710] sm:%s384]
                %622 = vst [vmem:[%s392 + $0x390] sm:%s384] %v621
                %v623 = vld [vmem:[%s391 + $0x718] sm:%s384]
                %624 = vst [vmem:[%s392 + $0x398] sm:%s384] %v623
                %v625 = vld [vmem:[%s391 + $0x720] sm:%s384]
                %626 = vst [vmem:[%s392 + $0x3a0] sm:%s384] %v625
                %v627 = vld [vmem:[%s391 + $0x728] sm:%s384]
                %628 = vst [vmem:[%s392 + $0x3a8] sm:%s384] %v627
                %v629 = vld [vmem:[%s391 + $0x730] sm:%s384]
                %630 = vst [vmem:[%s392 + $0x3b0] sm:%s384] %v629
                %v631 = vld [vmem:[%s391 + $0x738] sm:%s384]
                %632 = vst [vmem:[%s392 + $0x3b8] sm:%s384] %v631
                %v633 = vld [vmem:[%s391 + $0x740] sm:%s384]
                %634 = vst [vmem:[%s392 + $0x3c0] sm:%s384] %v633
                %v635 = vld [vmem:[%s391 + $0x748] sm:%s384]
                %636 = vst [vmem:[%s392 + $0x3c8] sm:%s384] %v635
                %v637 = vld [vmem:[%s391 + $0x750] sm:%s384]
                %638 = vst [vmem:[%s392 + $0x3d0] sm:%s384] %v637
                %v639 = vld [vmem:[%s391 + $0x758] sm:%s384]
                %640 = vst [vmem:[%s392 + $0x3d8] sm:%s384] %v639
                %v641 = vld [vmem:[%s391 + $0x760] sm:%s384]
                %642 = vst [vmem:[%s392 + $0x3e0] sm:%s384] %v641
                %v643 = vld [vmem:[%s391 + $0x768] sm:%s384]
                %644 = vst [vmem:[%s392 + $0x3e8] sm:%s384] %v643
                %v645 = vld [vmem:[%s391 + $0x770] sm:%s384]
                %646 = vst [vmem:[%s392 + $0x3f0] sm:%s384] %v645
                %v647 = vld [vmem:[%s391 + $0x778] sm:%s384]
                %648 = vst [vmem:[%s392 + $0x3f8] sm:%s384] %v647
              $region61: #{tpu_custom_call.1} parent=55 // loop_footer
                %s390 = sadd.s32 1, %s386
              $region62: #{tpu_custom_call.1} parent=55 // loop_footer_branch
                %385 = sbr.rel target = $region58
              $region63: #{tpu_custom_call.1} parent=55 // loop_exit
                _
            $region56: #{tpu_custom_call.1} parent=47 // pred_fallthru
              _
          $region48: #{tpu_custom_call.1} parent=43 // pred_fallthru
            _
          %917 = vnop
        $region44: #{tpu_custom_call.1} parent=39 // pred_fallthru
          _
        // Predicated region
        $region79: #{tpu_custom_call.1} parent=39 // pred_check
          %p918 = pneg %p87
        $region80: #{tpu_custom_call.1} parent=39 // pred_check_branch
          %920 = sbr.rel (%p918) target = $region82
        $region81: #{tpu_custom_call.1} parent=39 // pred_region
          #allocation17 [shape = 'u32[6]{0}', space=smem, size = 0x18, scoped, tag = 'DMA stride descriptor']
          %s921 = sand.u32 %s77, 1
          %s922 = scalar_lea.sflag [#allocation8], %s921
          %s923 = sand.u32 %s77, 1
          %s924 = smul.addr %s923, 1024
          %s925 = scalar_lea.vmem [#allocation7], %s924
          %s926 = smul.u32 8, %s32
          %s927 = smul.u32 16, %s33
          %s929 = ssub.s32 16384, 16384
          %930 = vsyncadd %s922, %s929
          %s931 = smul.addr %s926, 32
          %s932 = sadd.s32 %s927, %s931
          %s933 = smul.addr %s932, 128
          %s934 = scalar_lea.hbm %s1, %s933
          %s936 = sshll.u32 1, 14
          %s937 = sxor.u32 4294967295, %s936
          %s939 = sld [smem:[#allocation0]]
          %s940 = sadd.s32 2, %s939
          %s942 = sshll.u32 7, 26
          %s943 = sxor.u32 4294967295, %s942
          %s944 = sand.u32 0, %s943
          %s945 = sshll.u32 %s940, 26
          %s946 = sor.u32 %s944, %s945
          %s947 = sshll.u32 %s925, 4
          %s948 = int_to_ptr.vmem [resolvable:$true] %s947
          %954 = sst [smem:[#allocation17]] 4096
          %s955 = scalar_lea.smem [#allocation17], 1
          %956 = sst [smem:[%s955]] 2048
          %s957 = scalar_lea.smem [#allocation17], 2
          %958 = sst [smem:[%s957]] 16
          %s959 = scalar_lea.smem [#allocation17], 3
          %960 = sst [smem:[%s959]] 128
          %s961 = scalar_lea.smem [#allocation17], 4
          %962 = sst [smem:[%s961]] 128
          %s963 = scalar_lea.smem [#allocation17], 5
          %964 = sst [smem:[%s963]] 8
          %966 = dma.general %s934, 16384, %s948, %s922, 131072, [#allocation17], %s946, 0
        $region82: #{tpu_custom_call.1} parent=39 // pred_fallthru
          _
        // Predicated region
        $region83: #{tpu_custom_call.1} parent=39 // pred_check
          %p967 = pneg %p141
        $region84: #{tpu_custom_call.1} parent=39 // pred_check_branch
          %969 = sbr.rel (%p967) target = $region86
        $region85: #{tpu_custom_call.1} parent=39 // pred_region
          %s970 = sand.u32 %s131, 1
          %s971 = sand.u32 %s131, 1
          %s972 = smul.addr %s971, 1024
          %s973 = scalar_lea.vmem [#allocation10], %s972
          %s974 = smul.u32 8, %s32
          %s975 = smul.u32 16, %s33
          %s976 = smul.addr %s974, 32
          %s977 = sadd.s32 %s975, %s976
          %s978 = smul.addr %s977, 8
          %s979 = scalar_lea.vmem %s3, %s978
          // Predicated region
          $region87: #{tpu_custom_call.1} parent=85 // pred_check
            _
          $region88: #{tpu_custom_call.1} parent=85 // pred_check_branch
            %981 = sbr.rel (0) target = $region90
          $region89: #{tpu_custom_call.1} parent=85 // pred_region
            // Predicated region
            $region91: #{tpu_custom_call.1} parent=89 // pred_check
              _
            $region92: #{tpu_custom_call.1} parent=89 // pred_check_branch
              %983 = sbr.rel (0) target = $region94
            $region93: #{tpu_custom_call.1} parent=89 // pred_region
              // Predicated region
              $region106: #{tpu_custom_call.1} parent=93 // pred_check
                _
              $region107: #{tpu_custom_call.1} parent=93 // pred_check_branch
                %1253 = sbr.rel (0) target = $region109
              $region108: #{tpu_custom_call.1} parent=93 // pred_region
                loop: start=0, step=1, limit=1
                $region110: #{tpu_custom_call.1} parent=108 // loop_pre_header
                  _
                $region111: #{tpu_custom_call.1} parent=108 // loop_header
                  %s1255 = sphi 0, %s1259
                  %p1256 = scmp.ge.s32.totalorder %s1255, 1
                  %s1260 = sphi %s979, %s979
                  %s1261 = sphi %s973, %s973
                $region112: #{tpu_custom_call.1} parent=108 // loop_header_branch
                  %1258 = sbr.rel (%p1256) target = $region116
                $region113: #{tpu_custom_call.1} parent=108 // loop_body
                  %v1262 = vld [vmem:[%s1260] sm:$0xff]
                  %1263 = vst [vmem:[%s1261] sm:$0xff] %v1262
                  %v1264 = vld [vmem:[%s1260 + $0x8] sm:$0xff]
                  %1265 = vst [vmem:[%s1261 + $0x8] sm:$0xff] %v1264
                  %v1266 = vld [vmem:[%s1260 + $0x10] sm:$0xff]
                  %1267 = vst [vmem:[%s1261 + $0x10] sm:$0xff] %v1266
                  %v1268 = vld [vmem:[%s1260 + $0x18] sm:$0xff]
                  %1269 = vst [vmem:[%s1261 + $0x18] sm:$0xff] %v1268
                  %v1270 = vld [vmem:[%s1260 + $0x20] sm:$0xff]
                  %1271 = vst [vmem:[%s1261 + $0x20] sm:$0xff] %v1270
                  %v1272 = vld [vmem:[%s1260 + $0x28] sm:$0xff]
                  %1273 = vst [vmem:[%s1261 + $0x28] sm:$0xff] %v1272
                  %v1274 = vld [vmem:[%s1260 + $0x30] sm:$0xff]
                  %1275 = vst [vmem:[%s1261 + $0x30] sm:$0xff] %v1274
                  %v1276 = vld [vmem:[%s1260 + $0x38] sm:$0xff]
                  %1277 = vst [vmem:[%s1261 + $0x38] sm:$0xff] %v1276
                  %v1278 = vld [vmem:[%s1260 + $0x40] sm:$0xff]
                  %1279 = vst [vmem:[%s1261 + $0x40] sm:$0xff] %v1278
                  %v1280 = vld [vmem:[%s1260 + $0x48] sm:$0xff]
                  %1281 = vst [vmem:[%s1261 + $0x48] sm:$0xff] %v1280
                  %v1282 = vld [vmem:[%s1260 + $0x50] sm:$0xff]
                  %1283 = vst [vmem:[%s1261 + $0x50] sm:$0xff] %v1282
                  %v1284 = vld [vmem:[%s1260 + $0x58] sm:$0xff]
                  %1285 = vst [vmem:[%s1261 + $0x58] sm:$0xff] %v1284
                  %v1286 = vld [vmem:[%s1260 + $0x60] sm:$0xff]
                  %1287 = vst [vmem:[%s1261 + $0x60] sm:$0xff] %v1286
                  %v1288 = vld [vmem:[%s1260 + $0x68] sm:$0xff]
                  %1289 = vst [vmem:[%s1261 + $0x68] sm:$0xff] %v1288
                  %v1290 = vld [vmem:[%s1260 + $0x70] sm:$0xff]
                  %1291 = vst [vmem:[%s1261 + $0x70] sm:$0xff] %v1290
                  %v1292 = vld [vmem:[%s1260 + $0x78] sm:$0xff]
                  %1293 = vst [vmem:[%s1261 + $0x78] sm:$0xff] %v1292
                  %v1294 = vld [vmem:[%s1260 + $0x100] sm:$0xff]
                  %1295 = vst [vmem:[%s1261 + $0x80] sm:$0xff] %v1294
                  %v1296 = vld [vmem:[%s1260 + $0x108] sm:$0xff]
                  %1297 = vst [vmem:[%s1261 + $0x88] sm:$0xff] %v1296
                  %v1298 = vld [vmem:[%s1260 + $0x110] sm:$0xff]
                  %1299 = vst [vmem:[%s1261 + $0x90] sm:$0xff] %v1298
                  %v1300 = vld [vmem:[%s1260 + $0x118] sm:$0xff]
                  %1301 = vst [vmem:[%s1261 + $0x98] sm:$0xff] %v1300
                  %v1302 = vld [vmem:[%s1260 + $0x120] sm:$0xff]
                  %1303 = vst [vmem:[%s1261 + $0xa0] sm:$0xff] %v1302
                  %v1304 = vld [vmem:[%s1260 + $0x128] sm:$0xff]
                  %1305 = vst [vmem:[%s1261 + $0xa8] sm:$0xff] %v1304
                  %v1306 = vld [vmem:[%s1260 + $0x130] sm:$0xff]
                  %1307 = vst [vmem:[%s1261 + $0xb0] sm:$0xff] %v1306
                  %v1308 = vld [vmem:[%s1260 + $0x138] sm:$0xff]
                  %1309 = vst [vmem:[%s1261 + $0xb8] sm:$0xff] %v1308
                  %v1310 = vld [vmem:[%s1260 + $0x140] sm:$0xff]
                  %1311 = vst [vmem:[%s1261 + $0xc0] sm:$0xff] %v1310
                  %v1312 = vld [vmem:[%s1260 + $0x148] sm:$0xff]
                  %1313 = vst [vmem:[%s1261 + $0xc8] sm:$0xff] %v1312
                  %v1314 = vld [vmem:[%s1260 + $0x150] sm:$0xff]
                  %1315 = vst [vmem:[%s1261 + $0xd0] sm:$0xff] %v1314
                  %v1316 = vld [vmem:[%s1260 + $0x158] sm:$0xff]
                  %1317 = vst [vmem:[%s1261 + $0xd8] sm:$0xff] %v1316
                  %v1318 = vld [vmem:[%s1260 + $0x160] sm:$0xff]
                  %1319 = vst [vmem:[%s1261 + $0xe0] sm:$0xff] %v1318
                  %v1320 = vld [vmem:[%s1260 + $0x168] sm:$0xff]
                  %1321 = vst [vmem:[%s1261 + $0xe8] sm:$0xff] %v1320
                  %v1322 = vld [vmem:[%s1260 + $0x170] sm:$0xff]
                  %1323 = vst [vmem:[%s1261 + $0xf0] sm:$0xff] %v1322
                  %v1324 = vld [vmem:[%s1260 + $0x178] sm:$0xff]
                  %1325 = vst [vmem:[%s1261 + $0xf8] sm:$0xff] %v1324
                  %v1326 = vld [vmem:[%s1260 + $0x200] sm:$0xff]
                  %1327 = vst [vmem:[%s1261 + $0x100] sm:$0xff] %v1326
                  %v1328 = vld [vmem:[%s1260 + $0x208] sm:$0xff]
                  %1329 = vst [vmem:[%s1261 + $0x108] sm:$0xff] %v1328
                  %v1330 = vld [vmem:[%s1260 + $0x210] sm:$0xff]
                  %1331 = vst [vmem:[%s1261 + $0x110] sm:$0xff] %v1330
                  %v1332 = vld [vmem:[%s1260 + $0x218] sm:$0xff]
                  %1333 = vst [vmem:[%s1261 + $0x118] sm:$0xff] %v1332
                  %v1334 = vld [vmem:[%s1260 + $0x220] sm:$0xff]
                  %1335 = vst [vmem:[%s1261 + $0x120] sm:$0xff] %v1334
                  %v1336 = vld [vmem:[%s1260 + $0x228] sm:$0xff]
                  %1337 = vst [vmem:[%s1261 + $0x128] sm:$0xff] %v1336
                  %v1338 = vld [vmem:[%s1260 + $0x230] sm:$0xff]
                  %1339 = vst [vmem:[%s1261 + $0x130] sm:$0xff] %v1338
                  %v1340 = vld [vmem:[%s1260 + $0x238] sm:$0xff]
                  %1341 = vst [vmem:[%s1261 + $0x138] sm:$0xff] %v1340
                  %v1342 = vld [vmem:[%s1260 + $0x240] sm:$0xff]
                  %1343 = vst [vmem:[%s1261 + $0x140] sm:$0xff] %v1342
                  %v1344 = vld [vmem:[%s1260 + $0x248] sm:$0xff]
                  %1345 = vst [vmem:[%s1261 + $0x148] sm:$0xff] %v1344
                  %v1346 = vld [vmem:[%s1260 + $0x250] sm:$0xff]
                  %1347 = vst [vmem:[%s1261 + $0x150] sm:$0xff] %v1346
                  %v1348 = vld [vmem:[%s1260 + $0x258] sm:$0xff]
                  %1349 = vst [vmem:[%s1261 + $0x158] sm:$0xff] %v1348
                  %v1350 = vld [vmem:[%s1260 + $0x260] sm:$0xff]
                  %1351 = vst [vmem:[%s1261 + $0x160] sm:$0xff] %v1350
                  %v1352 = vld [vmem:[%s1260 + $0x268] sm:$0xff]
                  %1353 = vst [vmem:[%s1261 + $0x168] sm:$0xff] %v1352
                  %v1354 = vld [vmem:[%s1260 + $0x270] sm:$0xff]
                  %1355 = vst [vmem:[%s1261 + $0x170] sm:$0xff] %v1354
                  %v1356 = vld [vmem:[%s1260 + $0x278] sm:$0xff]
                  %1357 = vst [vmem:[%s1261 + $0x178] sm:$0xff] %v1356
                  %v1358 = vld [vmem:[%s1260 + $0x300] sm:$0xff]
                  %1359 = vst [vmem:[%s1261 + $0x180] sm:$0xff] %v1358
                  %v1360 = vld [vmem:[%s1260 + $0x308] sm:$0xff]
                  %1361 = vst [vmem:[%s1261 + $0x188] sm:$0xff] %v1360
                  %v1362 = vld [vmem:[%s1260 + $0x310] sm:$0xff]
                  %1363 = vst [vmem:[%s1261 + $0x190] sm:$0xff] %v1362
                  %v1364 = vld [vmem:[%s1260 + $0x318] sm:$0xff]
                  %1365 = vst [vmem:[%s1261 + $0x198] sm:$0xff] %v1364
                  %v1366 = vld [vmem:[%s1260 + $0x320] sm:$0xff]
                  %1367 = vst [vmem:[%s1261 + $0x1a0] sm:$0xff] %v1366
                  %v1368 = vld [vmem:[%s1260 + $0x328] sm:$0xff]
                  %1369 = vst [vmem:[%s1261 + $0x1a8] sm:$0xff] %v1368
                  %v1370 = vld [vmem:[%s1260 + $0x330] sm:$0xff]
                  %1371 = vst [vmem:[%s1261 + $0x1b0] sm:$0xff] %v1370
                  %v1372 = vld [vmem:[%s1260 + $0x338] sm:$0xff]
                  %1373 = vst [vmem:[%s1261 + $0x1b8] sm:$0xff] %v1372
                  %v1374 = vld [vmem:[%s1260 + $0x340] sm:$0xff]
                  %1375 = vst [vmem:[%s1261 + $0x1c0] sm:$0xff] %v1374
                  %v1376 = vld [vmem:[%s1260 + $0x348] sm:$0xff]
                  %1377 = vst [vmem:[%s1261 + $0x1c8] sm:$0xff] %v1376
                  %v1378 = vld [vmem:[%s1260 + $0x350] sm:$0xff]
                  %1379 = vst [vmem:[%s1261 + $0x1d0] sm:$0xff] %v1378
                  %v1380 = vld [vmem:[%s1260 + $0x358] sm:$0xff]
                  %1381 = vst [vmem:[%s1261 + $0x1d8] sm:$0xff] %v1380
                  %v1382 = vld [vmem:[%s1260 + $0x360] sm:$0xff]
                  %1383 = vst [vmem:[%s1261 + $0x1e0] sm:$0xff] %v1382
                  %v1384 = vld [vmem:[%s1260 + $0x368] sm:$0xff]
                  %1385 = vst [vmem:[%s1261 + $0x1e8] sm:$0xff] %v1384
                  %v1386 = vld [vmem:[%s1260 + $0x370] sm:$0xff]
                  %1387 = vst [vmem:[%s1261 + $0x1f0] sm:$0xff] %v1386
                  %v1388 = vld [vmem:[%s1260 + $0x378] sm:$0xff]
                  %1389 = vst [vmem:[%s1261 + $0x1f8] sm:$0xff] %v1388
                  %v1390 = vld [vmem:[%s1260 + $0x400] sm:$0xff]
                  %1391 = vst [vmem:[%s1261 + $0x200] sm:$0xff] %v1390
                  %v1392 = vld [vmem:[%s1260 + $0x408] sm:$0xff]
                  %1393 = vst [vmem:[%s1261 + $0x208] sm:$0xff] %v1392
                  %v1394 = vld [vmem:[%s1260 + $0x410] sm:$0xff]
                  %1395 = vst [vmem:[%s1261 + $0x210] sm:$0xff] %v1394
                  %v1396 = vld [vmem:[%s1260 + $0x418] sm:$0xff]
                  %1397 = vst [vmem:[%s1261 + $0x218] sm:$0xff] %v1396
                  %v1398 = vld [vmem:[%s1260 + $0x420] sm:$0xff]
                  %1399 = vst [vmem:[%s1261 + $0x220] sm:$0xff] %v1398
                  %v1400 = vld [vmem:[%s1260 + $0x428] sm:$0xff]
                  %1401 = vst [vmem:[%s1261 + $0x228] sm:$0xff] %v1400
                  %v1402 = vld [vmem:[%s1260 + $0x430] sm:$0xff]
                  %1403 = vst [vmem:[%s1261 + $0x230] sm:$0xff] %v1402
                  %v1404 = vld [vmem:[%s1260 + $0x438] sm:$0xff]
                  %1405 = vst [vmem:[%s1261 + $0x238] sm:$0xff] %v1404
                  %v1406 = vld [vmem:[%s1260 + $0x440] sm:$0xff]
                  %1407 = vst [vmem:[%s1261 + $0x240] sm:$0xff] %v1406
                  %v1408 = vld [vmem:[%s1260 + $0x448] sm:$0xff]
                  %1409 = vst [vmem:[%s1261 + $0x248] sm:$0xff] %v1408
                  %v1410 = vld [vmem:[%s1260 + $0x450] sm:$0xff]
                  %1411 = vst [vmem:[%s1261 + $0x250] sm:$0xff] %v1410
                  %v1412 = vld [vmem:[%s1260 + $0x458] sm:$0xff]
                  %1413 = vst [vmem:[%s1261 + $0x258] sm:$0xff] %v1412
                  %v1414 = vld [vmem:[%s1260 + $0x460] sm:$0xff]
                  %1415 = vst [vmem:[%s1261 + $0x260] sm:$0xff] %v1414
                  %v1416 = vld [vmem:[%s1260 + $0x468] sm:$0xff]
                  %1417 = vst [vmem:[%s1261 + $0x268] sm:$0xff] %v1416
                  %v1418 = vld [vmem:[%s1260 + $0x470] sm:$0xff]
                  %1419 = vst [vmem:[%s1261 + $0x270] sm:$0xff] %v1418
                  %v1420 = vld [vmem:[%s1260 + $0x478] sm:$0xff]
                  %1421 = vst [vmem:[%s1261 + $0x278] sm:$0xff] %v1420
                  %v1422 = vld [vmem:[%s1260 + $0x500] sm:$0xff]
                  %1423 = vst [vmem:[%s1261 + $0x280] sm:$0xff] %v1422
                  %v1424 = vld [vmem:[%s1260 + $0x508] sm:$0xff]
                  %1425 = vst [vmem:[%s1261 + $0x288] sm:$0xff] %v1424
                  %v1426 = vld [vmem:[%s1260 + $0x510] sm:$0xff]
                  %1427 = vst [vmem:[%s1261 + $0x290] sm:$0xff] %v1426
                  %v1428 = vld [vmem:[%s1260 + $0x518] sm:$0xff]
                  %1429 = vst [vmem:[%s1261 + $0x298] sm:$0xff] %v1428
                  %v1430 = vld [vmem:[%s1260 + $0x520] sm:$0xff]
                  %1431 = vst [vmem:[%s1261 + $0x2a0] sm:$0xff] %v1430
                  %v1432 = vld [vmem:[%s1260 + $0x528] sm:$0xff]
                  %1433 = vst [vmem:[%s1261 + $0x2a8] sm:$0xff] %v1432
                  %v1434 = vld [vmem:[%s1260 + $0x530] sm:$0xff]
                  %1435 = vst [vmem:[%s1261 + $0x2b0] sm:$0xff] %v1434
                  %v1436 = vld [vmem:[%s1260 + $0x538] sm:$0xff]
                  %1437 = vst [vmem:[%s1261 + $0x2b8] sm:$0xff] %v1436
                  %v1438 = vld [vmem:[%s1260 + $0x540] sm:$0xff]
                  %1439 = vst [vmem:[%s1261 + $0x2c0] sm:$0xff] %v1438
                  %v1440 = vld [vmem:[%s1260 + $0x548] sm:$0xff]
                  %1441 = vst [vmem:[%s1261 + $0x2c8] sm:$0xff] %v1440
                  %v1442 = vld [vmem:[%s1260 + $0x550] sm:$0xff]
                  %1443 = vst [vmem:[%s1261 + $0x2d0] sm:$0xff] %v1442
                  %v1444 = vld [vmem:[%s1260 + $0x558] sm:$0xff]
                  %1445 = vst [vmem:[%s1261 + $0x2d8] sm:$0xff] %v1444
                  %v1446 = vld [vmem:[%s1260 + $0x560] sm:$0xff]
                  %1447 = vst [vmem:[%s1261 + $0x2e0] sm:$0xff] %v1446
                  %v1448 = vld [vmem:[%s1260 + $0x568] sm:$0xff]
                  %1449 = vst [vmem:[%s1261 + $0x2e8] sm:$0xff] %v1448
                  %v1450 = vld [vmem:[%s1260 + $0x570] sm:$0xff]
                  %1451 = vst [vmem:[%s1261 + $0x2f0] sm:$0xff] %v1450
                  %v1452 = vld [vmem:[%s1260 + $0x578] sm:$0xff]
                  %1453 = vst [vmem:[%s1261 + $0x2f8] sm:$0xff] %v1452
                  %v1454 = vld [vmem:[%s1260 + $0x600] sm:$0xff]
                  %1455 = vst [vmem:[%s1261 + $0x300] sm:$0xff] %v1454
                  %v1456 = vld [vmem:[%s1260 + $0x608] sm:$0xff]
                  %1457 = vst [vmem:[%s1261 + $0x308] sm:$0xff] %v1456
                  %v1458 = vld [vmem:[%s1260 + $0x610] sm:$0xff]
                  %1459 = vst [vmem:[%s1261 + $0x310] sm:$0xff] %v1458
                  %v1460 = vld [vmem:[%s1260 + $0x618] sm:$0xff]
                  %1461 = vst [vmem:[%s1261 + $0x318] sm:$0xff] %v1460
                  %v1462 = vld [vmem:[%s1260 + $0x620] sm:$0xff]
                  %1463 = vst [vmem:[%s1261 + $0x320] sm:$0xff] %v1462
                  %v1464 = vld [vmem:[%s1260 + $0x628] sm:$0xff]
                  %1465 = vst [vmem:[%s1261 + $0x328] sm:$0xff] %v1464
                  %v1466 = vld [vmem:[%s1260 + $0x630] sm:$0xff]
                  %1467 = vst [vmem:[%s1261 + $0x330] sm:$0xff] %v1466
                  %v1468 = vld [vmem:[%s1260 + $0x638] sm:$0xff]
                  %1469 = vst [vmem:[%s1261 + $0x338] sm:$0xff] %v1468
                  %v1470 = vld [vmem:[%s1260 + $0x640] sm:$0xff]
                  %1471 = vst [vmem:[%s1261 + $0x340] sm:$0xff] %v1470
                  %v1472 = vld [vmem:[%s1260 + $0x648] sm:$0xff]
                  %1473 = vst [vmem:[%s1261 + $0x348] sm:$0xff] %v1472
                  %v1474 = vld [vmem:[%s1260 + $0x650] sm:$0xff]
                  %1475 = vst [vmem:[%s1261 + $0x350] sm:$0xff] %v1474
                  %v1476 = vld [vmem:[%s1260 + $0x658] sm:$0xff]
                  %1477 = vst [vmem:[%s1261 + $0x358] sm:$0xff] %v1476
                  %v1478 = vld [vmem:[%s1260 + $0x660] sm:$0xff]
                  %1479 = vst [vmem:[%s1261 + $0x360] sm:$0xff] %v1478
                  %v1480 = vld [vmem:[%s1260 + $0x668] sm:$0xff]
                  %1481 = vst [vmem:[%s1261 + $0x368] sm:$0xff] %v1480
                  %v1482 = vld [vmem:[%s1260 + $0x670] sm:$0xff]
                  %1483 = vst [vmem:[%s1261 + $0x370] sm:$0xff] %v1482
                  %v1484 = vld [vmem:[%s1260 + $0x678] sm:$0xff]
                  %1485 = vst [vmem:[%s1261 + $0x378] sm:$0xff] %v1484
                  %v1486 = vld [vmem:[%s1260 + $0x700] sm:$0xff]
                  %1487 = vst [vmem:[%s1261 + $0x380] sm:$0xff] %v1486
                  %v1488 = vld [vmem:[%s1260 + $0x708] sm:$0xff]
                  %1489 = vst [vmem:[%s1261 + $0x388] sm:$0xff] %v1488
                  %v1490 = vld [vmem:[%s1260 + $0x710] sm:$0xff]
                  %1491 = vst [vmem:[%s1261 + $0x390] sm:$0xff] %v1490
                  %v1492 = vld [vmem:[%s1260 + $0x718] sm:$0xff]
                  %1493 = vst [vmem:[%s1261 + $0x398] sm:$0xff] %v1492
                  %v1494 = vld [vmem:[%s1260 + $0x720] sm:$0xff]
                  %1495 = vst [vmem:[%s1261 + $0x3a0] sm:$0xff] %v1494
                  %v1496 = vld [vmem:[%s1260 + $0x728] sm:$0xff]
                  %1497 = vst [vmem:[%s1261 + $0x3a8] sm:$0xff] %v1496
                  %v1498 = vld [vmem:[%s1260 + $0x730] sm:$0xff]
                  %1499 = vst [vmem:[%s1261 + $0x3b0] sm:$0xff] %v1498
                  %v1500 = vld [vmem:[%s1260 + $0x738] sm:$0xff]
                  %1501 = vst [vmem:[%s1261 + $0x3b8] sm:$0xff] %v1500
                  %v1502 = vld [vmem:[%s1260 + $0x740] sm:$0xff]
                  %1503 = vst [vmem:[%s1261 + $0x3c0] sm:$0xff] %v1502
                  %v1504 = vld [vmem:[%s1260 + $0x748] sm:$0xff]
                  %1505 = vst [vmem:[%s1261 + $0x3c8] sm:$0xff] %v1504
                  %v1506 = vld [vmem:[%s1260 + $0x750] sm:$0xff]
                  %1507 = vst [vmem:[%s1261 + $0x3d0] sm:$0xff] %v1506
                  %v1508 = vld [vmem:[%s1260 + $0x758] sm:$0xff]
                  %1509 = vst [vmem:[%s1261 + $0x3d8] sm:$0xff] %v1508
                  %v1510 = vld [vmem:[%s1260 + $0x760] sm:$0xff]
                  %1511 = vst [vmem:[%s1261 + $0x3e0] sm:$0xff] %v1510
                  %v1512 = vld [vmem:[%s1260 + $0x768] sm:$0xff]
                  %1513 = vst [vmem:[%s1261 + $0x3e8] sm:$0xff] %v1512
                  %v1514 = vld [vmem:[%s1260 + $0x770] sm:$0xff]
                  %1515 = vst [vmem:[%s1261 + $0x3f0] sm:$0xff] %v1514
                  %v1516 = vld [vmem:[%s1260 + $0x778] sm:$0xff]
                  %1517 = vst [vmem:[%s1261 + $0x3f8] sm:$0xff] %v1516
                $region114: #{tpu_custom_call.1} parent=108 // loop_footer
                  %s1259 = sadd.s32 1, %s1255
                $region115: #{tpu_custom_call.1} parent=108 // loop_footer_branch
                  %1254 = sbr.rel target = $region111
                $region116: #{tpu_custom_call.1} parent=108 // loop_exit
                  _
              $region109: #{tpu_custom_call.1} parent=93 // pred_fallthru
                _
              // Predicated region
              $region117: #{tpu_custom_call.1} parent=93 // pred_check
                _
              $region118: #{tpu_custom_call.1} parent=93 // pred_check_branch
                %1519 = sbr.rel target = $region120
              $region119: #{tpu_custom_call.1} parent=93 // pred_region
                _
              $region120: #{tpu_custom_call.1} parent=93 // pred_fallthru
                _
            $region94: #{tpu_custom_call.1} parent=89 // pred_fallthru
              _
            // Predicated region
            $region95: #{tpu_custom_call.1} parent=89 // pred_check
              _
            $region96: #{tpu_custom_call.1} parent=89 // pred_check_branch
              %985 = sbr.rel target = $region98
            $region97: #{tpu_custom_call.1} parent=89 // pred_region
              %s987 = ssub.s32 256, 1
              loop: start=0, step=1, limit=1
              $region99: #{tpu_custom_call.1} parent=97 // loop_pre_header
                _
              $region100: #{tpu_custom_call.1} parent=97 // loop_header
                %s989 = sphi 0, %s993
                %p990 = scmp.ge.s32.totalorder %s989, 1
                %s994 = sphi %s979, %s979
                %s995 = sphi %s973, %s973
              $region101: #{tpu_custom_call.1} parent=97 // loop_header_branch
                %992 = sbr.rel (%p990) target = $region105
              $region102: #{tpu_custom_call.1} parent=97 // loop_body
                %v996 = vld [vmem:[%s994] sm:%s987]
                %997 = vst [vmem:[%s995] sm:%s987] %v996
                %v998 = vld [vmem:[%s994 + $0x8] sm:%s987]
                %999 = vst [vmem:[%s995 + $0x8] sm:%s987] %v998
                %v1000 = vld [vmem:[%s994 + $0x10] sm:%s987]
                %1001 = vst [vmem:[%s995 + $0x10] sm:%s987] %v1000
                %v1002 = vld [vmem:[%s994 + $0x18] sm:%s987]
                %1003 = vst [vmem:[%s995 + $0x18] sm:%s987] %v1002
                %v1004 = vld [vmem:[%s994 + $0x20] sm:%s987]
                %1005 = vst [vmem:[%s995 + $0x20] sm:%s987] %v1004
                %v1006 = vld [vmem:[%s994 + $0x28] sm:%s987]
                %1007 = vst [vmem:[%s995 + $0x28] sm:%s987] %v1006
                %v1008 = vld [vmem:[%s994 + $0x30] sm:%s987]
                %1009 = vst [vmem:[%s995 + $0x30] sm:%s987] %v1008
                %v1010 = vld [vmem:[%s994 + $0x38] sm:%s987]
                %1011 = vst [vmem:[%s995 + $0x38] sm:%s987] %v1010
                %v1012 = vld [vmem:[%s994 + $0x40] sm:%s987]
                %1013 = vst [vmem:[%s995 + $0x40] sm:%s987] %v1012
                %v1014 = vld [vmem:[%s994 + $0x48] sm:%s987]
                %1015 = vst [vmem:[%s995 + $0x48] sm:%s987] %v1014
                %v1016 = vld [vmem:[%s994 + $0x50] sm:%s987]
                %1017 = vst [vmem:[%s995 + $0x50] sm:%s987] %v1016
                %v1018 = vld [vmem:[%s994 + $0x58] sm:%s987]
                %1019 = vst [vmem:[%s995 + $0x58] sm:%s987] %v1018
                %v1020 = vld [vmem:[%s994 + $0x60] sm:%s987]
                %1021 = vst [vmem:[%s995 + $0x60] sm:%s987] %v1020
                %v1022 = vld [vmem:[%s994 + $0x68] sm:%s987]
                %1023 = vst [vmem:[%s995 + $0x68] sm:%s987] %v1022
                %v1024 = vld [vmem:[%s994 + $0x70] sm:%s987]
                %1025 = vst [vmem:[%s995 + $0x70] sm:%s987] %v1024
                %v1026 = vld [vmem:[%s994 + $0x78] sm:%s987]
                %1027 = vst [vmem:[%s995 + $0x78] sm:%s987] %v1026
                %v1028 = vld [vmem:[%s994 + $0x100] sm:%s987]
                %1029 = vst [vmem:[%s995 + $0x80] sm:%s987] %v1028
                %v1030 = vld [vmem:[%s994 + $0x108] sm:%s987]
                %1031 = vst [vmem:[%s995 + $0x88] sm:%s987] %v1030
                %v1032 = vld [vmem:[%s994 + $0x110] sm:%s987]
                %1033 = vst [vmem:[%s995 + $0x90] sm:%s987] %v1032
                %v1034 = vld [vmem:[%s994 + $0x118] sm:%s987]
                %1035 = vst [vmem:[%s995 + $0x98] sm:%s987] %v1034
                %v1036 = vld [vmem:[%s994 + $0x120] sm:%s987]
                %1037 = vst [vmem:[%s995 + $0xa0] sm:%s987] %v1036
                %v1038 = vld [vmem:[%s994 + $0x128] sm:%s987]
                %1039 = vst [vmem:[%s995 + $0xa8] sm:%s987] %v1038
                %v1040 = vld [vmem:[%s994 + $0x130] sm:%s987]
                %1041 = vst [vmem:[%s995 + $0xb0] sm:%s987] %v1040
                %v1042 = vld [vmem:[%s994 + $0x138] sm:%s987]
                %1043 = vst [vmem:[%s995 + $0xb8] sm:%s987] %v1042
                %v1044 = vld [vmem:[%s994 + $0x140] sm:%s987]
                %1045 = vst [vmem:[%s995 + $0xc0] sm:%s987] %v1044
                %v1046 = vld [vmem:[%s994 + $0x148] sm:%s987]
                %1047 = vst [vmem:[%s995 + $0xc8] sm:%s987] %v1046
                %v1048 = vld [vmem:[%s994 + $0x150] sm:%s987]
                %1049 = vst [vmem:[%s995 + $0xd0] sm:%s987] %v1048
                %v1050 = vld [vmem:[%s994 + $0x158] sm:%s987]
                %1051 = vst [vmem:[%s995 + $0xd8] sm:%s987] %v1050
                %v1052 = vld [vmem:[%s994 + $0x160] sm:%s987]
                %1053 = vst [vmem:[%s995 + $0xe0] sm:%s987] %v1052
                %v1054 = vld [vmem:[%s994 + $0x168] sm:%s987]
                %1055 = vst [vmem:[%s995 + $0xe8] sm:%s987] %v1054
                %v1056 = vld [vmem:[%s994 + $0x170] sm:%s987]
                %1057 = vst [vmem:[%s995 + $0xf0] sm:%s987] %v1056
                %v1058 = vld [vmem:[%s994 + $0x178] sm:%s987]
                %1059 = vst [vmem:[%s995 + $0xf8] sm:%s987] %v1058
                %v1060 = vld [vmem:[%s994 + $0x200] sm:%s987]
                %1061 = vst [vmem:[%s995 + $0x100] sm:%s987] %v1060
                %v1062 = vld [vmem:[%s994 + $0x208] sm:%s987]
                %1063 = vst [vmem:[%s995 + $0x108] sm:%s987] %v1062
                %v1064 = vld [vmem:[%s994 + $0x210] sm:%s987]
                %1065 = vst [vmem:[%s995 + $0x110] sm:%s987] %v1064
                %v1066 = vld [vmem:[%s994 + $0x218] sm:%s987]
                %1067 = vst [vmem:[%s995 + $0x118] sm:%s987] %v1066
                %v1068 = vld [vmem:[%s994 + $0x220] sm:%s987]
                %1069 = vst [vmem:[%s995 + $0x120] sm:%s987] %v1068
                %v1070 = vld [vmem:[%s994 + $0x228] sm:%s987]
                %1071 = vst [vmem:[%s995 + $0x128] sm:%s987] %v1070
                %v1072 = vld [vmem:[%s994 + $0x230] sm:%s987]
                %1073 = vst [vmem:[%s995 + $0x130] sm:%s987] %v1072
                %v1074 = vld [vmem:[%s994 + $0x238] sm:%s987]
                %1075 = vst [vmem:[%s995 + $0x138] sm:%s987] %v1074
                %v1076 = vld [vmem:[%s994 + $0x240] sm:%s987]
                %1077 = vst [vmem:[%s995 + $0x140] sm:%s987] %v1076
                %v1078 = vld [vmem:[%s994 + $0x248] sm:%s987]
                %1079 = vst [vmem:[%s995 + $0x148] sm:%s987] %v1078
                %v1080 = vld [vmem:[%s994 + $0x250] sm:%s987]
                %1081 = vst [vmem:[%s995 + $0x150] sm:%s987] %v1080
                %v1082 = vld [vmem:[%s994 + $0x258] sm:%s987]
                %1083 = vst [vmem:[%s995 + $0x158] sm:%s987] %v1082
                %v1084 = vld [vmem:[%s994 + $0x260] sm:%s987]
                %1085 = vst [vmem:[%s995 + $0x160] sm:%s987] %v1084
                %v1086 = vld [vmem:[%s994 + $0x268] sm:%s987]
                %1087 = vst [vmem:[%s995 + $0x168] sm:%s987] %v1086
                %v1088 = vld [vmem:[%s994 + $0x270] sm:%s987]
                %1089 = vst [vmem:[%s995 + $0x170] sm:%s987] %v1088
                %v1090 = vld [vmem:[%s994 + $0x278] sm:%s987]
                %1091 = vst [vmem:[%s995 + $0x178] sm:%s987] %v1090
                %v1092 = vld [vmem:[%s994 + $0x300] sm:%s987]
                %1093 = vst [vmem:[%s995 + $0x180] sm:%s987] %v1092
                %v1094 = vld [vmem:[%s994 + $0x308] sm:%s987]
                %1095 = vst [vmem:[%s995 + $0x188] sm:%s987] %v1094
                %v1096 = vld [vmem:[%s994 + $0x310] sm:%s987]
                %1097 = vst [vmem:[%s995 + $0x190] sm:%s987] %v1096
                %v1098 = vld [vmem:[%s994 + $0x318] sm:%s987]
                %1099 = vst [vmem:[%s995 + $0x198] sm:%s987] %v1098
                %v1100 = vld [vmem:[%s994 + $0x320] sm:%s987]
                %1101 = vst [vmem:[%s995 + $0x1a0] sm:%s987] %v1100
                %v1102 = vld [vmem:[%s994 + $0x328] sm:%s987]
                %1103 = vst [vmem:[%s995 + $0x1a8] sm:%s987] %v1102
                %v1104 = vld [vmem:[%s994 + $0x330] sm:%s987]
                %1105 = vst [vmem:[%s995 + $0x1b0] sm:%s987] %v1104
                %v1106 = vld [vmem:[%s994 + $0x338] sm:%s987]
                %1107 = vst [vmem:[%s995 + $0x1b8] sm:%s987] %v1106
                %v1108 = vld [vmem:[%s994 + $0x340] sm:%s987]
                %1109 = vst [vmem:[%s995 + $0x1c0] sm:%s987] %v1108
                %v1110 = vld [vmem:[%s994 + $0x348] sm:%s987]
                %1111 = vst [vmem:[%s995 + $0x1c8] sm:%s987] %v1110
                %v1112 = vld [vmem:[%s994 + $0x350] sm:%s987]
                %1113 = vst [vmem:[%s995 + $0x1d0] sm:%s987] %v1112
                %v1114 = vld [vmem:[%s994 + $0x358] sm:%s987]
                %1115 = vst [vmem:[%s995 + $0x1d8] sm:%s987] %v1114
                %v1116 = vld [vmem:[%s994 + $0x360] sm:%s987]
                %1117 = vst [vmem:[%s995 + $0x1e0] sm:%s987] %v1116
                %v1118 = vld [vmem:[%s994 + $0x368] sm:%s987]
                %1119 = vst [vmem:[%s995 + $0x1e8] sm:%s987] %v1118
                %v1120 = vld [vmem:[%s994 + $0x370] sm:%s987]
                %1121 = vst [vmem:[%s995 + $0x1f0] sm:%s987] %v1120
                %v1122 = vld [vmem:[%s994 + $0x378] sm:%s987]
                %1123 = vst [vmem:[%s995 + $0x1f8] sm:%s987] %v1122
                %v1124 = vld [vmem:[%s994 + $0x400] sm:%s987]
                %1125 = vst [vmem:[%s995 + $0x200] sm:%s987] %v1124
                %v1126 = vld [vmem:[%s994 + $0x408] sm:%s987]
                %1127 = vst [vmem:[%s995 + $0x208] sm:%s987] %v1126
                %v1128 = vld [vmem:[%s994 + $0x410] sm:%s987]
                %1129 = vst [vmem:[%s995 + $0x210] sm:%s987] %v1128
                %v1130 = vld [vmem:[%s994 + $0x418] sm:%s987]
                %1131 = vst [vmem:[%s995 + $0x218] sm:%s987] %v1130
                %v1132 = vld [vmem:[%s994 + $0x420] sm:%s987]
                %1133 = vst [vmem:[%s995 + $0x220] sm:%s987] %v1132
                %v1134 = vld [vmem:[%s994 + $0x428] sm:%s987]
                %1135 = vst [vmem:[%s995 + $0x228] sm:%s987] %v1134
                %v1136 = vld [vmem:[%s994 + $0x430] sm:%s987]
                %1137 = vst [vmem:[%s995 + $0x230] sm:%s987] %v1136
                %v1138 = vld [vmem:[%s994 + $0x438] sm:%s987]
                %1139 = vst [vmem:[%s995 + $0x238] sm:%s987] %v1138
                %v1140 = vld [vmem:[%s994 + $0x440] sm:%s987]
                %1141 = vst [vmem:[%s995 + $0x240] sm:%s987] %v1140
                %v1142 = vld [vmem:[%s994 + $0x448] sm:%s987]
                %1143 = vst [vmem:[%s995 + $0x248] sm:%s987] %v1142
                %v1144 = vld [vmem:[%s994 + $0x450] sm:%s987]
                %1145 = vst [vmem:[%s995 + $0x250] sm:%s987] %v1144
                %v1146 = vld [vmem:[%s994 + $0x458] sm:%s987]
                %1147 = vst [vmem:[%s995 + $0x258] sm:%s987] %v1146
                %v1148 = vld [vmem:[%s994 + $0x460] sm:%s987]
                %1149 = vst [vmem:[%s995 + $0x260] sm:%s987] %v1148
                %v1150 = vld [vmem:[%s994 + $0x468] sm:%s987]
                %1151 = vst [vmem:[%s995 + $0x268] sm:%s987] %v1150
                %v1152 = vld [vmem:[%s994 + $0x470] sm:%s987]
                %1153 = vst [vmem:[%s995 + $0x270] sm:%s987] %v1152
                %v1154 = vld [vmem:[%s994 + $0x478] sm:%s987]
                %1155 = vst [vmem:[%s995 + $0x278] sm:%s987] %v1154
                %v1156 = vld [vmem:[%s994 + $0x500] sm:%s987]
                %1157 = vst [vmem:[%s995 + $0x280] sm:%s987] %v1156
                %v1158 = vld [vmem:[%s994 + $0x508] sm:%s987]
                %1159 = vst [vmem:[%s995 + $0x288] sm:%s987] %v1158
                %v1160 = vld [vmem:[%s994 + $0x510] sm:%s987]
                %1161 = vst [vmem:[%s995 + $0x290] sm:%s987] %v1160
                %v1162 = vld [vmem:[%s994 + $0x518] sm:%s987]
                %1163 = vst [vmem:[%s995 + $0x298] sm:%s987] %v1162
                %v1164 = vld [vmem:[%s994 + $0x520] sm:%s987]
                %1165 = vst [vmem:[%s995 + $0x2a0] sm:%s987] %v1164
                %v1166 = vld [vmem:[%s994 + $0x528] sm:%s987]
                %1167 = vst [vmem:[%s995 + $0x2a8] sm:%s987] %v1166
                %v1168 = vld [vmem:[%s994 + $0x530] sm:%s987]
                %1169 = vst [vmem:[%s995 + $0x2b0] sm:%s987] %v1168
                %v1170 = vld [vmem:[%s994 + $0x538] sm:%s987]
                %1171 = vst [vmem:[%s995 + $0x2b8] sm:%s987] %v1170
                %v1172 = vld [vmem:[%s994 + $0x540] sm:%s987]
                %1173 = vst [vmem:[%s995 + $0x2c0] sm:%s987] %v1172
                %v1174 = vld [vmem:[%s994 + $0x548] sm:%s987]
                %1175 = vst [vmem:[%s995 + $0x2c8] sm:%s987] %v1174
                %v1176 = vld [vmem:[%s994 + $0x550] sm:%s987]
                %1177 = vst [vmem:[%s995 + $0x2d0] sm:%s987] %v1176
                %v1178 = vld [vmem:[%s994 + $0x558] sm:%s987]
                %1179 = vst [vmem:[%s995 + $0x2d8] sm:%s987] %v1178
                %v1180 = vld [vmem:[%s994 + $0x560] sm:%s987]
                %1181 = vst [vmem:[%s995 + $0x2e0] sm:%s987] %v1180
                %v1182 = vld [vmem:[%s994 + $0x568] sm:%s987]
                %1183 = vst [vmem:[%s995 + $0x2e8] sm:%s987] %v1182
                %v1184 = vld [vmem:[%s994 + $0x570] sm:%s987]
                %1185 = vst [vmem:[%s995 + $0x2f0] sm:%s987] %v1184
                %v1186 = vld [vmem:[%s994 + $0x578] sm:%s987]
                %1187 = vst [vmem:[%s995 + $0x2f8] sm:%s987] %v1186
                %v1188 = vld [vmem:[%s994 + $0x600] sm:%s987]
                %1189 = vst [vmem:[%s995 + $0x300] sm:%s987] %v1188
                %v1190 = vld [vmem:[%s994 + $0x608] sm:%s987]
                %1191 = vst [vmem:[%s995 + $0x308] sm:%s987] %v1190
                %v1192 = vld [vmem:[%s994 + $0x610] sm:%s987]
                %1193 = vst [vmem:[%s995 + $0x310] sm:%s987] %v1192
                %v1194 = vld [vmem:[%s994 + $0x618] sm:%s987]
                %1195 = vst [vmem:[%s995 + $0x318] sm:%s987] %v1194
                %v1196 = vld [vmem:[%s994 + $0x620] sm:%s987]
                %1197 = vst [vmem:[%s995 + $0x320] sm:%s987] %v1196
                %v1198 = vld [vmem:[%s994 + $0x628] sm:%s987]
                %1199 = vst [vmem:[%s995 + $0x328] sm:%s987] %v1198
                %v1200 = vld [vmem:[%s994 + $0x630] sm:%s987]
                %1201 = vst [vmem:[%s995 + $0x330] sm:%s987] %v1200
                %v1202 = vld [vmem:[%s994 + $0x638] sm:%s987]
                %1203 = vst [vmem:[%s995 + $0x338] sm:%s987] %v1202
                %v1204 = vld [vmem:[%s994 + $0x640] sm:%s987]
                %1205 = vst [vmem:[%s995 + $0x340] sm:%s987] %v1204
                %v1206 = vld [vmem:[%s994 + $0x648] sm:%s987]
                %1207 = vst [vmem:[%s995 + $0x348] sm:%s987] %v1206
                %v1208 = vld [vmem:[%s994 + $0x650] sm:%s987]
                %1209 = vst [vmem:[%s995 + $0x350] sm:%s987] %v1208
                %v1210 = vld [vmem:[%s994 + $0x658] sm:%s987]
                %1211 = vst [vmem:[%s995 + $0x358] sm:%s987] %v1210
                %v1212 = vld [vmem:[%s994 + $0x660] sm:%s987]
                %1213 = vst [vmem:[%s995 + $0x360] sm:%s987] %v1212
                %v1214 = vld [vmem:[%s994 + $0x668] sm:%s987]
                %1215 = vst [vmem:[%s995 + $0x368] sm:%s987] %v1214
                %v1216 = vld [vmem:[%s994 + $0x670] sm:%s987]
                %1217 = vst [vmem:[%s995 + $0x370] sm:%s987] %v1216
                %v1218 = vld [vmem:[%s994 + $0x678] sm:%s987]
                %1219 = vst [vmem:[%s995 + $0x378] sm:%s987] %v1218
                %v1220 = vld [vmem:[%s994 + $0x700] sm:%s987]
                %1221 = vst [vmem:[%s995 + $0x380] sm:%s987] %v1220
                %v1222 = vld [vmem:[%s994 + $0x708] sm:%s987]
                %1223 = vst [vmem:[%s995 + $0x388] sm:%s987] %v1222
                %v1224 = vld [vmem:[%s994 + $0x710] sm:%s987]
                %1225 = vst [vmem:[%s995 + $0x390] sm:%s987] %v1224
                %v1226 = vld [vmem:[%s994 + $0x718] sm:%s987]
                %1227 = vst [vmem:[%s995 + $0x398] sm:%s987] %v1226
                %v1228 = vld [vmem:[%s994 + $0x720] sm:%s987]
                %1229 = vst [vmem:[%s995 + $0x3a0] sm:%s987] %v1228
                %v1230 = vld [vmem:[%s994 + $0x728] sm:%s987]
                %1231 = vst [vmem:[%s995 + $0x3a8] sm:%s987] %v1230
                %v1232 = vld [vmem:[%s994 + $0x730] sm:%s987]
                %1233 = vst [vmem:[%s995 + $0x3b0] sm:%s987] %v1232
                %v1234 = vld [vmem:[%s994 + $0x738] sm:%s987]
                %1235 = vst [vmem:[%s995 + $0x3b8] sm:%s987] %v1234
                %v1236 = vld [vmem:[%s994 + $0x740] sm:%s987]
                %1237 = vst [vmem:[%s995 + $0x3c0] sm:%s987] %v1236
                %v1238 = vld [vmem:[%s994 + $0x748] sm:%s987]
                %1239 = vst [vmem:[%s995 + $0x3c8] sm:%s987] %v1238
                %v1240 = vld [vmem:[%s994 + $0x750] sm:%s987]
                %1241 = vst [vmem:[%s995 + $0x3d0] sm:%s987] %v1240
                %v1242 = vld [vmem:[%s994 + $0x758] sm:%s987]
                %1243 = vst [vmem:[%s995 + $0x3d8] sm:%s987] %v1242
                %v1244 = vld [vmem:[%s994 + $0x760] sm:%s987]
                %1245 = vst [vmem:[%s995 + $0x3e0] sm:%s987] %v1244
                %v1246 = vld [vmem:[%s994 + $0x768] sm:%s987]
                %1247 = vst [vmem:[%s995 + $0x3e8] sm:%s987] %v1246
                %v1248 = vld [vmem:[%s994 + $0x770] sm:%s987]
                %1249 = vst [vmem:[%s995 + $0x3f0] sm:%s987] %v1248
                %v1250 = vld [vmem:[%s994 + $0x778] sm:%s987]
                %1251 = vst [vmem:[%s995 + $0x3f8] sm:%s987] %v1250
              $region103: #{tpu_custom_call.1} parent=97 // loop_footer
                %s993 = sadd.s32 1, %s989
              $region104: #{tpu_custom_call.1} parent=97 // loop_footer_branch
                %988 = sbr.rel target = $region100
              $region105: #{tpu_custom_call.1} parent=97 // loop_exit
                _
            $region98: #{tpu_custom_call.1} parent=89 // pred_fallthru
              _
          $region90: #{tpu_custom_call.1} parent=85 // pred_fallthru
            _
          %1520 = vnop
        $region86: #{tpu_custom_call.1} parent=39 // pred_fallthru
          _
      $region40: #{tpu_custom_call.1} parent=5 // pred_fallthru
        _
      %p1521 = scmp.le.s32.totalorder 1, %s25
      %p1522 = scmp.lt.s32.totalorder %s25, 3
      %p1523 = pnand %p1521, %p1522
      %p1524 = pneg %p1523
      // Predicated region
      $region121: #{tpu_custom_call.1} parent=5 // pred_check
        _
      $region122: #{tpu_custom_call.1} parent=5 // pred_check_branch
        %1526 = sbr.rel (%p1523) target = $region124
      $region123: #{tpu_custom_call.1} parent=5 // pred_region
        %s1527 = ssub.s32 %s25, 1
        %s1528 = sand.u32 %s52, 1
        %s1529 = sand.u32 %s52, 1
        %s1530 = smul.addr %s1529, 1024
        %s1531 = scalar_lea.vmem [#allocation6], %s1530
        // Predicated region
        $region125: #{tpu_custom_call.1} parent=123 // pred_check
          %p1532 = pneg %p65
        $region126: #{tpu_custom_call.1} parent=123 // pred_check_branch
          %1534 = sbr.rel (%p1532) target = $region128
        $region127: #{tpu_custom_call.1} parent=123 // pred_region
          _
        $region128: #{tpu_custom_call.1} parent=123 // pred_fallthru
          _
        %s1535 = sand.u32 %s80, 1
        %s1536 = scalar_lea.sflag [#allocation8], %s1535
        %s1537 = sand.u32 %s80, 1
        %s1538 = smul.addr %s1537, 1024
        %s1539 = scalar_lea.vmem [#allocation7], %s1538
        // Predicated region
        $region129: #{tpu_custom_call.1} parent=123 // pred_check
          %p1540 = pneg %p93
        $region130: #{tpu_custom_call.1} parent=123 // pred_check_branch
          %1542 = sbr.rel (%p1540) target = $region132
        $region131: #{tpu_custom_call.1} parent=123 // pred_region
          %1543 = dma.done %s1536, 16384
        $region132: #{tpu_custom_call.1} parent=123 // pred_fallthru
          _
        %s1544 = sand.u32 %s134, 1
        %s1545 = sand.u32 %s134, 1
        %s1546 = smul.addr %s1545, 1024
        %s1547 = scalar_lea.vmem [#allocation10], %s1546
        // Predicated region
        $region133: #{tpu_custom_call.1} parent=123 // pred_check
          %p1548 = pneg %p147
        $region134: #{tpu_custom_call.1} parent=123 // pred_check_branch
          %1550 = sbr.rel (%p1548) target = $region136
        $region135: #{tpu_custom_call.1} parent=123 // pred_region
          _
        $region136: #{tpu_custom_call.1} parent=123 // pred_fallthru
          _
        // Predicated region
        $region137: #{tpu_custom_call.1} parent=123 // pred_check
          %p1551 = pneg %p215
        $region138: #{tpu_custom_call.1} parent=123 // pred_check_branch
          %1553 = sbr.rel (%p1551) target = $region140
        $region139: #{tpu_custom_call.1} parent=123 // pred_region
          %1554 = dma.done [#allocation12], 128
        $region140: #{tpu_custom_call.1} parent=123 // pred_fallthru
          _
        %s1555 = sand.u32 %s52, 1
        %s1556 = sand.u32 %s52, 1
        %s1557 = smul.addr %s1556, 1024
        %s1558 = scalar_lea.vmem [#allocation6], %s1557
        %p1559 = pneg %p65
        %p1560 = pneg %p62
        %s1561 = sand.u32 %s80, 1
        %s1562 = scalar_lea.sflag [#allocation8], %s1561
        %s1563 = sand.u32 %s80, 1
        %s1564 = smul.addr %s1563, 1024
        %s1565 = scalar_lea.vmem [#allocation7], %s1564
        %p1566 = pneg %p93
        %p1567 = pneg %p90
        %s1568 = smul.u32 8, %s34
        %p1569 = scmp.lt.s32.totalorder %s1568, 7
        %s1570 = scalar_select %p1569, %s1568, 7
        %s1571 = scalar_lea.vmem %s2, %s1570
        %p1572 = pneg %p119
        %p1573 = pneg %p116
        %s1574 = sand.u32 %s134, 1
        %s1575 = sand.u32 %s134, 1
        %s1576 = smul.addr %s1575, 1024
        %s1577 = scalar_lea.vmem [#allocation10], %s1576
        %p1578 = pneg %p147
        %p1579 = pneg %p144
        %s1580 = smul.u32 8, %s34
        %p1581 = scmp.lt.s32.totalorder %s1580, 7
        %s1582 = scalar_select %p1581, %s1580, 7
        %s1583 = scalar_lea.vmem %s4, %s1582
        %p1584 = pneg %p173
        %p1585 = pneg %p170
        %p1586 = pneg %p194
        %p1587 = pneg %p191
        %p1588 = pneg %p215
        %p1589 = pneg %p212
        %p1590 = pneg %p236
        %p1591 = pneg %p233
        %p1592 = pneg %p257
        %p1593 = pneg %p254
        %p1594 = pneg %p283
        %p1595 = pneg %p280
        %p1596 = pneg %p309
        %p1597 = pneg %p306
        %s1598 = smul.u32 8, %s34
        %s1599 = smul.u32 16, %s35
        %s1600 = smul.u32 8, %s34
        %s1601 = smul.u32 16, %s35
        %s1602 = smul.u32 8, %s34
        %p1603 = scmp.lt.s32.totalorder %s1602, 7
        %s1604 = scalar_select %p1603, %s1602, 7
        %s1605 = scalar_lea.vmem %s2, %s1604
        %s1606 = smul.u32 8, %s34
        %s1607 = smul.u32 8, %s34
        %s1608 = smul.u32 16, %s35
        %s1609 = smul.u32 8, %s34
        %p1610 = scmp.lt.s32.totalorder %s1609, 7
        %s1611 = scalar_select %p1610, %s1609, 7
        %s1612 = scalar_lea.vmem %s4, %s1611
        %s1613 = smul.u32 8, %s34
        %p1614 = scmp.eq.s32.totalorder %s35, 0
        // Predicated region
        $region141: #{tpu_custom_call.1} parent=123 // pred_check
          %p1615 = pneg %p1614
        $region142: #{tpu_custom_call.1} parent=123 // pred_check_branch
          %1617 = sbr.rel (%p1615) target = $region144
        $region143: #{tpu_custom_call.1} parent=123 // pred_region
          %vm1618 = vcmask 7168
          %1619 = vst.msk [vmem:[#allocation2] sm:$0xff] %vm1618, -1e+30
          %1620 = vst.msk [vmem:[#allocation3] sm:$0xff] %vm1618, 0.0
          %1621 = vst [vmem:[#allocation4] sm:$0xff] 0.0
          %1622 = vst [vmem:[#allocation14] sm:$0xff] 0.0
          %1623 = vst [vmem:[#allocation14 + $0x8] sm:$0xff] 0.0
        $region144: #{tpu_custom_call.1} parent=123 // pred_fallthru
          _
        %v1624 = vld [vmem:[%s1605] sm:$0x1]
        %v1625 = vld [vmem:[%s1605 + $0x1] sm:$0x1]
        %v1626 = vld [vmem:[%s1605 + $0x2] sm:$0x1]
        %v1627 = vld [vmem:[%s1605 + $0x3] sm:$0x1]
        %v1628 = vld [vmem:[%s1605 + $0x4] sm:$0x1]
        %v1629 = vld [vmem:[%s1605 + $0x5] sm:$0x1]
        %v1630 = vld [vmem:[%s1605 + $0x6] sm:$0x1]
        %v1631 = vld [vmem:[%s1605 + $0x7] sm:$0x1]
        %v1632 = vld [vmem:[%s5] sm:$0xff]
        %v1633 = vld [vmem:[%s5 + $0x8] sm:$0xff]
        %v1634 = vld [vmem:[%s5 + $0x10] sm:$0xff]
        %v1635 = vld [vmem:[%s5 + $0x18] sm:$0xff]
        %v1636 = vld [vmem:[%s5 + $0x20] sm:$0xff]
        %v1637 = vld [vmem:[%s5 + $0x28] sm:$0xff]
        %v1638 = vld [vmem:[%s5 + $0x30] sm:$0xff]
        %v1639 = vld [vmem:[%s5 + $0x38] sm:$0xff]
        %v1640 = vld [vmem:[%s5 + $0x40] sm:$0xff]
        %v1641 = vld [vmem:[%s5 + $0x48] sm:$0xff]
        %v1642 = vld [vmem:[%s5 + $0x50] sm:$0xff]
        %v1643 = vld [vmem:[%s5 + $0x58] sm:$0xff]
        %v1644 = vld [vmem:[%s5 + $0x60] sm:$0xff]
        %v1645 = vld [vmem:[%s5 + $0x68] sm:$0xff]
        %v1646 = vld [vmem:[%s5 + $0x70] sm:$0xff]
        %v1647 = vld [vmem:[%s5 + $0x78] sm:$0xff]
        %v1656 = vcombine.low %v1624, %v1625
        %v1657 = vcombine.low %v1626, %v1627
        %v1658 = vcombine.low %v1628, %v1629
        %v1659 = vcombine.low %v1630, %v1631
        %v1661 = vunpack.c.l.s4 1966171168
        %v1662 = vunpack.c.0.s8 %v1661
        %v1663 = vlaneseq
        %v1664 = vshrl.u32 %v1663, 7
        %v1665 = vsub.s32 %v1662, %v1664
        %v1666 = vrot.slane %v1656, %v1665
        %v1668 = vunpack.c.l.s4 1966171168
        %v1669 = vunpack.c.0.s8 %v1668
        %v1670 = vlaneseq
        %v1671 = vshrl.u32 %v1670, 7
        %v1672 = vsub.s32 %v1669, %v1671
        %v1673 = vrot.slane %v1657, %v1672
        %v1675 = vunpack.c.l.s4 1966171168
        %v1676 = vunpack.c.0.s8 %v1675
        %v1677 = vlaneseq
        %v1678 = vshrl.u32 %v1677, 7
        %v1679 = vsub.s32 %v1676, %v1678
        %v1680 = vrot.slane %v1658, %v1679
        %v1682 = vunpack.c.l.s4 1966171168
        %v1683 = vunpack.c.0.s8 %v1682
        %v1684 = vlaneseq
        %v1685 = vshrl.u32 %v1684, 7
        %v1686 = vsub.s32 %v1683, %v1685
        %v1687 = vrot.slane %v1659, %v1686
        %v1688 = vcombine.low %v1666, %v1673
        %v1689 = vcombine.low %v1680, %v1687
        %v1691 = vunpack.c.l.s4 1966171168
        %v1692 = vunpack.c.0.s8 %v1691
        %v1693 = vlaneseq
        %v1694 = vshrl.u32 %v1693, 7
        %v1695 = vsub.s32 %v1692, %v1694
        %v1696 = vrot.slane %v1688, %v1695
        %v1698 = vunpack.c.l.s4 1966171168
        %v1699 = vunpack.c.0.s8 %v1698
        %v1700 = vlaneseq
        %v1701 = vshrl.u32 %v1700, 7
        %v1702 = vsub.s32 %v1699, %v1701
        %v1703 = vrot.slane %v1689, %v1702
        %v1704 = vcombine.low %v1696, %v1703
        %1706 = vmatprep.subr.mxu0 0.0
        %1707 = vmatpush1.msra.mxu0 %v1647
        %1708 = vmatprep.subr.mxu0 0.0
        %1709 = vmatpush1.msra.mxu0 %v1646
        %1710 = vmatprep.subr.mxu0 0.0
        %1711 = vmatpush1.msra.mxu0 %v1645
        %1712 = vmatprep.subr.mxu0 0.0
        %1713 = vmatpush1.msra.mxu0 %v1644
        %1714 = vmatprep.subr.mxu0 0.0
        %1715 = vmatpush1.msra.mxu0 %v1643
        %1716 = vmatprep.subr.mxu0 0.0
        %1717 = vmatpush1.msra.mxu0 %v1642
        %1718 = vmatprep.subr.mxu0 0.0
        %1719 = vmatpush1.msra.mxu0 %v1641
        %1720 = vmatprep.subr.mxu0 0.0
        %1721 = vmatpush1.msra.mxu0 %v1640
        %1722 = vmatprep.subr.mxu0 0.0
        %1723 = vmatpush1.msra.mxu0 %v1639
        %1724 = vmatprep.subr.mxu0 0.0
        %1725 = vmatpush1.msra.mxu0 %v1638
        %1726 = vmatprep.subr.mxu0 0.0
        %1727 = vmatpush1.msra.mxu0 %v1637
        %1728 = vmatprep.subr.mxu0 0.0
        %1729 = vmatpush1.msra.mxu0 %v1636
        %1730 = vmatprep.subr.mxu0 0.0
        %1731 = vmatpush1.msra.mxu0 %v1635
        %1732 = vmatprep.subr.mxu0 0.0
        %1733 = vmatpush1.msra.mxu0 %v1634
        %1734 = vmatprep.subr.mxu0 0.0
        %1735 = vmatpush1.msra.mxu0 %v1633
        %1736 = vmatprep.subr.mxu0 0.0
        %1737 = vmatpush1.msra.mxu0 %v1632
        %1738 = vmatprep.subr.mxu0 0.0
        %1739 = vmatpush2.msra.mxu0 0.0
        %1740 = vmatprep.subr.mxu0 0.0
        %1741 = vmatpush2.msra.mxu0 0.0
        %1742 = vmatprep.subr.mxu0 0.0
        %1743 = vmatpush2.msra.mxu0 0.0
        %1744 = vmatprep.subr.mxu0 0.0
        %1745 = vmatpush2.msra.mxu0 0.0
        %1746 = vmatprep.subr.mxu0 0.0
        %1747 = vmatpush2.msra.mxu0 0.0
        %1748 = vmatprep.subr.mxu0 0.0
        %1749 = vmatpush2.msra.mxu0 0.0
        %1750 = vmatprep.subr.mxu0 0.0
        %1751 = vmatpush2.msra.mxu0 0.0
        %1752 = vmatprep.subr.mxu0 0.0
        %1753 = vmatpush2.msra.mxu0 0.0
        %1754 = vmatprep.subr.mxu0 0.0
        %1755 = vmatpush2.msra.mxu0 0.0
        %1756 = vmatprep.subr.mxu0 0.0
        %1757 = vmatpush2.msra.mxu0 0.0
        %1758 = vmatprep.subr.mxu0 0.0
        %1759 = vmatpush2.msra.mxu0 0.0
        %1760 = vmatprep.subr.mxu0 0.0
        %1761 = vmatpush2.msra.mxu0 0.0
        %1762 = vmatprep.subr.mxu0 0.0
        %1763 = vmatpush2.msra.mxu0 0.0
        %1764 = vmatprep.subr.mxu0 0.0
        %1765 = vmatpush2.msra.mxu0 0.0
        %1766 = vmatprep.subr.mxu0 0.0
        %1767 = vmatpush2.msra.mxu0 0.0
        %1768 = vmatprep.subr.mxu0 0.0
        %1769 = vmatpush2.msra.mxu0 0.0
        %1770 = vmatprep.mubr.f32.mxu0 0.0
        %1771 = vmatmul.mubr.f32.gmra.mxu0 %v1704
        %v1772 = vpop.f32.mrf.mxu0
        %v1773 = vadd.f32 0.0, %v1772
        %v1774 = vpop.f32.mrf.mxu0
        %1775 = vdwg.mxu0
        %v1776 = vld [vmem:[%s1547] sm:$0xff]
        %v1777 = vld [vmem:[%s1547 + $0x8] sm:$0xff]
        %v1778 = vld [vmem:[%s1547 + $0x10] sm:$0xff]
        %v1779 = vld [vmem:[%s1547 + $0x18] sm:$0xff]
        %v1780 = vld [vmem:[%s1547 + $0x20] sm:$0xff]
        %v1781 = vld [vmem:[%s1547 + $0x28] sm:$0xff]
        %v1782 = vld [vmem:[%s1547 + $0x30] sm:$0xff]
        %v1783 = vld [vmem:[%s1547 + $0x38] sm:$0xff]
        %v1784 = vld [vmem:[%s1547 + $0x40] sm:$0xff]
        %v1785 = vld [vmem:[%s1547 + $0x48] sm:$0xff]
        %v1786 = vld [vmem:[%s1547 + $0x50] sm:$0xff]
        %v1787 = vld [vmem:[%s1547 + $0x58] sm:$0xff]
        %v1788 = vld [vmem:[%s1547 + $0x60] sm:$0xff]
        %v1789 = vld [vmem:[%s1547 + $0x68] sm:$0xff]
        %v1790 = vld [vmem:[%s1547 + $0x70] sm:$0xff]
        %v1791 = vld [vmem:[%s1547 + $0x78] sm:$0xff]
        %v1792 = vld [vmem:[%s1547 + $0x80] sm:$0xff]
        %v1793 = vld [vmem:[%s1547 + $0x88] sm:$0xff]
        %v1794 = vld [vmem:[%s1547 + $0x90] sm:$0xff]
        %v1795 = vld [vmem:[%s1547 + $0x98] sm:$0xff]
        %v1796 = vld [vmem:[%s1547 + $0xa0] sm:$0xff]
        %v1797 = vld [vmem:[%s1547 + $0xa8] sm:$0xff]
        %v1798 = vld [vmem:[%s1547 + $0xb0] sm:$0xff]
        %v1799 = vld [vmem:[%s1547 + $0xb8] sm:$0xff]
        %v1800 = vld [vmem:[%s1547 + $0xc0] sm:$0xff]
        %v1801 = vld [vmem:[%s1547 + $0xc8] sm:$0xff]
        %v1802 = vld [vmem:[%s1547 + $0xd0] sm:$0xff]
        %v1803 = vld [vmem:[%s1547 + $0xd8] sm:$0xff]
        %v1804 = vld [vmem:[%s1547 + $0xe0] sm:$0xff]
        %v1805 = vld [vmem:[%s1547 + $0xe8] sm:$0xff]
        %v1806 = vld [vmem:[%s1547 + $0xf0] sm:$0xff]
        %v1807 = vld [vmem:[%s1547 + $0xf8] sm:$0xff]
        %v1808 = vld [vmem:[%s1547 + $0x100] sm:$0xff]
        %v1809 = vld [vmem:[%s1547 + $0x108] sm:$0xff]
        %v1810 = vld [vmem:[%s1547 + $0x110] sm:$0xff]
        %v1811 = vld [vmem:[%s1547 + $0x118] sm:$0xff]
        %v1812 = vld [vmem:[%s1547 + $0x120] sm:$0xff]
        %v1813 = vld [vmem:[%s1547 + $0x128] sm:$0xff]
        %v1814 = vld [vmem:[%s1547 + $0x130] sm:$0xff]
        %v1815 = vld [vmem:[%s1547 + $0x138] sm:$0xff]
        %v1816 = vld [vmem:[%s1547 + $0x140] sm:$0xff]
        %v1817 = vld [vmem:[%s1547 + $0x148] sm:$0xff]
        %v1818 = vld [vmem:[%s1547 + $0x150] sm:$0xff]
        %v1819 = vld [vmem:[%s1547 + $0x158] sm:$0xff]
        %v1820 = vld [vmem:[%s1547 + $0x160] sm:$0xff]
        %v1821 = vld [vmem:[%s1547 + $0x168] sm:$0xff]
        %v1822 = vld [vmem:[%s1547 + $0x170] sm:$0xff]
        %v1823 = vld [vmem:[%s1547 + $0x178] sm:$0xff]
        %v1824 = vld [vmem:[%s1547 + $0x180] sm:$0xff]
        %v1825 = vld [vmem:[%s1547 + $0x188] sm:$0xff]
        %v1826 = vld [vmem:[%s1547 + $0x190] sm:$0xff]
        %v1827 = vld [vmem:[%s1547 + $0x198] sm:$0xff]
        %v1828 = vld [vmem:[%s1547 + $0x1a0] sm:$0xff]
        %v1829 = vld [vmem:[%s1547 + $0x1a8] sm:$0xff]
        %v1830 = vld [vmem:[%s1547 + $0x1b0] sm:$0xff]
        %v1831 = vld [vmem:[%s1547 + $0x1b8] sm:$0xff]
        %v1832 = vld [vmem:[%s1547 + $0x1c0] sm:$0xff]
        %v1833 = vld [vmem:[%s1547 + $0x1c8] sm:$0xff]
        %v1834 = vld [vmem:[%s1547 + $0x1d0] sm:$0xff]
        %v1835 = vld [vmem:[%s1547 + $0x1d8] sm:$0xff]
        %v1836 = vld [vmem:[%s1547 + $0x1e0] sm:$0xff]
        %v1837 = vld [vmem:[%s1547 + $0x1e8] sm:$0xff]
        %v1838 = vld [vmem:[%s1547 + $0x1f0] sm:$0xff]
        %v1839 = vld [vmem:[%s1547 + $0x1f8] sm:$0xff]
        %v1840 = vld [vmem:[%s1547 + $0x200] sm:$0xff]
        %v1841 = vld [vmem:[%s1547 + $0x208] sm:$0xff]
        %v1842 = vld [vmem:[%s1547 + $0x210] sm:$0xff]
        %v1843 = vld [vmem:[%s1547 + $0x218] sm:$0xff]
        %v1844 = vld [vmem:[%s1547 + $0x220] sm:$0xff]
        %v1845 = vld [vmem:[%s1547 + $0x228] sm:$0xff]
        %v1846 = vld [vmem:[%s1547 + $0x230] sm:$0xff]
        %v1847 = vld [vmem:[%s1547 + $0x238] sm:$0xff]
        %v1848 = vld [vmem:[%s1547 + $0x240] sm:$0xff]
        %v1849 = vld [vmem:[%s1547 + $0x248] sm:$0xff]
        %v1850 = vld [vmem:[%s1547 + $0x250] sm:$0xff]
        %v1851 = vld [vmem:[%s1547 + $0x258] sm:$0xff]
        %v1852 = vld [vmem:[%s1547 + $0x260] sm:$0xff]
        %v1853 = vld [vmem:[%s1547 + $0x268] sm:$0xff]
        %v1854 = vld [vmem:[%s1547 + $0x270] sm:$0xff]
        %v1855 = vld [vmem:[%s1547 + $0x278] sm:$0xff]
        %v1856 = vld [vmem:[%s1547 + $0x280] sm:$0xff]
        %v1857 = vld [vmem:[%s1547 + $0x288] sm:$0xff]
        %v1858 = vld [vmem:[%s1547 + $0x290] sm:$0xff]
        %v1859 = vld [vmem:[%s1547 + $0x298] sm:$0xff]
        %v1860 = vld [vmem:[%s1547 + $0x2a0] sm:$0xff]
        %v1861 = vld [vmem:[%s1547 + $0x2a8] sm:$0xff]
        %v1862 = vld [vmem:[%s1547 + $0x2b0] sm:$0xff]
        %v1863 = vld [vmem:[%s1547 + $0x2b8] sm:$0xff]
        %v1864 = vld [vmem:[%s1547 + $0x2c0] sm:$0xff]
        %v1865 = vld [vmem:[%s1547 + $0x2c8] sm:$0xff]
        %v1866 = vld [vmem:[%s1547 + $0x2d0] sm:$0xff]
        %v1867 = vld [vmem:[%s1547 + $0x2d8] sm:$0xff]
        %v1868 = vld [vmem:[%s1547 + $0x2e0] sm:$0xff]
        %v1869 = vld [vmem:[%s1547 + $0x2e8] sm:$0xff]
        %v1870 = vld [vmem:[%s1547 + $0x2f0] sm:$0xff]
        %v1871 = vld [vmem:[%s1547 + $0x2f8] sm:$0xff]
        %v1872 = vld [vmem:[%s1547 + $0x300] sm:$0xff]
        %v1873 = vld [vmem:[%s1547 + $0x308] sm:$0xff]
        %v1874 = vld [vmem:[%s1547 + $0x310] sm:$0xff]
        %v1875 = vld [vmem:[%s1547 + $0x318] sm:$0xff]
        %v1876 = vld [vmem:[%s1547 + $0x320] sm:$0xff]
        %v1877 = vld [vmem:[%s1547 + $0x328] sm:$0xff]
        %v1878 = vld [vmem:[%s1547 + $0x330] sm:$0xff]
        %v1879 = vld [vmem:[%s1547 + $0x338] sm:$0xff]
        %v1880 = vld [vmem:[%s1547 + $0x340] sm:$0xff]
        %v1881 = vld [vmem:[%s1547 + $0x348] sm:$0xff]
        %v1882 = vld [vmem:[%s1547 + $0x350] sm:$0xff]
        %v1883 = vld [vmem:[%s1547 + $0x358] sm:$0xff]
        %v1884 = vld [vmem:[%s1547 + $0x360] sm:$0xff]
        %v1885 = vld [vmem:[%s1547 + $0x368] sm:$0xff]
        %v1886 = vld [vmem:[%s1547 + $0x370] sm:$0xff]
        %v1887 = vld [vmem:[%s1547 + $0x378] sm:$0xff]
        %v1888 = vld [vmem:[%s1547 + $0x380] sm:$0xff]
        %v1889 = vld [vmem:[%s1547 + $0x388] sm:$0xff]
        %v1890 = vld [vmem:[%s1547 + $0x390] sm:$0xff]
        %v1891 = vld [vmem:[%s1547 + $0x398] sm:$0xff]
        %v1892 = vld [vmem:[%s1547 + $0x3a0] sm:$0xff]
        %v1893 = vld [vmem:[%s1547 + $0x3a8] sm:$0xff]
        %v1894 = vld [vmem:[%s1547 + $0x3b0] sm:$0xff]
        %v1895 = vld [vmem:[%s1547 + $0x3b8] sm:$0xff]
        %v1896 = vld [vmem:[%s1547 + $0x3c0] sm:$0xff]
        %v1897 = vld [vmem:[%s1547 + $0x3c8] sm:$0xff]
        %v1898 = vld [vmem:[%s1547 + $0x3d0] sm:$0xff]
        %v1899 = vld [vmem:[%s1547 + $0x3d8] sm:$0xff]
        %v1900 = vld [vmem:[%s1547 + $0x3e0] sm:$0xff]
        %v1901 = vld [vmem:[%s1547 + $0x3e8] sm:$0xff]
        %v1902 = vld [vmem:[%s1547 + $0x3f0] sm:$0xff]
        %v1903 = vld [vmem:[%s1547 + $0x3f8] sm:$0xff]
        %v1904 = vld [vmem:[#allocation11] sm:$0xff]
        %v1905 = vld [vmem:[%s1531] sm:$0xff]
        %v1906 = vld [vmem:[%s1531 + $0x8] sm:$0xff]
        %v1907 = vld [vmem:[%s1531 + $0x10] sm:$0xff]
        %v1908 = vld [vmem:[%s1531 + $0x18] sm:$0xff]
        %v1909 = vld [vmem:[%s1531 + $0x20] sm:$0xff]
        %v1910 = vld [vmem:[%s1531 + $0x28] sm:$0xff]
        %v1911 = vld [vmem:[%s1531 + $0x30] sm:$0xff]
        %v1912 = vld [vmem:[%s1531 + $0x38] sm:$0xff]
        %v1913 = vld [vmem:[%s1531 + $0x40] sm:$0xff]
        %v1914 = vld [vmem:[%s1531 + $0x48] sm:$0xff]
        %v1915 = vld [vmem:[%s1531 + $0x50] sm:$0xff]
        %v1916 = vld [vmem:[%s1531 + $0x58] sm:$0xff]
        %v1917 = vld [vmem:[%s1531 + $0x60] sm:$0xff]
        %v1918 = vld [vmem:[%s1531 + $0x68] sm:$0xff]
        %v1919 = vld [vmem:[%s1531 + $0x70] sm:$0xff]
        %v1920 = vld [vmem:[%s1531 + $0x78] sm:$0xff]
        %v1921 = vld [vmem:[%s1531 + $0x80] sm:$0xff]
        %v1922 = vld [vmem:[%s1531 + $0x88] sm:$0xff]
        %v1923 = vld [vmem:[%s1531 + $0x90] sm:$0xff]
        %v1924 = vld [vmem:[%s1531 + $0x98] sm:$0xff]
        %v1925 = vld [vmem:[%s1531 + $0xa0] sm:$0xff]
        %v1926 = vld [vmem:[%s1531 + $0xa8] sm:$0xff]
        %v1927 = vld [vmem:[%s1531 + $0xb0] sm:$0xff]
        %v1928 = vld [vmem:[%s1531 + $0xb8] sm:$0xff]
        %v1929 = vld [vmem:[%s1531 + $0xc0] sm:$0xff]
        %v1930 = vld [vmem:[%s1531 + $0xc8] sm:$0xff]
        %v1931 = vld [vmem:[%s1531 + $0xd0] sm:$0xff]
        %v1932 = vld [vmem:[%s1531 + $0xd8] sm:$0xff]
        %v1933 = vld [vmem:[%s1531 + $0xe0] sm:$0xff]
        %v1934 = vld [vmem:[%s1531 + $0xe8] sm:$0xff]
        %v1935 = vld [vmem:[%s1531 + $0xf0] sm:$0xff]
        %v1936 = vld [vmem:[%s1531 + $0xf8] sm:$0xff]
        %v1937 = vld [vmem:[%s1531 + $0x100] sm:$0xff]
        %v1938 = vld [vmem:[%s1531 + $0x108] sm:$0xff]
        %v1939 = vld [vmem:[%s1531 + $0x110] sm:$0xff]
        %v1940 = vld [vmem:[%s1531 + $0x118] sm:$0xff]
        %v1941 = vld [vmem:[%s1531 + $0x120] sm:$0xff]
        %v1942 = vld [vmem:[%s1531 + $0x128] sm:$0xff]
        %v1943 = vld [vmem:[%s1531 + $0x130] sm:$0xff]
        %v1944 = vld [vmem:[%s1531 + $0x138] sm:$0xff]
        %v1945 = vld [vmem:[%s1531 + $0x140] sm:$0xff]
        %v1946 = vld [vmem:[%s1531 + $0x148] sm:$0xff]
        %v1947 = vld [vmem:[%s1531 + $0x150] sm:$0xff]
        %v1948 = vld [vmem:[%s1531 + $0x158] sm:$0xff]
        %v1949 = vld [vmem:[%s1531 + $0x160] sm:$0xff]
        %v1950 = vld [vmem:[%s1531 + $0x168] sm:$0xff]
        %v1951 = vld [vmem:[%s1531 + $0x170] sm:$0xff]
        %v1952 = vld [vmem:[%s1531 + $0x178] sm:$0xff]
        %v1953 = vld [vmem:[%s1531 + $0x180] sm:$0xff]
        %v1954 = vld [vmem:[%s1531 + $0x188] sm:$0xff]
        %v1955 = vld [vmem:[%s1531 + $0x190] sm:$0xff]
        %v1956 = vld [vmem:[%s1531 + $0x198] sm:$0xff]
        %v1957 = vld [vmem:[%s1531 + $0x1a0] sm:$0xff]
        %v1958 = vld [vmem:[%s1531 + $0x1a8] sm:$0xff]
        %v1959 = vld [vmem:[%s1531 + $0x1b0] sm:$0xff]
        %v1960 = vld [vmem:[%s1531 + $0x1b8] sm:$0xff]
        %v1961 = vld [vmem:[%s1531 + $0x1c0] sm:$0xff]
        %v1962 = vld [vmem:[%s1531 + $0x1c8] sm:$0xff]
        %v1963 = vld [vmem:[%s1531 + $0x1d0] sm:$0xff]
        %v1964 = vld [vmem:[%s1531 + $0x1d8] sm:$0xff]
        %v1965 = vld [vmem:[%s1531 + $0x1e0] sm:$0xff]
        %v1966 = vld [vmem:[%s1531 + $0x1e8] sm:$0xff]
        %v1967 = vld [vmem:[%s1531 + $0x1f0] sm:$0xff]
        %v1968 = vld [vmem:[%s1531 + $0x1f8] sm:$0xff]
        %v1969 = vld [vmem:[%s1531 + $0x200] sm:$0xff]
        %v1970 = vld [vmem:[%s1531 + $0x208] sm:$0xff]
        %v1971 = vld [vmem:[%s1531 + $0x210] sm:$0xff]
        %v1972 = vld [vmem:[%s1531 + $0x218] sm:$0xff]
        %v1973 = vld [vmem:[%s1531 + $0x220] sm:$0xff]
        %v1974 = vld [vmem:[%s1531 + $0x228] sm:$0xff]
        %v1975 = vld [vmem:[%s1531 + $0x230] sm:$0xff]
        %v1976 = vld [vmem:[%s1531 + $0x238] sm:$0xff]
        %v1977 = vld [vmem:[%s1531 + $0x240] sm:$0xff]
        %v1978 = vld [vmem:[%s1531 + $0x248] sm:$0xff]
        %v1979 = vld [vmem:[%s1531 + $0x250] sm:$0xff]
        %v1980 = vld [vmem:[%s1531 + $0x258] sm:$0xff]
        %v1981 = vld [vmem:[%s1531 + $0x260] sm:$0xff]
        %v1982 = vld [vmem:[%s1531 + $0x268] sm:$0xff]
        %v1983 = vld [vmem:[%s1531 + $0x270] sm:$0xff]
        %v1984 = vld [vmem:[%s1531 + $0x278] sm:$0xff]
        %v1985 = vld [vmem:[%s1531 + $0x280] sm:$0xff]
        %v1986 = vld [vmem:[%s1531 + $0x288] sm:$0xff]
        %v1987 = vld [vmem:[%s1531 + $0x290] sm:$0xff]
        %v1988 = vld [vmem:[%s1531 + $0x298] sm:$0xff]
        %v1989 = vld [vmem:[%s1531 + $0x2a0] sm:$0xff]
        %v1990 = vld [vmem:[%s1531 + $0x2a8] sm:$0xff]
        %v1991 = vld [vmem:[%s1531 + $0x2b0] sm:$0xff]
        %v1992 = vld [vmem:[%s1531 + $0x2b8] sm:$0xff]
        %v1993 = vld [vmem:[%s1531 + $0x2c0] sm:$0xff]
        %v1994 = vld [vmem:[%s1531 + $0x2c8] sm:$0xff]
        %v1995 = vld [vmem:[%s1531 + $0x2d0] sm:$0xff]
        %v1996 = vld [vmem:[%s1531 + $0x2d8] sm:$0xff]
        %v1997 = vld [vmem:[%s1531 + $0x2e0] sm:$0xff]
        %v1998 = vld [vmem:[%s1531 + $0x2e8] sm:$0xff]
        %v1999 = vld [vmem:[%s1531 + $0x2f0] sm:$0xff]
        %v2000 = vld [vmem:[%s1531 + $0x2f8] sm:$0xff]
        %v2001 = vld [vmem:[%s1531 + $0x300] sm:$0xff]
        %v2002 = vld [vmem:[%s1531 + $0x308] sm:$0xff]
        %v2003 = vld [vmem:[%s1531 + $0x310] sm:$0xff]
        %v2004 = vld [vmem:[%s1531 + $0x318] sm:$0xff]
        %v2005 = vld [vmem:[%s1531 + $0x320] sm:$0xff]
        %v2006 = vld [vmem:[%s1531 + $0x328] sm:$0xff]
        %v2007 = vld [vmem:[%s1531 + $0x330] sm:$0xff]
        %v2008 = vld [vmem:[%s1531 + $0x338] sm:$0xff]
        %v2009 = vld [vmem:[%s1531 + $0x340] sm:$0xff]
        %v2010 = vld [vmem:[%s1531 + $0x348] sm:$0xff]
        %v2011 = vld [vmem:[%s1531 + $0x350] sm:$0xff]
        %v2012 = vld [vmem:[%s1531 + $0x358] sm:$0xff]
        %v2013 = vld [vmem:[%s1531 + $0x360] sm:$0xff]
        %v2014 = vld [vmem:[%s1531 + $0x368] sm:$0xff]
        %v2015 = vld [vmem:[%s1531 + $0x370] sm:$0xff]
        %v2016 = vld [vmem:[%s1531 + $0x378] sm:$0xff]
        %v2017 = vld [vmem:[%s1531 + $0x380] sm:$0xff]
        %v2018 = vld [vmem:[%s1531 + $0x388] sm:$0xff]
        %v2019 = vld [vmem:[%s1531 + $0x390] sm:$0xff]
        %v2020 = vld [vmem:[%s1531 + $0x398] sm:$0xff]
        %v2021 = vld [vmem:[%s1531 + $0x3a0] sm:$0xff]
        %v2022 = vld [vmem:[%s1531 + $0x3a8] sm:$0xff]
        %v2023 = vld [vmem:[%s1531 + $0x3b0] sm:$0xff]
        %v2024 = vld [vmem:[%s1531 + $0x3b8] sm:$0xff]
        %v2025 = vld [vmem:[%s1531 + $0x3c0] sm:$0xff]
        %v2026 = vld [vmem:[%s1531 + $0x3c8] sm:$0xff]
        %v2027 = vld [vmem:[%s1531 + $0x3d0] sm:$0xff]
        %v2028 = vld [vmem:[%s1531 + $0x3d8] sm:$0xff]
        %v2029 = vld [vmem:[%s1531 + $0x3e0] sm:$0xff]
        %v2030 = vld [vmem:[%s1531 + $0x3e8] sm:$0xff]
        %v2031 = vld [vmem:[%s1531 + $0x3f0] sm:$0xff]
        %v2032 = vld [vmem:[%s1531 + $0x3f8] sm:$0xff]
        %vm2033 = vcmask 64512
        %v2035 = vsel %vm2033, %v1776, 0
        %v2038 = vsel %vm2033, %v1777, 0
        %v2041 = vsel %vm2033, %v1778, 0
        %v2044 = vsel %vm2033, %v1779, 0
        %v2047 = vsel %vm2033, %v1780, 0
        %v2050 = vsel %vm2033, %v1781, 0
        %v2053 = vsel %vm2033, %v1782, 0
        %v2056 = vsel %vm2033, %v1783, 0
        %v2059 = vsel %vm2033, %v1784, 0
        %v2062 = vsel %vm2033, %v1785, 0
        %v2065 = vsel %vm2033, %v1786, 0
        %v2068 = vsel %vm2033, %v1787, 0
        %v2071 = vsel %vm2033, %v1788, 0
        %v2074 = vsel %vm2033, %v1789, 0
        %v2077 = vsel %vm2033, %v1790, 0
        %v2080 = vsel %vm2033, %v1791, 0
        %v2083 = vsel %vm2033, %v1792, 0
        %v2086 = vsel %vm2033, %v1793, 0
        %v2089 = vsel %vm2033, %v1794, 0
        %v2092 = vsel %vm2033, %v1795, 0
        %v2095 = vsel %vm2033, %v1796, 0
        %v2098 = vsel %vm2033, %v1797, 0
        %v2101 = vsel %vm2033, %v1798, 0
        %v2104 = vsel %vm2033, %v1799, 0
        %v2107 = vsel %vm2033, %v1800, 0
        %v2110 = vsel %vm2033, %v1801, 0
        %v2113 = vsel %vm2033, %v1802, 0
        %v2116 = vsel %vm2033, %v1803, 0
        %v2119 = vsel %vm2033, %v1804, 0
        %v2122 = vsel %vm2033, %v1805, 0
        %v2125 = vsel %vm2033, %v1806, 0
        %v2128 = vsel %vm2033, %v1807, 0
        %v2131 = vsel %vm2033, %v1808, 0
        %v2134 = vsel %vm2033, %v1809, 0
        %v2137 = vsel %vm2033, %v1810, 0
        %v2140 = vsel %vm2033, %v1811, 0
        %v2143 = vsel %vm2033, %v1812, 0
        %v2146 = vsel %vm2033, %v1813, 0
        %v2149 = vsel %vm2033, %v1814, 0
        %v2152 = vsel %vm2033, %v1815, 0
        %v2155 = vsel %vm2033, %v1816, 0
        %v2158 = vsel %vm2033, %v1817, 0
        %v2161 = vsel %vm2033, %v1818, 0
        %v2164 = vsel %vm2033, %v1819, 0
        %v2167 = vsel %vm2033, %v1820, 0
        %v2170 = vsel %vm2033, %v1821, 0
        %v2173 = vsel %vm2033, %v1822, 0
        %v2176 = vsel %vm2033, %v1823, 0
        %v2179 = vsel %vm2033, %v1824, 0
        %v2182 = vsel %vm2033, %v1825, 0
        %v2185 = vsel %vm2033, %v1826, 0
        %v2188 = vsel %vm2033, %v1827, 0
        %v2191 = vsel %vm2033, %v1828, 0
        %v2194 = vsel %vm2033, %v1829, 0
        %v2197 = vsel %vm2033, %v1830, 0
        %v2200 = vsel %vm2033, %v1831, 0
        %v2203 = vsel %vm2033, %v1832, 0
        %v2206 = vsel %vm2033, %v1833, 0
        %v2209 = vsel %vm2033, %v1834, 0
        %v2212 = vsel %vm2033, %v1835, 0
        %v2215 = vsel %vm2033, %v1836, 0
        %v2218 = vsel %vm2033, %v1837, 0
        %v2221 = vsel %vm2033, %v1838, 0
        %v2224 = vsel %vm2033, %v1839, 0
        %v2227 = vsel %vm2033, %v1840, 0
        %v2230 = vsel %vm2033, %v1841, 0
        %v2233 = vsel %vm2033, %v1842, 0
        %v2236 = vsel %vm2033, %v1843, 0
        %v2239 = vsel %vm2033, %v1844, 0
        %v2242 = vsel %vm2033, %v1845, 0
        %v2245 = vsel %vm2033, %v1846, 0
        %v2248 = vsel %vm2033, %v1847, 0
        %v2251 = vsel %vm2033, %v1848, 0
        %v2254 = vsel %vm2033, %v1849, 0
        %v2257 = vsel %vm2033, %v1850, 0
        %v2260 = vsel %vm2033, %v1851, 0
        %v2263 = vsel %vm2033, %v1852, 0
        %v2266 = vsel %vm2033, %v1853, 0
        %v2269 = vsel %vm2033, %v1854, 0
        %v2272 = vsel %vm2033, %v1855, 0
        %v2275 = vsel %vm2033, %v1856, 0
        %v2278 = vsel %vm2033, %v1857, 0
        %v2281 = vsel %vm2033, %v1858, 0
        %v2284 = vsel %vm2033, %v1859, 0
        %v2287 = vsel %vm2033, %v1860, 0
        %v2290 = vsel %vm2033, %v1861, 0
        %v2293 = vsel %vm2033, %v1862, 0
        %v2296 = vsel %vm2033, %v1863, 0
        %v2299 = vsel %vm2033, %v1864, 0
        %v2302 = vsel %vm2033, %v1865, 0
        %v2305 = vsel %vm2033, %v1866, 0
        %v2308 = vsel %vm2033, %v1867, 0
        %v2311 = vsel %vm2033, %v1868, 0
        %v2314 = vsel %vm2033, %v1869, 0
        %v2317 = vsel %vm2033, %v1870, 0
        %v2320 = vsel %vm2033, %v1871, 0
        %v2323 = vsel %vm2033, %v1872, 0
        %v2326 = vsel %vm2033, %v1873, 0
        %v2329 = vsel %vm2033, %v1874, 0
        %v2332 = vsel %vm2033, %v1875, 0
        %v2335 = vsel %vm2033, %v1876, 0
        %v2338 = vsel %vm2033, %v1877, 0
        %v2341 = vsel %vm2033, %v1878, 0
        %v2344 = vsel %vm2033, %v1879, 0
        %v2347 = vsel %vm2033, %v1880, 0
        %v2350 = vsel %vm2033, %v1881, 0
        %v2353 = vsel %vm2033, %v1882, 0
        %v2356 = vsel %vm2033, %v1883, 0
        %v2359 = vsel %vm2033, %v1884, 0
        %v2362 = vsel %vm2033, %v1885, 0
        %v2365 = vsel %vm2033, %v1886, 0
        %v2368 = vsel %vm2033, %v1887, 0
        %v2371 = vsel %vm2033, %v1888, 0
        %v2374 = vsel %vm2033, %v1889, 0
        %v2377 = vsel %vm2033, %v1890, 0
        %v2380 = vsel %vm2033, %v1891, 0
        %v2383 = vsel %vm2033, %v1892, 0
        %v2386 = vsel %vm2033, %v1893, 0
        %v2389 = vsel %vm2033, %v1894, 0
        %v2392 = vsel %vm2033, %v1895, 0
        %v2395 = vsel %vm2033, %v1896, 0
        %v2398 = vsel %vm2033, %v1897, 0
        %v2401 = vsel %vm2033, %v1898, 0
        %v2404 = vsel %vm2033, %v1899, 0
        %v2407 = vsel %vm2033, %v1900, 0
        %v2410 = vsel %vm2033, %v1901, 0
        %v2413 = vsel %vm2033, %v1902, 0
        %v2416 = vsel %vm2033, %v1903, 0
        %2418 = vmatprep.subr.mxu0 0.0
        %2419 = vmatpush1.msra.mxu0 0.0
        %2420 = vmatprep.subr.mxu0 0.0
        %2421 = vmatpush1.msra.mxu0 0.0
        %2422 = vmatprep.subr.mxu0 0.0
        %2423 = vmatpush1.msra.mxu0 0.0
        %2424 = vmatprep.subr.mxu0 0.0
        %2425 = vmatpush1.msra.mxu0 0.0
        %2426 = vmatprep.subr.mxu0 0.0
        %2427 = vmatpush1.msra.mxu0 0.0
        %2428 = vmatprep.subr.mxu0 0.0
        %2429 = vmatpush1.msra.mxu0 0.0
        %2430 = vmatprep.subr.mxu0 0.0
        %2431 = vmatpush1.msra.mxu0 0.0
        %2432 = vmatprep.subr.mxu0 0.0
        %2433 = vmatpush1.msra.mxu0 0.0
        %2434 = vmatprep.subr.mxu0 0.0
        %2435 = vmatpush1.msra.mxu0 0.0
        %2436 = vmatprep.subr.mxu0 0.0
        %2437 = vmatpush1.msra.mxu0 0.0
        %2438 = vmatprep.subr.mxu0 0.0
        %2439 = vmatpush1.msra.mxu0 0.0
        %2440 = vmatprep.subr.mxu0 0.0
        %2441 = vmatpush1.msra.mxu0 0.0
        %2442 = vmatprep.subr.mxu0 0.0
        %2443 = vmatpush1.msra.mxu0 0.0
        %2444 = vmatprep.subr.mxu0 0.0
        %2445 = vmatpush1.msra.mxu0 0.0
        %2446 = vmatprep.subr.mxu0 0.0
        %2447 = vmatpush1.msra.mxu0 0.0
        %2448 = vmatprep.subr.mxu0 0.0
        %2449 = vmatpush1.msra.mxu0 %v1904
        %2450 = vmatprep.subr.mxu0 0.0
        %2451 = vmatpush2.msra.mxu0 0.0
        %2452 = vmatprep.subr.mxu0 0.0
        %2453 = vmatpush2.msra.mxu0 0.0
        %2454 = vmatprep.subr.mxu0 0.0
        %2455 = vmatpush2.msra.mxu0 0.0
        %2456 = vmatprep.subr.mxu0 0.0
        %2457 = vmatpush2.msra.mxu0 0.0
        %2458 = vmatprep.subr.mxu0 0.0
        %2459 = vmatpush2.msra.mxu0 0.0
        %2460 = vmatprep.subr.mxu0 0.0
        %2461 = vmatpush2.msra.mxu0 0.0
        %2462 = vmatprep.subr.mxu0 0.0
        %2463 = vmatpush2.msra.mxu0 0.0
        %2464 = vmatprep.subr.mxu0 0.0
        %2465 = vmatpush2.msra.mxu0 0.0
        %2466 = vmatprep.subr.mxu0 0.0
        %2467 = vmatpush2.msra.mxu0 0.0
        %2468 = vmatprep.subr.mxu0 0.0
        %2469 = vmatpush2.msra.mxu0 0.0
        %2470 = vmatprep.subr.mxu0 0.0
        %2471 = vmatpush2.msra.mxu0 0.0
        %2472 = vmatprep.subr.mxu0 0.0
        %2473 = vmatpush2.msra.mxu0 0.0
        %2474 = vmatprep.subr.mxu0 0.0
        %2475 = vmatpush2.msra.mxu0 0.0
        %2476 = vmatprep.subr.mxu0 0.0
        %2477 = vmatpush2.msra.mxu0 0.0
        %2478 = vmatprep.subr.mxu0 0.0
        %2479 = vmatpush2.msra.mxu0 0.0
        %2480 = vmatprep.subr.mxu0 0.0
        %2481 = vmatpush2.msra.mxu0 0.0
        %2482 = vmatprep.mubr.f32.mxu0 0.0
        %2483 = vmatmul.mubr.f32.gmra.mxu0 %v2035
        %v2484 = vpop.f32.mrf.mxu0
        %v2485 = vadd.f32 %v1905, %v2484
        %v2486 = vpop.f32.mrf.mxu0
        %2487 = vmatprep.mubr.f32.mxu0 0.0
        %2488 = vmatmul.mubr.f32.gmra.mxu0 %v2038
        %v2489 = vpop.f32.mrf.mxu0
        %v2490 = vadd.f32 %v1906, %v2489
        %v2491 = vpop.f32.mrf.mxu0
        %2492 = vmatprep.mubr.f32.mxu0 0.0
        %2493 = vmatmul.mubr.f32.gmra.mxu0 %v2041
        %v2494 = vpop.f32.mrf.mxu0
        %v2495 = vadd.f32 %v1907, %v2494
        %v2496 = vpop.f32.mrf.mxu0
        %2497 = vmatprep.mubr.f32.mxu0 0.0
        %2498 = vmatmul.mubr.f32.gmra.mxu0 %v2044
        %v2499 = vpop.f32.mrf.mxu0
        %v2500 = vadd.f32 %v1908, %v2499
        %v2501 = vpop.f32.mrf.mxu0
        %2502 = vmatprep.mubr.f32.mxu0 0.0
        %2503 = vmatmul.mubr.f32.gmra.mxu0 %v2047
        %v2504 = vpop.f32.mrf.mxu0
        %v2505 = vadd.f32 %v1909, %v2504
        %v2506 = vpop.f32.mrf.mxu0
        %2507 = vmatprep.mubr.f32.mxu0 0.0
        %2508 = vmatmul.mubr.f32.gmra.mxu0 %v2050
        %v2509 = vpop.f32.mrf.mxu0
        %v2510 = vadd.f32 %v1910, %v2509
        %v2511 = vpop.f32.mrf.mxu0
        %2512 = vmatprep.mubr.f32.mxu0 0.0
        %2513 = vmatmul.mubr.f32.gmra.mxu0 %v2053
        %v2514 = vpop.f32.mrf.mxu0
        %v2515 = vadd.f32 %v1911, %v2514
        %v2516 = vpop.f32.mrf.mxu0
        %2517 = vmatprep.mubr.f32.mxu0 0.0
        %2518 = vmatmul.mubr.f32.gmra.mxu0 %v2056
        %v2519 = vpop.f32.mrf.mxu0
        %v2520 = vadd.f32 %v1912, %v2519
        %v2521 = vpop.f32.mrf.mxu0
        %2522 = vmatprep.mubr.f32.mxu0 0.0
        %2523 = vmatmul.mubr.f32.gmra.mxu0 %v2059
        %v2524 = vpop.f32.mrf.mxu0
        %v2525 = vadd.f32 %v1913, %v2524
        %v2526 = vpop.f32.mrf.mxu0
        %2527 = vmatprep.mubr.f32.mxu0 0.0
        %2528 = vmatmul.mubr.f32.gmra.mxu0 %v2062
        %v2529 = vpop.f32.mrf.mxu0
        %v2530 = vadd.f32 %v1914, %v2529
        %v2531 = vpop.f32.mrf.mxu0
        %2532 = vmatprep.mubr.f32.mxu0 0.0
        %2533 = vmatmul.mubr.f32.gmra.mxu0 %v2065
        %v2534 = vpop.f32.mrf.mxu0
        %v2535 = vadd.f32 %v1915, %v2534
        %v2536 = vpop.f32.mrf.mxu0
        %2537 = vmatprep.mubr.f32.mxu0 0.0
        %2538 = vmatmul.mubr.f32.gmra.mxu0 %v2068
        %v2539 = vpop.f32.mrf.mxu0
        %v2540 = vadd.f32 %v1916, %v2539
        %v2541 = vpop.f32.mrf.mxu0
        %2542 = vmatprep.mubr.f32.mxu0 0.0
        %2543 = vmatmul.mubr.f32.gmra.mxu0 %v2071
        %v2544 = vpop.f32.mrf.mxu0
        %v2545 = vadd.f32 %v1917, %v2544
        %v2546 = vpop.f32.mrf.mxu0
        %2547 = vmatprep.mubr.f32.mxu0 0.0
        %2548 = vmatmul.mubr.f32.gmra.mxu0 %v2074
        %v2549 = vpop.f32.mrf.mxu0
        %v2550 = vadd.f32 %v1918, %v2549
        %v2551 = vpop.f32.mrf.mxu0
        %2552 = vmatprep.mubr.f32.mxu0 0.0
        %2553 = vmatmul.mubr.f32.gmra.mxu0 %v2077
        %v2554 = vpop.f32.mrf.mxu0
        %v2555 = vadd.f32 %v1919, %v2554
        %v2556 = vpop.f32.mrf.mxu0
        %2557 = vmatprep.mubr.f32.mxu0 0.0
        %2558 = vmatmul.mubr.f32.gmra.mxu0 %v2080
        %v2559 = vpop.f32.mrf.mxu0
        %v2560 = vadd.f32 %v1920, %v2559
        %v2561 = vpop.f32.mrf.mxu0
        %2562 = vmatprep.mubr.f32.mxu0 0.0
        %2563 = vmatmul.mubr.f32.gmra.mxu0 %v2083
        %v2564 = vpop.f32.mrf.mxu0
        %v2565 = vadd.f32 %v1921, %v2564
        %v2566 = vpop.f32.mrf.mxu0
        %2567 = vmatprep.mubr.f32.mxu0 0.0
        %2568 = vmatmul.mubr.f32.gmra.mxu0 %v2086
        %v2569 = vpop.f32.mrf.mxu0
        %v2570 = vadd.f32 %v1922, %v2569
        %v2571 = vpop.f32.mrf.mxu0
        %2572 = vmatprep.mubr.f32.mxu0 0.0
        %2573 = vmatmul.mubr.f32.gmra.mxu0 %v2089
        %v2574 = vpop.f32.mrf.mxu0
        %v2575 = vadd.f32 %v1923, %v2574
        %v2576 = vpop.f32.mrf.mxu0
        %2577 = vmatprep.mubr.f32.mxu0 0.0
        %2578 = vmatmul.mubr.f32.gmra.mxu0 %v2092
        %v2579 = vpop.f32.mrf.mxu0
        %v2580 = vadd.f32 %v1924, %v2579
        %v2581 = vpop.f32.mrf.mxu0
        %2582 = vmatprep.mubr.f32.mxu0 0.0
        %2583 = vmatmul.mubr.f32.gmra.mxu0 %v2095
        %v2584 = vpop.f32.mrf.mxu0
        %v2585 = vadd.f32 %v1925, %v2584
        %v2586 = vpop.f32.mrf.mxu0
        %2587 = vmatprep.mubr.f32.mxu0 0.0
        %2588 = vmatmul.mubr.f32.gmra.mxu0 %v2098
        %v2589 = vpop.f32.mrf.mxu0
        %v2590 = vadd.f32 %v1926, %v2589
        %v2591 = vpop.f32.mrf.mxu0
        %2592 = vmatprep.mubr.f32.mxu0 0.0
        %2593 = vmatmul.mubr.f32.gmra.mxu0 %v2101
        %v2594 = vpop.f32.mrf.mxu0
        %v2595 = vadd.f32 %v1927, %v2594
        %v2596 = vpop.f32.mrf.mxu0
        %2597 = vmatprep.mubr.f32.mxu0 0.0
        %2598 = vmatmul.mubr.f32.gmra.mxu0 %v2104
        %v2599 = vpop.f32.mrf.mxu0
        %v2600 = vadd.f32 %v1928, %v2599
        %v2601 = vpop.f32.mrf.mxu0
        %2602 = vmatprep.mubr.f32.mxu0 0.0
        %2603 = vmatmul.mubr.f32.gmra.mxu0 %v2107
        %v2604 = vpop.f32.mrf.mxu0
        %v2605 = vadd.f32 %v1929, %v2604
        %v2606 = vpop.f32.mrf.mxu0
        %2607 = vmatprep.mubr.f32.mxu0 0.0
        %2608 = vmatmul.mubr.f32.gmra.mxu0 %v2110
        %v2609 = vpop.f32.mrf.mxu0
        %v2610 = vadd.f32 %v1930, %v2609
        %v2611 = vpop.f32.mrf.mxu0
        %2612 = vmatprep.mubr.f32.mxu0 0.0
        %2613 = vmatmul.mubr.f32.gmra.mxu0 %v2113
        %v2614 = vpop.f32.mrf.mxu0
        %v2615 = vadd.f32 %v1931, %v2614
        %v2616 = vpop.f32.mrf.mxu0
        %2617 = vmatprep.mubr.f32.mxu0 0.0
        %2618 = vmatmul.mubr.f32.gmra.mxu0 %v2116
        %v2619 = vpop.f32.mrf.mxu0
        %v2620 = vadd.f32 %v1932, %v2619
        %v2621 = vpop.f32.mrf.mxu0
        %2622 = vmatprep.mubr.f32.mxu0 0.0
        %2623 = vmatmul.mubr.f32.gmra.mxu0 %v2119
        %v2624 = vpop.f32.mrf.mxu0
        %v2625 = vadd.f32 %v1933, %v2624
        %v2626 = vpop.f32.mrf.mxu0
        %2627 = vmatprep.mubr.f32.mxu0 0.0
        %2628 = vmatmul.mubr.f32.gmra.mxu0 %v2122
        %v2629 = vpop.f32.mrf.mxu0
        %v2630 = vadd.f32 %v1934, %v2629
        %v2631 = vpop.f32.mrf.mxu0
        %2632 = vmatprep.mubr.f32.mxu0 0.0
        %2633 = vmatmul.mubr.f32.gmra.mxu0 %v2125
        %v2634 = vpop.f32.mrf.mxu0
        %v2635 = vadd.f32 %v1935, %v2634
        %v2636 = vpop.f32.mrf.mxu0
        %2637 = vmatprep.mubr.f32.mxu0 0.0
        %2638 = vmatmul.mubr.f32.gmra.mxu0 %v2128
        %v2639 = vpop.f32.mrf.mxu0
        %v2640 = vadd.f32 %v1936, %v2639
        %v2641 = vpop.f32.mrf.mxu0
        %2642 = vmatprep.mubr.f32.mxu0 0.0
        %2643 = vmatmul.mubr.f32.gmra.mxu0 %v2131
        %v2644 = vpop.f32.mrf.mxu0
        %v2645 = vadd.f32 %v1937, %v2644
        %v2646 = vpop.f32.mrf.mxu0
        %2647 = vmatprep.mubr.f32.mxu0 0.0
        %2648 = vmatmul.mubr.f32.gmra.mxu0 %v2134
        %v2649 = vpop.f32.mrf.mxu0
        %v2650 = vadd.f32 %v1938, %v2649
        %v2651 = vpop.f32.mrf.mxu0
        %2652 = vmatprep.mubr.f32.mxu0 0.0
        %2653 = vmatmul.mubr.f32.gmra.mxu0 %v2137
        %v2654 = vpop.f32.mrf.mxu0
        %v2655 = vadd.f32 %v1939, %v2654
        %v2656 = vpop.f32.mrf.mxu0
        %2657 = vmatprep.mubr.f32.mxu0 0.0
        %2658 = vmatmul.mubr.f32.gmra.mxu0 %v2140
        %v2659 = vpop.f32.mrf.mxu0
        %v2660 = vadd.f32 %v1940, %v2659
        %v2661 = vpop.f32.mrf.mxu0
        %2662 = vmatprep.mubr.f32.mxu0 0.0
        %2663 = vmatmul.mubr.f32.gmra.mxu0 %v2143
        %v2664 = vpop.f32.mrf.mxu0
        %v2665 = vadd.f32 %v1941, %v2664
        %v2666 = vpop.f32.mrf.mxu0
        %2667 = vmatprep.mubr.f32.mxu0 0.0
        %2668 = vmatmul.mubr.f32.gmra.mxu0 %v2146
        %v2669 = vpop.f32.mrf.mxu0
        %v2670 = vadd.f32 %v1942, %v2669
        %v2671 = vpop.f32.mrf.mxu0
        %2672 = vmatprep.mubr.f32.mxu0 0.0
        %2673 = vmatmul.mubr.f32.gmra.mxu0 %v2149
        %v2674 = vpop.f32.mrf.mxu0
        %v2675 = vadd.f32 %v1943, %v2674
        %v2676 = vpop.f32.mrf.mxu0
        %2677 = vmatprep.mubr.f32.mxu0 0.0
        %2678 = vmatmul.mubr.f32.gmra.mxu0 %v2152
        %v2679 = vpop.f32.mrf.mxu0
        %v2680 = vadd.f32 %v1944, %v2679
        %v2681 = vpop.f32.mrf.mxu0
        %2682 = vmatprep.mubr.f32.mxu0 0.0
        %2683 = vmatmul.mubr.f32.gmra.mxu0 %v2155
        %v2684 = vpop.f32.mrf.mxu0
        %v2685 = vadd.f32 %v1945, %v2684
        %v2686 = vpop.f32.mrf.mxu0
        %2687 = vmatprep.mubr.f32.mxu0 0.0
        %2688 = vmatmul.mubr.f32.gmra.mxu0 %v2158
        %v2689 = vpop.f32.mrf.mxu0
        %v2690 = vadd.f32 %v1946, %v2689
        %v2691 = vpop.f32.mrf.mxu0
        %2692 = vmatprep.mubr.f32.mxu0 0.0
        %2693 = vmatmul.mubr.f32.gmra.mxu0 %v2161
        %v2694 = vpop.f32.mrf.mxu0
        %v2695 = vadd.f32 %v1947, %v2694
        %v2696 = vpop.f32.mrf.mxu0
        %2697 = vmatprep.mubr.f32.mxu0 0.0
        %2698 = vmatmul.mubr.f32.gmra.mxu0 %v2164
        %v2699 = vpop.f32.mrf.mxu0
        %v2700 = vadd.f32 %v1948, %v2699
        %v2701 = vpop.f32.mrf.mxu0
        %2702 = vmatprep.mubr.f32.mxu0 0.0
        %2703 = vmatmul.mubr.f32.gmra.mxu0 %v2167
        %v2704 = vpop.f32.mrf.mxu0
        %v2705 = vadd.f32 %v1949, %v2704
        %v2706 = vpop.f32.mrf.mxu0
        %2707 = vmatprep.mubr.f32.mxu0 0.0
        %2708 = vmatmul.mubr.f32.gmra.mxu0 %v2170
        %v2709 = vpop.f32.mrf.mxu0
        %v2710 = vadd.f32 %v1950, %v2709
        %v2711 = vpop.f32.mrf.mxu0
        %2712 = vmatprep.mubr.f32.mxu0 0.0
        %2713 = vmatmul.mubr.f32.gmra.mxu0 %v2173
        %v2714 = vpop.f32.mrf.mxu0
        %v2715 = vadd.f32 %v1951, %v2714
        %v2716 = vpop.f32.mrf.mxu0
        %2717 = vmatprep.mubr.f32.mxu0 0.0
        %2718 = vmatmul.mubr.f32.gmra.mxu0 %v2176
        %v2719 = vpop.f32.mrf.mxu0
        %v2720 = vadd.f32 %v1952, %v2719
        %v2721 = vpop.f32.mrf.mxu0
        %2722 = vmatprep.mubr.f32.mxu0 0.0
        %2723 = vmatmul.mubr.f32.gmra.mxu0 %v2179
        %v2724 = vpop.f32.mrf.mxu0
        %v2725 = vadd.f32 %v1953, %v2724
        %v2726 = vpop.f32.mrf.mxu0
        %2727 = vmatprep.mubr.f32.mxu0 0.0
        %2728 = vmatmul.mubr.f32.gmra.mxu0 %v2182
        %v2729 = vpop.f32.mrf.mxu0
        %v2730 = vadd.f32 %v1954, %v2729
        %v2731 = vpop.f32.mrf.mxu0
        %2732 = vmatprep.mubr.f32.mxu0 0.0
        %2733 = vmatmul.mubr.f32.gmra.mxu0 %v2185
        %v2734 = vpop.f32.mrf.mxu0
        %v2735 = vadd.f32 %v1955, %v2734
        %v2736 = vpop.f32.mrf.mxu0
        %2737 = vmatprep.mubr.f32.mxu0 0.0
        %2738 = vmatmul.mubr.f32.gmra.mxu0 %v2188
        %v2739 = vpop.f32.mrf.mxu0
        %v2740 = vadd.f32 %v1956, %v2739
        %v2741 = vpop.f32.mrf.mxu0
        %2742 = vmatprep.mubr.f32.mxu0 0.0
        %2743 = vmatmul.mubr.f32.gmra.mxu0 %v2191
        %v2744 = vpop.f32.mrf.mxu0
        %v2745 = vadd.f32 %v1957, %v2744
        %v2746 = vpop.f32.mrf.mxu0
        %2747 = vmatprep.mubr.f32.mxu0 0.0
        %2748 = vmatmul.mubr.f32.gmra.mxu0 %v2194
        %v2749 = vpop.f32.mrf.mxu0
        %v2750 = vadd.f32 %v1958, %v2749
        %v2751 = vpop.f32.mrf.mxu0
        %2752 = vmatprep.mubr.f32.mxu0 0.0
        %2753 = vmatmul.mubr.f32.gmra.mxu0 %v2197
        %v2754 = vpop.f32.mrf.mxu0
        %v2755 = vadd.f32 %v1959, %v2754
        %v2756 = vpop.f32.mrf.mxu0
        %2757 = vmatprep.mubr.f32.mxu0 0.0
        %2758 = vmatmul.mubr.f32.gmra.mxu0 %v2200
        %v2759 = vpop.f32.mrf.mxu0
        %v2760 = vadd.f32 %v1960, %v2759
        %v2761 = vpop.f32.mrf.mxu0
        %2762 = vmatprep.mubr.f32.mxu0 0.0
        %2763 = vmatmul.mubr.f32.gmra.mxu0 %v2203
        %v2764 = vpop.f32.mrf.mxu0
        %v2765 = vadd.f32 %v1961, %v2764
        %v2766 = vpop.f32.mrf.mxu0
        %2767 = vmatprep.mubr.f32.mxu0 0.0
        %2768 = vmatmul.mubr.f32.gmra.mxu0 %v2206
        %v2769 = vpop.f32.mrf.mxu0
        %v2770 = vadd.f32 %v1962, %v2769
        %v2771 = vpop.f32.mrf.mxu0
        %2772 = vmatprep.mubr.f32.mxu0 0.0
        %2773 = vmatmul.mubr.f32.gmra.mxu0 %v2209
        %v2774 = vpop.f32.mrf.mxu0
        %v2775 = vadd.f32 %v1963, %v2774
        %v2776 = vpop.f32.mrf.mxu0
        %2777 = vmatprep.mubr.f32.mxu0 0.0
        %2778 = vmatmul.mubr.f32.gmra.mxu0 %v2212
        %v2779 = vpop.f32.mrf.mxu0
        %v2780 = vadd.f32 %v1964, %v2779
        %v2781 = vpop.f32.mrf.mxu0
        %2782 = vmatprep.mubr.f32.mxu0 0.0
        %2783 = vmatmul.mubr.f32.gmra.mxu0 %v2215
        %v2784 = vpop.f32.mrf.mxu0
        %v2785 = vadd.f32 %v1965, %v2784
        %v2786 = vpop.f32.mrf.mxu0
        %2787 = vmatprep.mubr.f32.mxu0 0.0
        %2788 = vmatmul.mubr.f32.gmra.mxu0 %v2218
        %v2789 = vpop.f32.mrf.mxu0
        %v2790 = vadd.f32 %v1966, %v2789
        %v2791 = vpop.f32.mrf.mxu0
        %2792 = vmatprep.mubr.f32.mxu0 0.0
        %2793 = vmatmul.mubr.f32.gmra.mxu0 %v2221
        %v2794 = vpop.f32.mrf.mxu0
        %v2795 = vadd.f32 %v1967, %v2794
        %v2796 = vpop.f32.mrf.mxu0
        %2797 = vmatprep.mubr.f32.mxu0 0.0
        %2798 = vmatmul.mubr.f32.gmra.mxu0 %v2224
        %v2799 = vpop.f32.mrf.mxu0
        %v2800 = vadd.f32 %v1968, %v2799
        %v2801 = vpop.f32.mrf.mxu0
        %2802 = vmatprep.mubr.f32.mxu0 0.0
        %2803 = vmatmul.mubr.f32.gmra.mxu0 %v2227
        %v2804 = vpop.f32.mrf.mxu0
        %v2805 = vadd.f32 %v1969, %v2804
        %v2806 = vpop.f32.mrf.mxu0
        %2807 = vmatprep.mubr.f32.mxu0 0.0
        %2808 = vmatmul.mubr.f32.gmra.mxu0 %v2230
        %v2809 = vpop.f32.mrf.mxu0
        %v2810 = vadd.f32 %v1970, %v2809
        %v2811 = vpop.f32.mrf.mxu0
        %2812 = vmatprep.mubr.f32.mxu0 0.0
        %2813 = vmatmul.mubr.f32.gmra.mxu0 %v2233
        %v2814 = vpop.f32.mrf.mxu0
        %v2815 = vadd.f32 %v1971, %v2814
        %v2816 = vpop.f32.mrf.mxu0
        %2817 = vmatprep.mubr.f32.mxu0 0.0
        %2818 = vmatmul.mubr.f32.gmra.mxu0 %v2236
        %v2819 = vpop.f32.mrf.mxu0
        %v2820 = vadd.f32 %v1972, %v2819
        %v2821 = vpop.f32.mrf.mxu0
        %2822 = vmatprep.mubr.f32.mxu0 0.0
        %2823 = vmatmul.mubr.f32.gmra.mxu0 %v2239
        %v2824 = vpop.f32.mrf.mxu0
        %v2825 = vadd.f32 %v1973, %v2824
        %v2826 = vpop.f32.mrf.mxu0
        %2827 = vmatprep.mubr.f32.mxu0 0.0
        %2828 = vmatmul.mubr.f32.gmra.mxu0 %v2242
        %v2829 = vpop.f32.mrf.mxu0
        %v2830 = vadd.f32 %v1974, %v2829
        %v2831 = vpop.f32.mrf.mxu0
        %2832 = vmatprep.mubr.f32.mxu0 0.0
        %2833 = vmatmul.mubr.f32.gmra.mxu0 %v2245
        %v2834 = vpop.f32.mrf.mxu0
        %v2835 = vadd.f32 %v1975, %v2834
        %v2836 = vpop.f32.mrf.mxu0
        %2837 = vmatprep.mubr.f32.mxu0 0.0
        %2838 = vmatmul.mubr.f32.gmra.mxu0 %v2248
        %v2839 = vpop.f32.mrf.mxu0
        %v2840 = vadd.f32 %v1976, %v2839
        %v2841 = vpop.f32.mrf.mxu0
        %2842 = vmatprep.mubr.f32.mxu0 0.0
        %2843 = vmatmul.mubr.f32.gmra.mxu0 %v2251
        %v2844 = vpop.f32.mrf.mxu0
        %v2845 = vadd.f32 %v1977, %v2844
        %v2846 = vpop.f32.mrf.mxu0
        %2847 = vmatprep.mubr.f32.mxu0 0.0
        %2848 = vmatmul.mubr.f32.gmra.mxu0 %v2254
        %v2849 = vpop.f32.mrf.mxu0
        %v2850 = vadd.f32 %v1978, %v2849
        %v2851 = vpop.f32.mrf.mxu0
        %2852 = vmatprep.mubr.f32.mxu0 0.0
        %2853 = vmatmul.mubr.f32.gmra.mxu0 %v2257
        %v2854 = vpop.f32.mrf.mxu0
        %v2855 = vadd.f32 %v1979, %v2854
        %v2856 = vpop.f32.mrf.mxu0
        %2857 = vmatprep.mubr.f32.mxu0 0.0
        %2858 = vmatmul.mubr.f32.gmra.mxu0 %v2260
        %v2859 = vpop.f32.mrf.mxu0
        %v2860 = vadd.f32 %v1980, %v2859
        %v2861 = vpop.f32.mrf.mxu0
        %2862 = vmatprep.mubr.f32.mxu0 0.0
        %2863 = vmatmul.mubr.f32.gmra.mxu0 %v2263
        %v2864 = vpop.f32.mrf.mxu0
        %v2865 = vadd.f32 %v1981, %v2864
        %v2866 = vpop.f32.mrf.mxu0
        %2867 = vmatprep.mubr.f32.mxu0 0.0
        %2868 = vmatmul.mubr.f32.gmra.mxu0 %v2266
        %v2869 = vpop.f32.mrf.mxu0
        %v2870 = vadd.f32 %v1982, %v2869
        %v2871 = vpop.f32.mrf.mxu0
        %2872 = vmatprep.mubr.f32.mxu0 0.0
        %2873 = vmatmul.mubr.f32.gmra.mxu0 %v2269
        %v2874 = vpop.f32.mrf.mxu0
        %v2875 = vadd.f32 %v1983, %v2874
        %v2876 = vpop.f32.mrf.mxu0
        %2877 = vmatprep.mubr.f32.mxu0 0.0
        %2878 = vmatmul.mubr.f32.gmra.mxu0 %v2272
        %v2879 = vpop.f32.mrf.mxu0
        %v2880 = vadd.f32 %v1984, %v2879
        %v2881 = vpop.f32.mrf.mxu0
        %2882 = vmatprep.mubr.f32.mxu0 0.0
        %2883 = vmatmul.mubr.f32.gmra.mxu0 %v2275
        %v2884 = vpop.f32.mrf.mxu0
        %v2885 = vadd.f32 %v1985, %v2884
        %v2886 = vpop.f32.mrf.mxu0
        %2887 = vmatprep.mubr.f32.mxu0 0.0
        %2888 = vmatmul.mubr.f32.gmra.mxu0 %v2278
        %v2889 = vpop.f32.mrf.mxu0
        %v2890 = vadd.f32 %v1986, %v2889
        %v2891 = vpop.f32.mrf.mxu0
        %2892 = vmatprep.mubr.f32.mxu0 0.0
        %2893 = vmatmul.mubr.f32.gmra.mxu0 %v2281
        %v2894 = vpop.f32.mrf.mxu0
        %v2895 = vadd.f32 %v1987, %v2894
        %v2896 = vpop.f32.mrf.mxu0
        %2897 = vmatprep.mubr.f32.mxu0 0.0
        %2898 = vmatmul.mubr.f32.gmra.mxu0 %v2284
        %v2899 = vpop.f32.mrf.mxu0
        %v2900 = vadd.f32 %v1988, %v2899
        %v2901 = vpop.f32.mrf.mxu0
        %2902 = vmatprep.mubr.f32.mxu0 0.0
        %2903 = vmatmul.mubr.f32.gmra.mxu0 %v2287
        %v2904 = vpop.f32.mrf.mxu0
        %v2905 = vadd.f32 %v1989, %v2904
        %v2906 = vpop.f32.mrf.mxu0
        %2907 = vmatprep.mubr.f32.mxu0 0.0
        %2908 = vmatmul.mubr.f32.gmra.mxu0 %v2290
        %v2909 = vpop.f32.mrf.mxu0
        %v2910 = vadd.f32 %v1990, %v2909
        %v2911 = vpop.f32.mrf.mxu0
        %2912 = vmatprep.mubr.f32.mxu0 0.0
        %2913 = vmatmul.mubr.f32.gmra.mxu0 %v2293
        %v2914 = vpop.f32.mrf.mxu0
        %v2915 = vadd.f32 %v1991, %v2914
        %v2916 = vpop.f32.mrf.mxu0
        %2917 = vmatprep.mubr.f32.mxu0 0.0
        %2918 = vmatmul.mubr.f32.gmra.mxu0 %v2296
        %v2919 = vpop.f32.mrf.mxu0
        %v2920 = vadd.f32 %v1992, %v2919
        %v2921 = vpop.f32.mrf.mxu0
        %2922 = vmatprep.mubr.f32.mxu0 0.0
        %2923 = vmatmul.mubr.f32.gmra.mxu0 %v2299
        %v2924 = vpop.f32.mrf.mxu0
        %v2925 = vadd.f32 %v1993, %v2924
        %v2926 = vpop.f32.mrf.mxu0
        %2927 = vmatprep.mubr.f32.mxu0 0.0
        %2928 = vmatmul.mubr.f32.gmra.mxu0 %v2302
        %v2929 = vpop.f32.mrf.mxu0
        %v2930 = vadd.f32 %v1994, %v2929
        %v2931 = vpop.f32.mrf.mxu0
        %2932 = vmatprep.mubr.f32.mxu0 0.0
        %2933 = vmatmul.mubr.f32.gmra.mxu0 %v2305
        %v2934 = vpop.f32.mrf.mxu0
        %v2935 = vadd.f32 %v1995, %v2934
        %v2936 = vpop.f32.mrf.mxu0
        %2937 = vmatprep.mubr.f32.mxu0 0.0
        %2938 = vmatmul.mubr.f32.gmra.mxu0 %v2308
        %v2939 = vpop.f32.mrf.mxu0
        %v2940 = vadd.f32 %v1996, %v2939
        %v2941 = vpop.f32.mrf.mxu0
        %2942 = vmatprep.mubr.f32.mxu0 0.0
        %2943 = vmatmul.mubr.f32.gmra.mxu0 %v2311
        %v2944 = vpop.f32.mrf.mxu0
        %v2945 = vadd.f32 %v1997, %v2944
        %v2946 = vpop.f32.mrf.mxu0
        %2947 = vmatprep.mubr.f32.mxu0 0.0
        %2948 = vmatmul.mubr.f32.gmra.mxu0 %v2314
        %v2949 = vpop.f32.mrf.mxu0
        %v2950 = vadd.f32 %v1998, %v2949
        %v2951 = vpop.f32.mrf.mxu0
        %2952 = vmatprep.mubr.f32.mxu0 0.0
        %2953 = vmatmul.mubr.f32.gmra.mxu0 %v2317
        %v2954 = vpop.f32.mrf.mxu0
        %v2955 = vadd.f32 %v1999, %v2954
        %v2956 = vpop.f32.mrf.mxu0
        %2957 = vmatprep.mubr.f32.mxu0 0.0
        %2958 = vmatmul.mubr.f32.gmra.mxu0 %v2320
        %v2959 = vpop.f32.mrf.mxu0
        %v2960 = vadd.f32 %v2000, %v2959
        %v2961 = vpop.f32.mrf.mxu0
        %2962 = vmatprep.mubr.f32.mxu0 0.0
        %2963 = vmatmul.mubr.f32.gmra.mxu0 %v2323
        %v2964 = vpop.f32.mrf.mxu0
        %v2965 = vadd.f32 %v2001, %v2964
        %v2966 = vpop.f32.mrf.mxu0
        %2967 = vmatprep.mubr.f32.mxu0 0.0
        %2968 = vmatmul.mubr.f32.gmra.mxu0 %v2326
        %v2969 = vpop.f32.mrf.mxu0
        %v2970 = vadd.f32 %v2002, %v2969
        %v2971 = vpop.f32.mrf.mxu0
        %2972 = vmatprep.mubr.f32.mxu0 0.0
        %2973 = vmatmul.mubr.f32.gmra.mxu0 %v2329
        %v2974 = vpop.f32.mrf.mxu0
        %v2975 = vadd.f32 %v2003, %v2974
        %v2976 = vpop.f32.mrf.mxu0
        %2977 = vmatprep.mubr.f32.mxu0 0.0
        %2978 = vmatmul.mubr.f32.gmra.mxu0 %v2332
        %v2979 = vpop.f32.mrf.mxu0
        %v2980 = vadd.f32 %v2004, %v2979
        %v2981 = vpop.f32.mrf.mxu0
        %2982 = vmatprep.mubr.f32.mxu0 0.0
        %2983 = vmatmul.mubr.f32.gmra.mxu0 %v2335
        %v2984 = vpop.f32.mrf.mxu0
        %v2985 = vadd.f32 %v2005, %v2984
        %v2986 = vpop.f32.mrf.mxu0
        %2987 = vmatprep.mubr.f32.mxu0 0.0
        %2988 = vmatmul.mubr.f32.gmra.mxu0 %v2338
        %v2989 = vpop.f32.mrf.mxu0
        %v2990 = vadd.f32 %v2006, %v2989
        %v2991 = vpop.f32.mrf.mxu0
        %2992 = vmatprep.mubr.f32.mxu0 0.0
        %2993 = vmatmul.mubr.f32.gmra.mxu0 %v2341
        %v2994 = vpop.f32.mrf.mxu0
        %v2995 = vadd.f32 %v2007, %v2994
        %v2996 = vpop.f32.mrf.mxu0
        %2997 = vmatprep.mubr.f32.mxu0 0.0
        %2998 = vmatmul.mubr.f32.gmra.mxu0 %v2344
        %v2999 = vpop.f32.mrf.mxu0
        %v3000 = vadd.f32 %v2008, %v2999
        %v3001 = vpop.f32.mrf.mxu0
        %3002 = vmatprep.mubr.f32.mxu0 0.0
        %3003 = vmatmul.mubr.f32.gmra.mxu0 %v2347
        %v3004 = vpop.f32.mrf.mxu0
        %v3005 = vadd.f32 %v2009, %v3004
        %v3006 = vpop.f32.mrf.mxu0
        %3007 = vmatprep.mubr.f32.mxu0 0.0
        %3008 = vmatmul.mubr.f32.gmra.mxu0 %v2350
        %v3009 = vpop.f32.mrf.mxu0
        %v3010 = vadd.f32 %v2010, %v3009
        %v3011 = vpop.f32.mrf.mxu0
        %3012 = vmatprep.mubr.f32.mxu0 0.0
        %3013 = vmatmul.mubr.f32.gmra.mxu0 %v2353
        %v3014 = vpop.f32.mrf.mxu0
        %v3015 = vadd.f32 %v2011, %v3014
        %v3016 = vpop.f32.mrf.mxu0
        %3017 = vmatprep.mubr.f32.mxu0 0.0
        %3018 = vmatmul.mubr.f32.gmra.mxu0 %v2356
        %v3019 = vpop.f32.mrf.mxu0
        %v3020 = vadd.f32 %v2012, %v3019
        %v3021 = vpop.f32.mrf.mxu0
        %3022 = vmatprep.mubr.f32.mxu0 0.0
        %3023 = vmatmul.mubr.f32.gmra.mxu0 %v2359
        %v3024 = vpop.f32.mrf.mxu0
        %v3025 = vadd.f32 %v2013, %v3024
        %v3026 = vpop.f32.mrf.mxu0
        %3027 = vmatprep.mubr.f32.mxu0 0.0
        %3028 = vmatmul.mubr.f32.gmra.mxu0 %v2362
        %v3029 = vpop.f32.mrf.mxu0
        %v3030 = vadd.f32 %v2014, %v3029
        %v3031 = vpop.f32.mrf.mxu0
        %3032 = vmatprep.mubr.f32.mxu0 0.0
        %3033 = vmatmul.mubr.f32.gmra.mxu0 %v2365
        %v3034 = vpop.f32.mrf.mxu0
        %v3035 = vadd.f32 %v2015, %v3034
        %v3036 = vpop.f32.mrf.mxu0
        %3037 = vmatprep.mubr.f32.mxu0 0.0
        %3038 = vmatmul.mubr.f32.gmra.mxu0 %v2368
        %v3039 = vpop.f32.mrf.mxu0
        %v3040 = vadd.f32 %v2016, %v3039
        %v3041 = vpop.f32.mrf.mxu0
        %3042 = vmatprep.mubr.f32.mxu0 0.0
        %3043 = vmatmul.mubr.f32.gmra.mxu0 %v2371
        %v3044 = vpop.f32.mrf.mxu0
        %v3045 = vadd.f32 %v2017, %v3044
        %v3046 = vpop.f32.mrf.mxu0
        %3047 = vmatprep.mubr.f32.mxu0 0.0
        %3048 = vmatmul.mubr.f32.gmra.mxu0 %v2374
        %v3049 = vpop.f32.mrf.mxu0
        %v3050 = vadd.f32 %v2018, %v3049
        %v3051 = vpop.f32.mrf.mxu0
        %3052 = vmatprep.mubr.f32.mxu0 0.0
        %3053 = vmatmul.mubr.f32.gmra.mxu0 %v2377
        %v3054 = vpop.f32.mrf.mxu0
        %v3055 = vadd.f32 %v2019, %v3054
        %v3056 = vpop.f32.mrf.mxu0
        %3057 = vmatprep.mubr.f32.mxu0 0.0
        %3058 = vmatmul.mubr.f32.gmra.mxu0 %v2380
        %v3059 = vpop.f32.mrf.mxu0
        %v3060 = vadd.f32 %v2020, %v3059
        %v3061 = vpop.f32.mrf.mxu0
        %3062 = vmatprep.mubr.f32.mxu0 0.0
        %3063 = vmatmul.mubr.f32.gmra.mxu0 %v2383
        %v3064 = vpop.f32.mrf.mxu0
        %v3065 = vadd.f32 %v2021, %v3064
        %v3066 = vpop.f32.mrf.mxu0
        %3067 = vmatprep.mubr.f32.mxu0 0.0
        %3068 = vmatmul.mubr.f32.gmra.mxu0 %v2386
        %v3069 = vpop.f32.mrf.mxu0
        %v3070 = vadd.f32 %v2022, %v3069
        %v3071 = vpop.f32.mrf.mxu0
        %3072 = vmatprep.mubr.f32.mxu0 0.0
        %3073 = vmatmul.mubr.f32.gmra.mxu0 %v2389
        %v3074 = vpop.f32.mrf.mxu0
        %v3075 = vadd.f32 %v2023, %v3074
        %v3076 = vpop.f32.mrf.mxu0
        %3077 = vmatprep.mubr.f32.mxu0 0.0
        %3078 = vmatmul.mubr.f32.gmra.mxu0 %v2392
        %v3079 = vpop.f32.mrf.mxu0
        %v3080 = vadd.f32 %v2024, %v3079
        %v3081 = vpop.f32.mrf.mxu0
        %3082 = vmatprep.mubr.f32.mxu0 0.0
        %3083 = vmatmul.mubr.f32.gmra.mxu0 %v2395
        %v3084 = vpop.f32.mrf.mxu0
        %v3085 = vadd.f32 %v2025, %v3084
        %v3086 = vpop.f32.mrf.mxu0
        %3087 = vmatprep.mubr.f32.mxu0 0.0
        %3088 = vmatmul.mubr.f32.gmra.mxu0 %v2398
        %v3089 = vpop.f32.mrf.mxu0
        %v3090 = vadd.f32 %v2026, %v3089
        %v3091 = vpop.f32.mrf.mxu0
        %3092 = vmatprep.mubr.f32.mxu0 0.0
        %3093 = vmatmul.mubr.f32.gmra.mxu0 %v2401
        %v3094 = vpop.f32.mrf.mxu0
        %v3095 = vadd.f32 %v2027, %v3094
        %v3096 = vpop.f32.mrf.mxu0
        %3097 = vmatprep.mubr.f32.mxu0 0.0
        %3098 = vmatmul.mubr.f32.gmra.mxu0 %v2404
        %v3099 = vpop.f32.mrf.mxu0
        %v3100 = vadd.f32 %v2028, %v3099
        %v3101 = vpop.f32.mrf.mxu0
        %3102 = vmatprep.mubr.f32.mxu0 0.0
        %3103 = vmatmul.mubr.f32.gmra.mxu0 %v2407
        %v3104 = vpop.f32.mrf.mxu0
        %v3105 = vadd.f32 %v2029, %v3104
        %v3106 = vpop.f32.mrf.mxu0
        %3107 = vmatprep.mubr.f32.mxu0 0.0
        %3108 = vmatmul.mubr.f32.gmra.mxu0 %v2410
        %v3109 = vpop.f32.mrf.mxu0
        %v3110 = vadd.f32 %v2030, %v3109
        %v3111 = vpop.f32.mrf.mxu0
        %3112 = vmatprep.mubr.f32.mxu0 0.0
        %3113 = vmatmul.mubr.f32.gmra.mxu0 %v2413
        %v3114 = vpop.f32.mrf.mxu0
        %v3115 = vadd.f32 %v2031, %v3114
        %v3116 = vpop.f32.mrf.mxu0
        %3117 = vmatprep.mubr.f32.mxu0 0.0
        %3118 = vmatmul.mubr.f32.gmra.mxu0 %v2416
        %v3119 = vpop.f32.mrf.mxu0
        %v3120 = vadd.f32 %v2032, %v3119
        %v3121 = vpop.f32.mrf.mxu0
        %3122 = vdwg.mxu0
        %v3124 = vcombine.high %v1773, %v1773
        %v3126 = vunpack.c.l.s4 1966171168
        %v3127 = vunpack.c.0.s8 %v3126
        %v3128 = vlaneseq
        %v3129 = vshrl.u32 %v3128, 7
        %v3130 = vsub.s32 %v3127, %v3129
        %v3131 = vrot.slane %v1773, %v3130
        %v3133 = vunpack.c.l.s4 1966171168
        %v3134 = vunpack.c.0.s8 %v3133
        %v3135 = vlaneseq
        %v3136 = vshrl.u32 %v3135, 7
        %v3137 = vsub.s32 %v3134, %v3136
        %v3138 = vrot.slane %v3124, %v3137
        %v3139 = vcombine.high %v3131, %v3131
        %v3140 = vcombine.high %v3138, %v3138
        %v3142 = vunpack.c.l.s4 1966171168
        %v3143 = vunpack.c.0.s8 %v3142
        %v3144 = vlaneseq
        %v3145 = vshrl.u32 %v3144, 7
        %v3146 = vsub.s32 %v3143, %v3145
        %v3147 = vrot.slane %v3131, %v3146
        %v3149 = vunpack.c.l.s4 1966171168
        %v3150 = vunpack.c.0.s8 %v3149
        %v3151 = vlaneseq
        %v3152 = vshrl.u32 %v3151, 7
        %v3153 = vsub.s32 %v3150, %v3152
        %v3154 = vrot.slane %v3138, %v3153
        %v3156 = vunpack.c.l.s4 1966171168
        %v3157 = vunpack.c.0.s8 %v3156
        %v3158 = vlaneseq
        %v3159 = vshrl.u32 %v3158, 7
        %v3160 = vsub.s32 %v3157, %v3159
        %v3161 = vrot.slane %v3139, %v3160
        %v3163 = vunpack.c.l.s4 1966171168
        %v3164 = vunpack.c.0.s8 %v3163
        %v3165 = vlaneseq
        %v3166 = vshrl.u32 %v3165, 7
        %v3167 = vsub.s32 %v3164, %v3166
        %v3168 = vrot.slane %v3140, %v3167
        %v3169 = vcombine.high %v3147, %v3147
        %v3170 = vcombine.high %v3154, %v3154
        %v3171 = vcombine.high %v3161, %v3161
        %v3172 = vcombine.high %v3168, %v3168
        %v3173 = vlaneseq
        %v3174 = vshrl.u32 %v3173, 7
        %v3175 = vsub.s32 0, %v3174
        %v3176 = vrot.slane %v3147, %v3175
        %v3177 = vlaneseq
        %v3178 = vshrl.u32 %v3177, 7
        %v3179 = vsub.s32 0, %v3178
        %v3180 = vrot.slane %v3161, %v3179
        %v3181 = vlaneseq
        %v3182 = vshrl.u32 %v3181, 7
        %v3183 = vsub.s32 0, %v3182
        %v3184 = vrot.slane %v3169, %v3183
        %v3185 = vlaneseq
        %v3186 = vshrl.u32 %v3185, 7
        %v3187 = vsub.s32 0, %v3186
        %v3188 = vrot.slane %v3171, %v3187
        %v3189 = vlaneseq
        %v3190 = vshrl.u32 %v3189, 7
        %v3191 = vsub.s32 0, %v3190
        %v3192 = vrot.slane %v3154, %v3191
        %v3193 = vlaneseq
        %v3194 = vshrl.u32 %v3193, 7
        %v3195 = vsub.s32 0, %v3194
        %v3196 = vrot.slane %v3168, %v3195
        %v3197 = vlaneseq
        %v3198 = vshrl.u32 %v3197, 7
        %v3199 = vsub.s32 0, %v3198
        %v3200 = vrot.slane %v3170, %v3199
        %v3201 = vlaneseq
        %v3202 = vshrl.u32 %v3201, 7
        %v3203 = vsub.s32 0, %v3202
        %v3204 = vrot.slane %v3172, %v3203
        %v3213 = vadd.f32 %v2485, %v3176
        %v3214 = vadd.f32 %v2490, %v3176
        %v3215 = vadd.f32 %v2495, %v3176
        %v3216 = vadd.f32 %v2500, %v3176
        %v3217 = vadd.f32 %v2505, %v3176
        %v3218 = vadd.f32 %v2510, %v3176
        %v3219 = vadd.f32 %v2515, %v3176
        %v3220 = vadd.f32 %v2520, %v3176
        %v3221 = vadd.f32 %v2525, %v3176
        %v3222 = vadd.f32 %v2530, %v3176
        %v3223 = vadd.f32 %v2535, %v3176
        %v3224 = vadd.f32 %v2540, %v3176
        %v3225 = vadd.f32 %v2545, %v3176
        %v3226 = vadd.f32 %v2550, %v3176
        %v3227 = vadd.f32 %v2555, %v3176
        %v3228 = vadd.f32 %v2560, %v3176
        %v3229 = vadd.f32 %v2565, %v3180
        %v3230 = vadd.f32 %v2570, %v3180
        %v3231 = vadd.f32 %v2575, %v3180
        %v3232 = vadd.f32 %v2580, %v3180
        %v3233 = vadd.f32 %v2585, %v3180
        %v3234 = vadd.f32 %v2590, %v3180
        %v3235 = vadd.f32 %v2595, %v3180
        %v3236 = vadd.f32 %v2600, %v3180
        %v3237 = vadd.f32 %v2605, %v3180
        %v3238 = vadd.f32 %v2610, %v3180
        %v3239 = vadd.f32 %v2615, %v3180
        %v3240 = vadd.f32 %v2620, %v3180
        %v3241 = vadd.f32 %v2625, %v3180
        %v3242 = vadd.f32 %v2630, %v3180
        %v3243 = vadd.f32 %v2635, %v3180
        %v3244 = vadd.f32 %v2640, %v3180
        %v3245 = vadd.f32 %v2645, %v3184
        %v3246 = vadd.f32 %v2650, %v3184
        %v3247 = vadd.f32 %v2655, %v3184
        %v3248 = vadd.f32 %v2660, %v3184
        %v3249 = vadd.f32 %v2665, %v3184
        %v3250 = vadd.f32 %v2670, %v3184
        %v3251 = vadd.f32 %v2675, %v3184
        %v3252 = vadd.f32 %v2680, %v3184
        %v3253 = vadd.f32 %v2685, %v3184
        %v3254 = vadd.f32 %v2690, %v3184
        %v3255 = vadd.f32 %v2695, %v3184
        %v3256 = vadd.f32 %v2700, %v3184
        %v3257 = vadd.f32 %v2705, %v3184
        %v3258 = vadd.f32 %v2710, %v3184
        %v3259 = vadd.f32 %v2715, %v3184
        %v3260 = vadd.f32 %v2720, %v3184
        %v3261 = vadd.f32 %v2725, %v3188
        %v3262 = vadd.f32 %v2730, %v3188
        %v3263 = vadd.f32 %v2735, %v3188
        %v3264 = vadd.f32 %v2740, %v3188
        %v3265 = vadd.f32 %v2745, %v3188
        %v3266 = vadd.f32 %v2750, %v3188
        %v3267 = vadd.f32 %v2755, %v3188
        %v3268 = vadd.f32 %v2760, %v3188
        %v3269 = vadd.f32 %v2765, %v3188
        %v3270 = vadd.f32 %v2770, %v3188
        %v3271 = vadd.f32 %v2775, %v3188
        %v3272 = vadd.f32 %v2780, %v3188
        %v3273 = vadd.f32 %v2785, %v3188
        %v3274 = vadd.f32 %v2790, %v3188
        %v3275 = vadd.f32 %v2795, %v3188
        %v3276 = vadd.f32 %v2800, %v3188
        %v3277 = vadd.f32 %v2805, %v3192
        %v3278 = vadd.f32 %v2810, %v3192
        %v3279 = vadd.f32 %v2815, %v3192
        %v3280 = vadd.f32 %v2820, %v3192
        %v3281 = vadd.f32 %v2825, %v3192
        %v3282 = vadd.f32 %v2830, %v3192
        %v3283 = vadd.f32 %v2835, %v3192
        %v3284 = vadd.f32 %v2840, %v3192
        %v3285 = vadd.f32 %v2845, %v3192
        %v3286 = vadd.f32 %v2850, %v3192
        %v3287 = vadd.f32 %v2855, %v3192
        %v3288 = vadd.f32 %v2860, %v3192
        %v3289 = vadd.f32 %v2865, %v3192
        %v3290 = vadd.f32 %v2870, %v3192
        %v3291 = vadd.f32 %v2875, %v3192
        %v3292 = vadd.f32 %v2880, %v3192
        %v3293 = vadd.f32 %v2885, %v3196
        %v3294 = vadd.f32 %v2890, %v3196
        %v3295 = vadd.f32 %v2895, %v3196
        %v3296 = vadd.f32 %v2900, %v3196
        %v3297 = vadd.f32 %v2905, %v3196
        %v3298 = vadd.f32 %v2910, %v3196
        %v3299 = vadd.f32 %v2915, %v3196
        %v3300 = vadd.f32 %v2920, %v3196
        %v3301 = vadd.f32 %v2925, %v3196
        %v3302 = vadd.f32 %v2930, %v3196
        %v3303 = vadd.f32 %v2935, %v3196
        %v3304 = vadd.f32 %v2940, %v3196
        %v3305 = vadd.f32 %v2945, %v3196
        %v3306 = vadd.f32 %v2950, %v3196
        %v3307 = vadd.f32 %v2955, %v3196
        %v3308 = vadd.f32 %v2960, %v3196
        %v3309 = vadd.f32 %v2965, %v3200
        %v3310 = vadd.f32 %v2970, %v3200
        %v3311 = vadd.f32 %v2975, %v3200
        %v3312 = vadd.f32 %v2980, %v3200
        %v3313 = vadd.f32 %v2985, %v3200
        %v3314 = vadd.f32 %v2990, %v3200
        %v3315 = vadd.f32 %v2995, %v3200
        %v3316 = vadd.f32 %v3000, %v3200
        %v3317 = vadd.f32 %v3005, %v3200
        %v3318 = vadd.f32 %v3010, %v3200
        %v3319 = vadd.f32 %v3015, %v3200
        %v3320 = vadd.f32 %v3020, %v3200
        %v3321 = vadd.f32 %v3025, %v3200
        %v3322 = vadd.f32 %v3030, %v3200
        %v3323 = vadd.f32 %v3035, %v3200
        %v3324 = vadd.f32 %v3040, %v3200
        %v3325 = vadd.f32 %v3045, %v3204
        %v3326 = vadd.f32 %v3050, %v3204
        %v3327 = vadd.f32 %v3055, %v3204
        %v3328 = vadd.f32 %v3060, %v3204
        %v3329 = vadd.f32 %v3065, %v3204
        %v3330 = vadd.f32 %v3070, %v3204
        %v3331 = vadd.f32 %v3075, %v3204
        %v3332 = vadd.f32 %v3080, %v3204
        %v3333 = vadd.f32 %v3085, %v3204
        %v3334 = vadd.f32 %v3090, %v3204
        %v3335 = vadd.f32 %v3095, %v3204
        %v3336 = vadd.f32 %v3100, %v3204
        %v3337 = vadd.f32 %v3105, %v3204
        %v3338 = vadd.f32 %v3110, %v3204
        %v3339 = vadd.f32 %v3115, %v3204
        %v3340 = vadd.f32 %v3120, %v3204
        %v3341 = vtanh.pop %v3213
        %v3342 = vtanh.pop %v3214
        %v3343 = vtanh.pop %v3215
        %v3344 = vtanh.pop %v3216
        %v3345 = vtanh.pop %v3217
        %v3346 = vtanh.pop %v3218
        %v3347 = vtanh.pop %v3219
        %v3348 = vtanh.pop %v3220
        %v3349 = vtanh.pop %v3221
        %v3350 = vtanh.pop %v3222
        %v3351 = vtanh.pop %v3223
        %v3352 = vtanh.pop %v3224
        %v3353 = vtanh.pop %v3225
        %v3354 = vtanh.pop %v3226
        %v3355 = vtanh.pop %v3227
        %v3356 = vtanh.pop %v3228
        %v3357 = vtanh.pop %v3229
        %v3358 = vtanh.pop %v3230
        %v3359 = vtanh.pop %v3231
        %v3360 = vtanh.pop %v3232
        %v3361 = vtanh.pop %v3233
        %v3362 = vtanh.pop %v3234
        %v3363 = vtanh.pop %v3235
        %v3364 = vtanh.pop %v3236
        %v3365 = vtanh.pop %v3237
        %v3366 = vtanh.pop %v3238
        %v3367 = vtanh.pop %v3239
        %v3368 = vtanh.pop %v3240
        %v3369 = vtanh.pop %v3241
        %v3370 = vtanh.pop %v3242
        %v3371 = vtanh.pop %v3243
        %v3372 = vtanh.pop %v3244
        %v3373 = vtanh.pop %v3245
        %v3374 = vtanh.pop %v3246
        %v3375 = vtanh.pop %v3247
        %v3376 = vtanh.pop %v3248
        %v3377 = vtanh.pop %v3249
        %v3378 = vtanh.pop %v3250
        %v3379 = vtanh.pop %v3251
        %v3380 = vtanh.pop %v3252
        %v3381 = vtanh.pop %v3253
        %v3382 = vtanh.pop %v3254
        %v3383 = vtanh.pop %v3255
        %v3384 = vtanh.pop %v3256
        %v3385 = vtanh.pop %v3257
        %v3386 = vtanh.pop %v3258
        %v3387 = vtanh.pop %v3259
        %v3388 = vtanh.pop %v3260
        %v3389 = vtanh.pop %v3261
        %v3390 = vtanh.pop %v3262
        %v3391 = vtanh.pop %v3263
        %v3392 = vtanh.pop %v3264
        %v3393 = vtanh.pop %v3265
        %v3394 = vtanh.pop %v3266
        %v3395 = vtanh.pop %v3267
        %v3396 = vtanh.pop %v3268
        %v3397 = vtanh.pop %v3269
        %v3398 = vtanh.pop %v3270
        %v3399 = vtanh.pop %v3271
        %v3400 = vtanh.pop %v3272
        %v3401 = vtanh.pop %v3273
        %v3402 = vtanh.pop %v3274
        %v3403 = vtanh.pop %v3275
        %v3404 = vtanh.pop %v3276
        %v3405 = vtanh.pop %v3277
        %v3406 = vtanh.pop %v3278
        %v3407 = vtanh.pop %v3279
        %v3408 = vtanh.pop %v3280
        %v3409 = vtanh.pop %v3281
        %v3410 = vtanh.pop %v3282
        %v3411 = vtanh.pop %v3283
        %v3412 = vtanh.pop %v3284
        %v3413 = vtanh.pop %v3285
        %v3414 = vtanh.pop %v3286
        %v3415 = vtanh.pop %v3287
        %v3416 = vtanh.pop %v3288
        %v3417 = vtanh.pop %v3289
        %v3418 = vtanh.pop %v3290
        %v3419 = vtanh.pop %v3291
        %v3420 = vtanh.pop %v3292
        %v3421 = vtanh.pop %v3293
        %v3422 = vtanh.pop %v3294
        %v3423 = vtanh.pop %v3295
        %v3424 = vtanh.pop %v3296
        %v3425 = vtanh.pop %v3297
        %v3426 = vtanh.pop %v3298
        %v3427 = vtanh.pop %v3299
        %v3428 = vtanh.pop %v3300
        %v3429 = vtanh.pop %v3301
        %v3430 = vtanh.pop %v3302
        %v3431 = vtanh.pop %v3303
        %v3432 = vtanh.pop %v3304
        %v3433 = vtanh.pop %v3305
        %v3434 = vtanh.pop %v3306
        %v3435 = vtanh.pop %v3307
        %v3436 = vtanh.pop %v3308
        %v3437 = vtanh.pop %v3309
        %v3438 = vtanh.pop %v3310
        %v3439 = vtanh.pop %v3311
        %v3440 = vtanh.pop %v3312
        %v3441 = vtanh.pop %v3313
        %v3442 = vtanh.pop %v3314
        %v3443 = vtanh.pop %v3315
        %v3444 = vtanh.pop %v3316
        %v3445 = vtanh.pop %v3317
        %v3446 = vtanh.pop %v3318
        %v3447 = vtanh.pop %v3319
        %v3448 = vtanh.pop %v3320
        %v3449 = vtanh.pop %v3321
        %v3450 = vtanh.pop %v3322
        %v3451 = vtanh.pop %v3323
        %v3452 = vtanh.pop %v3324
        %v3453 = vtanh.pop %v3325
        %v3454 = vtanh.pop %v3326
        %v3455 = vtanh.pop %v3327
        %v3456 = vtanh.pop %v3328
        %v3457 = vtanh.pop %v3329
        %v3458 = vtanh.pop %v3330
        %v3459 = vtanh.pop %v3331
        %v3460 = vtanh.pop %v3332
        %v3461 = vtanh.pop %v3333
        %v3462 = vtanh.pop %v3334
        %v3463 = vtanh.pop %v3335
        %v3464 = vtanh.pop %v3336
        %v3465 = vtanh.pop %v3337
        %v3466 = vtanh.pop %v3338
        %v3467 = vtanh.pop %v3339
        %v3468 = vtanh.pop %v3340
        %v3469 = vld [vmem:[%s7] sm:$0xff]
        %3470 = vmatprep.subr.mxu0 0.0
        %3471 = vmatpush1.xpose.msra.mxu0 0.0
        %3472 = vmatprep.subr.mxu0 0.0
        %3473 = vmatpush1.xpose.msra.mxu0 0.0
        %3474 = vmatprep.subr.mxu0 0.0
        %3475 = vmatpush1.xpose.msra.mxu0 0.0
        %3476 = vmatprep.subr.mxu0 0.0
        %3477 = vmatpush1.xpose.msra.mxu0 0.0
        %3478 = vmatprep.subr.mxu0 0.0
        %3479 = vmatpush1.xpose.msra.mxu0 0.0
        %3480 = vmatprep.subr.mxu0 0.0
        %3481 = vmatpush1.xpose.msra.mxu0 0.0
        %3482 = vmatprep.subr.mxu0 0.0
        %3483 = vmatpush1.xpose.msra.mxu0 0.0
        %3484 = vmatprep.subr.mxu0 0.0
        %3485 = vmatpush1.xpose.msra.mxu0 0.0
        %3486 = vmatprep.subr.mxu0 0.0
        %3487 = vmatpush1.xpose.msra.mxu0 0.0
        %3488 = vmatprep.subr.mxu0 0.0
        %3489 = vmatpush1.xpose.msra.mxu0 0.0
        %3490 = vmatprep.subr.mxu0 0.0
        %3491 = vmatpush1.xpose.msra.mxu0 0.0
        %3492 = vmatprep.subr.mxu0 0.0
        %3493 = vmatpush1.xpose.msra.mxu0 0.0
        %3494 = vmatprep.subr.mxu0 0.0
        %3495 = vmatpush1.xpose.msra.mxu0 0.0
        %3496 = vmatprep.subr.mxu0 0.0
        %3497 = vmatpush1.xpose.msra.mxu0 0.0
        %3498 = vmatprep.subr.mxu0 0.0
        %3499 = vmatpush1.xpose.msra.mxu0 0.0
        %3500 = vmatprep.subr.mxu0 0.0
        %3501 = vmatpush1.xpose.msra.mxu0 %v3469
        %3502 = vmatprep.subr.mxu0 0.0
        %3503 = vmatpush2.xpose.msra.mxu0 0.0
        %3504 = vmatprep.subr.mxu0 0.0
        %3505 = vmatpush2.xpose.msra.mxu0 0.0
        %3506 = vmatprep.subr.mxu0 0.0
        %3507 = vmatpush2.xpose.msra.mxu0 0.0
        %3508 = vmatprep.subr.mxu0 0.0
        %3509 = vmatpush2.xpose.msra.mxu0 0.0
        %3510 = vmatprep.subr.mxu0 0.0
        %3511 = vmatpush2.xpose.msra.mxu0 0.0
        %3512 = vmatprep.subr.mxu0 0.0
        %3513 = vmatpush2.xpose.msra.mxu0 0.0
        %3514 = vmatprep.subr.mxu0 0.0
        %3515 = vmatpush2.xpose.msra.mxu0 0.0
        %3516 = vmatprep.subr.mxu0 0.0
        %3517 = vmatpush2.xpose.msra.mxu0 0.0
        %3518 = vmatprep.subr.mxu0 0.0
        %3519 = vmatpush2.xpose.msra.mxu0 0.0
        %3520 = vmatprep.subr.mxu0 0.0
        %3521 = vmatpush2.xpose.msra.mxu0 0.0
        %3522 = vmatprep.subr.mxu0 0.0
        %3523 = vmatpush2.xpose.msra.mxu0 0.0
        %3524 = vmatprep.subr.mxu0 0.0
        %3525 = vmatpush2.xpose.msra.mxu0 0.0
        %3526 = vmatprep.subr.mxu0 0.0
        %3527 = vmatpush2.xpose.msra.mxu0 0.0
        %3528 = vmatprep.subr.mxu0 0.0
        %3529 = vmatpush2.xpose.msra.mxu0 0.0
        %3530 = vmatprep.subr.mxu0 0.0
        %3531 = vmatpush2.xpose.msra.mxu0 0.0
        %3532 = vmatprep.subr.mxu0 0.0
        %3533 = vmatpush2.xpose.msra.mxu0 0.0
        %3534 = vmatprep.mubr.f32.mxu0 0.0
        %3535 = vmatmul.mubr.f32.gmra.mxu0 %v3341
        %v3536 = vpop.f32.mrf.mxu0
        %v3537 = vadd.f32 0.0, %v3536
        %v3538 = vpop.f32.mrf.mxu0
        %3539 = vmatprep.mubr.f32.mxu0 0.0
        %3540 = vmatmul.mubr.f32.gmra.mxu0 %v3342
        %v3541 = vpop.f32.mrf.mxu0
        %v3542 = vadd.f32 0.0, %v3541
        %v3543 = vpop.f32.mrf.mxu0
        %3544 = vmatprep.mubr.f32.mxu0 0.0
        %3545 = vmatmul.mubr.f32.gmra.mxu0 %v3343
        %v3546 = vpop.f32.mrf.mxu0
        %v3547 = vadd.f32 0.0, %v3546
        %v3548 = vpop.f32.mrf.mxu0
        %3549 = vmatprep.mubr.f32.mxu0 0.0
        %3550 = vmatmul.mubr.f32.gmra.mxu0 %v3344
        %v3551 = vpop.f32.mrf.mxu0
        %v3552 = vadd.f32 0.0, %v3551
        %v3553 = vpop.f32.mrf.mxu0
        %3554 = vmatprep.mubr.f32.mxu0 0.0
        %3555 = vmatmul.mubr.f32.gmra.mxu0 %v3345
        %v3556 = vpop.f32.mrf.mxu0
        %v3557 = vadd.f32 0.0, %v3556
        %v3558 = vpop.f32.mrf.mxu0
        %3559 = vmatprep.mubr.f32.mxu0 0.0
        %3560 = vmatmul.mubr.f32.gmra.mxu0 %v3346
        %v3561 = vpop.f32.mrf.mxu0
        %v3562 = vadd.f32 0.0, %v3561
        %v3563 = vpop.f32.mrf.mxu0
        %3564 = vmatprep.mubr.f32.mxu0 0.0
        %3565 = vmatmul.mubr.f32.gmra.mxu0 %v3347
        %v3566 = vpop.f32.mrf.mxu0
        %v3567 = vadd.f32 0.0, %v3566
        %v3568 = vpop.f32.mrf.mxu0
        %3569 = vmatprep.mubr.f32.mxu0 0.0
        %3570 = vmatmul.mubr.f32.gmra.mxu0 %v3348
        %v3571 = vpop.f32.mrf.mxu0
        %v3572 = vadd.f32 0.0, %v3571
        %v3573 = vpop.f32.mrf.mxu0
        %3574 = vmatprep.mubr.f32.mxu0 0.0
        %3575 = vmatmul.mubr.f32.gmra.mxu0 %v3349
        %v3576 = vpop.f32.mrf.mxu0
        %v3577 = vadd.f32 0.0, %v3576
        %v3578 = vpop.f32.mrf.mxu0
        %3579 = vmatprep.mubr.f32.mxu0 0.0
        %3580 = vmatmul.mubr.f32.gmra.mxu0 %v3350
        %v3581 = vpop.f32.mrf.mxu0
        %v3582 = vadd.f32 0.0, %v3581
        %v3583 = vpop.f32.mrf.mxu0
        %3584 = vmatprep.mubr.f32.mxu0 0.0
        %3585 = vmatmul.mubr.f32.gmra.mxu0 %v3351
        %v3586 = vpop.f32.mrf.mxu0
        %v3587 = vadd.f32 0.0, %v3586
        %v3588 = vpop.f32.mrf.mxu0
        %3589 = vmatprep.mubr.f32.mxu0 0.0
        %3590 = vmatmul.mubr.f32.gmra.mxu0 %v3352
        %v3591 = vpop.f32.mrf.mxu0
        %v3592 = vadd.f32 0.0, %v3591
        %v3593 = vpop.f32.mrf.mxu0
        %3594 = vmatprep.mubr.f32.mxu0 0.0
        %3595 = vmatmul.mubr.f32.gmra.mxu0 %v3353
        %v3596 = vpop.f32.mrf.mxu0
        %v3597 = vadd.f32 0.0, %v3596
        %v3598 = vpop.f32.mrf.mxu0
        %3599 = vmatprep.mubr.f32.mxu0 0.0
        %3600 = vmatmul.mubr.f32.gmra.mxu0 %v3354
        %v3601 = vpop.f32.mrf.mxu0
        %v3602 = vadd.f32 0.0, %v3601
        %v3603 = vpop.f32.mrf.mxu0
        %3604 = vmatprep.mubr.f32.mxu0 0.0
        %3605 = vmatmul.mubr.f32.gmra.mxu0 %v3355
        %v3606 = vpop.f32.mrf.mxu0
        %v3607 = vadd.f32 0.0, %v3606
        %v3608 = vpop.f32.mrf.mxu0
        %3609 = vmatprep.mubr.f32.mxu0 0.0
        %3610 = vmatmul.mubr.f32.gmra.mxu0 %v3356
        %v3611 = vpop.f32.mrf.mxu0
        %v3612 = vadd.f32 0.0, %v3611
        %v3613 = vpop.f32.mrf.mxu0
        %3614 = vmatprep.mubr.f32.mxu0 0.0
        %3615 = vmatmul.mubr.f32.gmra.mxu0 %v3357
        %v3616 = vpop.f32.mrf.mxu0
        %v3617 = vadd.f32 0.0, %v3616
        %v3618 = vpop.f32.mrf.mxu0
        %3619 = vmatprep.mubr.f32.mxu0 0.0
        %3620 = vmatmul.mubr.f32.gmra.mxu0 %v3358
        %v3621 = vpop.f32.mrf.mxu0
        %v3622 = vadd.f32 0.0, %v3621
        %v3623 = vpop.f32.mrf.mxu0
        %3624 = vmatprep.mubr.f32.mxu0 0.0
        %3625 = vmatmul.mubr.f32.gmra.mxu0 %v3359
        %v3626 = vpop.f32.mrf.mxu0
        %v3627 = vadd.f32 0.0, %v3626
        %v3628 = vpop.f32.mrf.mxu0
        %3629 = vmatprep.mubr.f32.mxu0 0.0
        %3630 = vmatmul.mubr.f32.gmra.mxu0 %v3360
        %v3631 = vpop.f32.mrf.mxu0
        %v3632 = vadd.f32 0.0, %v3631
        %v3633 = vpop.f32.mrf.mxu0
        %3634 = vmatprep.mubr.f32.mxu0 0.0
        %3635 = vmatmul.mubr.f32.gmra.mxu0 %v3361
        %v3636 = vpop.f32.mrf.mxu0
        %v3637 = vadd.f32 0.0, %v3636
        %v3638 = vpop.f32.mrf.mxu0
        %3639 = vmatprep.mubr.f32.mxu0 0.0
        %3640 = vmatmul.mubr.f32.gmra.mxu0 %v3362
        %v3641 = vpop.f32.mrf.mxu0
        %v3642 = vadd.f32 0.0, %v3641
        %v3643 = vpop.f32.mrf.mxu0
        %3644 = vmatprep.mubr.f32.mxu0 0.0
        %3645 = vmatmul.mubr.f32.gmra.mxu0 %v3363
        %v3646 = vpop.f32.mrf.mxu0
        %v3647 = vadd.f32 0.0, %v3646
        %v3648 = vpop.f32.mrf.mxu0
        %3649 = vmatprep.mubr.f32.mxu0 0.0
        %3650 = vmatmul.mubr.f32.gmra.mxu0 %v3364
        %v3651 = vpop.f32.mrf.mxu0
        %v3652 = vadd.f32 0.0, %v3651
        %v3653 = vpop.f32.mrf.mxu0
        %3654 = vmatprep.mubr.f32.mxu0 0.0
        %3655 = vmatmul.mubr.f32.gmra.mxu0 %v3365
        %v3656 = vpop.f32.mrf.mxu0
        %v3657 = vadd.f32 0.0, %v3656
        %v3658 = vpop.f32.mrf.mxu0
        %3659 = vmatprep.mubr.f32.mxu0 0.0
        %3660 = vmatmul.mubr.f32.gmra.mxu0 %v3366
        %v3661 = vpop.f32.mrf.mxu0
        %v3662 = vadd.f32 0.0, %v3661
        %v3663 = vpop.f32.mrf.mxu0
        %3664 = vmatprep.mubr.f32.mxu0 0.0
        %3665 = vmatmul.mubr.f32.gmra.mxu0 %v3367
        %v3666 = vpop.f32.mrf.mxu0
        %v3667 = vadd.f32 0.0, %v3666
        %v3668 = vpop.f32.mrf.mxu0
        %3669 = vmatprep.mubr.f32.mxu0 0.0
        %3670 = vmatmul.mubr.f32.gmra.mxu0 %v3368
        %v3671 = vpop.f32.mrf.mxu0
        %v3672 = vadd.f32 0.0, %v3671
        %v3673 = vpop.f32.mrf.mxu0
        %3674 = vmatprep.mubr.f32.mxu0 0.0
        %3675 = vmatmul.mubr.f32.gmra.mxu0 %v3369
        %v3676 = vpop.f32.mrf.mxu0
        %v3677 = vadd.f32 0.0, %v3676
        %v3678 = vpop.f32.mrf.mxu0
        %3679 = vmatprep.mubr.f32.mxu0 0.0
        %3680 = vmatmul.mubr.f32.gmra.mxu0 %v3370
        %v3681 = vpop.f32.mrf.mxu0
        %v3682 = vadd.f32 0.0, %v3681
        %v3683 = vpop.f32.mrf.mxu0
        %3684 = vmatprep.mubr.f32.mxu0 0.0
        %3685 = vmatmul.mubr.f32.gmra.mxu0 %v3371
        %v3686 = vpop.f32.mrf.mxu0
        %v3687 = vadd.f32 0.0, %v3686
        %v3688 = vpop.f32.mrf.mxu0
        %3689 = vmatprep.mubr.f32.mxu0 0.0
        %3690 = vmatmul.mubr.f32.gmra.mxu0 %v3372
        %v3691 = vpop.f32.mrf.mxu0
        %v3692 = vadd.f32 0.0, %v3691
        %v3693 = vpop.f32.mrf.mxu0
        %3694 = vmatprep.mubr.f32.mxu0 0.0
        %3695 = vmatmul.mubr.f32.gmra.mxu0 %v3373
        %v3696 = vpop.f32.mrf.mxu0
        %v3697 = vadd.f32 0.0, %v3696
        %v3698 = vpop.f32.mrf.mxu0
        %3699 = vmatprep.mubr.f32.mxu0 0.0
        %3700 = vmatmul.mubr.f32.gmra.mxu0 %v3374
        %v3701 = vpop.f32.mrf.mxu0
        %v3702 = vadd.f32 0.0, %v3701
        %v3703 = vpop.f32.mrf.mxu0
        %3704 = vmatprep.mubr.f32.mxu0 0.0
        %3705 = vmatmul.mubr.f32.gmra.mxu0 %v3375
        %v3706 = vpop.f32.mrf.mxu0
        %v3707 = vadd.f32 0.0, %v3706
        %v3708 = vpop.f32.mrf.mxu0
        %3709 = vmatprep.mubr.f32.mxu0 0.0
        %3710 = vmatmul.mubr.f32.gmra.mxu0 %v3376
        %v3711 = vpop.f32.mrf.mxu0
        %v3712 = vadd.f32 0.0, %v3711
        %v3713 = vpop.f32.mrf.mxu0
        %3714 = vmatprep.mubr.f32.mxu0 0.0
        %3715 = vmatmul.mubr.f32.gmra.mxu0 %v3377
        %v3716 = vpop.f32.mrf.mxu0
        %v3717 = vadd.f32 0.0, %v3716
        %v3718 = vpop.f32.mrf.mxu0
        %3719 = vmatprep.mubr.f32.mxu0 0.0
        %3720 = vmatmul.mubr.f32.gmra.mxu0 %v3378
        %v3721 = vpop.f32.mrf.mxu0
        %v3722 = vadd.f32 0.0, %v3721
        %v3723 = vpop.f32.mrf.mxu0
        %3724 = vmatprep.mubr.f32.mxu0 0.0
        %3725 = vmatmul.mubr.f32.gmra.mxu0 %v3379
        %v3726 = vpop.f32.mrf.mxu0
        %v3727 = vadd.f32 0.0, %v3726
        %v3728 = vpop.f32.mrf.mxu0
        %3729 = vmatprep.mubr.f32.mxu0 0.0
        %3730 = vmatmul.mubr.f32.gmra.mxu0 %v3380
        %v3731 = vpop.f32.mrf.mxu0
        %v3732 = vadd.f32 0.0, %v3731
        %v3733 = vpop.f32.mrf.mxu0
        %3734 = vmatprep.mubr.f32.mxu0 0.0
        %3735 = vmatmul.mubr.f32.gmra.mxu0 %v3381
        %v3736 = vpop.f32.mrf.mxu0
        %v3737 = vadd.f32 0.0, %v3736
        %v3738 = vpop.f32.mrf.mxu0
        %3739 = vmatprep.mubr.f32.mxu0 0.0
        %3740 = vmatmul.mubr.f32.gmra.mxu0 %v3382
        %v3741 = vpop.f32.mrf.mxu0
        %v3742 = vadd.f32 0.0, %v3741
        %v3743 = vpop.f32.mrf.mxu0
        %3744 = vmatprep.mubr.f32.mxu0 0.0
        %3745 = vmatmul.mubr.f32.gmra.mxu0 %v3383
        %v3746 = vpop.f32.mrf.mxu0
        %v3747 = vadd.f32 0.0, %v3746
        %v3748 = vpop.f32.mrf.mxu0
        %3749 = vmatprep.mubr.f32.mxu0 0.0
        %3750 = vmatmul.mubr.f32.gmra.mxu0 %v3384
        %v3751 = vpop.f32.mrf.mxu0
        %v3752 = vadd.f32 0.0, %v3751
        %v3753 = vpop.f32.mrf.mxu0
        %3754 = vmatprep.mubr.f32.mxu0 0.0
        %3755 = vmatmul.mubr.f32.gmra.mxu0 %v3385
        %v3756 = vpop.f32.mrf.mxu0
        %v3757 = vadd.f32 0.0, %v3756
        %v3758 = vpop.f32.mrf.mxu0
        %3759 = vmatprep.mubr.f32.mxu0 0.0
        %3760 = vmatmul.mubr.f32.gmra.mxu0 %v3386
        %v3761 = vpop.f32.mrf.mxu0
        %v3762 = vadd.f32 0.0, %v3761
        %v3763 = vpop.f32.mrf.mxu0
        %3764 = vmatprep.mubr.f32.mxu0 0.0
        %3765 = vmatmul.mubr.f32.gmra.mxu0 %v3387
        %v3766 = vpop.f32.mrf.mxu0
        %v3767 = vadd.f32 0.0, %v3766
        %v3768 = vpop.f32.mrf.mxu0
        %3769 = vmatprep.mubr.f32.mxu0 0.0
        %3770 = vmatmul.mubr.f32.gmra.mxu0 %v3388
        %v3771 = vpop.f32.mrf.mxu0
        %v3772 = vadd.f32 0.0, %v3771
        %v3773 = vpop.f32.mrf.mxu0
        %3774 = vmatprep.mubr.f32.mxu0 0.0
        %3775 = vmatmul.mubr.f32.gmra.mxu0 %v3389
        %v3776 = vpop.f32.mrf.mxu0
        %v3777 = vadd.f32 0.0, %v3776
        %v3778 = vpop.f32.mrf.mxu0
        %3779 = vmatprep.mubr.f32.mxu0 0.0
        %3780 = vmatmul.mubr.f32.gmra.mxu0 %v3390
        %v3781 = vpop.f32.mrf.mxu0
        %v3782 = vadd.f32 0.0, %v3781
        %v3783 = vpop.f32.mrf.mxu0
        %3784 = vmatprep.mubr.f32.mxu0 0.0
        %3785 = vmatmul.mubr.f32.gmra.mxu0 %v3391
        %v3786 = vpop.f32.mrf.mxu0
        %v3787 = vadd.f32 0.0, %v3786
        %v3788 = vpop.f32.mrf.mxu0
        %3789 = vmatprep.mubr.f32.mxu0 0.0
        %3790 = vmatmul.mubr.f32.gmra.mxu0 %v3392
        %v3791 = vpop.f32.mrf.mxu0
        %v3792 = vadd.f32 0.0, %v3791
        %v3793 = vpop.f32.mrf.mxu0
        %3794 = vmatprep.mubr.f32.mxu0 0.0
        %3795 = vmatmul.mubr.f32.gmra.mxu0 %v3393
        %v3796 = vpop.f32.mrf.mxu0
        %v3797 = vadd.f32 0.0, %v3796
        %v3798 = vpop.f32.mrf.mxu0
        %3799 = vmatprep.mubr.f32.mxu0 0.0
        %3800 = vmatmul.mubr.f32.gmra.mxu0 %v3394
        %v3801 = vpop.f32.mrf.mxu0
        %v3802 = vadd.f32 0.0, %v3801
        %v3803 = vpop.f32.mrf.mxu0
        %3804 = vmatprep.mubr.f32.mxu0 0.0
        %3805 = vmatmul.mubr.f32.gmra.mxu0 %v3395
        %v3806 = vpop.f32.mrf.mxu0
        %v3807 = vadd.f32 0.0, %v3806
        %v3808 = vpop.f32.mrf.mxu0
        %3809 = vmatprep.mubr.f32.mxu0 0.0
        %3810 = vmatmul.mubr.f32.gmra.mxu0 %v3396
        %v3811 = vpop.f32.mrf.mxu0
        %v3812 = vadd.f32 0.0, %v3811
        %v3813 = vpop.f32.mrf.mxu0
        %3814 = vmatprep.mubr.f32.mxu0 0.0
        %3815 = vmatmul.mubr.f32.gmra.mxu0 %v3397
        %v3816 = vpop.f32.mrf.mxu0
        %v3817 = vadd.f32 0.0, %v3816
        %v3818 = vpop.f32.mrf.mxu0
        %3819 = vmatprep.mubr.f32.mxu0 0.0
        %3820 = vmatmul.mubr.f32.gmra.mxu0 %v3398
        %v3821 = vpop.f32.mrf.mxu0
        %v3822 = vadd.f32 0.0, %v3821
        %v3823 = vpop.f32.mrf.mxu0
        %3824 = vmatprep.mubr.f32.mxu0 0.0
        %3825 = vmatmul.mubr.f32.gmra.mxu0 %v3399
        %v3826 = vpop.f32.mrf.mxu0
        %v3827 = vadd.f32 0.0, %v3826
        %v3828 = vpop.f32.mrf.mxu0
        %3829 = vmatprep.mubr.f32.mxu0 0.0
        %3830 = vmatmul.mubr.f32.gmra.mxu0 %v3400
        %v3831 = vpop.f32.mrf.mxu0
        %v3832 = vadd.f32 0.0, %v3831
        %v3833 = vpop.f32.mrf.mxu0
        %3834 = vmatprep.mubr.f32.mxu0 0.0
        %3835 = vmatmul.mubr.f32.gmra.mxu0 %v3401
        %v3836 = vpop.f32.mrf.mxu0
        %v3837 = vadd.f32 0.0, %v3836
        %v3838 = vpop.f32.mrf.mxu0
        %3839 = vmatprep.mubr.f32.mxu0 0.0
        %3840 = vmatmul.mubr.f32.gmra.mxu0 %v3402
        %v3841 = vpop.f32.mrf.mxu0
        %v3842 = vadd.f32 0.0, %v3841
        %v3843 = vpop.f32.mrf.mxu0
        %3844 = vmatprep.mubr.f32.mxu0 0.0
        %3845 = vmatmul.mubr.f32.gmra.mxu0 %v3403
        %v3846 = vpop.f32.mrf.mxu0
        %v3847 = vadd.f32 0.0, %v3846
        %v3848 = vpop.f32.mrf.mxu0
        %3849 = vmatprep.mubr.f32.mxu0 0.0
        %3850 = vmatmul.mubr.f32.gmra.mxu0 %v3404
        %v3851 = vpop.f32.mrf.mxu0
        %v3852 = vadd.f32 0.0, %v3851
        %v3853 = vpop.f32.mrf.mxu0
        %3854 = vmatprep.mubr.f32.mxu0 0.0
        %3855 = vmatmul.mubr.f32.gmra.mxu0 %v3405
        %v3856 = vpop.f32.mrf.mxu0
        %v3857 = vadd.f32 0.0, %v3856
        %v3858 = vpop.f32.mrf.mxu0
        %3859 = vmatprep.mubr.f32.mxu0 0.0
        %3860 = vmatmul.mubr.f32.gmra.mxu0 %v3406
        %v3861 = vpop.f32.mrf.mxu0
        %v3862 = vadd.f32 0.0, %v3861
        %v3863 = vpop.f32.mrf.mxu0
        %3864 = vmatprep.mubr.f32.mxu0 0.0
        %3865 = vmatmul.mubr.f32.gmra.mxu0 %v3407
        %v3866 = vpop.f32.mrf.mxu0
        %v3867 = vadd.f32 0.0, %v3866
        %v3868 = vpop.f32.mrf.mxu0
        %3869 = vmatprep.mubr.f32.mxu0 0.0
        %3870 = vmatmul.mubr.f32.gmra.mxu0 %v3408
        %v3871 = vpop.f32.mrf.mxu0
        %v3872 = vadd.f32 0.0, %v3871
        %v3873 = vpop.f32.mrf.mxu0
        %3874 = vmatprep.mubr.f32.mxu0 0.0
        %3875 = vmatmul.mubr.f32.gmra.mxu0 %v3409
        %v3876 = vpop.f32.mrf.mxu0
        %v3877 = vadd.f32 0.0, %v3876
        %v3878 = vpop.f32.mrf.mxu0
        %3879 = vmatprep.mubr.f32.mxu0 0.0
        %3880 = vmatmul.mubr.f32.gmra.mxu0 %v3410
        %v3881 = vpop.f32.mrf.mxu0
        %v3882 = vadd.f32 0.0, %v3881
        %v3883 = vpop.f32.mrf.mxu0
        %3884 = vmatprep.mubr.f32.mxu0 0.0
        %3885 = vmatmul.mubr.f32.gmra.mxu0 %v3411
        %v3886 = vpop.f32.mrf.mxu0
        %v3887 = vadd.f32 0.0, %v3886
        %v3888 = vpop.f32.mrf.mxu0
        %3889 = vmatprep.mubr.f32.mxu0 0.0
        %3890 = vmatmul.mubr.f32.gmra.mxu0 %v3412
        %v3891 = vpop.f32.mrf.mxu0
        %v3892 = vadd.f32 0.0, %v3891
        %v3893 = vpop.f32.mrf.mxu0
        %3894 = vmatprep.mubr.f32.mxu0 0.0
        %3895 = vmatmul.mubr.f32.gmra.mxu0 %v3413
        %v3896 = vpop.f32.mrf.mxu0
        %v3897 = vadd.f32 0.0, %v3896
        %v3898 = vpop.f32.mrf.mxu0
        %3899 = vmatprep.mubr.f32.mxu0 0.0
        %3900 = vmatmul.mubr.f32.gmra.mxu0 %v3414
        %v3901 = vpop.f32.mrf.mxu0
        %v3902 = vadd.f32 0.0, %v3901
        %v3903 = vpop.f32.mrf.mxu0
        %3904 = vmatprep.mubr.f32.mxu0 0.0
        %3905 = vmatmul.mubr.f32.gmra.mxu0 %v3415
        %v3906 = vpop.f32.mrf.mxu0
        %v3907 = vadd.f32 0.0, %v3906
        %v3908 = vpop.f32.mrf.mxu0
        %3909 = vmatprep.mubr.f32.mxu0 0.0
        %3910 = vmatmul.mubr.f32.gmra.mxu0 %v3416
        %v3911 = vpop.f32.mrf.mxu0
        %v3912 = vadd.f32 0.0, %v3911
        %v3913 = vpop.f32.mrf.mxu0
        %3914 = vmatprep.mubr.f32.mxu0 0.0
        %3915 = vmatmul.mubr.f32.gmra.mxu0 %v3417
        %v3916 = vpop.f32.mrf.mxu0
        %v3917 = vadd.f32 0.0, %v3916
        %v3918 = vpop.f32.mrf.mxu0
        %3919 = vmatprep.mubr.f32.mxu0 0.0
        %3920 = vmatmul.mubr.f32.gmra.mxu0 %v3418
        %v3921 = vpop.f32.mrf.mxu0
        %v3922 = vadd.f32 0.0, %v3921
        %v3923 = vpop.f32.mrf.mxu0
        %3924 = vmatprep.mubr.f32.mxu0 0.0
        %3925 = vmatmul.mubr.f32.gmra.mxu0 %v3419
        %v3926 = vpop.f32.mrf.mxu0
        %v3927 = vadd.f32 0.0, %v3926
        %v3928 = vpop.f32.mrf.mxu0
        %3929 = vmatprep.mubr.f32.mxu0 0.0
        %3930 = vmatmul.mubr.f32.gmra.mxu0 %v3420
        %v3931 = vpop.f32.mrf.mxu0
        %v3932 = vadd.f32 0.0, %v3931
        %v3933 = vpop.f32.mrf.mxu0
        %3934 = vmatprep.mubr.f32.mxu0 0.0
        %3935 = vmatmul.mubr.f32.gmra.mxu0 %v3421
        %v3936 = vpop.f32.mrf.mxu0
        %v3937 = vadd.f32 0.0, %v3936
        %v3938 = vpop.f32.mrf.mxu0
        %3939 = vmatprep.mubr.f32.mxu0 0.0
        %3940 = vmatmul.mubr.f32.gmra.mxu0 %v3422
        %v3941 = vpop.f32.mrf.mxu0
        %v3942 = vadd.f32 0.0, %v3941
        %v3943 = vpop.f32.mrf.mxu0
        %3944 = vmatprep.mubr.f32.mxu0 0.0
        %3945 = vmatmul.mubr.f32.gmra.mxu0 %v3423
        %v3946 = vpop.f32.mrf.mxu0
        %v3947 = vadd.f32 0.0, %v3946
        %v3948 = vpop.f32.mrf.mxu0
        %3949 = vmatprep.mubr.f32.mxu0 0.0
        %3950 = vmatmul.mubr.f32.gmra.mxu0 %v3424
        %v3951 = vpop.f32.mrf.mxu0
        %v3952 = vadd.f32 0.0, %v3951
        %v3953 = vpop.f32.mrf.mxu0
        %3954 = vmatprep.mubr.f32.mxu0 0.0
        %3955 = vmatmul.mubr.f32.gmra.mxu0 %v3425
        %v3956 = vpop.f32.mrf.mxu0
        %v3957 = vadd.f32 0.0, %v3956
        %v3958 = vpop.f32.mrf.mxu0
        %3959 = vmatprep.mubr.f32.mxu0 0.0
        %3960 = vmatmul.mubr.f32.gmra.mxu0 %v3426
        %v3961 = vpop.f32.mrf.mxu0
        %v3962 = vadd.f32 0.0, %v3961
        %v3963 = vpop.f32.mrf.mxu0
        %3964 = vmatprep.mubr.f32.mxu0 0.0
        %3965 = vmatmul.mubr.f32.gmra.mxu0 %v3427
        %v3966 = vpop.f32.mrf.mxu0
        %v3967 = vadd.f32 0.0, %v3966
        %v3968 = vpop.f32.mrf.mxu0
        %3969 = vmatprep.mubr.f32.mxu0 0.0
        %3970 = vmatmul.mubr.f32.gmra.mxu0 %v3428
        %v3971 = vpop.f32.mrf.mxu0
        %v3972 = vadd.f32 0.0, %v3971
        %v3973 = vpop.f32.mrf.mxu0
        %3974 = vmatprep.mubr.f32.mxu0 0.0
        %3975 = vmatmul.mubr.f32.gmra.mxu0 %v3429
        %v3976 = vpop.f32.mrf.mxu0
        %v3977 = vadd.f32 0.0, %v3976
        %v3978 = vpop.f32.mrf.mxu0
        %3979 = vmatprep.mubr.f32.mxu0 0.0
        %3980 = vmatmul.mubr.f32.gmra.mxu0 %v3430
        %v3981 = vpop.f32.mrf.mxu0
        %v3982 = vadd.f32 0.0, %v3981
        %v3983 = vpop.f32.mrf.mxu0
        %3984 = vmatprep.mubr.f32.mxu0 0.0
        %3985 = vmatmul.mubr.f32.gmra.mxu0 %v3431
        %v3986 = vpop.f32.mrf.mxu0
        %v3987 = vadd.f32 0.0, %v3986
        %v3988 = vpop.f32.mrf.mxu0
        %3989 = vmatprep.mubr.f32.mxu0 0.0
        %3990 = vmatmul.mubr.f32.gmra.mxu0 %v3432
        %v3991 = vpop.f32.mrf.mxu0
        %v3992 = vadd.f32 0.0, %v3991
        %v3993 = vpop.f32.mrf.mxu0
        %3994 = vmatprep.mubr.f32.mxu0 0.0
        %3995 = vmatmul.mubr.f32.gmra.mxu0 %v3433
        %v3996 = vpop.f32.mrf.mxu0
        %v3997 = vadd.f32 0.0, %v3996
        %v3998 = vpop.f32.mrf.mxu0
        %3999 = vmatprep.mubr.f32.mxu0 0.0
        %4000 = vmatmul.mubr.f32.gmra.mxu0 %v3434
        %v4001 = vpop.f32.mrf.mxu0
        %v4002 = vadd.f32 0.0, %v4001
        %v4003 = vpop.f32.mrf.mxu0
        %4004 = vmatprep.mubr.f32.mxu0 0.0
        %4005 = vmatmul.mubr.f32.gmra.mxu0 %v3435
        %v4006 = vpop.f32.mrf.mxu0
        %v4007 = vadd.f32 0.0, %v4006
        %v4008 = vpop.f32.mrf.mxu0
        %4009 = vmatprep.mubr.f32.mxu0 0.0
        %4010 = vmatmul.mubr.f32.gmra.mxu0 %v3436
        %v4011 = vpop.f32.mrf.mxu0
        %v4012 = vadd.f32 0.0, %v4011
        %v4013 = vpop.f32.mrf.mxu0
        %4014 = vmatprep.mubr.f32.mxu0 0.0
        %4015 = vmatmul.mubr.f32.gmra.mxu0 %v3437
        %v4016 = vpop.f32.mrf.mxu0
        %v4017 = vadd.f32 0.0, %v4016
        %v4018 = vpop.f32.mrf.mxu0
        %4019 = vmatprep.mubr.f32.mxu0 0.0
        %4020 = vmatmul.mubr.f32.gmra.mxu0 %v3438
        %v4021 = vpop.f32.mrf.mxu0
        %v4022 = vadd.f32 0.0, %v4021
        %v4023 = vpop.f32.mrf.mxu0
        %4024 = vmatprep.mubr.f32.mxu0 0.0
        %4025 = vmatmul.mubr.f32.gmra.mxu0 %v3439
        %v4026 = vpop.f32.mrf.mxu0
        %v4027 = vadd.f32 0.0, %v4026
        %v4028 = vpop.f32.mrf.mxu0
        %4029 = vmatprep.mubr.f32.mxu0 0.0
        %4030 = vmatmul.mubr.f32.gmra.mxu0 %v3440
        %v4031 = vpop.f32.mrf.mxu0
        %v4032 = vadd.f32 0.0, %v4031
        %v4033 = vpop.f32.mrf.mxu0
        %4034 = vmatprep.mubr.f32.mxu0 0.0
        %4035 = vmatmul.mubr.f32.gmra.mxu0 %v3441
        %v4036 = vpop.f32.mrf.mxu0
        %v4037 = vadd.f32 0.0, %v4036
        %v4038 = vpop.f32.mrf.mxu0
        %4039 = vmatprep.mubr.f32.mxu0 0.0
        %4040 = vmatmul.mubr.f32.gmra.mxu0 %v3442
        %v4041 = vpop.f32.mrf.mxu0
        %v4042 = vadd.f32 0.0, %v4041
        %v4043 = vpop.f32.mrf.mxu0
        %4044 = vmatprep.mubr.f32.mxu0 0.0
        %4045 = vmatmul.mubr.f32.gmra.mxu0 %v3443
        %v4046 = vpop.f32.mrf.mxu0
        %v4047 = vadd.f32 0.0, %v4046
        %v4048 = vpop.f32.mrf.mxu0
        %4049 = vmatprep.mubr.f32.mxu0 0.0
        %4050 = vmatmul.mubr.f32.gmra.mxu0 %v3444
        %v4051 = vpop.f32.mrf.mxu0
        %v4052 = vadd.f32 0.0, %v4051
        %v4053 = vpop.f32.mrf.mxu0
        %4054 = vmatprep.mubr.f32.mxu0 0.0
        %4055 = vmatmul.mubr.f32.gmra.mxu0 %v3445
        %v4056 = vpop.f32.mrf.mxu0
        %v4057 = vadd.f32 0.0, %v4056
        %v4058 = vpop.f32.mrf.mxu0
        %4059 = vmatprep.mubr.f32.mxu0 0.0
        %4060 = vmatmul.mubr.f32.gmra.mxu0 %v3446
        %v4061 = vpop.f32.mrf.mxu0
        %v4062 = vadd.f32 0.0, %v4061
        %v4063 = vpop.f32.mrf.mxu0
        %4064 = vmatprep.mubr.f32.mxu0 0.0
        %4065 = vmatmul.mubr.f32.gmra.mxu0 %v3447
        %v4066 = vpop.f32.mrf.mxu0
        %v4067 = vadd.f32 0.0, %v4066
        %v4068 = vpop.f32.mrf.mxu0
        %4069 = vmatprep.mubr.f32.mxu0 0.0
        %4070 = vmatmul.mubr.f32.gmra.mxu0 %v3448
        %v4071 = vpop.f32.mrf.mxu0
        %v4072 = vadd.f32 0.0, %v4071
        %v4073 = vpop.f32.mrf.mxu0
        %4074 = vmatprep.mubr.f32.mxu0 0.0
        %4075 = vmatmul.mubr.f32.gmra.mxu0 %v3449
        %v4076 = vpop.f32.mrf.mxu0
        %v4077 = vadd.f32 0.0, %v4076
        %v4078 = vpop.f32.mrf.mxu0
        %4079 = vmatprep.mubr.f32.mxu0 0.0
        %4080 = vmatmul.mubr.f32.gmra.mxu0 %v3450
        %v4081 = vpop.f32.mrf.mxu0
        %v4082 = vadd.f32 0.0, %v4081
        %v4083 = vpop.f32.mrf.mxu0
        %4084 = vmatprep.mubr.f32.mxu0 0.0
        %4085 = vmatmul.mubr.f32.gmra.mxu0 %v3451
        %v4086 = vpop.f32.mrf.mxu0
        %v4087 = vadd.f32 0.0, %v4086
        %v4088 = vpop.f32.mrf.mxu0
        %4089 = vmatprep.mubr.f32.mxu0 0.0
        %4090 = vmatmul.mubr.f32.gmra.mxu0 %v3452
        %v4091 = vpop.f32.mrf.mxu0
        %v4092 = vadd.f32 0.0, %v4091
        %v4093 = vpop.f32.mrf.mxu0
        %4094 = vmatprep.mubr.f32.mxu0 0.0
        %4095 = vmatmul.mubr.f32.gmra.mxu0 %v3453
        %v4096 = vpop.f32.mrf.mxu0
        %v4097 = vadd.f32 0.0, %v4096
        %v4098 = vpop.f32.mrf.mxu0
        %4099 = vmatprep.mubr.f32.mxu0 0.0
        %4100 = vmatmul.mubr.f32.gmra.mxu0 %v3454
        %v4101 = vpop.f32.mrf.mxu0
        %v4102 = vadd.f32 0.0, %v4101
        %v4103 = vpop.f32.mrf.mxu0
        %4104 = vmatprep.mubr.f32.mxu0 0.0
        %4105 = vmatmul.mubr.f32.gmra.mxu0 %v3455
        %v4106 = vpop.f32.mrf.mxu0
        %v4107 = vadd.f32 0.0, %v4106
        %v4108 = vpop.f32.mrf.mxu0
        %4109 = vmatprep.mubr.f32.mxu0 0.0
        %4110 = vmatmul.mubr.f32.gmra.mxu0 %v3456
        %v4111 = vpop.f32.mrf.mxu0
        %v4112 = vadd.f32 0.0, %v4111
        %v4113 = vpop.f32.mrf.mxu0
        %4114 = vmatprep.mubr.f32.mxu0 0.0
        %4115 = vmatmul.mubr.f32.gmra.mxu0 %v3457
        %v4116 = vpop.f32.mrf.mxu0
        %v4117 = vadd.f32 0.0, %v4116
        %v4118 = vpop.f32.mrf.mxu0
        %4119 = vmatprep.mubr.f32.mxu0 0.0
        %4120 = vmatmul.mubr.f32.gmra.mxu0 %v3458
        %v4121 = vpop.f32.mrf.mxu0
        %v4122 = vadd.f32 0.0, %v4121
        %v4123 = vpop.f32.mrf.mxu0
        %4124 = vmatprep.mubr.f32.mxu0 0.0
        %4125 = vmatmul.mubr.f32.gmra.mxu0 %v3459
        %v4126 = vpop.f32.mrf.mxu0
        %v4127 = vadd.f32 0.0, %v4126
        %v4128 = vpop.f32.mrf.mxu0
        %4129 = vmatprep.mubr.f32.mxu0 0.0
        %4130 = vmatmul.mubr.f32.gmra.mxu0 %v3460
        %v4131 = vpop.f32.mrf.mxu0
        %v4132 = vadd.f32 0.0, %v4131
        %v4133 = vpop.f32.mrf.mxu0
        %4134 = vmatprep.mubr.f32.mxu0 0.0
        %4135 = vmatmul.mubr.f32.gmra.mxu0 %v3461
        %v4136 = vpop.f32.mrf.mxu0
        %v4137 = vadd.f32 0.0, %v4136
        %v4138 = vpop.f32.mrf.mxu0
        %4139 = vmatprep.mubr.f32.mxu0 0.0
        %4140 = vmatmul.mubr.f32.gmra.mxu0 %v3462
        %v4141 = vpop.f32.mrf.mxu0
        %v4142 = vadd.f32 0.0, %v4141
        %v4143 = vpop.f32.mrf.mxu0
        %4144 = vmatprep.mubr.f32.mxu0 0.0
        %4145 = vmatmul.mubr.f32.gmra.mxu0 %v3463
        %v4146 = vpop.f32.mrf.mxu0
        %v4147 = vadd.f32 0.0, %v4146
        %v4148 = vpop.f32.mrf.mxu0
        %4149 = vmatprep.mubr.f32.mxu0 0.0
        %4150 = vmatmul.mubr.f32.gmra.mxu0 %v3464
        %v4151 = vpop.f32.mrf.mxu0
        %v4152 = vadd.f32 0.0, %v4151
        %v4153 = vpop.f32.mrf.mxu0
        %4154 = vmatprep.mubr.f32.mxu0 0.0
        %4155 = vmatmul.mubr.f32.gmra.mxu0 %v3465
        %v4156 = vpop.f32.mrf.mxu0
        %v4157 = vadd.f32 0.0, %v4156
        %v4158 = vpop.f32.mrf.mxu0
        %4159 = vmatprep.mubr.f32.mxu0 0.0
        %4160 = vmatmul.mubr.f32.gmra.mxu0 %v3466
        %v4161 = vpop.f32.mrf.mxu0
        %v4162 = vadd.f32 0.0, %v4161
        %v4163 = vpop.f32.mrf.mxu0
        %4164 = vmatprep.mubr.f32.mxu0 0.0
        %4165 = vmatmul.mubr.f32.gmra.mxu0 %v3467
        %v4166 = vpop.f32.mrf.mxu0
        %v4167 = vadd.f32 0.0, %v4166
        %v4168 = vpop.f32.mrf.mxu0
        %4169 = vmatprep.mubr.f32.mxu0 0.0
        %4170 = vmatmul.mubr.f32.gmra.mxu0 %v3468
        %v4171 = vpop.f32.mrf.mxu0
        %v4172 = vadd.f32 0.0, %v4171
        %v4173 = vpop.f32.mrf.mxu0
        %4174 = vdwg.mxu0
        %v4175 = vsel %vm2033, %v3537, 0.0
        %4176 = vadd.xlane.f32.xlu0 %v4175
        %v4177 = vpop.xlane.xlu0 %4176
        %v4178 = vsel %vm2033, %v3542, 0.0
        %4179 = vadd.xlane.f32.xlu0 %v4178
        %v4180 = vpop.xlane.xlu0 %4179
        %v4181 = vsel %vm2033, %v3547, 0.0
        %4182 = vadd.xlane.f32.xlu0 %v4181
        %v4183 = vpop.xlane.xlu0 %4182
        %v4184 = vsel %vm2033, %v3552, 0.0
        %4185 = vadd.xlane.f32.xlu0 %v4184
        %v4186 = vpop.xlane.xlu0 %4185
        %v4187 = vsel %vm2033, %v3557, 0.0
        %4188 = vadd.xlane.f32.xlu0 %v4187
        %v4189 = vpop.xlane.xlu0 %4188
        %v4190 = vsel %vm2033, %v3562, 0.0
        %4191 = vadd.xlane.f32.xlu0 %v4190
        %v4192 = vpop.xlane.xlu0 %4191
        %v4193 = vsel %vm2033, %v3567, 0.0
        %4194 = vadd.xlane.f32.xlu0 %v4193
        %v4195 = vpop.xlane.xlu0 %4194
        %v4196 = vsel %vm2033, %v3572, 0.0
        %4197 = vadd.xlane.f32.xlu0 %v4196
        %v4198 = vpop.xlane.xlu0 %4197
        %v4199 = vsel %vm2033, %v3577, 0.0
        %4200 = vadd.xlane.f32.xlu0 %v4199
        %v4201 = vpop.xlane.xlu0 %4200
        %v4202 = vsel %vm2033, %v3582, 0.0
        %4203 = vadd.xlane.f32.xlu0 %v4202
        %v4204 = vpop.xlane.xlu0 %4203
        %v4205 = vsel %vm2033, %v3587, 0.0
        %4206 = vadd.xlane.f32.xlu0 %v4205
        %v4207 = vpop.xlane.xlu0 %4206
        %v4208 = vsel %vm2033, %v3592, 0.0
        %4209 = vadd.xlane.f32.xlu0 %v4208
        %v4210 = vpop.xlane.xlu0 %4209
        %v4211 = vsel %vm2033, %v3597, 0.0
        %4212 = vadd.xlane.f32.xlu0 %v4211
        %v4213 = vpop.xlane.xlu0 %4212
        %v4214 = vsel %vm2033, %v3602, 0.0
        %4215 = vadd.xlane.f32.xlu0 %v4214
        %v4216 = vpop.xlane.xlu0 %4215
        %v4217 = vsel %vm2033, %v3607, 0.0
        %4218 = vadd.xlane.f32.xlu0 %v4217
        %v4219 = vpop.xlane.xlu0 %4218
        %v4220 = vsel %vm2033, %v3612, 0.0
        %4221 = vadd.xlane.f32.xlu0 %v4220
        %v4222 = vpop.xlane.xlu0 %4221
        %v4223 = vsel %vm2033, %v3617, 0.0
        %4224 = vadd.xlane.f32.xlu0 %v4223
        %v4225 = vpop.xlane.xlu0 %4224
        %v4226 = vsel %vm2033, %v3622, 0.0
        %4227 = vadd.xlane.f32.xlu0 %v4226
        %v4228 = vpop.xlane.xlu0 %4227
        %v4229 = vsel %vm2033, %v3627, 0.0
        %4230 = vadd.xlane.f32.xlu0 %v4229
        %v4231 = vpop.xlane.xlu0 %4230
        %v4232 = vsel %vm2033, %v3632, 0.0
        %4233 = vadd.xlane.f32.xlu0 %v4232
        %v4234 = vpop.xlane.xlu0 %4233
        %v4235 = vsel %vm2033, %v3637, 0.0
        %4236 = vadd.xlane.f32.xlu0 %v4235
        %v4237 = vpop.xlane.xlu0 %4236
        %v4238 = vsel %vm2033, %v3642, 0.0
        %4239 = vadd.xlane.f32.xlu0 %v4238
        %v4240 = vpop.xlane.xlu0 %4239
        %v4241 = vsel %vm2033, %v3647, 0.0
        %4242 = vadd.xlane.f32.xlu0 %v4241
        %v4243 = vpop.xlane.xlu0 %4242
        %v4244 = vsel %vm2033, %v3652, 0.0
        %4245 = vadd.xlane.f32.xlu0 %v4244
        %v4246 = vpop.xlane.xlu0 %4245
        %v4247 = vsel %vm2033, %v3657, 0.0
        %4248 = vadd.xlane.f32.xlu0 %v4247
        %v4249 = vpop.xlane.xlu0 %4248
        %v4250 = vsel %vm2033, %v3662, 0.0
        %4251 = vadd.xlane.f32.xlu0 %v4250
        %v4252 = vpop.xlane.xlu0 %4251
        %v4253 = vsel %vm2033, %v3667, 0.0
        %4254 = vadd.xlane.f32.xlu0 %v4253
        %v4255 = vpop.xlane.xlu0 %4254
        %v4256 = vsel %vm2033, %v3672, 0.0
        %4257 = vadd.xlane.f32.xlu0 %v4256
        %v4258 = vpop.xlane.xlu0 %4257
        %v4259 = vsel %vm2033, %v3677, 0.0
        %4260 = vadd.xlane.f32.xlu0 %v4259
        %v4261 = vpop.xlane.xlu0 %4260
        %v4262 = vsel %vm2033, %v3682, 0.0
        %4263 = vadd.xlane.f32.xlu0 %v4262
        %v4264 = vpop.xlane.xlu0 %4263
        %v4265 = vsel %vm2033, %v3687, 0.0
        %4266 = vadd.xlane.f32.xlu0 %v4265
        %v4267 = vpop.xlane.xlu0 %4266
        %v4268 = vsel %vm2033, %v3692, 0.0
        %4269 = vadd.xlane.f32.xlu0 %v4268
        %v4270 = vpop.xlane.xlu0 %4269
        %v4271 = vsel %vm2033, %v3697, 0.0
        %4272 = vadd.xlane.f32.xlu0 %v4271
        %v4273 = vpop.xlane.xlu0 %4272
        %v4274 = vsel %vm2033, %v3702, 0.0
        %4275 = vadd.xlane.f32.xlu0 %v4274
        %v4276 = vpop.xlane.xlu0 %4275
        %v4277 = vsel %vm2033, %v3707, 0.0
        %4278 = vadd.xlane.f32.xlu0 %v4277
        %v4279 = vpop.xlane.xlu0 %4278
        %v4280 = vsel %vm2033, %v3712, 0.0
        %4281 = vadd.xlane.f32.xlu0 %v4280
        %v4282 = vpop.xlane.xlu0 %4281
        %v4283 = vsel %vm2033, %v3717, 0.0
        %4284 = vadd.xlane.f32.xlu0 %v4283
        %v4285 = vpop.xlane.xlu0 %4284
        %v4286 = vsel %vm2033, %v3722, 0.0
        %4287 = vadd.xlane.f32.xlu0 %v4286
        %v4288 = vpop.xlane.xlu0 %4287
        %v4289 = vsel %vm2033, %v3727, 0.0
        %4290 = vadd.xlane.f32.xlu0 %v4289
        %v4291 = vpop.xlane.xlu0 %4290
        %v4292 = vsel %vm2033, %v3732, 0.0
        %4293 = vadd.xlane.f32.xlu0 %v4292
        %v4294 = vpop.xlane.xlu0 %4293
        %v4295 = vsel %vm2033, %v3737, 0.0
        %4296 = vadd.xlane.f32.xlu0 %v4295
        %v4297 = vpop.xlane.xlu0 %4296
        %v4298 = vsel %vm2033, %v3742, 0.0
        %4299 = vadd.xlane.f32.xlu0 %v4298
        %v4300 = vpop.xlane.xlu0 %4299
        %v4301 = vsel %vm2033, %v3747, 0.0
        %4302 = vadd.xlane.f32.xlu0 %v4301
        %v4303 = vpop.xlane.xlu0 %4302
        %v4304 = vsel %vm2033, %v3752, 0.0
        %4305 = vadd.xlane.f32.xlu0 %v4304
        %v4306 = vpop.xlane.xlu0 %4305
        %v4307 = vsel %vm2033, %v3757, 0.0
        %4308 = vadd.xlane.f32.xlu0 %v4307
        %v4309 = vpop.xlane.xlu0 %4308
        %v4310 = vsel %vm2033, %v3762, 0.0
        %4311 = vadd.xlane.f32.xlu0 %v4310
        %v4312 = vpop.xlane.xlu0 %4311
        %v4313 = vsel %vm2033, %v3767, 0.0
        %4314 = vadd.xlane.f32.xlu0 %v4313
        %v4315 = vpop.xlane.xlu0 %4314
        %v4316 = vsel %vm2033, %v3772, 0.0
        %4317 = vadd.xlane.f32.xlu0 %v4316
        %v4318 = vpop.xlane.xlu0 %4317
        %v4319 = vsel %vm2033, %v3777, 0.0
        %4320 = vadd.xlane.f32.xlu0 %v4319
        %v4321 = vpop.xlane.xlu0 %4320
        %v4322 = vsel %vm2033, %v3782, 0.0
        %4323 = vadd.xlane.f32.xlu0 %v4322
        %v4324 = vpop.xlane.xlu0 %4323
        %v4325 = vsel %vm2033, %v3787, 0.0
        %4326 = vadd.xlane.f32.xlu0 %v4325
        %v4327 = vpop.xlane.xlu0 %4326
        %v4328 = vsel %vm2033, %v3792, 0.0
        %4329 = vadd.xlane.f32.xlu0 %v4328
        %v4330 = vpop.xlane.xlu0 %4329
        %v4331 = vsel %vm2033, %v3797, 0.0
        %4332 = vadd.xlane.f32.xlu0 %v4331
        %v4333 = vpop.xlane.xlu0 %4332
        %v4334 = vsel %vm2033, %v3802, 0.0
        %4335 = vadd.xlane.f32.xlu0 %v4334
        %v4336 = vpop.xlane.xlu0 %4335
        %v4337 = vsel %vm2033, %v3807, 0.0
        %4338 = vadd.xlane.f32.xlu0 %v4337
        %v4339 = vpop.xlane.xlu0 %4338
        %v4340 = vsel %vm2033, %v3812, 0.0
        %4341 = vadd.xlane.f32.xlu0 %v4340
        %v4342 = vpop.xlane.xlu0 %4341
        %v4343 = vsel %vm2033, %v3817, 0.0
        %4344 = vadd.xlane.f32.xlu0 %v4343
        %v4345 = vpop.xlane.xlu0 %4344
        %v4346 = vsel %vm2033, %v3822, 0.0
        %4347 = vadd.xlane.f32.xlu0 %v4346
        %v4348 = vpop.xlane.xlu0 %4347
        %v4349 = vsel %vm2033, %v3827, 0.0
        %4350 = vadd.xlane.f32.xlu0 %v4349
        %v4351 = vpop.xlane.xlu0 %4350
        %v4352 = vsel %vm2033, %v3832, 0.0
        %4353 = vadd.xlane.f32.xlu0 %v4352
        %v4354 = vpop.xlane.xlu0 %4353
        %v4355 = vsel %vm2033, %v3837, 0.0
        %4356 = vadd.xlane.f32.xlu0 %v4355
        %v4357 = vpop.xlane.xlu0 %4356
        %v4358 = vsel %vm2033, %v3842, 0.0
        %4359 = vadd.xlane.f32.xlu0 %v4358
        %v4360 = vpop.xlane.xlu0 %4359
        %v4361 = vsel %vm2033, %v3847, 0.0
        %4362 = vadd.xlane.f32.xlu0 %v4361
        %v4363 = vpop.xlane.xlu0 %4362
        %v4364 = vsel %vm2033, %v3852, 0.0
        %4365 = vadd.xlane.f32.xlu0 %v4364
        %v4366 = vpop.xlane.xlu0 %4365
        %v4367 = vsel %vm2033, %v3857, 0.0
        %4368 = vadd.xlane.f32.xlu0 %v4367
        %v4369 = vpop.xlane.xlu0 %4368
        %v4370 = vsel %vm2033, %v3862, 0.0
        %4371 = vadd.xlane.f32.xlu0 %v4370
        %v4372 = vpop.xlane.xlu0 %4371
        %v4373 = vsel %vm2033, %v3867, 0.0
        %4374 = vadd.xlane.f32.xlu0 %v4373
        %v4375 = vpop.xlane.xlu0 %4374
        %v4376 = vsel %vm2033, %v3872, 0.0
        %4377 = vadd.xlane.f32.xlu0 %v4376
        %v4378 = vpop.xlane.xlu0 %4377
        %v4379 = vsel %vm2033, %v3877, 0.0
        %4380 = vadd.xlane.f32.xlu0 %v4379
        %v4381 = vpop.xlane.xlu0 %4380
        %v4382 = vsel %vm2033, %v3882, 0.0
        %4383 = vadd.xlane.f32.xlu0 %v4382
        %v4384 = vpop.xlane.xlu0 %4383
        %v4385 = vsel %vm2033, %v3887, 0.0
        %4386 = vadd.xlane.f32.xlu0 %v4385
        %v4387 = vpop.xlane.xlu0 %4386
        %v4388 = vsel %vm2033, %v3892, 0.0
        %4389 = vadd.xlane.f32.xlu0 %v4388
        %v4390 = vpop.xlane.xlu0 %4389
        %v4391 = vsel %vm2033, %v3897, 0.0
        %4392 = vadd.xlane.f32.xlu0 %v4391
        %v4393 = vpop.xlane.xlu0 %4392
        %v4394 = vsel %vm2033, %v3902, 0.0
        %4395 = vadd.xlane.f32.xlu0 %v4394
        %v4396 = vpop.xlane.xlu0 %4395
        %v4397 = vsel %vm2033, %v3907, 0.0
        %4398 = vadd.xlane.f32.xlu0 %v4397
        %v4399 = vpop.xlane.xlu0 %4398
        %v4400 = vsel %vm2033, %v3912, 0.0
        %4401 = vadd.xlane.f32.xlu0 %v4400
        %v4402 = vpop.xlane.xlu0 %4401
        %v4403 = vsel %vm2033, %v3917, 0.0
        %4404 = vadd.xlane.f32.xlu0 %v4403
        %v4405 = vpop.xlane.xlu0 %4404
        %v4406 = vsel %vm2033, %v3922, 0.0
        %4407 = vadd.xlane.f32.xlu0 %v4406
        %v4408 = vpop.xlane.xlu0 %4407
        %v4409 = vsel %vm2033, %v3927, 0.0
        %4410 = vadd.xlane.f32.xlu0 %v4409
        %v4411 = vpop.xlane.xlu0 %4410
        %v4412 = vsel %vm2033, %v3932, 0.0
        %4413 = vadd.xlane.f32.xlu0 %v4412
        %v4414 = vpop.xlane.xlu0 %4413
        %v4415 = vsel %vm2033, %v3937, 0.0
        %4416 = vadd.xlane.f32.xlu0 %v4415
        %v4417 = vpop.xlane.xlu0 %4416
        %v4418 = vsel %vm2033, %v3942, 0.0
        %4419 = vadd.xlane.f32.xlu0 %v4418
        %v4420 = vpop.xlane.xlu0 %4419
        %v4421 = vsel %vm2033, %v3947, 0.0
        %4422 = vadd.xlane.f32.xlu0 %v4421
        %v4423 = vpop.xlane.xlu0 %4422
        %v4424 = vsel %vm2033, %v3952, 0.0
        %4425 = vadd.xlane.f32.xlu0 %v4424
        %v4426 = vpop.xlane.xlu0 %4425
        %v4427 = vsel %vm2033, %v3957, 0.0
        %4428 = vadd.xlane.f32.xlu0 %v4427
        %v4429 = vpop.xlane.xlu0 %4428
        %v4430 = vsel %vm2033, %v3962, 0.0
        %4431 = vadd.xlane.f32.xlu0 %v4430
        %v4432 = vpop.xlane.xlu0 %4431
        %v4433 = vsel %vm2033, %v3967, 0.0
        %4434 = vadd.xlane.f32.xlu0 %v4433
        %v4435 = vpop.xlane.xlu0 %4434
        %v4436 = vsel %vm2033, %v3972, 0.0
        %4437 = vadd.xlane.f32.xlu0 %v4436
        %v4438 = vpop.xlane.xlu0 %4437
        %v4439 = vsel %vm2033, %v3977, 0.0
        %4440 = vadd.xlane.f32.xlu0 %v4439
        %v4441 = vpop.xlane.xlu0 %4440
        %v4442 = vsel %vm2033, %v3982, 0.0
        %4443 = vadd.xlane.f32.xlu0 %v4442
        %v4444 = vpop.xlane.xlu0 %4443
        %v4445 = vsel %vm2033, %v3987, 0.0
        %4446 = vadd.xlane.f32.xlu0 %v4445
        %v4447 = vpop.xlane.xlu0 %4446
        %v4448 = vsel %vm2033, %v3992, 0.0
        %4449 = vadd.xlane.f32.xlu0 %v4448
        %v4450 = vpop.xlane.xlu0 %4449
        %v4451 = vsel %vm2033, %v3997, 0.0
        %4452 = vadd.xlane.f32.xlu0 %v4451
        %v4453 = vpop.xlane.xlu0 %4452
        %v4454 = vsel %vm2033, %v4002, 0.0
        %4455 = vadd.xlane.f32.xlu0 %v4454
        %v4456 = vpop.xlane.xlu0 %4455
        %v4457 = vsel %vm2033, %v4007, 0.0
        %4458 = vadd.xlane.f32.xlu0 %v4457
        %v4459 = vpop.xlane.xlu0 %4458
        %v4460 = vsel %vm2033, %v4012, 0.0
        %4461 = vadd.xlane.f32.xlu0 %v4460
        %v4462 = vpop.xlane.xlu0 %4461
        %v4463 = vsel %vm2033, %v4017, 0.0
        %4464 = vadd.xlane.f32.xlu0 %v4463
        %v4465 = vpop.xlane.xlu0 %4464
        %v4466 = vsel %vm2033, %v4022, 0.0
        %4467 = vadd.xlane.f32.xlu0 %v4466
        %v4468 = vpop.xlane.xlu0 %4467
        %v4469 = vsel %vm2033, %v4027, 0.0
        %4470 = vadd.xlane.f32.xlu0 %v4469
        %v4471 = vpop.xlane.xlu0 %4470
        %v4472 = vsel %vm2033, %v4032, 0.0
        %4473 = vadd.xlane.f32.xlu0 %v4472
        %v4474 = vpop.xlane.xlu0 %4473
        %v4475 = vsel %vm2033, %v4037, 0.0
        %4476 = vadd.xlane.f32.xlu0 %v4475
        %v4477 = vpop.xlane.xlu0 %4476
        %v4478 = vsel %vm2033, %v4042, 0.0
        %4479 = vadd.xlane.f32.xlu0 %v4478
        %v4480 = vpop.xlane.xlu0 %4479
        %v4481 = vsel %vm2033, %v4047, 0.0
        %4482 = vadd.xlane.f32.xlu0 %v4481
        %v4483 = vpop.xlane.xlu0 %4482
        %v4484 = vsel %vm2033, %v4052, 0.0
        %4485 = vadd.xlane.f32.xlu0 %v4484
        %v4486 = vpop.xlane.xlu0 %4485
        %v4487 = vsel %vm2033, %v4057, 0.0
        %4488 = vadd.xlane.f32.xlu0 %v4487
        %v4489 = vpop.xlane.xlu0 %4488
        %v4490 = vsel %vm2033, %v4062, 0.0
        %4491 = vadd.xlane.f32.xlu0 %v4490
        %v4492 = vpop.xlane.xlu0 %4491
        %v4493 = vsel %vm2033, %v4067, 0.0
        %4494 = vadd.xlane.f32.xlu0 %v4493
        %v4495 = vpop.xlane.xlu0 %4494
        %v4496 = vsel %vm2033, %v4072, 0.0
        %4497 = vadd.xlane.f32.xlu0 %v4496
        %v4498 = vpop.xlane.xlu0 %4497
        %v4499 = vsel %vm2033, %v4077, 0.0
        %4500 = vadd.xlane.f32.xlu0 %v4499
        %v4501 = vpop.xlane.xlu0 %4500
        %v4502 = vsel %vm2033, %v4082, 0.0
        %4503 = vadd.xlane.f32.xlu0 %v4502
        %v4504 = vpop.xlane.xlu0 %4503
        %v4505 = vsel %vm2033, %v4087, 0.0
        %4506 = vadd.xlane.f32.xlu0 %v4505
        %v4507 = vpop.xlane.xlu0 %4506
        %v4508 = vsel %vm2033, %v4092, 0.0
        %4509 = vadd.xlane.f32.xlu0 %v4508
        %v4510 = vpop.xlane.xlu0 %4509
        %v4511 = vsel %vm2033, %v4097, 0.0
        %4512 = vadd.xlane.f32.xlu0 %v4511
        %v4513 = vpop.xlane.xlu0 %4512
        %v4514 = vsel %vm2033, %v4102, 0.0
        %4515 = vadd.xlane.f32.xlu0 %v4514
        %v4516 = vpop.xlane.xlu0 %4515
        %v4517 = vsel %vm2033, %v4107, 0.0
        %4518 = vadd.xlane.f32.xlu0 %v4517
        %v4519 = vpop.xlane.xlu0 %4518
        %v4520 = vsel %vm2033, %v4112, 0.0
        %4521 = vadd.xlane.f32.xlu0 %v4520
        %v4522 = vpop.xlane.xlu0 %4521
        %v4523 = vsel %vm2033, %v4117, 0.0
        %4524 = vadd.xlane.f32.xlu0 %v4523
        %v4525 = vpop.xlane.xlu0 %4524
        %v4526 = vsel %vm2033, %v4122, 0.0
        %4527 = vadd.xlane.f32.xlu0 %v4526
        %v4528 = vpop.xlane.xlu0 %4527
        %v4529 = vsel %vm2033, %v4127, 0.0
        %4530 = vadd.xlane.f32.xlu0 %v4529
        %v4531 = vpop.xlane.xlu0 %4530
        %v4532 = vsel %vm2033, %v4132, 0.0
        %4533 = vadd.xlane.f32.xlu0 %v4532
        %v4534 = vpop.xlane.xlu0 %4533
        %v4535 = vsel %vm2033, %v4137, 0.0
        %4536 = vadd.xlane.f32.xlu0 %v4535
        %v4537 = vpop.xlane.xlu0 %4536
        %v4538 = vsel %vm2033, %v4142, 0.0
        %4539 = vadd.xlane.f32.xlu0 %v4538
        %v4540 = vpop.xlane.xlu0 %4539
        %v4541 = vsel %vm2033, %v4147, 0.0
        %4542 = vadd.xlane.f32.xlu0 %v4541
        %v4543 = vpop.xlane.xlu0 %4542
        %v4544 = vsel %vm2033, %v4152, 0.0
        %4545 = vadd.xlane.f32.xlu0 %v4544
        %v4546 = vpop.xlane.xlu0 %4545
        %v4547 = vsel %vm2033, %v4157, 0.0
        %4548 = vadd.xlane.f32.xlu0 %v4547
        %v4549 = vpop.xlane.xlu0 %4548
        %v4550 = vsel %vm2033, %v4162, 0.0
        %4551 = vadd.xlane.f32.xlu0 %v4550
        %v4552 = vpop.xlane.xlu0 %4551
        %v4553 = vsel %vm2033, %v4167, 0.0
        %4554 = vadd.xlane.f32.xlu0 %v4553
        %v4555 = vpop.xlane.xlu0 %4554
        %v4556 = vsel %vm2033, %v4172, 0.0
        %4557 = vadd.xlane.f32.xlu0 %v4556
        %v4558 = vpop.xlane.xlu0 %4557
        %v4559 = vld [vmem:[#allocation5] sm:$0x1]
        %v4561 = vlaneseq
        %v4562 = vshrl.u32 %v4561, 7
        %v4563 = vsub.s32 0, %v4562
        %v4564 = vrot.slane %v4559, %v4563
        %4565 = vset.pattern.permute.xlu0 0
        %4566 = vperm.xlu0 %4565, %v4564
        %v4567 = vpop.permute.xlu0 %4566
        %v4569 = vadd.f32 %v4177, %v4567
        %v4570 = vadd.f32 %v4180, %v4567
        %v4571 = vadd.f32 %v4183, %v4567
        %v4572 = vadd.f32 %v4186, %v4567
        %v4573 = vadd.f32 %v4189, %v4567
        %v4574 = vadd.f32 %v4192, %v4567
        %v4575 = vadd.f32 %v4195, %v4567
        %v4576 = vadd.f32 %v4198, %v4567
        %v4577 = vadd.f32 %v4201, %v4567
        %v4578 = vadd.f32 %v4204, %v4567
        %v4579 = vadd.f32 %v4207, %v4567
        %v4580 = vadd.f32 %v4210, %v4567
        %v4581 = vadd.f32 %v4213, %v4567
        %v4582 = vadd.f32 %v4216, %v4567
        %v4583 = vadd.f32 %v4219, %v4567
        %v4584 = vadd.f32 %v4222, %v4567
        %v4585 = vadd.f32 %v4225, %v4567
        %v4586 = vadd.f32 %v4228, %v4567
        %v4587 = vadd.f32 %v4231, %v4567
        %v4588 = vadd.f32 %v4234, %v4567
        %v4589 = vadd.f32 %v4237, %v4567
        %v4590 = vadd.f32 %v4240, %v4567
        %v4591 = vadd.f32 %v4243, %v4567
        %v4592 = vadd.f32 %v4246, %v4567
        %v4593 = vadd.f32 %v4249, %v4567
        %v4594 = vadd.f32 %v4252, %v4567
        %v4595 = vadd.f32 %v4255, %v4567
        %v4596 = vadd.f32 %v4258, %v4567
        %v4597 = vadd.f32 %v4261, %v4567
        %v4598 = vadd.f32 %v4264, %v4567
        %v4599 = vadd.f32 %v4267, %v4567
        %v4600 = vadd.f32 %v4270, %v4567
        %v4601 = vadd.f32 %v4273, %v4567
        %v4602 = vadd.f32 %v4276, %v4567
        %v4603 = vadd.f32 %v4279, %v4567
        %v4604 = vadd.f32 %v4282, %v4567
        %v4605 = vadd.f32 %v4285, %v4567
        %v4606 = vadd.f32 %v4288, %v4567
        %v4607 = vadd.f32 %v4291, %v4567
        %v4608 = vadd.f32 %v4294, %v4567
        %v4609 = vadd.f32 %v4297, %v4567
        %v4610 = vadd.f32 %v4300, %v4567
        %v4611 = vadd.f32 %v4303, %v4567
        %v4612 = vadd.f32 %v4306, %v4567
        %v4613 = vadd.f32 %v4309, %v4567
        %v4614 = vadd.f32 %v4312, %v4567
        %v4615 = vadd.f32 %v4315, %v4567
        %v4616 = vadd.f32 %v4318, %v4567
        %v4617 = vadd.f32 %v4321, %v4567
        %v4618 = vadd.f32 %v4324, %v4567
        %v4619 = vadd.f32 %v4327, %v4567
        %v4620 = vadd.f32 %v4330, %v4567
        %v4621 = vadd.f32 %v4333, %v4567
        %v4622 = vadd.f32 %v4336, %v4567
        %v4623 = vadd.f32 %v4339, %v4567
        %v4624 = vadd.f32 %v4342, %v4567
        %v4625 = vadd.f32 %v4345, %v4567
        %v4626 = vadd.f32 %v4348, %v4567
        %v4627 = vadd.f32 %v4351, %v4567
        %v4628 = vadd.f32 %v4354, %v4567
        %v4629 = vadd.f32 %v4357, %v4567
        %v4630 = vadd.f32 %v4360, %v4567
        %v4631 = vadd.f32 %v4363, %v4567
        %v4632 = vadd.f32 %v4366, %v4567
        %v4633 = vadd.f32 %v4369, %v4567
        %v4634 = vadd.f32 %v4372, %v4567
        %v4635 = vadd.f32 %v4375, %v4567
        %v4636 = vadd.f32 %v4378, %v4567
        %v4637 = vadd.f32 %v4381, %v4567
        %v4638 = vadd.f32 %v4384, %v4567
        %v4639 = vadd.f32 %v4387, %v4567
        %v4640 = vadd.f32 %v4390, %v4567
        %v4641 = vadd.f32 %v4393, %v4567
        %v4642 = vadd.f32 %v4396, %v4567
        %v4643 = vadd.f32 %v4399, %v4567
        %v4644 = vadd.f32 %v4402, %v4567
        %v4645 = vadd.f32 %v4405, %v4567
        %v4646 = vadd.f32 %v4408, %v4567
        %v4647 = vadd.f32 %v4411, %v4567
        %v4648 = vadd.f32 %v4414, %v4567
        %v4649 = vadd.f32 %v4417, %v4567
        %v4650 = vadd.f32 %v4420, %v4567
        %v4651 = vadd.f32 %v4423, %v4567
        %v4652 = vadd.f32 %v4426, %v4567
        %v4653 = vadd.f32 %v4429, %v4567
        %v4654 = vadd.f32 %v4432, %v4567
        %v4655 = vadd.f32 %v4435, %v4567
        %v4656 = vadd.f32 %v4438, %v4567
        %v4657 = vadd.f32 %v4441, %v4567
        %v4658 = vadd.f32 %v4444, %v4567
        %v4659 = vadd.f32 %v4447, %v4567
        %v4660 = vadd.f32 %v4450, %v4567
        %v4661 = vadd.f32 %v4453, %v4567
        %v4662 = vadd.f32 %v4456, %v4567
        %v4663 = vadd.f32 %v4459, %v4567
        %v4664 = vadd.f32 %v4462, %v4567
        %v4665 = vadd.f32 %v4465, %v4567
        %v4666 = vadd.f32 %v4468, %v4567
        %v4667 = vadd.f32 %v4471, %v4567
        %v4668 = vadd.f32 %v4474, %v4567
        %v4669 = vadd.f32 %v4477, %v4567
        %v4670 = vadd.f32 %v4480, %v4567
        %v4671 = vadd.f32 %v4483, %v4567
        %v4672 = vadd.f32 %v4486, %v4567
        %v4673 = vadd.f32 %v4489, %v4567
        %v4674 = vadd.f32 %v4492, %v4567
        %v4675 = vadd.f32 %v4495, %v4567
        %v4676 = vadd.f32 %v4498, %v4567
        %v4677 = vadd.f32 %v4501, %v4567
        %v4678 = vadd.f32 %v4504, %v4567
        %v4679 = vadd.f32 %v4507, %v4567
        %v4680 = vadd.f32 %v4510, %v4567
        %v4681 = vadd.f32 %v4513, %v4567
        %v4682 = vadd.f32 %v4516, %v4567
        %v4683 = vadd.f32 %v4519, %v4567
        %v4684 = vadd.f32 %v4522, %v4567
        %v4685 = vadd.f32 %v4525, %v4567
        %v4686 = vadd.f32 %v4528, %v4567
        %v4687 = vadd.f32 %v4531, %v4567
        %v4688 = vadd.f32 %v4534, %v4567
        %v4689 = vadd.f32 %v4537, %v4567
        %v4690 = vadd.f32 %v4540, %v4567
        %v4691 = vadd.f32 %v4543, %v4567
        %v4692 = vadd.f32 %v4546, %v4567
        %v4693 = vadd.f32 %v4549, %v4567
        %v4694 = vadd.f32 %v4552, %v4567
        %v4695 = vadd.f32 %v4555, %v4567
        %v4696 = vadd.f32 %v4558, %v4567
        %v4697 = vld [vmem:[%s1612] sm:$0x1]
        %v4698 = vld [vmem:[%s1612 + $0x1] sm:$0x1]
        %v4699 = vld [vmem:[%s1612 + $0x2] sm:$0x1]
        %v4700 = vld [vmem:[%s1612 + $0x3] sm:$0x1]
        %v4701 = vld [vmem:[%s1612 + $0x4] sm:$0x1]
        %v4702 = vld [vmem:[%s1612 + $0x5] sm:$0x1]
        %v4703 = vld [vmem:[%s1612 + $0x6] sm:$0x1]
        %v4704 = vld [vmem:[%s1612 + $0x7] sm:$0x1]
        %s4705 = smul.u32 %s35, 128
        %v4706 = vlaneseq
        %v4707 = vand.u32 %v4706, 127
        %v4708 = vstv %s4705
        %v4709 = vadd.s32 %v4708, %v4707
        %4710 = vset.pattern.permute.xlu0 0
        %4711 = vperm.xlu0 %4710, %v4697
        %v4712 = vpop.permute.xlu0 %4711
        %v4713 = vlaneseq
        %v4714 = vshrl.u32 %v4713, 7
        %v4715 = vsub.s32 0, %v4714
        %v4716 = vrot.slane %v4712, %v4715
        %4717 = vset.pattern.permute.xlu0 0
        %4718 = vperm.xlu0 %4717, %v4698
        %v4719 = vpop.permute.xlu0 %4718
        %v4720 = vlaneseq
        %v4721 = vshrl.u32 %v4720, 7
        %v4722 = vsub.s32 0, %v4721
        %v4723 = vrot.slane %v4719, %v4722
        %4724 = vset.pattern.permute.xlu0 0
        %4725 = vperm.xlu0 %4724, %v4699
        %v4726 = vpop.permute.xlu0 %4725
        %v4727 = vlaneseq
        %v4728 = vshrl.u32 %v4727, 7
        %v4729 = vsub.s32 0, %v4728
        %v4730 = vrot.slane %v4726, %v4729
        %4731 = vset.pattern.permute.xlu0 0
        %4732 = vperm.xlu0 %4731, %v4700
        %v4733 = vpop.permute.xlu0 %4732
        %v4734 = vlaneseq
        %v4735 = vshrl.u32 %v4734, 7
        %v4736 = vsub.s32 0, %v4735
        %v4737 = vrot.slane %v4733, %v4736
        %4738 = vset.pattern.permute.xlu0 0
        %4739 = vperm.xlu0 %4738, %v4701
        %v4740 = vpop.permute.xlu0 %4739
        %v4741 = vlaneseq
        %v4742 = vshrl.u32 %v4741, 7
        %v4743 = vsub.s32 0, %v4742
        %v4744 = vrot.slane %v4740, %v4743
        %4745 = vset.pattern.permute.xlu0 0
        %4746 = vperm.xlu0 %4745, %v4702
        %v4747 = vpop.permute.xlu0 %4746
        %v4748 = vlaneseq
        %v4749 = vshrl.u32 %v4748, 7
        %v4750 = vsub.s32 0, %v4749
        %v4751 = vrot.slane %v4747, %v4750
        %4752 = vset.pattern.permute.xlu0 0
        %4753 = vperm.xlu0 %4752, %v4703
        %v4754 = vpop.permute.xlu0 %4753
        %v4755 = vlaneseq
        %v4756 = vshrl.u32 %v4755, 7
        %v4757 = vsub.s32 0, %v4756
        %v4758 = vrot.slane %v4754, %v4757
        %4759 = vset.pattern.permute.xlu0 0
        %4760 = vperm.xlu0 %4759, %v4704
        %v4761 = vpop.permute.xlu0 %4760
        %v4762 = vlaneseq
        %v4763 = vshrl.u32 %v4762, 7
        %v4764 = vsub.s32 0, %v4763
        %v4765 = vrot.slane %v4761, %v4764
        %v4766 = vcombine.low %v4716, %v4723
        %v4767 = vcombine.low %v4730, %v4737
        %v4768 = vcombine.low %v4744, %v4751
        %v4769 = vcombine.low %v4758, %v4765
        %v4771 = vunpack.c.l.s4 1966171168
        %v4772 = vunpack.c.0.s8 %v4771
        %v4773 = vlaneseq
        %v4774 = vshrl.u32 %v4773, 7
        %v4775 = vsub.s32 %v4772, %v4774
        %v4776 = vrot.slane %v4766, %v4775
        %v4778 = vunpack.c.l.s4 1966171168
        %v4779 = vunpack.c.0.s8 %v4778
        %v4780 = vlaneseq
        %v4781 = vshrl.u32 %v4780, 7
        %v4782 = vsub.s32 %v4779, %v4781
        %v4783 = vrot.slane %v4767, %v4782
        %v4785 = vunpack.c.l.s4 1966171168
        %v4786 = vunpack.c.0.s8 %v4785
        %v4787 = vlaneseq
        %v4788 = vshrl.u32 %v4787, 7
        %v4789 = vsub.s32 %v4786, %v4788
        %v4790 = vrot.slane %v4768, %v4789
        %v4792 = vunpack.c.l.s4 1966171168
        %v4793 = vunpack.c.0.s8 %v4792
        %v4794 = vlaneseq
        %v4795 = vshrl.u32 %v4794, 7
        %v4796 = vsub.s32 %v4793, %v4795
        %v4797 = vrot.slane %v4769, %v4796
        %v4798 = vcombine.low %v4776, %v4783
        %v4799 = vcombine.low %v4790, %v4797
        %v4801 = vunpack.c.l.s4 1966171168
        %v4802 = vunpack.c.0.s8 %v4801
        %v4803 = vlaneseq
        %v4804 = vshrl.u32 %v4803, 7
        %v4805 = vsub.s32 %v4802, %v4804
        %v4806 = vrot.slane %v4798, %v4805
        %v4808 = vunpack.c.l.s4 1966171168
        %v4809 = vunpack.c.0.s8 %v4808
        %v4810 = vlaneseq
        %v4811 = vshrl.u32 %v4810, 7
        %v4812 = vsub.s32 %v4809, %v4811
        %v4813 = vrot.slane %v4799, %v4812
        %v4814 = vcombine.low %v4806, %v4813
        %vm4815 = vcmp.lt.s32.totalorder %v4709, %v4814
        %v4816 = vmul.f32 %v4569, 2.0
        %v4817 = vmul.f32 %v4570, 2.0
        %v4818 = vmul.f32 %v4571, 2.0
        %v4819 = vmul.f32 %v4572, 2.0
        %v4820 = vmul.f32 %v4573, 2.0
        %v4821 = vmul.f32 %v4574, 2.0
        %v4822 = vmul.f32 %v4575, 2.0
        %v4823 = vmul.f32 %v4576, 2.0
        %v4824 = vmul.f32 %v4577, 2.0
        %v4825 = vmul.f32 %v4578, 2.0
        %v4826 = vmul.f32 %v4579, 2.0
        %v4827 = vmul.f32 %v4580, 2.0
        %v4828 = vmul.f32 %v4581, 2.0
        %v4829 = vmul.f32 %v4582, 2.0
        %v4830 = vmul.f32 %v4583, 2.0
        %v4831 = vmul.f32 %v4584, 2.0
        %v4832 = vmul.f32 %v4585, 2.0
        %v4833 = vmul.f32 %v4586, 2.0
        %v4834 = vmul.f32 %v4587, 2.0
        %v4835 = vmul.f32 %v4588, 2.0
        %v4836 = vmul.f32 %v4589, 2.0
        %v4837 = vmul.f32 %v4590, 2.0
        %v4838 = vmul.f32 %v4591, 2.0
        %v4839 = vmul.f32 %v4592, 2.0
        %v4840 = vmul.f32 %v4593, 2.0
        %v4841 = vmul.f32 %v4594, 2.0
        %v4842 = vmul.f32 %v4595, 2.0
        %v4843 = vmul.f32 %v4596, 2.0
        %v4844 = vmul.f32 %v4597, 2.0
        %v4845 = vmul.f32 %v4598, 2.0
        %v4846 = vmul.f32 %v4599, 2.0
        %v4847 = vmul.f32 %v4600, 2.0
        %v4848 = vmul.f32 %v4601, 2.0
        %v4849 = vmul.f32 %v4602, 2.0
        %v4850 = vmul.f32 %v4603, 2.0
        %v4851 = vmul.f32 %v4604, 2.0
        %v4852 = vmul.f32 %v4605, 2.0
        %v4853 = vmul.f32 %v4606, 2.0
        %v4854 = vmul.f32 %v4607, 2.0
        %v4855 = vmul.f32 %v4608, 2.0
        %v4856 = vmul.f32 %v4609, 2.0
        %v4857 = vmul.f32 %v4610, 2.0
        %v4858 = vmul.f32 %v4611, 2.0
        %v4859 = vmul.f32 %v4612, 2.0
        %v4860 = vmul.f32 %v4613, 2.0
        %v4861 = vmul.f32 %v4614, 2.0
        %v4862 = vmul.f32 %v4615, 2.0
        %v4863 = vmul.f32 %v4616, 2.0
        %v4864 = vmul.f32 %v4617, 2.0
        %v4865 = vmul.f32 %v4618, 2.0
        %v4866 = vmul.f32 %v4619, 2.0
        %v4867 = vmul.f32 %v4620, 2.0
        %v4868 = vmul.f32 %v4621, 2.0
        %v4869 = vmul.f32 %v4622, 2.0
        %v4870 = vmul.f32 %v4623, 2.0
        %v4871 = vmul.f32 %v4624, 2.0
        %v4872 = vmul.f32 %v4625, 2.0
        %v4873 = vmul.f32 %v4626, 2.0
        %v4874 = vmul.f32 %v4627, 2.0
        %v4875 = vmul.f32 %v4628, 2.0
        %v4876 = vmul.f32 %v4629, 2.0
        %v4877 = vmul.f32 %v4630, 2.0
        %v4878 = vmul.f32 %v4631, 2.0
        %v4879 = vmul.f32 %v4632, 2.0
        %v4880 = vmul.f32 %v4633, 2.0
        %v4881 = vmul.f32 %v4634, 2.0
        %v4882 = vmul.f32 %v4635, 2.0
        %v4883 = vmul.f32 %v4636, 2.0
        %v4884 = vmul.f32 %v4637, 2.0
        %v4885 = vmul.f32 %v4638, 2.0
        %v4886 = vmul.f32 %v4639, 2.0
        %v4887 = vmul.f32 %v4640, 2.0
        %v4888 = vmul.f32 %v4641, 2.0
        %v4889 = vmul.f32 %v4642, 2.0
        %v4890 = vmul.f32 %v4643, 2.0
        %v4891 = vmul.f32 %v4644, 2.0
        %v4892 = vmul.f32 %v4645, 2.0
        %v4893 = vmul.f32 %v4646, 2.0
        %v4894 = vmul.f32 %v4647, 2.0
        %v4895 = vmul.f32 %v4648, 2.0
        %v4896 = vmul.f32 %v4649, 2.0
        %v4897 = vmul.f32 %v4650, 2.0
        %v4898 = vmul.f32 %v4651, 2.0
        %v4899 = vmul.f32 %v4652, 2.0
        %v4900 = vmul.f32 %v4653, 2.0
        %v4901 = vmul.f32 %v4654, 2.0
        %v4902 = vmul.f32 %v4655, 2.0
        %v4903 = vmul.f32 %v4656, 2.0
        %v4904 = vmul.f32 %v4657, 2.0
        %v4905 = vmul.f32 %v4658, 2.0
        %v4906 = vmul.f32 %v4659, 2.0
        %v4907 = vmul.f32 %v4660, 2.0
        %v4908 = vmul.f32 %v4661, 2.0
        %v4909 = vmul.f32 %v4662, 2.0
        %v4910 = vmul.f32 %v4663, 2.0
        %v4911 = vmul.f32 %v4664, 2.0
        %v4912 = vmul.f32 %v4665, 2.0
        %v4913 = vmul.f32 %v4666, 2.0
        %v4914 = vmul.f32 %v4667, 2.0
        %v4915 = vmul.f32 %v4668, 2.0
        %v4916 = vmul.f32 %v4669, 2.0
        %v4917 = vmul.f32 %v4670, 2.0
        %v4918 = vmul.f32 %v4671, 2.0
        %v4919 = vmul.f32 %v4672, 2.0
        %v4920 = vmul.f32 %v4673, 2.0
        %v4921 = vmul.f32 %v4674, 2.0
        %v4922 = vmul.f32 %v4675, 2.0
        %v4923 = vmul.f32 %v4676, 2.0
        %v4924 = vmul.f32 %v4677, 2.0
        %v4925 = vmul.f32 %v4678, 2.0
        %v4926 = vmul.f32 %v4679, 2.0
        %v4927 = vmul.f32 %v4680, 2.0
        %v4928 = vmul.f32 %v4681, 2.0
        %v4929 = vmul.f32 %v4682, 2.0
        %v4930 = vmul.f32 %v4683, 2.0
        %v4931 = vmul.f32 %v4684, 2.0
        %v4932 = vmul.f32 %v4685, 2.0
        %v4933 = vmul.f32 %v4686, 2.0
        %v4934 = vmul.f32 %v4687, 2.0
        %v4935 = vmul.f32 %v4688, 2.0
        %v4936 = vmul.f32 %v4689, 2.0
        %v4937 = vmul.f32 %v4690, 2.0
        %v4938 = vmul.f32 %v4691, 2.0
        %v4939 = vmul.f32 %v4692, 2.0
        %v4940 = vmul.f32 %v4693, 2.0
        %v4941 = vmul.f32 %v4694, 2.0
        %v4942 = vmul.f32 %v4695, 2.0
        %v4943 = vmul.f32 %v4696, 2.0
        %v5072 = vlaneseq
        %v5073 = vshrl.u32 %v5072, 7
        %v5074 = vsub.s32 %v4707, %v5073
        %v5075 = vrot.slane %v4816, %v5074
        %v5076 = vadd.s32 %v4707, 4294967288
        %v5077 = vlaneseq
        %v5078 = vshrl.u32 %v5077, 7
        %v5079 = vsub.s32 %v5076, %v5078
        %v5080 = vrot.slane %v4817, %v5079
        %vm5081 = vcmask 130112
        %v5082 = vsel %vm5081, %v5080, %v5075
        %v5083 = vadd.s32 %v4707, 4294967280
        %v5084 = vlaneseq
        %v5085 = vshrl.u32 %v5084, 7
        %v5086 = vsub.s32 %v5083, %v5085
        %v5087 = vrot.slane %v4818, %v5086
        %vm5088 = vcmask 195712
        %v5089 = vsel %vm5088, %v5087, %v5082
        %v5090 = vadd.s32 %v4707, 4294967272
        %v5091 = vlaneseq
        %v5092 = vshrl.u32 %v5091, 7
        %v5093 = vsub.s32 %v5090, %v5092
        %v5094 = vrot.slane %v4819, %v5093
        %vm5095 = vcmask 261312
        %v5096 = vsel %vm5095, %v5094, %v5089
        %v5097 = vadd.s32 %v4707, 4294967264
        %v5098 = vlaneseq
        %v5099 = vshrl.u32 %v5098, 7
        %v5100 = vsub.s32 %v5097, %v5099
        %v5101 = vrot.slane %v4820, %v5100
        %vm5102 = vcmask 326912
        %v5103 = vsel %vm5102, %v5101, %v5096
        %v5104 = vadd.s32 %v4707, 4294967256
        %v5105 = vlaneseq
        %v5106 = vshrl.u32 %v5105, 7
        %v5107 = vsub.s32 %v5104, %v5106
        %v5108 = vrot.slane %v4821, %v5107
        %vm5109 = vcmask 392512
        %v5110 = vsel %vm5109, %v5108, %v5103
        %v5111 = vadd.s32 %v4707, 4294967248
        %v5112 = vlaneseq
        %v5113 = vshrl.u32 %v5112, 7
        %v5114 = vsub.s32 %v5111, %v5113
        %v5115 = vrot.slane %v4822, %v5114
        %vm5116 = vcmask 458112
        %v5117 = vsel %vm5116, %v5115, %v5110
        %v5118 = vadd.s32 %v4707, 4294967240
        %v5119 = vlaneseq
        %v5120 = vshrl.u32 %v5119, 7
        %v5121 = vsub.s32 %v5118, %v5120
        %v5122 = vrot.slane %v4823, %v5121
        %vm5123 = vcmask 523712
        %v5124 = vsel %vm5123, %v5122, %v5117
        %v5125 = vadd.s32 %v4707, 4294967232
        %v5126 = vlaneseq
        %v5127 = vshrl.u32 %v5126, 7
        %v5128 = vsub.s32 %v5125, %v5127
        %v5129 = vrot.slane %v4824, %v5128
        %vm5130 = vcmask 589312
        %v5131 = vsel %vm5130, %v5129, %v5124
        %v5132 = vadd.s32 %v4707, 4294967224
        %v5133 = vlaneseq
        %v5134 = vshrl.u32 %v5133, 7
        %v5135 = vsub.s32 %v5132, %v5134
        %v5136 = vrot.slane %v4825, %v5135
        %vm5137 = vcmask 654912
        %v5138 = vsel %vm5137, %v5136, %v5131
        %v5139 = vadd.s32 %v4707, 4294967216
        %v5140 = vlaneseq
        %v5141 = vshrl.u32 %v5140, 7
        %v5142 = vsub.s32 %v5139, %v5141
        %v5143 = vrot.slane %v4826, %v5142
        %vm5144 = vcmask 720512
        %v5145 = vsel %vm5144, %v5143, %v5138
        %v5146 = vadd.s32 %v4707, 4294967208
        %v5147 = vlaneseq
        %v5148 = vshrl.u32 %v5147, 7
        %v5149 = vsub.s32 %v5146, %v5148
        %v5150 = vrot.slane %v4827, %v5149
        %vm5151 = vcmask 786112
        %v5152 = vsel %vm5151, %v5150, %v5145
        %v5153 = vadd.s32 %v4707, 4294967200
        %v5154 = vlaneseq
        %v5155 = vshrl.u32 %v5154, 7
        %v5156 = vsub.s32 %v5153, %v5155
        %v5157 = vrot.slane %v4828, %v5156
        %vm5158 = vcmask 851712
        %v5159 = vsel %vm5158, %v5157, %v5152
        %v5160 = vadd.s32 %v4707, 4294967192
        %v5161 = vlaneseq
        %v5162 = vshrl.u32 %v5161, 7
        %v5163 = vsub.s32 %v5160, %v5162
        %v5164 = vrot.slane %v4829, %v5163
        %vm5165 = vcmask 917312
        %v5166 = vsel %vm5165, %v5164, %v5159
        %v5167 = vadd.s32 %v4707, 4294967184
        %v5168 = vlaneseq
        %v5169 = vshrl.u32 %v5168, 7
        %v5170 = vsub.s32 %v5167, %v5169
        %v5171 = vrot.slane %v4830, %v5170
        %vm5172 = vcmask 982912
        %v5173 = vsel %vm5172, %v5171, %v5166
        %v5174 = vadd.s32 %v4707, 4294967176
        %v5175 = vlaneseq
        %v5176 = vshrl.u32 %v5175, 7
        %v5177 = vsub.s32 %v5174, %v5176
        %v5178 = vrot.slane %v4831, %v5177
        %vm5179 = vcmask 1048512
        %v5180 = vsel %vm5179, %v5178, %v5173
        %v5181 = vlaneseq
        %v5182 = vshrl.u32 %v5181, 7
        %v5183 = vsub.s32 %v4707, %v5182
        %v5184 = vrot.slane %v4832, %v5183
        %v5185 = vlaneseq
        %v5186 = vshrl.u32 %v5185, 7
        %v5187 = vsub.s32 %v5076, %v5186
        %v5188 = vrot.slane %v4833, %v5187
        %v5189 = vsel %vm5081, %v5188, %v5184
        %v5190 = vlaneseq
        %v5191 = vshrl.u32 %v5190, 7
        %v5192 = vsub.s32 %v5083, %v5191
        %v5193 = vrot.slane %v4834, %v5192
        %v5194 = vsel %vm5088, %v5193, %v5189
        %v5195 = vlaneseq
        %v5196 = vshrl.u32 %v5195, 7
        %v5197 = vsub.s32 %v5090, %v5196
        %v5198 = vrot.slane %v4835, %v5197
        %v5199 = vsel %vm5095, %v5198, %v5194
        %v5200 = vlaneseq
        %v5201 = vshrl.u32 %v5200, 7
        %v5202 = vsub.s32 %v5097, %v5201
        %v5203 = vrot.slane %v4836, %v5202
        %v5204 = vsel %vm5102, %v5203, %v5199
        %v5205 = vlaneseq
        %v5206 = vshrl.u32 %v5205, 7
        %v5207 = vsub.s32 %v5104, %v5206
        %v5208 = vrot.slane %v4837, %v5207
        %v5209 = vsel %vm5109, %v5208, %v5204
        %v5210 = vlaneseq
        %v5211 = vshrl.u32 %v5210, 7
        %v5212 = vsub.s32 %v5111, %v5211
        %v5213 = vrot.slane %v4838, %v5212
        %v5214 = vsel %vm5116, %v5213, %v5209
        %v5215 = vlaneseq
        %v5216 = vshrl.u32 %v5215, 7
        %v5217 = vsub.s32 %v5118, %v5216
        %v5218 = vrot.slane %v4839, %v5217
        %v5219 = vsel %vm5123, %v5218, %v5214
        %v5220 = vlaneseq
        %v5221 = vshrl.u32 %v5220, 7
        %v5222 = vsub.s32 %v5125, %v5221
        %v5223 = vrot.slane %v4840, %v5222
        %v5224 = vsel %vm5130, %v5223, %v5219
        %v5225 = vlaneseq
        %v5226 = vshrl.u32 %v5225, 7
        %v5227 = vsub.s32 %v5132, %v5226
        %v5228 = vrot.slane %v4841, %v5227
        %v5229 = vsel %vm5137, %v5228, %v5224
        %v5230 = vlaneseq
        %v5231 = vshrl.u32 %v5230, 7
        %v5232 = vsub.s32 %v5139, %v5231
        %v5233 = vrot.slane %v4842, %v5232
        %v5234 = vsel %vm5144, %v5233, %v5229
        %v5235 = vlaneseq
        %v5236 = vshrl.u32 %v5235, 7
        %v5237 = vsub.s32 %v5146, %v5236
        %v5238 = vrot.slane %v4843, %v5237
        %v5239 = vsel %vm5151, %v5238, %v5234
        %v5240 = vlaneseq
        %v5241 = vshrl.u32 %v5240, 7
        %v5242 = vsub.s32 %v5153, %v5241
        %v5243 = vrot.slane %v4844, %v5242
        %v5244 = vsel %vm5158, %v5243, %v5239
        %v5245 = vlaneseq
        %v5246 = vshrl.u32 %v5245, 7
        %v5247 = vsub.s32 %v5160, %v5246
        %v5248 = vrot.slane %v4845, %v5247
        %v5249 = vsel %vm5165, %v5248, %v5244
        %v5250 = vlaneseq
        %v5251 = vshrl.u32 %v5250, 7
        %v5252 = vsub.s32 %v5167, %v5251
        %v5253 = vrot.slane %v4846, %v5252
        %v5254 = vsel %vm5172, %v5253, %v5249
        %v5255 = vlaneseq
        %v5256 = vshrl.u32 %v5255, 7
        %v5257 = vsub.s32 %v5174, %v5256
        %v5258 = vrot.slane %v4847, %v5257
        %v5259 = vsel %vm5179, %v5258, %v5254
        %v5260 = vlaneseq
        %v5261 = vshrl.u32 %v5260, 7
        %v5262 = vsub.s32 %v4707, %v5261
        %v5263 = vrot.slane %v4848, %v5262
        %v5264 = vlaneseq
        %v5265 = vshrl.u32 %v5264, 7
        %v5266 = vsub.s32 %v5076, %v5265
        %v5267 = vrot.slane %v4849, %v5266
        %v5268 = vsel %vm5081, %v5267, %v5263
        %v5269 = vlaneseq
        %v5270 = vshrl.u32 %v5269, 7
        %v5271 = vsub.s32 %v5083, %v5270
        %v5272 = vrot.slane %v4850, %v5271
        %v5273 = vsel %vm5088, %v5272, %v5268
        %v5274 = vlaneseq
        %v5275 = vshrl.u32 %v5274, 7
        %v5276 = vsub.s32 %v5090, %v5275
        %v5277 = vrot.slane %v4851, %v5276
        %v5278 = vsel %vm5095, %v5277, %v5273
        %v5279 = vlaneseq
        %v5280 = vshrl.u32 %v5279, 7
        %v5281 = vsub.s32 %v5097, %v5280
        %v5282 = vrot.slane %v4852, %v5281
        %v5283 = vsel %vm5102, %v5282, %v5278
        %v5284 = vlaneseq
        %v5285 = vshrl.u32 %v5284, 7
        %v5286 = vsub.s32 %v5104, %v5285
        %v5287 = vrot.slane %v4853, %v5286
        %v5288 = vsel %vm5109, %v5287, %v5283
        %v5289 = vlaneseq
        %v5290 = vshrl.u32 %v5289, 7
        %v5291 = vsub.s32 %v5111, %v5290
        %v5292 = vrot.slane %v4854, %v5291
        %v5293 = vsel %vm5116, %v5292, %v5288
        %v5294 = vlaneseq
        %v5295 = vshrl.u32 %v5294, 7
        %v5296 = vsub.s32 %v5118, %v5295
        %v5297 = vrot.slane %v4855, %v5296
        %v5298 = vsel %vm5123, %v5297, %v5293
        %v5299 = vlaneseq
        %v5300 = vshrl.u32 %v5299, 7
        %v5301 = vsub.s32 %v5125, %v5300
        %v5302 = vrot.slane %v4856, %v5301
        %v5303 = vsel %vm5130, %v5302, %v5298
        %v5304 = vlaneseq
        %v5305 = vshrl.u32 %v5304, 7
        %v5306 = vsub.s32 %v5132, %v5305
        %v5307 = vrot.slane %v4857, %v5306
        %v5308 = vsel %vm5137, %v5307, %v5303
        %v5309 = vlaneseq
        %v5310 = vshrl.u32 %v5309, 7
        %v5311 = vsub.s32 %v5139, %v5310
        %v5312 = vrot.slane %v4858, %v5311
        %v5313 = vsel %vm5144, %v5312, %v5308
        %v5314 = vlaneseq
        %v5315 = vshrl.u32 %v5314, 7
        %v5316 = vsub.s32 %v5146, %v5315
        %v5317 = vrot.slane %v4859, %v5316
        %v5318 = vsel %vm5151, %v5317, %v5313
        %v5319 = vlaneseq
        %v5320 = vshrl.u32 %v5319, 7
        %v5321 = vsub.s32 %v5153, %v5320
        %v5322 = vrot.slane %v4860, %v5321
        %v5323 = vsel %vm5158, %v5322, %v5318
        %v5324 = vlaneseq
        %v5325 = vshrl.u32 %v5324, 7
        %v5326 = vsub.s32 %v5160, %v5325
        %v5327 = vrot.slane %v4861, %v5326
        %v5328 = vsel %vm5165, %v5327, %v5323
        %v5329 = vlaneseq
        %v5330 = vshrl.u32 %v5329, 7
        %v5331 = vsub.s32 %v5167, %v5330
        %v5332 = vrot.slane %v4862, %v5331
        %v5333 = vsel %vm5172, %v5332, %v5328
        %v5334 = vlaneseq
        %v5335 = vshrl.u32 %v5334, 7
        %v5336 = vsub.s32 %v5174, %v5335
        %v5337 = vrot.slane %v4863, %v5336
        %v5338 = vsel %vm5179, %v5337, %v5333
        %v5339 = vlaneseq
        %v5340 = vshrl.u32 %v5339, 7
        %v5341 = vsub.s32 %v4707, %v5340
        %v5342 = vrot.slane %v4864, %v5341
        %v5343 = vlaneseq
        %v5344 = vshrl.u32 %v5343, 7
        %v5345 = vsub.s32 %v5076, %v5344
        %v5346 = vrot.slane %v4865, %v5345
        %v5347 = vsel %vm5081, %v5346, %v5342
        %v5348 = vlaneseq
        %v5349 = vshrl.u32 %v5348, 7
        %v5350 = vsub.s32 %v5083, %v5349
        %v5351 = vrot.slane %v4866, %v5350
        %v5352 = vsel %vm5088, %v5351, %v5347
        %v5353 = vlaneseq
        %v5354 = vshrl.u32 %v5353, 7
        %v5355 = vsub.s32 %v5090, %v5354
        %v5356 = vrot.slane %v4867, %v5355
        %v5357 = vsel %vm5095, %v5356, %v5352
        %v5358 = vlaneseq
        %v5359 = vshrl.u32 %v5358, 7
        %v5360 = vsub.s32 %v5097, %v5359
        %v5361 = vrot.slane %v4868, %v5360
        %v5362 = vsel %vm5102, %v5361, %v5357
        %v5363 = vlaneseq
        %v5364 = vshrl.u32 %v5363, 7
        %v5365 = vsub.s32 %v5104, %v5364
        %v5366 = vrot.slane %v4869, %v5365
        %v5367 = vsel %vm5109, %v5366, %v5362
        %v5368 = vlaneseq
        %v5369 = vshrl.u32 %v5368, 7
        %v5370 = vsub.s32 %v5111, %v5369
        %v5371 = vrot.slane %v4870, %v5370
        %v5372 = vsel %vm5116, %v5371, %v5367
        %v5373 = vlaneseq
        %v5374 = vshrl.u32 %v5373, 7
        %v5375 = vsub.s32 %v5118, %v5374
        %v5376 = vrot.slane %v4871, %v5375
        %v5377 = vsel %vm5123, %v5376, %v5372
        %v5378 = vlaneseq
        %v5379 = vshrl.u32 %v5378, 7
        %v5380 = vsub.s32 %v5125, %v5379
        %v5381 = vrot.slane %v4872, %v5380
        %v5382 = vsel %vm5130, %v5381, %v5377
        %v5383 = vlaneseq
        %v5384 = vshrl.u32 %v5383, 7
        %v5385 = vsub.s32 %v5132, %v5384
        %v5386 = vrot.slane %v4873, %v5385
        %v5387 = vsel %vm5137, %v5386, %v5382
        %v5388 = vlaneseq
        %v5389 = vshrl.u32 %v5388, 7
        %v5390 = vsub.s32 %v5139, %v5389
        %v5391 = vrot.slane %v4874, %v5390
        %v5392 = vsel %vm5144, %v5391, %v5387
        %v5393 = vlaneseq
        %v5394 = vshrl.u32 %v5393, 7
        %v5395 = vsub.s32 %v5146, %v5394
        %v5396 = vrot.slane %v4875, %v5395
        %v5397 = vsel %vm5151, %v5396, %v5392
        %v5398 = vlaneseq
        %v5399 = vshrl.u32 %v5398, 7
        %v5400 = vsub.s32 %v5153, %v5399
        %v5401 = vrot.slane %v4876, %v5400
        %v5402 = vsel %vm5158, %v5401, %v5397
        %v5403 = vlaneseq
        %v5404 = vshrl.u32 %v5403, 7
        %v5405 = vsub.s32 %v5160, %v5404
        %v5406 = vrot.slane %v4877, %v5405
        %v5407 = vsel %vm5165, %v5406, %v5402
        %v5408 = vlaneseq
        %v5409 = vshrl.u32 %v5408, 7
        %v5410 = vsub.s32 %v5167, %v5409
        %v5411 = vrot.slane %v4878, %v5410
        %v5412 = vsel %vm5172, %v5411, %v5407
        %v5413 = vlaneseq
        %v5414 = vshrl.u32 %v5413, 7
        %v5415 = vsub.s32 %v5174, %v5414
        %v5416 = vrot.slane %v4879, %v5415
        %v5417 = vsel %vm5179, %v5416, %v5412
        %v5418 = vlaneseq
        %v5419 = vshrl.u32 %v5418, 7
        %v5420 = vsub.s32 %v4707, %v5419
        %v5421 = vrot.slane %v4880, %v5420
        %v5422 = vlaneseq
        %v5423 = vshrl.u32 %v5422, 7
        %v5424 = vsub.s32 %v5076, %v5423
        %v5425 = vrot.slane %v4881, %v5424
        %v5426 = vsel %vm5081, %v5425, %v5421
        %v5427 = vlaneseq
        %v5428 = vshrl.u32 %v5427, 7
        %v5429 = vsub.s32 %v5083, %v5428
        %v5430 = vrot.slane %v4882, %v5429
        %v5431 = vsel %vm5088, %v5430, %v5426
        %v5432 = vlaneseq
        %v5433 = vshrl.u32 %v5432, 7
        %v5434 = vsub.s32 %v5090, %v5433
        %v5435 = vrot.slane %v4883, %v5434
        %v5436 = vsel %vm5095, %v5435, %v5431
        %v5437 = vlaneseq
        %v5438 = vshrl.u32 %v5437, 7
        %v5439 = vsub.s32 %v5097, %v5438
        %v5440 = vrot.slane %v4884, %v5439
        %v5441 = vsel %vm5102, %v5440, %v5436
        %v5442 = vlaneseq
        %v5443 = vshrl.u32 %v5442, 7
        %v5444 = vsub.s32 %v5104, %v5443
        %v5445 = vrot.slane %v4885, %v5444
        %v5446 = vsel %vm5109, %v5445, %v5441
        %v5447 = vlaneseq
        %v5448 = vshrl.u32 %v5447, 7
        %v5449 = vsub.s32 %v5111, %v5448
        %v5450 = vrot.slane %v4886, %v5449
        %v5451 = vsel %vm5116, %v5450, %v5446
        %v5452 = vlaneseq
        %v5453 = vshrl.u32 %v5452, 7
        %v5454 = vsub.s32 %v5118, %v5453
        %v5455 = vrot.slane %v4887, %v5454
        %v5456 = vsel %vm5123, %v5455, %v5451
        %v5457 = vlaneseq
        %v5458 = vshrl.u32 %v5457, 7
        %v5459 = vsub.s32 %v5125, %v5458
        %v5460 = vrot.slane %v4888, %v5459
        %v5461 = vsel %vm5130, %v5460, %v5456
        %v5462 = vlaneseq
        %v5463 = vshrl.u32 %v5462, 7
        %v5464 = vsub.s32 %v5132, %v5463
        %v5465 = vrot.slane %v4889, %v5464
        %v5466 = vsel %vm5137, %v5465, %v5461
        %v5467 = vlaneseq
        %v5468 = vshrl.u32 %v5467, 7
        %v5469 = vsub.s32 %v5139, %v5468
        %v5470 = vrot.slane %v4890, %v5469
        %v5471 = vsel %vm5144, %v5470, %v5466
        %v5472 = vlaneseq
        %v5473 = vshrl.u32 %v5472, 7
        %v5474 = vsub.s32 %v5146, %v5473
        %v5475 = vrot.slane %v4891, %v5474
        %v5476 = vsel %vm5151, %v5475, %v5471
        %v5477 = vlaneseq
        %v5478 = vshrl.u32 %v5477, 7
        %v5479 = vsub.s32 %v5153, %v5478
        %v5480 = vrot.slane %v4892, %v5479
        %v5481 = vsel %vm5158, %v5480, %v5476
        %v5482 = vlaneseq
        %v5483 = vshrl.u32 %v5482, 7
        %v5484 = vsub.s32 %v5160, %v5483
        %v5485 = vrot.slane %v4893, %v5484
        %v5486 = vsel %vm5165, %v5485, %v5481
        %v5487 = vlaneseq
        %v5488 = vshrl.u32 %v5487, 7
        %v5489 = vsub.s32 %v5167, %v5488
        %v5490 = vrot.slane %v4894, %v5489
        %v5491 = vsel %vm5172, %v5490, %v5486
        %v5492 = vlaneseq
        %v5493 = vshrl.u32 %v5492, 7
        %v5494 = vsub.s32 %v5174, %v5493
        %v5495 = vrot.slane %v4895, %v5494
        %v5496 = vsel %vm5179, %v5495, %v5491
        %v5497 = vlaneseq
        %v5498 = vshrl.u32 %v5497, 7
        %v5499 = vsub.s32 %v4707, %v5498
        %v5500 = vrot.slane %v4896, %v5499
        %v5501 = vlaneseq
        %v5502 = vshrl.u32 %v5501, 7
        %v5503 = vsub.s32 %v5076, %v5502
        %v5504 = vrot.slane %v4897, %v5503
        %v5505 = vsel %vm5081, %v5504, %v5500
        %v5506 = vlaneseq
        %v5507 = vshrl.u32 %v5506, 7
        %v5508 = vsub.s32 %v5083, %v5507
        %v5509 = vrot.slane %v4898, %v5508
        %v5510 = vsel %vm5088, %v5509, %v5505
        %v5511 = vlaneseq
        %v5512 = vshrl.u32 %v5511, 7
        %v5513 = vsub.s32 %v5090, %v5512
        %v5514 = vrot.slane %v4899, %v5513
        %v5515 = vsel %vm5095, %v5514, %v5510
        %v5516 = vlaneseq
        %v5517 = vshrl.u32 %v5516, 7
        %v5518 = vsub.s32 %v5097, %v5517
        %v5519 = vrot.slane %v4900, %v5518
        %v5520 = vsel %vm5102, %v5519, %v5515
        %v5521 = vlaneseq
        %v5522 = vshrl.u32 %v5521, 7
        %v5523 = vsub.s32 %v5104, %v5522
        %v5524 = vrot.slane %v4901, %v5523
        %v5525 = vsel %vm5109, %v5524, %v5520
        %v5526 = vlaneseq
        %v5527 = vshrl.u32 %v5526, 7
        %v5528 = vsub.s32 %v5111, %v5527
        %v5529 = vrot.slane %v4902, %v5528
        %v5530 = vsel %vm5116, %v5529, %v5525
        %v5531 = vlaneseq
        %v5532 = vshrl.u32 %v5531, 7
        %v5533 = vsub.s32 %v5118, %v5532
        %v5534 = vrot.slane %v4903, %v5533
        %v5535 = vsel %vm5123, %v5534, %v5530
        %v5536 = vlaneseq
        %v5537 = vshrl.u32 %v5536, 7
        %v5538 = vsub.s32 %v5125, %v5537
        %v5539 = vrot.slane %v4904, %v5538
        %v5540 = vsel %vm5130, %v5539, %v5535
        %v5541 = vlaneseq
        %v5542 = vshrl.u32 %v5541, 7
        %v5543 = vsub.s32 %v5132, %v5542
        %v5544 = vrot.slane %v4905, %v5543
        %v5545 = vsel %vm5137, %v5544, %v5540
        %v5546 = vlaneseq
        %v5547 = vshrl.u32 %v5546, 7
        %v5548 = vsub.s32 %v5139, %v5547
        %v5549 = vrot.slane %v4906, %v5548
        %v5550 = vsel %vm5144, %v5549, %v5545
        %v5551 = vlaneseq
        %v5552 = vshrl.u32 %v5551, 7
        %v5553 = vsub.s32 %v5146, %v5552
        %v5554 = vrot.slane %v4907, %v5553
        %v5555 = vsel %vm5151, %v5554, %v5550
        %v5556 = vlaneseq
        %v5557 = vshrl.u32 %v5556, 7
        %v5558 = vsub.s32 %v5153, %v5557
        %v5559 = vrot.slane %v4908, %v5558
        %v5560 = vsel %vm5158, %v5559, %v5555
        %v5561 = vlaneseq
        %v5562 = vshrl.u32 %v5561, 7
        %v5563 = vsub.s32 %v5160, %v5562
        %v5564 = vrot.slane %v4909, %v5563
        %v5565 = vsel %vm5165, %v5564, %v5560
        %v5566 = vlaneseq
        %v5567 = vshrl.u32 %v5566, 7
        %v5568 = vsub.s32 %v5167, %v5567
        %v5569 = vrot.slane %v4910, %v5568
        %v5570 = vsel %vm5172, %v5569, %v5565
        %v5571 = vlaneseq
        %v5572 = vshrl.u32 %v5571, 7
        %v5573 = vsub.s32 %v5174, %v5572
        %v5574 = vrot.slane %v4911, %v5573
        %v5575 = vsel %vm5179, %v5574, %v5570
        %v5576 = vlaneseq
        %v5577 = vshrl.u32 %v5576, 7
        %v5578 = vsub.s32 %v4707, %v5577
        %v5579 = vrot.slane %v4912, %v5578
        %v5580 = vlaneseq
        %v5581 = vshrl.u32 %v5580, 7
        %v5582 = vsub.s32 %v5076, %v5581
        %v5583 = vrot.slane %v4913, %v5582
        %v5584 = vsel %vm5081, %v5583, %v5579
        %v5585 = vlaneseq
        %v5586 = vshrl.u32 %v5585, 7
        %v5587 = vsub.s32 %v5083, %v5586
        %v5588 = vrot.slane %v4914, %v5587
        %v5589 = vsel %vm5088, %v5588, %v5584
        %v5590 = vlaneseq
        %v5591 = vshrl.u32 %v5590, 7
        %v5592 = vsub.s32 %v5090, %v5591
        %v5593 = vrot.slane %v4915, %v5592
        %v5594 = vsel %vm5095, %v5593, %v5589
        %v5595 = vlaneseq
        %v5596 = vshrl.u32 %v5595, 7
        %v5597 = vsub.s32 %v5097, %v5596
        %v5598 = vrot.slane %v4916, %v5597
        %v5599 = vsel %vm5102, %v5598, %v5594
        %v5600 = vlaneseq
        %v5601 = vshrl.u32 %v5600, 7
        %v5602 = vsub.s32 %v5104, %v5601
        %v5603 = vrot.slane %v4917, %v5602
        %v5604 = vsel %vm5109, %v5603, %v5599
        %v5605 = vlaneseq
        %v5606 = vshrl.u32 %v5605, 7
        %v5607 = vsub.s32 %v5111, %v5606
        %v5608 = vrot.slane %v4918, %v5607
        %v5609 = vsel %vm5116, %v5608, %v5604
        %v5610 = vlaneseq
        %v5611 = vshrl.u32 %v5610, 7
        %v5612 = vsub.s32 %v5118, %v5611
        %v5613 = vrot.slane %v4919, %v5612
        %v5614 = vsel %vm5123, %v5613, %v5609
        %v5615 = vlaneseq
        %v5616 = vshrl.u32 %v5615, 7
        %v5617 = vsub.s32 %v5125, %v5616
        %v5618 = vrot.slane %v4920, %v5617
        %v5619 = vsel %vm5130, %v5618, %v5614
        %v5620 = vlaneseq
        %v5621 = vshrl.u32 %v5620, 7
        %v5622 = vsub.s32 %v5132, %v5621
        %v5623 = vrot.slane %v4921, %v5622
        %v5624 = vsel %vm5137, %v5623, %v5619
        %v5625 = vlaneseq
        %v5626 = vshrl.u32 %v5625, 7
        %v5627 = vsub.s32 %v5139, %v5626
        %v5628 = vrot.slane %v4922, %v5627
        %v5629 = vsel %vm5144, %v5628, %v5624
        %v5630 = vlaneseq
        %v5631 = vshrl.u32 %v5630, 7
        %v5632 = vsub.s32 %v5146, %v5631
        %v5633 = vrot.slane %v4923, %v5632
        %v5634 = vsel %vm5151, %v5633, %v5629
        %v5635 = vlaneseq
        %v5636 = vshrl.u32 %v5635, 7
        %v5637 = vsub.s32 %v5153, %v5636
        %v5638 = vrot.slane %v4924, %v5637
        %v5639 = vsel %vm5158, %v5638, %v5634
        %v5640 = vlaneseq
        %v5641 = vshrl.u32 %v5640, 7
        %v5642 = vsub.s32 %v5160, %v5641
        %v5643 = vrot.slane %v4925, %v5642
        %v5644 = vsel %vm5165, %v5643, %v5639
        %v5645 = vlaneseq
        %v5646 = vshrl.u32 %v5645, 7
        %v5647 = vsub.s32 %v5167, %v5646
        %v5648 = vrot.slane %v4926, %v5647
        %v5649 = vsel %vm5172, %v5648, %v5644
        %v5650 = vlaneseq
        %v5651 = vshrl.u32 %v5650, 7
        %v5652 = vsub.s32 %v5174, %v5651
        %v5653 = vrot.slane %v4927, %v5652
        %v5654 = vsel %vm5179, %v5653, %v5649
        %v5655 = vlaneseq
        %v5656 = vshrl.u32 %v5655, 7
        %v5657 = vsub.s32 %v4707, %v5656
        %v5658 = vrot.slane %v4928, %v5657
        %v5659 = vlaneseq
        %v5660 = vshrl.u32 %v5659, 7
        %v5661 = vsub.s32 %v5076, %v5660
        %v5662 = vrot.slane %v4929, %v5661
        %v5663 = vsel %vm5081, %v5662, %v5658
        %v5664 = vlaneseq
        %v5665 = vshrl.u32 %v5664, 7
        %v5666 = vsub.s32 %v5083, %v5665
        %v5667 = vrot.slane %v4930, %v5666
        %v5668 = vsel %vm5088, %v5667, %v5663
        %v5669 = vlaneseq
        %v5670 = vshrl.u32 %v5669, 7
        %v5671 = vsub.s32 %v5090, %v5670
        %v5672 = vrot.slane %v4931, %v5671
        %v5673 = vsel %vm5095, %v5672, %v5668
        %v5674 = vlaneseq
        %v5675 = vshrl.u32 %v5674, 7
        %v5676 = vsub.s32 %v5097, %v5675
        %v5677 = vrot.slane %v4932, %v5676
        %v5678 = vsel %vm5102, %v5677, %v5673
        %v5679 = vlaneseq
        %v5680 = vshrl.u32 %v5679, 7
        %v5681 = vsub.s32 %v5104, %v5680
        %v5682 = vrot.slane %v4933, %v5681
        %v5683 = vsel %vm5109, %v5682, %v5678
        %v5684 = vlaneseq
        %v5685 = vshrl.u32 %v5684, 7
        %v5686 = vsub.s32 %v5111, %v5685
        %v5687 = vrot.slane %v4934, %v5686
        %v5688 = vsel %vm5116, %v5687, %v5683
        %v5689 = vlaneseq
        %v5690 = vshrl.u32 %v5689, 7
        %v5691 = vsub.s32 %v5118, %v5690
        %v5692 = vrot.slane %v4935, %v5691
        %v5693 = vsel %vm5123, %v5692, %v5688
        %v5694 = vlaneseq
        %v5695 = vshrl.u32 %v5694, 7
        %v5696 = vsub.s32 %v5125, %v5695
        %v5697 = vrot.slane %v4936, %v5696
        %v5698 = vsel %vm5130, %v5697, %v5693
        %v5699 = vlaneseq
        %v5700 = vshrl.u32 %v5699, 7
        %v5701 = vsub.s32 %v5132, %v5700
        %v5702 = vrot.slane %v4937, %v5701
        %v5703 = vsel %vm5137, %v5702, %v5698
        %v5704 = vlaneseq
        %v5705 = vshrl.u32 %v5704, 7
        %v5706 = vsub.s32 %v5139, %v5705
        %v5707 = vrot.slane %v4938, %v5706
        %v5708 = vsel %vm5144, %v5707, %v5703
        %v5709 = vlaneseq
        %v5710 = vshrl.u32 %v5709, 7
        %v5711 = vsub.s32 %v5146, %v5710
        %v5712 = vrot.slane %v4939, %v5711
        %v5713 = vsel %vm5151, %v5712, %v5708
        %v5714 = vlaneseq
        %v5715 = vshrl.u32 %v5714, 7
        %v5716 = vsub.s32 %v5153, %v5715
        %v5717 = vrot.slane %v4940, %v5716
        %v5718 = vsel %vm5158, %v5717, %v5713
        %v5719 = vlaneseq
        %v5720 = vshrl.u32 %v5719, 7
        %v5721 = vsub.s32 %v5160, %v5720
        %v5722 = vrot.slane %v4941, %v5721
        %v5723 = vsel %vm5165, %v5722, %v5718
        %v5724 = vlaneseq
        %v5725 = vshrl.u32 %v5724, 7
        %v5726 = vsub.s32 %v5167, %v5725
        %v5727 = vrot.slane %v4942, %v5726
        %v5728 = vsel %vm5172, %v5727, %v5723
        %v5729 = vlaneseq
        %v5730 = vshrl.u32 %v5729, 7
        %v5731 = vsub.s32 %v5174, %v5730
        %v5732 = vrot.slane %v4943, %v5731
        %v5733 = vsel %vm5179, %v5732, %v5728
        %vm5734 = vcmask 1041409
        %v5735 = vsel %vm5734, %v5259, %v5180
        %vm5736 = vcmask 1042434
        %v5737 = vsel %vm5736, %v5338, %v5735
        %vm5738 = vcmask 1043459
        %v5739 = vsel %vm5738, %v5417, %v5737
        %vm5740 = vcmask 1044484
        %v5741 = vsel %vm5740, %v5496, %v5739
        %vm5742 = vcmask 1045509
        %v5743 = vsel %vm5742, %v5575, %v5741
        %vm5744 = vcmask 1046534
        %v5745 = vsel %vm5744, %v5654, %v5743
        %vm5746 = vcmask 1047559
        %v5747 = vsel %vm5746, %v5733, %v5745
        %v5749 = vsel %vm4815, %v5747, -1e+30
        %v5750 = vld [vmem:[#allocation2] sm:$0xff]
        %5751 = vmax.xlane.f32.xlu0 %v5749
        %v5752 = vpop.xlane.xlu0 %5751
        %v5753 = vmax.f32 %v5750, %v5752
        %v5754 = vsub.f32 %v5750, %v5753
        %v5755 = vmul.f32 %v5754, 1.442695
        %v5756 = vpow.pop %v5755
        %5758 = vset.pattern.permute.xlu0 0
        %5759 = vperm.xlu0 %5758, %v5753
        %v5760 = vpop.permute.xlu0 %5759
        %v5762 = vsub.f32 %v5749, %v5760
        %v5763 = vmul.f32 %v5762, 1.442695
        %v5764 = vpow.pop %v5763
        %v5765 = vsel %vm4815, %v5764, 0.0
        %v5766 = vld [vmem:[#allocation14] sm:$0xff]
        %v5767 = vld [vmem:[#allocation14 + $0x8] sm:$0xff]
        %5769 = vset.pattern.permute.xlu0 0
        %5770 = vperm.xlu0 %5769, %v5756
        %v5771 = vpop.permute.xlu0 %5770
        %v5773 = vmul.f32 %v5766, %v5771
        %v5774 = vmul.f32 %v5767, %v5771
        %5775 = vst [vmem:[#allocation14] sm:$0xff] %v5773
        %5776 = vst [vmem:[#allocation14 + $0x8] sm:$0xff] %v5774
        %s5777 = smul.u32 %s35, 8
        %s5778 = scalar_lea.vmem [#allocation14], %s5777
        %5779 = vst [vmem:[%s5778] sm:$0xff] %v5765
        %v5780 = vld [vmem:[#allocation3] sm:$0xff]
        %v5781 = vmul.f32 %v5756, %v5780
        %5782 = vadd.xlane.f32.xlu0 %v5765
        %v5783 = vpop.xlane.xlu0 %5782
        %v5784 = vadd.f32 %v5781, %v5783
        %vm5785 = vcmask 7168
        %5786 = vst.msk [vmem:[#allocation3] sm:$0xff] %vm5785, %v5784
        %v5787 = vld [vmem:[#allocation4] sm:$0xff]
        %v5788 = vmul.f32 %v5771, %v5787
        %v5790 = vcombine.high %v5765, %v5765
        %v5792 = vunpack.c.l.s4 1966171168
        %v5793 = vunpack.c.0.s8 %v5792
        %v5794 = vlaneseq
        %v5795 = vshrl.u32 %v5794, 7
        %v5796 = vsub.s32 %v5793, %v5795
        %v5797 = vrot.slane %v5765, %v5796
        %v5799 = vunpack.c.l.s4 1966171168
        %v5800 = vunpack.c.0.s8 %v5799
        %v5801 = vlaneseq
        %v5802 = vshrl.u32 %v5801, 7
        %v5803 = vsub.s32 %v5800, %v5802
        %v5804 = vrot.slane %v5790, %v5803
        %v5805 = vcombine.high %v5797, %v5797
        %v5806 = vcombine.high %v5804, %v5804
        %v5808 = vunpack.c.l.s4 1966171168
        %v5809 = vunpack.c.0.s8 %v5808
        %v5810 = vlaneseq
        %v5811 = vshrl.u32 %v5810, 7
        %v5812 = vsub.s32 %v5809, %v5811
        %v5813 = vrot.slane %v5797, %v5812
        %v5815 = vunpack.c.l.s4 1966171168
        %v5816 = vunpack.c.0.s8 %v5815
        %v5817 = vlaneseq
        %v5818 = vshrl.u32 %v5817, 7
        %v5819 = vsub.s32 %v5816, %v5818
        %v5820 = vrot.slane %v5804, %v5819
        %v5822 = vunpack.c.l.s4 1966171168
        %v5823 = vunpack.c.0.s8 %v5822
        %v5824 = vlaneseq
        %v5825 = vshrl.u32 %v5824, 7
        %v5826 = vsub.s32 %v5823, %v5825
        %v5827 = vrot.slane %v5805, %v5826
        %v5829 = vunpack.c.l.s4 1966171168
        %v5830 = vunpack.c.0.s8 %v5829
        %v5831 = vlaneseq
        %v5832 = vshrl.u32 %v5831, 7
        %v5833 = vsub.s32 %v5830, %v5832
        %v5834 = vrot.slane %v5806, %v5833
        %v5835 = vcombine.high %v5813, %v5813
        %v5836 = vcombine.high %v5820, %v5820
        %v5837 = vcombine.high %v5827, %v5827
        %v5838 = vcombine.high %v5834, %v5834
        %v5847 = vld [vmem:[%s1539] sm:$0xff]
        %v5848 = vld [vmem:[%s1539 + $0x8] sm:$0xff]
        %v5849 = vld [vmem:[%s1539 + $0x10] sm:$0xff]
        %v5850 = vld [vmem:[%s1539 + $0x18] sm:$0xff]
        %v5851 = vld [vmem:[%s1539 + $0x20] sm:$0xff]
        %v5852 = vld [vmem:[%s1539 + $0x28] sm:$0xff]
        %v5853 = vld [vmem:[%s1539 + $0x30] sm:$0xff]
        %v5854 = vld [vmem:[%s1539 + $0x38] sm:$0xff]
        %v5855 = vld [vmem:[%s1539 + $0x40] sm:$0xff]
        %v5856 = vld [vmem:[%s1539 + $0x48] sm:$0xff]
        %v5857 = vld [vmem:[%s1539 + $0x50] sm:$0xff]
        %v5858 = vld [vmem:[%s1539 + $0x58] sm:$0xff]
        %v5859 = vld [vmem:[%s1539 + $0x60] sm:$0xff]
        %v5860 = vld [vmem:[%s1539 + $0x68] sm:$0xff]
        %v5861 = vld [vmem:[%s1539 + $0x70] sm:$0xff]
        %v5862 = vld [vmem:[%s1539 + $0x78] sm:$0xff]
        %v5863 = vld [vmem:[%s1539 + $0x80] sm:$0xff]
        %v5864 = vld [vmem:[%s1539 + $0x88] sm:$0xff]
        %v5865 = vld [vmem:[%s1539 + $0x90] sm:$0xff]
        %v5866 = vld [vmem:[%s1539 + $0x98] sm:$0xff]
        %v5867 = vld [vmem:[%s1539 + $0xa0] sm:$0xff]
        %v5868 = vld [vmem:[%s1539 + $0xa8] sm:$0xff]
        %v5869 = vld [vmem:[%s1539 + $0xb0] sm:$0xff]
        %v5870 = vld [vmem:[%s1539 + $0xb8] sm:$0xff]
        %v5871 = vld [vmem:[%s1539 + $0xc0] sm:$0xff]
        %v5872 = vld [vmem:[%s1539 + $0xc8] sm:$0xff]
        %v5873 = vld [vmem:[%s1539 + $0xd0] sm:$0xff]
        %v5874 = vld [vmem:[%s1539 + $0xd8] sm:$0xff]
        %v5875 = vld [vmem:[%s1539 + $0xe0] sm:$0xff]
        %v5876 = vld [vmem:[%s1539 + $0xe8] sm:$0xff]
        %v5877 = vld [vmem:[%s1539 + $0xf0] sm:$0xff]
        %v5878 = vld [vmem:[%s1539 + $0xf8] sm:$0xff]
        %v5879 = vld [vmem:[%s1539 + $0x100] sm:$0xff]
        %v5880 = vld [vmem:[%s1539 + $0x108] sm:$0xff]
        %v5881 = vld [vmem:[%s1539 + $0x110] sm:$0xff]
        %v5882 = vld [vmem:[%s1539 + $0x118] sm:$0xff]
        %v5883 = vld [vmem:[%s1539 + $0x120] sm:$0xff]
        %v5884 = vld [vmem:[%s1539 + $0x128] sm:$0xff]
        %v5885 = vld [vmem:[%s1539 + $0x130] sm:$0xff]
        %v5886 = vld [vmem:[%s1539 + $0x138] sm:$0xff]
        %v5887 = vld [vmem:[%s1539 + $0x140] sm:$0xff]
        %v5888 = vld [vmem:[%s1539 + $0x148] sm:$0xff]
        %v5889 = vld [vmem:[%s1539 + $0x150] sm:$0xff]
        %v5890 = vld [vmem:[%s1539 + $0x158] sm:$0xff]
        %v5891 = vld [vmem:[%s1539 + $0x160] sm:$0xff]
        %v5892 = vld [vmem:[%s1539 + $0x168] sm:$0xff]
        %v5893 = vld [vmem:[%s1539 + $0x170] sm:$0xff]
        %v5894 = vld [vmem:[%s1539 + $0x178] sm:$0xff]
        %v5895 = vld [vmem:[%s1539 + $0x180] sm:$0xff]
        %v5896 = vld [vmem:[%s1539 + $0x188] sm:$0xff]
        %v5897 = vld [vmem:[%s1539 + $0x190] sm:$0xff]
        %v5898 = vld [vmem:[%s1539 + $0x198] sm:$0xff]
        %v5899 = vld [vmem:[%s1539 + $0x1a0] sm:$0xff]
        %v5900 = vld [vmem:[%s1539 + $0x1a8] sm:$0xff]
        %v5901 = vld [vmem:[%s1539 + $0x1b0] sm:$0xff]
        %v5902 = vld [vmem:[%s1539 + $0x1b8] sm:$0xff]
        %v5903 = vld [vmem:[%s1539 + $0x1c0] sm:$0xff]
        %v5904 = vld [vmem:[%s1539 + $0x1c8] sm:$0xff]
        %v5905 = vld [vmem:[%s1539 + $0x1d0] sm:$0xff]
        %v5906 = vld [vmem:[%s1539 + $0x1d8] sm:$0xff]
        %v5907 = vld [vmem:[%s1539 + $0x1e0] sm:$0xff]
        %v5908 = vld [vmem:[%s1539 + $0x1e8] sm:$0xff]
        %v5909 = vld [vmem:[%s1539 + $0x1f0] sm:$0xff]
        %v5910 = vld [vmem:[%s1539 + $0x1f8] sm:$0xff]
        %v5911 = vld [vmem:[%s1539 + $0x200] sm:$0xff]
        %v5912 = vld [vmem:[%s1539 + $0x208] sm:$0xff]
        %v5913 = vld [vmem:[%s1539 + $0x210] sm:$0xff]
        %v5914 = vld [vmem:[%s1539 + $0x218] sm:$0xff]
        %v5915 = vld [vmem:[%s1539 + $0x220] sm:$0xff]
        %v5916 = vld [vmem:[%s1539 + $0x228] sm:$0xff]
        %v5917 = vld [vmem:[%s1539 + $0x230] sm:$0xff]
        %v5918 = vld [vmem:[%s1539 + $0x238] sm:$0xff]
        %v5919 = vld [vmem:[%s1539 + $0x240] sm:$0xff]
        %v5920 = vld [vmem:[%s1539 + $0x248] sm:$0xff]
        %v5921 = vld [vmem:[%s1539 + $0x250] sm:$0xff]
        %v5922 = vld [vmem:[%s1539 + $0x258] sm:$0xff]
        %v5923 = vld [vmem:[%s1539 + $0x260] sm:$0xff]
        %v5924 = vld [vmem:[%s1539 + $0x268] sm:$0xff]
        %v5925 = vld [vmem:[%s1539 + $0x270] sm:$0xff]
        %v5926 = vld [vmem:[%s1539 + $0x278] sm:$0xff]
        %v5927 = vld [vmem:[%s1539 + $0x280] sm:$0xff]
        %v5928 = vld [vmem:[%s1539 + $0x288] sm:$0xff]
        %v5929 = vld [vmem:[%s1539 + $0x290] sm:$0xff]
        %v5930 = vld [vmem:[%s1539 + $0x298] sm:$0xff]
        %v5931 = vld [vmem:[%s1539 + $0x2a0] sm:$0xff]
        %v5932 = vld [vmem:[%s1539 + $0x2a8] sm:$0xff]
        %v5933 = vld [vmem:[%s1539 + $0x2b0] sm:$0xff]
        %v5934 = vld [vmem:[%s1539 + $0x2b8] sm:$0xff]
        %v5935 = vld [vmem:[%s1539 + $0x2c0] sm:$0xff]
        %v5936 = vld [vmem:[%s1539 + $0x2c8] sm:$0xff]
        %v5937 = vld [vmem:[%s1539 + $0x2d0] sm:$0xff]
        %v5938 = vld [vmem:[%s1539 + $0x2d8] sm:$0xff]
        %v5939 = vld [vmem:[%s1539 + $0x2e0] sm:$0xff]
        %v5940 = vld [vmem:[%s1539 + $0x2e8] sm:$0xff]
        %v5941 = vld [vmem:[%s1539 + $0x2f0] sm:$0xff]
        %v5942 = vld [vmem:[%s1539 + $0x2f8] sm:$0xff]
        %v5943 = vld [vmem:[%s1539 + $0x300] sm:$0xff]
        %v5944 = vld [vmem:[%s1539 + $0x308] sm:$0xff]
        %v5945 = vld [vmem:[%s1539 + $0x310] sm:$0xff]
        %v5946 = vld [vmem:[%s1539 + $0x318] sm:$0xff]
        %v5947 = vld [vmem:[%s1539 + $0x320] sm:$0xff]
        %v5948 = vld [vmem:[%s1539 + $0x328] sm:$0xff]
        %v5949 = vld [vmem:[%s1539 + $0x330] sm:$0xff]
        %v5950 = vld [vmem:[%s1539 + $0x338] sm:$0xff]
        %v5951 = vld [vmem:[%s1539 + $0x340] sm:$0xff]
        %v5952 = vld [vmem:[%s1539 + $0x348] sm:$0xff]
        %v5953 = vld [vmem:[%s1539 + $0x350] sm:$0xff]
        %v5954 = vld [vmem:[%s1539 + $0x358] sm:$0xff]
        %v5955 = vld [vmem:[%s1539 + $0x360] sm:$0xff]
        %v5956 = vld [vmem:[%s1539 + $0x368] sm:$0xff]
        %v5957 = vld [vmem:[%s1539 + $0x370] sm:$0xff]
        %v5958 = vld [vmem:[%s1539 + $0x378] sm:$0xff]
        %v5959 = vld [vmem:[%s1539 + $0x380] sm:$0xff]
        %v5960 = vld [vmem:[%s1539 + $0x388] sm:$0xff]
        %v5961 = vld [vmem:[%s1539 + $0x390] sm:$0xff]
        %v5962 = vld [vmem:[%s1539 + $0x398] sm:$0xff]
        %v5963 = vld [vmem:[%s1539 + $0x3a0] sm:$0xff]
        %v5964 = vld [vmem:[%s1539 + $0x3a8] sm:$0xff]
        %v5965 = vld [vmem:[%s1539 + $0x3b0] sm:$0xff]
        %v5966 = vld [vmem:[%s1539 + $0x3b8] sm:$0xff]
        %v5967 = vld [vmem:[%s1539 + $0x3c0] sm:$0xff]
        %v5968 = vld [vmem:[%s1539 + $0x3c8] sm:$0xff]
        %v5969 = vld [vmem:[%s1539 + $0x3d0] sm:$0xff]
        %v5970 = vld [vmem:[%s1539 + $0x3d8] sm:$0xff]
        %v5971 = vld [vmem:[%s1539 + $0x3e0] sm:$0xff]
        %v5972 = vld [vmem:[%s1539 + $0x3e8] sm:$0xff]
        %v5973 = vld [vmem:[%s1539 + $0x3f0] sm:$0xff]
        %v5974 = vld [vmem:[%s1539 + $0x3f8] sm:$0xff]
        %5975 = vmatprep.subr.mxu0 0.0
        %5976 = vmatpush1.msra.mxu0 %v5862
        %5977 = vmatprep.subr.mxu0 0.0
        %5978 = vmatpush1.msra.mxu0 %v5861
        %5979 = vmatprep.subr.mxu0 0.0
        %5980 = vmatpush1.msra.mxu0 %v5860
        %5981 = vmatprep.subr.mxu0 0.0
        %5982 = vmatpush1.msra.mxu0 %v5859
        %5983 = vmatprep.subr.mxu0 0.0
        %5984 = vmatpush1.msra.mxu0 %v5858
        %5985 = vmatprep.subr.mxu0 0.0
        %5986 = vmatpush1.msra.mxu0 %v5857
        %5987 = vmatprep.subr.mxu0 0.0
        %5988 = vmatpush1.msra.mxu0 %v5856
        %5989 = vmatprep.subr.mxu0 0.0
        %5990 = vmatpush1.msra.mxu0 %v5855
        %5991 = vmatprep.subr.mxu0 0.0
        %5992 = vmatpush1.msra.mxu0 %v5854
        %5993 = vmatprep.subr.mxu0 0.0
        %5994 = vmatpush1.msra.mxu0 %v5853
        %5995 = vmatprep.subr.mxu0 0.0
        %5996 = vmatpush1.msra.mxu0 %v5852
        %5997 = vmatprep.subr.mxu0 0.0
        %5998 = vmatpush1.msra.mxu0 %v5851
        %5999 = vmatprep.subr.mxu0 0.0
        %6000 = vmatpush1.msra.mxu0 %v5850
        %6001 = vmatprep.subr.mxu0 0.0
        %6002 = vmatpush1.msra.mxu0 %v5849
        %6003 = vmatprep.subr.mxu0 0.0
        %6004 = vmatpush1.msra.mxu0 %v5848
        %6005 = vmatprep.subr.mxu0 0.0
        %6006 = vmatpush1.msra.mxu0 %v5847
        %6007 = vmatprep.subr.mxu0 0.0
        %6008 = vmatpush2.msra.mxu0 0.0
        %6009 = vmatprep.subr.mxu0 0.0
        %6010 = vmatpush2.msra.mxu0 0.0
        %6011 = vmatprep.subr.mxu0 0.0
        %6012 = vmatpush2.msra.mxu0 0.0
        %6013 = vmatprep.subr.mxu0 0.0
        %6014 = vmatpush2.msra.mxu0 0.0
        %6015 = vmatprep.subr.mxu0 0.0
        %6016 = vmatpush2.msra.mxu0 0.0
        %6017 = vmatprep.subr.mxu0 0.0
        %6018 = vmatpush2.msra.mxu0 0.0
        %6019 = vmatprep.subr.mxu0 0.0
        %6020 = vmatpush2.msra.mxu0 0.0
        %6021 = vmatprep.subr.mxu0 0.0
        %6022 = vmatpush2.msra.mxu0 0.0
        %6023 = vmatprep.subr.mxu0 0.0
        %6024 = vmatpush2.msra.mxu0 0.0
        %6025 = vmatprep.subr.mxu0 0.0
        %6026 = vmatpush2.msra.mxu0 0.0
        %6027 = vmatprep.subr.mxu0 0.0
        %6028 = vmatpush2.msra.mxu0 0.0
        %6029 = vmatprep.subr.mxu0 0.0
        %6030 = vmatpush2.msra.mxu0 0.0
        %6031 = vmatprep.subr.mxu0 0.0
        %6032 = vmatpush2.msra.mxu0 0.0
        %6033 = vmatprep.subr.mxu0 0.0
        %6034 = vmatpush2.msra.mxu0 0.0
        %6035 = vmatprep.subr.mxu0 0.0
        %6036 = vmatpush2.msra.mxu0 0.0
        %6037 = vmatprep.subr.mxu0 0.0
        %6038 = vmatpush2.msra.mxu0 0.0
        %6039 = vmatprep.mubr.f32.mxu0 0.0
        %6040 = vmatmul.mubr.f32.gmra.mxu0 %v5813
        %v6041 = vpop.f32.mrf.mxu0
        %v6042 = vadd.f32 0.0, %v6041
        %v6043 = vpop.f32.mrf.mxu0
        %6044 = vdwg.mxu0
        %6045 = vmatprep.subr.mxu0 0.0
        %6046 = vmatpush1.msra.mxu0 %v5878
        %6047 = vmatprep.subr.mxu0 0.0
        %6048 = vmatpush1.msra.mxu0 %v5877
        %6049 = vmatprep.subr.mxu0 0.0
        %6050 = vmatpush1.msra.mxu0 %v5876
        %6051 = vmatprep.subr.mxu0 0.0
        %6052 = vmatpush1.msra.mxu0 %v5875
        %6053 = vmatprep.subr.mxu0 0.0
        %6054 = vmatpush1.msra.mxu0 %v5874
        %6055 = vmatprep.subr.mxu0 0.0
        %6056 = vmatpush1.msra.mxu0 %v5873
        %6057 = vmatprep.subr.mxu0 0.0
        %6058 = vmatpush1.msra.mxu0 %v5872
        %6059 = vmatprep.subr.mxu0 0.0
        %6060 = vmatpush1.msra.mxu0 %v5871
        %6061 = vmatprep.subr.mxu0 0.0
        %6062 = vmatpush1.msra.mxu0 %v5870
        %6063 = vmatprep.subr.mxu0 0.0
        %6064 = vmatpush1.msra.mxu0 %v5869
        %6065 = vmatprep.subr.mxu0 0.0
        %6066 = vmatpush1.msra.mxu0 %v5868
        %6067 = vmatprep.subr.mxu0 0.0
        %6068 = vmatpush1.msra.mxu0 %v5867
        %6069 = vmatprep.subr.mxu0 0.0
        %6070 = vmatpush1.msra.mxu0 %v5866
        %6071 = vmatprep.subr.mxu0 0.0
        %6072 = vmatpush1.msra.mxu0 %v5865
        %6073 = vmatprep.subr.mxu0 0.0
        %6074 = vmatpush1.msra.mxu0 %v5864
        %6075 = vmatprep.subr.mxu0 0.0
        %6076 = vmatpush1.msra.mxu0 %v5863
        %6077 = vmatprep.subr.mxu0 0.0
        %6078 = vmatpush2.msra.mxu0 0.0
        %6079 = vmatprep.subr.mxu0 0.0
        %6080 = vmatpush2.msra.mxu0 0.0
        %6081 = vmatprep.subr.mxu0 0.0
        %6082 = vmatpush2.msra.mxu0 0.0
        %6083 = vmatprep.subr.mxu0 0.0
        %6084 = vmatpush2.msra.mxu0 0.0
        %6085 = vmatprep.subr.mxu0 0.0
        %6086 = vmatpush2.msra.mxu0 0.0
        %6087 = vmatprep.subr.mxu0 0.0
        %6088 = vmatpush2.msra.mxu0 0.0
        %6089 = vmatprep.subr.mxu0 0.0
        %6090 = vmatpush2.msra.mxu0 0.0
        %6091 = vmatprep.subr.mxu0 0.0
        %6092 = vmatpush2.msra.mxu0 0.0
        %6093 = vmatprep.subr.mxu0 0.0
        %6094 = vmatpush2.msra.mxu0 0.0
        %6095 = vmatprep.subr.mxu0 0.0
        %6096 = vmatpush2.msra.mxu0 0.0
        %6097 = vmatprep.subr.mxu0 0.0
        %6098 = vmatpush2.msra.mxu0 0.0
        %6099 = vmatprep.subr.mxu0 0.0
        %6100 = vmatpush2.msra.mxu0 0.0
        %6101 = vmatprep.subr.mxu0 0.0
        %6102 = vmatpush2.msra.mxu0 0.0
        %6103 = vmatprep.subr.mxu0 0.0
        %6104 = vmatpush2.msra.mxu0 0.0
        %6105 = vmatprep.subr.mxu0 0.0
        %6106 = vmatpush2.msra.mxu0 0.0
        %6107 = vmatprep.subr.mxu0 0.0
        %6108 = vmatpush2.msra.mxu0 0.0
        %6109 = vmatprep.mubr.f32.mxu0 0.0
        %6110 = vmatmul.mubr.f32.gmra.mxu0 %v5827
        %v6111 = vpop.f32.mrf.mxu0
        %v6112 = vadd.f32 0.0, %v6111
        %v6113 = vpop.f32.mrf.mxu0
        %6114 = vdwg.mxu0
        %6115 = vmatprep.subr.mxu0 0.0
        %6116 = vmatpush1.msra.mxu0 %v5894
        %6117 = vmatprep.subr.mxu0 0.0
        %6118 = vmatpush1.msra.mxu0 %v5893
        %6119 = vmatprep.subr.mxu0 0.0
        %6120 = vmatpush1.msra.mxu0 %v5892
        %6121 = vmatprep.subr.mxu0 0.0
        %6122 = vmatpush1.msra.mxu0 %v5891
        %6123 = vmatprep.subr.mxu0 0.0
        %6124 = vmatpush1.msra.mxu0 %v5890
        %6125 = vmatprep.subr.mxu0 0.0
        %6126 = vmatpush1.msra.mxu0 %v5889
        %6127 = vmatprep.subr.mxu0 0.0
        %6128 = vmatpush1.msra.mxu0 %v5888
        %6129 = vmatprep.subr.mxu0 0.0
        %6130 = vmatpush1.msra.mxu0 %v5887
        %6131 = vmatprep.subr.mxu0 0.0
        %6132 = vmatpush1.msra.mxu0 %v5886
        %6133 = vmatprep.subr.mxu0 0.0
        %6134 = vmatpush1.msra.mxu0 %v5885
        %6135 = vmatprep.subr.mxu0 0.0
        %6136 = vmatpush1.msra.mxu0 %v5884
        %6137 = vmatprep.subr.mxu0 0.0
        %6138 = vmatpush1.msra.mxu0 %v5883
        %6139 = vmatprep.subr.mxu0 0.0
        %6140 = vmatpush1.msra.mxu0 %v5882
        %6141 = vmatprep.subr.mxu0 0.0
        %6142 = vmatpush1.msra.mxu0 %v5881
        %6143 = vmatprep.subr.mxu0 0.0
        %6144 = vmatpush1.msra.mxu0 %v5880
        %6145 = vmatprep.subr.mxu0 0.0
        %6146 = vmatpush1.msra.mxu0 %v5879
        %6147 = vmatprep.subr.mxu0 0.0
        %6148 = vmatpush2.msra.mxu0 0.0
        %6149 = vmatprep.subr.mxu0 0.0
        %6150 = vmatpush2.msra.mxu0 0.0
        %6151 = vmatprep.subr.mxu0 0.0
        %6152 = vmatpush2.msra.mxu0 0.0
        %6153 = vmatprep.subr.mxu0 0.0
        %6154 = vmatpush2.msra.mxu0 0.0
        %6155 = vmatprep.subr.mxu0 0.0
        %6156 = vmatpush2.msra.mxu0 0.0
        %6157 = vmatprep.subr.mxu0 0.0
        %6158 = vmatpush2.msra.mxu0 0.0
        %6159 = vmatprep.subr.mxu0 0.0
        %6160 = vmatpush2.msra.mxu0 0.0
        %6161 = vmatprep.subr.mxu0 0.0
        %6162 = vmatpush2.msra.mxu0 0.0
        %6163 = vmatprep.subr.mxu0 0.0
        %6164 = vmatpush2.msra.mxu0 0.0
        %6165 = vmatprep.subr.mxu0 0.0
        %6166 = vmatpush2.msra.mxu0 0.0
        %6167 = vmatprep.subr.mxu0 0.0
        %6168 = vmatpush2.msra.mxu0 0.0
        %6169 = vmatprep.subr.mxu0 0.0
        %6170 = vmatpush2.msra.mxu0 0.0
        %6171 = vmatprep.subr.mxu0 0.0
        %6172 = vmatpush2.msra.mxu0 0.0
        %6173 = vmatprep.subr.mxu0 0.0
        %6174 = vmatpush2.msra.mxu0 0.0
        %6175 = vmatprep.subr.mxu0 0.0
        %6176 = vmatpush2.msra.mxu0 0.0
        %6177 = vmatprep.subr.mxu0 0.0
        %6178 = vmatpush2.msra.mxu0 0.0
        %6179 = vmatprep.mubr.f32.mxu0 0.0
        %6180 = vmatmul.mubr.f32.gmra.mxu0 %v5835
        %v6181 = vpop.f32.mrf.mxu0
        %v6182 = vadd.f32 0.0, %v6181
        %v6183 = vpop.f32.mrf.mxu0
        %6184 = vdwg.mxu0
        %6185 = vmatprep.subr.mxu0 0.0
        %6186 = vmatpush1.msra.mxu0 %v5910
        %6187 = vmatprep.subr.mxu0 0.0
        %6188 = vmatpush1.msra.mxu0 %v5909
        %6189 = vmatprep.subr.mxu0 0.0
        %6190 = vmatpush1.msra.mxu0 %v5908
        %6191 = vmatprep.subr.mxu0 0.0
        %6192 = vmatpush1.msra.mxu0 %v5907
        %6193 = vmatprep.subr.mxu0 0.0
        %6194 = vmatpush1.msra.mxu0 %v5906
        %6195 = vmatprep.subr.mxu0 0.0
        %6196 = vmatpush1.msra.mxu0 %v5905
        %6197 = vmatprep.subr.mxu0 0.0
        %6198 = vmatpush1.msra.mxu0 %v5904
        %6199 = vmatprep.subr.mxu0 0.0
        %6200 = vmatpush1.msra.mxu0 %v5903
        %6201 = vmatprep.subr.mxu0 0.0
        %6202 = vmatpush1.msra.mxu0 %v5902
        %6203 = vmatprep.subr.mxu0 0.0
        %6204 = vmatpush1.msra.mxu0 %v5901
        %6205 = vmatprep.subr.mxu0 0.0
        %6206 = vmatpush1.msra.mxu0 %v5900
        %6207 = vmatprep.subr.mxu0 0.0
        %6208 = vmatpush1.msra.mxu0 %v5899
        %6209 = vmatprep.subr.mxu0 0.0
        %6210 = vmatpush1.msra.mxu0 %v5898
        %6211 = vmatprep.subr.mxu0 0.0
        %6212 = vmatpush1.msra.mxu0 %v5897
        %6213 = vmatprep.subr.mxu0 0.0
        %6214 = vmatpush1.msra.mxu0 %v5896
        %6215 = vmatprep.subr.mxu0 0.0
        %6216 = vmatpush1.msra.mxu0 %v5895
        %6217 = vmatprep.subr.mxu0 0.0
        %6218 = vmatpush2.msra.mxu0 0.0
        %6219 = vmatprep.subr.mxu0 0.0
        %6220 = vmatpush2.msra.mxu0 0.0
        %6221 = vmatprep.subr.mxu0 0.0
        %6222 = vmatpush2.msra.mxu0 0.0
        %6223 = vmatprep.subr.mxu0 0.0
        %6224 = vmatpush2.msra.mxu0 0.0
        %6225 = vmatprep.subr.mxu0 0.0
        %6226 = vmatpush2.msra.mxu0 0.0
        %6227 = vmatprep.subr.mxu0 0.0
        %6228 = vmatpush2.msra.mxu0 0.0
        %6229 = vmatprep.subr.mxu0 0.0
        %6230 = vmatpush2.msra.mxu0 0.0
        %6231 = vmatprep.subr.mxu0 0.0
        %6232 = vmatpush2.msra.mxu0 0.0
        %6233 = vmatprep.subr.mxu0 0.0
        %6234 = vmatpush2.msra.mxu0 0.0
        %6235 = vmatprep.subr.mxu0 0.0
        %6236 = vmatpush2.msra.mxu0 0.0
        %6237 = vmatprep.subr.mxu0 0.0
        %6238 = vmatpush2.msra.mxu0 0.0
        %6239 = vmatprep.subr.mxu0 0.0
        %6240 = vmatpush2.msra.mxu0 0.0
        %6241 = vmatprep.subr.mxu0 0.0
        %6242 = vmatpush2.msra.mxu0 0.0
        %6243 = vmatprep.subr.mxu0 0.0
        %6244 = vmatpush2.msra.mxu0 0.0
        %6245 = vmatprep.subr.mxu0 0.0
        %6246 = vmatpush2.msra.mxu0 0.0
        %6247 = vmatprep.subr.mxu0 0.0
        %6248 = vmatpush2.msra.mxu0 0.0
        %6249 = vmatprep.mubr.f32.mxu0 0.0
        %6250 = vmatmul.mubr.f32.gmra.mxu0 %v5837
        %v6251 = vpop.f32.mrf.mxu0
        %v6252 = vadd.f32 0.0, %v6251
        %v6253 = vpop.f32.mrf.mxu0
        %6254 = vdwg.mxu0
        %6255 = vmatprep.subr.mxu0 0.0
        %6256 = vmatpush1.msra.mxu0 %v5926
        %6257 = vmatprep.subr.mxu0 0.0
        %6258 = vmatpush1.msra.mxu0 %v5925
        %6259 = vmatprep.subr.mxu0 0.0
        %6260 = vmatpush1.msra.mxu0 %v5924
        %6261 = vmatprep.subr.mxu0 0.0
        %6262 = vmatpush1.msra.mxu0 %v5923
        %6263 = vmatprep.subr.mxu0 0.0
        %6264 = vmatpush1.msra.mxu0 %v5922
        %6265 = vmatprep.subr.mxu0 0.0
        %6266 = vmatpush1.msra.mxu0 %v5921
        %6267 = vmatprep.subr.mxu0 0.0
        %6268 = vmatpush1.msra.mxu0 %v5920
        %6269 = vmatprep.subr.mxu0 0.0
        %6270 = vmatpush1.msra.mxu0 %v5919
        %6271 = vmatprep.subr.mxu0 0.0
        %6272 = vmatpush1.msra.mxu0 %v5918
        %6273 = vmatprep.subr.mxu0 0.0
        %6274 = vmatpush1.msra.mxu0 %v5917
        %6275 = vmatprep.subr.mxu0 0.0
        %6276 = vmatpush1.msra.mxu0 %v5916
        %6277 = vmatprep.subr.mxu0 0.0
        %6278 = vmatpush1.msra.mxu0 %v5915
        %6279 = vmatprep.subr.mxu0 0.0
        %6280 = vmatpush1.msra.mxu0 %v5914
        %6281 = vmatprep.subr.mxu0 0.0
        %6282 = vmatpush1.msra.mxu0 %v5913
        %6283 = vmatprep.subr.mxu0 0.0
        %6284 = vmatpush1.msra.mxu0 %v5912
        %6285 = vmatprep.subr.mxu0 0.0
        %6286 = vmatpush1.msra.mxu0 %v5911
        %6287 = vmatprep.subr.mxu0 0.0
        %6288 = vmatpush2.msra.mxu0 0.0
        %6289 = vmatprep.subr.mxu0 0.0
        %6290 = vmatpush2.msra.mxu0 0.0
        %6291 = vmatprep.subr.mxu0 0.0
        %6292 = vmatpush2.msra.mxu0 0.0
        %6293 = vmatprep.subr.mxu0 0.0
        %6294 = vmatpush2.msra.mxu0 0.0
        %6295 = vmatprep.subr.mxu0 0.0
        %6296 = vmatpush2.msra.mxu0 0.0
        %6297 = vmatprep.subr.mxu0 0.0
        %6298 = vmatpush2.msra.mxu0 0.0
        %6299 = vmatprep.subr.mxu0 0.0
        %6300 = vmatpush2.msra.mxu0 0.0
        %6301 = vmatprep.subr.mxu0 0.0
        %6302 = vmatpush2.msra.mxu0 0.0
        %6303 = vmatprep.subr.mxu0 0.0
        %6304 = vmatpush2.msra.mxu0 0.0
        %6305 = vmatprep.subr.mxu0 0.0
        %6306 = vmatpush2.msra.mxu0 0.0
        %6307 = vmatprep.subr.mxu0 0.0
        %6308 = vmatpush2.msra.mxu0 0.0
        %6309 = vmatprep.subr.mxu0 0.0
        %6310 = vmatpush2.msra.mxu0 0.0
        %6311 = vmatprep.subr.mxu0 0.0
        %6312 = vmatpush2.msra.mxu0 0.0
        %6313 = vmatprep.subr.mxu0 0.0
        %6314 = vmatpush2.msra.mxu0 0.0
        %6315 = vmatprep.subr.mxu0 0.0
        %6316 = vmatpush2.msra.mxu0 0.0
        %6317 = vmatprep.subr.mxu0 0.0
        %6318 = vmatpush2.msra.mxu0 0.0
        %6319 = vmatprep.mubr.f32.mxu0 0.0
        %6320 = vmatmul.mubr.f32.gmra.mxu0 %v5820
        %v6321 = vpop.f32.mrf.mxu0
        %v6322 = vadd.f32 0.0, %v6321
        %v6323 = vpop.f32.mrf.mxu0
        %6324 = vdwg.mxu0
        %6325 = vmatprep.subr.mxu0 0.0
        %6326 = vmatpush1.msra.mxu0 %v5942
        %6327 = vmatprep.subr.mxu0 0.0
        %6328 = vmatpush1.msra.mxu0 %v5941
        %6329 = vmatprep.subr.mxu0 0.0
        %6330 = vmatpush1.msra.mxu0 %v5940
        %6331 = vmatprep.subr.mxu0 0.0
        %6332 = vmatpush1.msra.mxu0 %v5939
        %6333 = vmatprep.subr.mxu0 0.0
        %6334 = vmatpush1.msra.mxu0 %v5938
        %6335 = vmatprep.subr.mxu0 0.0
        %6336 = vmatpush1.msra.mxu0 %v5937
        %6337 = vmatprep.subr.mxu0 0.0
        %6338 = vmatpush1.msra.mxu0 %v5936
        %6339 = vmatprep.subr.mxu0 0.0
        %6340 = vmatpush1.msra.mxu0 %v5935
        %6341 = vmatprep.subr.mxu0 0.0
        %6342 = vmatpush1.msra.mxu0 %v5934
        %6343 = vmatprep.subr.mxu0 0.0
        %6344 = vmatpush1.msra.mxu0 %v5933
        %6345 = vmatprep.subr.mxu0 0.0
        %6346 = vmatpush1.msra.mxu0 %v5932
        %6347 = vmatprep.subr.mxu0 0.0
        %6348 = vmatpush1.msra.mxu0 %v5931
        %6349 = vmatprep.subr.mxu0 0.0
        %6350 = vmatpush1.msra.mxu0 %v5930
        %6351 = vmatprep.subr.mxu0 0.0
        %6352 = vmatpush1.msra.mxu0 %v5929
        %6353 = vmatprep.subr.mxu0 0.0
        %6354 = vmatpush1.msra.mxu0 %v5928
        %6355 = vmatprep.subr.mxu0 0.0
        %6356 = vmatpush1.msra.mxu0 %v5927
        %6357 = vmatprep.subr.mxu0 0.0
        %6358 = vmatpush2.msra.mxu0 0.0
        %6359 = vmatprep.subr.mxu0 0.0
        %6360 = vmatpush2.msra.mxu0 0.0
        %6361 = vmatprep.subr.mxu0 0.0
        %6362 = vmatpush2.msra.mxu0 0.0
        %6363 = vmatprep.subr.mxu0 0.0
        %6364 = vmatpush2.msra.mxu0 0.0
        %6365 = vmatprep.subr.mxu0 0.0
        %6366 = vmatpush2.msra.mxu0 0.0
        %6367 = vmatprep.subr.mxu0 0.0
        %6368 = vmatpush2.msra.mxu0 0.0
        %6369 = vmatprep.subr.mxu0 0.0
        %6370 = vmatpush2.msra.mxu0 0.0
        %6371 = vmatprep.subr.mxu0 0.0
        %6372 = vmatpush2.msra.mxu0 0.0
        %6373 = vmatprep.subr.mxu0 0.0
        %6374 = vmatpush2.msra.mxu0 0.0
        %6375 = vmatprep.subr.mxu0 0.0
        %6376 = vmatpush2.msra.mxu0 0.0
        %6377 = vmatprep.subr.mxu0 0.0
        %6378 = vmatpush2.msra.mxu0 0.0
        %6379 = vmatprep.subr.mxu0 0.0
        %6380 = vmatpush2.msra.mxu0 0.0
        %6381 = vmatprep.subr.mxu0 0.0
        %6382 = vmatpush2.msra.mxu0 0.0
        %6383 = vmatprep.subr.mxu0 0.0
        %6384 = vmatpush2.msra.mxu0 0.0
        %6385 = vmatprep.subr.mxu0 0.0
        %6386 = vmatpush2.msra.mxu0 0.0
        %6387 = vmatprep.subr.mxu0 0.0
        %6388 = vmatpush2.msra.mxu0 0.0
        %6389 = vmatprep.mubr.f32.mxu0 0.0
        %6390 = vmatmul.mubr.f32.gmra.mxu0 %v5834
        %v6391 = vpop.f32.mrf.mxu0
        %v6392 = vadd.f32 0.0, %v6391
        %v6393 = vpop.f32.mrf.mxu0
        %6394 = vdwg.mxu0
        %6395 = vmatprep.subr.mxu0 0.0
        %6396 = vmatpush1.msra.mxu0 %v5958
        %6397 = vmatprep.subr.mxu0 0.0
        %6398 = vmatpush1.msra.mxu0 %v5957
        %6399 = vmatprep.subr.mxu0 0.0
        %6400 = vmatpush1.msra.mxu0 %v5956
        %6401 = vmatprep.subr.mxu0 0.0
        %6402 = vmatpush1.msra.mxu0 %v5955
        %6403 = vmatprep.subr.mxu0 0.0
        %6404 = vmatpush1.msra.mxu0 %v5954
        %6405 = vmatprep.subr.mxu0 0.0
        %6406 = vmatpush1.msra.mxu0 %v5953
        %6407 = vmatprep.subr.mxu0 0.0
        %6408 = vmatpush1.msra.mxu0 %v5952
        %6409 = vmatprep.subr.mxu0 0.0
        %6410 = vmatpush1.msra.mxu0 %v5951
        %6411 = vmatprep.subr.mxu0 0.0
        %6412 = vmatpush1.msra.mxu0 %v5950
        %6413 = vmatprep.subr.mxu0 0.0
        %6414 = vmatpush1.msra.mxu0 %v5949
        %6415 = vmatprep.subr.mxu0 0.0
        %6416 = vmatpush1.msra.mxu0 %v5948
        %6417 = vmatprep.subr.mxu0 0.0
        %6418 = vmatpush1.msra.mxu0 %v5947
        %6419 = vmatprep.subr.mxu0 0.0
        %6420 = vmatpush1.msra.mxu0 %v5946
        %6421 = vmatprep.subr.mxu0 0.0
        %6422 = vmatpush1.msra.mxu0 %v5945
        %6423 = vmatprep.subr.mxu0 0.0
        %6424 = vmatpush1.msra.mxu0 %v5944
        %6425 = vmatprep.subr.mxu0 0.0
        %6426 = vmatpush1.msra.mxu0 %v5943
        %6427 = vmatprep.subr.mxu0 0.0
        %6428 = vmatpush2.msra.mxu0 0.0
        %6429 = vmatprep.subr.mxu0 0.0
        %6430 = vmatpush2.msra.mxu0 0.0
        %6431 = vmatprep.subr.mxu0 0.0
        %6432 = vmatpush2.msra.mxu0 0.0
        %6433 = vmatprep.subr.mxu0 0.0
        %6434 = vmatpush2.msra.mxu0 0.0
        %6435 = vmatprep.subr.mxu0 0.0
        %6436 = vmatpush2.msra.mxu0 0.0
        %6437 = vmatprep.subr.mxu0 0.0
        %6438 = vmatpush2.msra.mxu0 0.0
        %6439 = vmatprep.subr.mxu0 0.0
        %6440 = vmatpush2.msra.mxu0 0.0
        %6441 = vmatprep.subr.mxu0 0.0
        %6442 = vmatpush2.msra.mxu0 0.0
        %6443 = vmatprep.subr.mxu0 0.0
        %6444 = vmatpush2.msra.mxu0 0.0
        %6445 = vmatprep.subr.mxu0 0.0
        %6446 = vmatpush2.msra.mxu0 0.0
        %6447 = vmatprep.subr.mxu0 0.0
        %6448 = vmatpush2.msra.mxu0 0.0
        %6449 = vmatprep.subr.mxu0 0.0
        %6450 = vmatpush2.msra.mxu0 0.0
        %6451 = vmatprep.subr.mxu0 0.0
        %6452 = vmatpush2.msra.mxu0 0.0
        %6453 = vmatprep.subr.mxu0 0.0
        %6454 = vmatpush2.msra.mxu0 0.0
        %6455 = vmatprep.subr.mxu0 0.0
        %6456 = vmatpush2.msra.mxu0 0.0
        %6457 = vmatprep.subr.mxu0 0.0
        %6458 = vmatpush2.msra.mxu0 0.0
        %6459 = vmatprep.mubr.f32.mxu0 0.0
        %6460 = vmatmul.mubr.f32.gmra.mxu0 %v5836
        %v6461 = vpop.f32.mrf.mxu0
        %v6462 = vadd.f32 0.0, %v6461
        %v6463 = vpop.f32.mrf.mxu0
        %6464 = vdwg.mxu0
        %6465 = vmatprep.subr.mxu0 0.0
        %6466 = vmatpush1.msra.mxu0 %v5974
        %6467 = vmatprep.subr.mxu0 0.0
        %6468 = vmatpush1.msra.mxu0 %v5973
        %6469 = vmatprep.subr.mxu0 0.0
        %6470 = vmatpush1.msra.mxu0 %v5972
        %6471 = vmatprep.subr.mxu0 0.0
        %6472 = vmatpush1.msra.mxu0 %v5971
        %6473 = vmatprep.subr.mxu0 0.0
        %6474 = vmatpush1.msra.mxu0 %v5970
        %6475 = vmatprep.subr.mxu0 0.0
        %6476 = vmatpush1.msra.mxu0 %v5969
        %6477 = vmatprep.subr.mxu0 0.0
        %6478 = vmatpush1.msra.mxu0 %v5968
        %6479 = vmatprep.subr.mxu0 0.0
        %6480 = vmatpush1.msra.mxu0 %v5967
        %6481 = vmatprep.subr.mxu0 0.0
        %6482 = vmatpush1.msra.mxu0 %v5966
        %6483 = vmatprep.subr.mxu0 0.0
        %6484 = vmatpush1.msra.mxu0 %v5965
        %6485 = vmatprep.subr.mxu0 0.0
        %6486 = vmatpush1.msra.mxu0 %v5964
        %6487 = vmatprep.subr.mxu0 0.0
        %6488 = vmatpush1.msra.mxu0 %v5963
        %6489 = vmatprep.subr.mxu0 0.0
        %6490 = vmatpush1.msra.mxu0 %v5962
        %6491 = vmatprep.subr.mxu0 0.0
        %6492 = vmatpush1.msra.mxu0 %v5961
        %6493 = vmatprep.subr.mxu0 0.0
        %6494 = vmatpush1.msra.mxu0 %v5960
        %6495 = vmatprep.subr.mxu0 0.0
        %6496 = vmatpush1.msra.mxu0 %v5959
        %6497 = vmatprep.subr.mxu0 0.0
        %6498 = vmatpush2.msra.mxu0 0.0
        %6499 = vmatprep.subr.mxu0 0.0
        %6500 = vmatpush2.msra.mxu0 0.0
        %6501 = vmatprep.subr.mxu0 0.0
        %6502 = vmatpush2.msra.mxu0 0.0
        %6503 = vmatprep.subr.mxu0 0.0
        %6504 = vmatpush2.msra.mxu0 0.0
        %6505 = vmatprep.subr.mxu0 0.0
        %6506 = vmatpush2.msra.mxu0 0.0
        %6507 = vmatprep.subr.mxu0 0.0
        %6508 = vmatpush2.msra.mxu0 0.0
        %6509 = vmatprep.subr.mxu0 0.0
        %6510 = vmatpush2.msra.mxu0 0.0
        %6511 = vmatprep.subr.mxu0 0.0
        %6512 = vmatpush2.msra.mxu0 0.0
        %6513 = vmatprep.subr.mxu0 0.0
        %6514 = vmatpush2.msra.mxu0 0.0
        %6515 = vmatprep.subr.mxu0 0.0
        %6516 = vmatpush2.msra.mxu0 0.0
        %6517 = vmatprep.subr.mxu0 0.0
        %6518 = vmatpush2.msra.mxu0 0.0
        %6519 = vmatprep.subr.mxu0 0.0
        %6520 = vmatpush2.msra.mxu0 0.0
        %6521 = vmatprep.subr.mxu0 0.0
        %6522 = vmatpush2.msra.mxu0 0.0
        %6523 = vmatprep.subr.mxu0 0.0
        %6524 = vmatpush2.msra.mxu0 0.0
        %6525 = vmatprep.subr.mxu0 0.0
        %6526 = vmatpush2.msra.mxu0 0.0
        %6527 = vmatprep.subr.mxu0 0.0
        %6528 = vmatpush2.msra.mxu0 0.0
        %6529 = vmatprep.mubr.f32.mxu0 0.0
        %6530 = vmatmul.mubr.f32.gmra.mxu0 %v5838
        %v6531 = vpop.f32.mrf.mxu0
        %v6532 = vadd.f32 0.0, %v6531
        %v6533 = vpop.f32.mrf.mxu0
        %6534 = vdwg.mxu0
        %v6543 = vrot.slane %v6112, 7
        %v6544 = vsel %vm5734, %v6543, %v6042
        %v6545 = vrot.slane %v6182, 6
        %v6546 = vsel %vm5736, %v6545, %v6544
        %v6547 = vrot.slane %v6252, 5
        %v6548 = vsel %vm5738, %v6547, %v6546
        %v6549 = vrot.slane %v6322, 4
        %v6550 = vsel %vm5740, %v6549, %v6548
        %v6551 = vrot.slane %v6392, 3
        %v6552 = vsel %vm5742, %v6551, %v6550
        %v6553 = vrot.slane %v6462, 2
        %v6554 = vsel %vm5744, %v6553, %v6552
        %v6555 = vrot.slane %v6532, 1
        %v6556 = vsel %vm5746, %v6555, %v6554
        %v6558 = vadd.f32 %v5788, %v6556
        %6559 = vst [vmem:[#allocation4] sm:$0xff] %v6558
        %6560 = vst.msk [vmem:[#allocation2] sm:$0xff] %vm5785, %v5753
        %p6561 = scmp.eq.s32.totalorder %s35, 1
        // Predicated region
        $region145: #{tpu_custom_call.1} parent=123 // pred_check
          %p6562 = pneg %p6561
        $region146: #{tpu_custom_call.1} parent=123 // pred_check_branch
          %6564 = sbr.rel (%p6562) target = $region148
        $region147: #{tpu_custom_call.1} parent=123 // pred_region
          %v6565 = vld [vmem:[#allocation3] sm:$0xff]
          %v6566 = vmax.f32 %v6565, 1e-30
          %v6567 = vrcp.pop %v6566
          %v6568 = vld [vmem:[#allocation4] sm:$0xff]
          %6570 = vset.pattern.permute.xlu0 0
          %6571 = vperm.xlu0 %6570, %v6567
          %v6572 = vpop.permute.xlu0 %6571
          %v6574 = vmul.f32 %v6568, %v6572
          %6575 = vst [vmem:[#allocation13] sm:$0xff] %v6574
          %v6576 = vld [vmem:[#allocation14] sm:$0xff]
          %v6577 = vld [vmem:[#allocation14 + $0x8] sm:$0xff]
          %v6578 = vmul.f32 %v6576, %v6572
          %v6579 = vmul.f32 %v6577, %v6572
          %6580 = vst [vmem:[#allocation14] sm:$0xff] %v6578
          %6581 = vst [vmem:[#allocation14 + $0x8] sm:$0xff] %v6579
        $region148: #{tpu_custom_call.1} parent=123 // pred_fallthru
          _
        // Predicated region
        $region149: #{tpu_custom_call.1} parent=123 // pred_check
          %p6582 = pneg %p280
        $region150: #{tpu_custom_call.1} parent=123 // pred_check_branch
          %6584 = sbr.rel (%p6582) target = $region152
        $region151: #{tpu_custom_call.1} parent=123 // pred_region
          %s6586 = ssub.s32 128, 128
          %6587 = vsyncadd [#allocation9], %s6586
          %s6588 = smul.addr %s34, 128
          %s6589 = scalar_lea.hbm %s9, %s6588
          %s6591 = sshll.u32 [#allocation13], 4
          %s6592 = int_to_ptr.vmem [resolvable:$true] %s6591
          %6594 = dma.vmem_to_hbm [thread:$0]  %s6592, 128, %s6589, [#allocation9]
        $region152: #{tpu_custom_call.1} parent=123 // pred_fallthru
          _
        // Predicated region
        $region153: #{tpu_custom_call.1} parent=123 // pred_check
          %p6595 = pneg %p306
        $region154: #{tpu_custom_call.1} parent=123 // pred_check_branch
          %6597 = sbr.rel (%p6595) target = $region156
        $region155: #{tpu_custom_call.1} parent=123 // pred_region
          %s6599 = ssub.s32 256, 256
          %6600 = vsyncadd [#allocation15], %s6599
          %s6601 = smul.addr %s34, 128
          %s6602 = scalar_lea.hbm %s10, %s6601
          %s6603 = sshll.u32 [#allocation14], 4
          %s6604 = int_to_ptr.vmem [resolvable:$true] %s6603
          %6609 = dma.vmem_to_hbm [thread:$0]  %s6604, 256, %s6602, [#allocation15], 128, 128, 8
        $region156: #{tpu_custom_call.1} parent=123 // pred_fallthru
          _
        // Predicated region
        $region157: #{tpu_custom_call.1} parent=123 // pred_check
          %p6610 = pneg %p280
        $region158: #{tpu_custom_call.1} parent=123 // pred_check_branch
          %6612 = sbr.rel (%p6610) target = $region160
        $region159: #{tpu_custom_call.1} parent=123 // pred_region
          %6613 = dma.done [#allocation9], 128
        $region160: #{tpu_custom_call.1} parent=123 // pred_fallthru
          _
        // Predicated region
        $region161: #{tpu_custom_call.1} parent=123 // pred_check
          %p6614 = pneg %p306
        $region162: #{tpu_custom_call.1} parent=123 // pred_check_branch
          %6616 = sbr.rel (%p6614) target = $region164
        $region163: #{tpu_custom_call.1} parent=123 // pred_region
          %6617 = dma.done [#allocation15], 256
        $region164: #{tpu_custom_call.1} parent=123 // pred_fallthru
          _
      $region124: #{tpu_custom_call.1} parent=5 // pred_fallthru
        _
      %p6618 = scmp.le.s32.totalorder 2, %s25
      // Predicated region
      $region165: #{tpu_custom_call.1} parent=5 // pred_check
        %p6619 = pneg %p6618
      $region166: #{tpu_custom_call.1} parent=5 // pred_check_branch
        %6621 = sbr.rel (%p6619) target = $region168
      $region167: #{tpu_custom_call.1} parent=5 // pred_region
        %s6622 = ssub.s32 %s25, 2
      $region168: #{tpu_custom_call.1} parent=5 // pred_fallthru
        _
    $region6: #{tpu_custom_call.1} parent=1 // loop_footer
      %s29 = sadd.s32 1, %s25
    $region7: #{tpu_custom_call.1} parent=1 // loop_footer_branch
      %24 = sbr.rel target = $region3
    $region8: #{tpu_custom_call.1} parent=1 // loop_exit
      _
    %6623 = vsyncpa [#allocation8], 1
    %s6624 = scalar_lea.sflag [#allocation8], 1
    %6625 = vsyncpa %s6624, 1
    %6626 = vsyncpa [#allocation12], 1
    %6627 = vsyncpa [#allocation9], 1
    %s6628 = scalar_lea.sflag [#allocation9], 1
    %6629 = vsyncpa %s6628, 1
    %6630 = vsyncpa [#allocation15], 1

</llo_original>
